<compile_context>
chip_gen: v6e
topology: v6e:2x2x1
jax: 0.10.0
libtpu: 0.0.40
codegen_flags: <defaults>
</compile_context>

<pallas_src>
import functools

import jax
import jax.numpy as jnp
from jax import lax
from jax.experimental import pallas as pl
from jax.experimental.pallas import tpu as pltpu

_VMEM = pl.BlockSpec(memory_space=pltpu.MemorySpace.VMEM)


def _round_up(x, m):
    return ((x + m - 1) // m) * m


# ---------------------------------------------------------------------------
# Fused CVAE forward kernel
# ---------------------------------------------------------------------------
def _cvae_fused_kernel(std,
                       # token / data inputs
                       enc_tok_f_ref, enc_tok_r_ref, dec_tok_ref,
                       conds_ref, eps_ref,
                       # encoder (embedding-folded, gate-grouped) weights
                       m_enc_f_ref, m_enc_b_ref, enc_bias_ref,
                       enc_whh_ref, enc_bhhn_ref,
                       # recognition / prior / heads
                       recog_wh_ref, recog_wc_ref, recog_b_ref,
                       fc_w_ref, fc_b_ref, prior_w_ref, prior_b_ref,
                       heads_w_ref, heads_b_ref,
                       # decoder (embedding-folded) weights
                       m_dec_ref, dec_bias_ref,
                       dwz_ref, dwd_ref, dbh0_ref,
                       dwhh_ref, dec_bhhn_ref, dwout_ref, dbout_ref,
                       # outputs
                       logits_ref, head_ref,
                       # scratch
                       h_scr):
    f32 = jnp.float32
    B = conds_ref.shape[0]
    L = eps_ref.shape[1]
    V = m_enc_f_ref.shape[0]
    GP = dwhh_ref.shape[0]            # 128-lane gate pitch
    GP2 = 2 * GP                      # fwd|bwd concatenated hidden width
    T_enc = enc_tok_f_ref.shape[0] // B
    T_dec = dec_tok_ref.shape[0] // B
    PACK = head_ref.shape[1]

    conds = conds_ref[...]
    eps = eps_ref[...]

    # ---------------- encoder: bulk (embedding+input-proj) matmuls ----------
    oh_f = (lax.broadcasted_iota(jnp.int32, (T_enc * B, V), 1)
            == enc_tok_f_ref[...]).astype(f32)                   # (T*B, V)
    oh_r = (lax.broadcasted_iota(jnp.int32, (T_enc * B, V), 1)
            == enc_tok_r_ref[...]).astype(f32)
    gi_f = jnp.dot(oh_f, m_enc_f_ref[...], preferred_element_type=f32)
    gi_b = jnp.dot(oh_r, m_enc_b_ref[...], preferred_element_type=f32)
    # group gates fwd/bwd: [r_f | r_b | z_f | z_b | n_f | n_b] (128-aligned
    # lane blocks); bias already contains b_ih + b_hh for the r/z gates.
    gi_enc = jnp.concatenate(
        [gi_f[:, :GP], gi_b[:, :GP],
         gi_f[:, GP:2 * GP], gi_b[:, GP:2 * GP],
         gi_f[:, 2 * GP:], gi_b[:, 2 * GP:]], axis=1) + enc_bias_ref[...]

    enc_whh = enc_whh_ref[...]                                   # (2GP, 6GP)
    bhhn_e = jnp.broadcast_to(enc_bhhn_ref[...], (B, GP2))       # hoisted

    # interleaved fwd/bwd recurrence: ONE block-diagonal matmul + shared gate
    # math per step.  Padded lanes of h stay exactly 0 (zero-padded weights
    # and biases => n_pad = tanh(0) = 0, h_pad = 0 + z*(0-0) = 0).
    h_cat = jnp.zeros((B, GP2), f32)                             # [h_f | h_b]
    for t in range(T_enc):
        gh = jnp.dot(h_cat, enc_whh, preferred_element_type=f32)
        gi_t = gi_enc[t * B:(t + 1) * B]
        r = jax.nn.sigmoid(gi_t[:, :GP2] + gh[:, :GP2])
        zg = jax.nn.sigmoid(gi_t[:, GP2:2 * GP2] + gh[:, GP2:2 * GP2])
        n = jnp.tanh(gi_t[:, 2 * GP2:] + r * (gh[:, 2 * GP2:] + bhhn_e))
        h_cat = n + zg * (h_cat - n)

    # ---------------- recognition / prior / sample / heads ------------------
    recog = (jnp.dot(h_cat, recog_wh_ref[...], preferred_element_type=f32)
             + jnp.dot(conds, recog_wc_ref[...], preferred_element_type=f32)
             + recog_b_ref[...])                                  # (B, 2L)
    prior_fc = jnp.tanh(jnp.dot(conds, fc_w_ref[...],
                                preferred_element_type=f32) + fc_b_ref[...])
    prior = (jnp.dot(prior_fc, prior_w_ref[...],
                     preferred_element_type=f32) + prior_b_ref[...])
    recog_mu = recog[:, :L]
    recog_lv = recog[:, L:]
    # use_prior=False path: z = mu + exp(0.5*logvar) * (std * eps)
    z = recog_mu + jnp.exp(0.5 * recog_lv) * (eps * std)
    heads = (jnp.dot(z, heads_w_ref[...], preferred_element_type=f32)
             + heads_b_ref[...])                                  # (B, do+da+sv)

    used = recog.shape[1] + prior.shape[1] + z.shape[1] + heads.shape[1]
    pieces = [recog, prior, z, heads]
    if PACK > used:
        pieces.append(jnp.zeros((B, PACK - used), f32))
    head_ref[...] = jnp.concatenate(pieces, axis=1)   # one lane-dense store

    # ---------------- decoder -----------------------------------------------
    oh_d = (lax.broadcasted_iota(jnp.int32, (T_dec * B, V), 1)
            == dec_tok_ref[...]).astype(f32)
    gi_d = (jnp.dot(oh_d, m_dec_ref[...], preferred_element_type=f32)
            + dec_bias_ref[...])                                  # (T*B, 3GP)

    dwhh = dwhh_ref[...]
    bhhn_d = jnp.broadcast_to(dec_bhhn_ref[...], (B, GP))

    # hidden init from (z, conds); padded lanes are tanh(0) = 0
    h = jnp.tanh(jnp.dot(z, dwz_ref[...], preferred_element_type=f32)
                 + jnp.dot(conds, dwd_ref[...], preferred_element_type=f32)
                 + dbh0_ref[...])                                 # (B, GP)

    for t in range(T_dec):
        gh = jnp.dot(h, dwhh, preferred_element_type=f32)
        gi_t = gi_d[t * B:(t + 1) * B]
        r = jax.nn.sigmoid(gi_t[:, :GP] + gh[:, :GP])
        zg = jax.nn.sigmoid(gi_t[:, GP:2 * GP] + gh[:, GP:2 * GP])
        n = jnp.tanh(gi_t[:, 2 * GP:] + r * (gh[:, 2 * GP:] + bhhn_d))
        h = n + zg * (h - n)
        # ONE contiguous time-major store per step (no per-row masked stores)
        h_scr[t * B:(t + 1) * B, :] = h

    # bulk lane-dense vocab projection: (T*B, GP) @ (GP, 128) + full-lane store
    logits_ref[...] = (jnp.dot(h_scr[...], dwout_ref[...],
                               preferred_element_type=f32) + dbout_ref[...])


# ---------------------------------------------------------------------------
# Forward wrapper: single fused pallas_call.
# ---------------------------------------------------------------------------
@functools.partial(jax.jit, static_argnames=("std", "head_sizes"))
def cvae_forward(params, input_seq, input_lengths, target_seq, target_lengths,
                 conds_seq, eps, std=1.0, head_sizes=(4, 8, 10)):
    # TODO(synk): input_lengths / target_lengths masking not implemented.
    del input_lengths, target_lengths
    B, T_enc = input_seq.shape
    _, T_dec = target_seq.shape
    L = eps.shape[1]
    V = params["m_enc_f"].shape[0]
    GP = params["dec_whh"].shape[0]
    VP = params["dec_wout"].shape[1]
    n_do, n_da, n_sv = head_sizes
    PACK = _round_up(5 * L + n_do + n_da + n_sv, 128)

    # token ids, time-major flattened (row = t*B + b); the backward direction
    # gets a time-reversed copy so every recurrence step reads one contiguous
    # row block of the bulk gate-input projection.
    enc_tok_f = jnp.transpose(input_seq, (1, 0)).reshape(T_enc * B, 1).astype(jnp.int32)
    enc_tok_r = jnp.transpose(jnp.flip(input_seq, axis=1),
                              (1, 0)).reshape(T_enc * B, 1).astype(jnp.int32)
    dec_tok = jnp.transpose(target_seq, (1, 0)).reshape(T_dec * B, 1).astype(jnp.int32)

    operands = (
        enc_tok_f, enc_tok_r, dec_tok,
        conds_seq.astype(jnp.float32), eps.astype(jnp.float32),
        params["m_enc_f"], params["m_enc_b"], params["enc_bias"],
        params["enc_whh"], params["enc_bhh_n"],
        params["recog_wh"], params["recog_wc"], params["recog_b"],
        params["fc_w"], params["fc_b"], params["prior_w"], params["prior_b"],
        params["heads_w"], params["heads_b"],
        params["m_dec"], params["dec_bias"],
        params["dec_wz"], params["dec_wd"], params["dec_bh0"],
        params["dec_whh"], params["dec_bhh_n"],
        params["dec_wout"], params["dec_bout"],
    )

    logits_tm, head = pl.pallas_call(
        functools.partial(_cvae_fused_kernel, float(std)),
        out_shape=(jax.ShapeDtypeStruct((T_dec * B, VP), jnp.float32),
                   jax.ShapeDtypeStruct((B, PACK), jnp.float32)),
        in_specs=[_VMEM] * len(operands),
        out_specs=(_VMEM, _VMEM),
        scratch_shapes=[pltpu.VMEM((T_dec * B, GP), jnp.float32)],
    )(*operands)

    # lane-dense time-major (T*B, 128) -> (B, T, V); tiny, fused under jit.
    logits = jnp.transpose(logits_tm.reshape(T_dec, B, VP)[:, :, :V], (1, 0, 2))
    decoded = jnp.argmax(logits, axis=-1).astype(jnp.int32)

    h_off = 5 * L
    aux = dict(
        recog_mu=head[:, 0:L],
        recog_logvar=head[:, L:2 * L],
        prior_mu=head[:, 2 * L:3 * L],
        prior_logvar=head[:, 3 * L:4 * L],
        z=head[:, 4 * L:5 * L],
        do_output=head[:, h_off:h_off + n_do],
        da_output=head[:, h_off + n_do:h_off + n_do + n_da],
        sv_output=head[:, h_off + n_do + n_da:h_off + n_do + n_da + n_sv],
    )
    return logits, decoded, aux


# ---------------------------------------------------------------------------
# Logical (PyTorch-layout, transposed to (in, out)) parameters, plus a
# one-time packing pass: fold embeddings into the input projections, fold
# b_hh(r,z) into the input biases, build the grouped block-diagonal encoder
# hidden weight, and pad everything to 128-lane pitch.
# ---------------------------------------------------------------------------
def init_params(key, vocab_size, hidden_size, latent_size, d_size, da_size, sv_size):
    ks = iter(jax.random.split(key, 40))

    def w(shape, scale=0.1):
        return (scale * jax.random.normal(next(ks), shape)).astype(jnp.float32)

    H, L, D, V = hidden_size, latent_size, d_size, vocab_size
    return {
        # Encoder: embedding + bidirectional GRU (1 layer)
        "enc_emb": w((V, H)),
        "enc_wih_f": w((H, 3 * H)), "enc_whh_f": w((H, 3 * H)),
        "enc_bih_f": w((1, 3 * H)), "enc_bhh_f": w((1, 3 * H)),
        "enc_wih_b": w((H, 3 * H)), "enc_whh_b": w((H, 3 * H)),
        "enc_bih_b": w((1, 3 * H)), "enc_bhh_b": w((1, 3 * H)),
        # recog: Linear(2H + D -> 2L)
        "recog_w": w((2 * H + D, 2 * L)), "recog_b": w((1, 2 * L)),
        # fc: Linear(D -> 2L), prior: Linear(2L -> 2L)
        "fc_w": w((D, 2 * L)), "fc_b": w((1, 2 * L)),
        "prior_w": w((2 * L, 2 * L)), "prior_b": w((1, 2 * L)),
        # prediction heads
        "pred_do_w": w((L, 4)), "pred_do_b": w((1, 4)),
        "pred_da_w": w((L, da_size)), "pred_da_b": w((1, da_size)),
        "pred_sv_w": w((L, sv_size)), "pred_sv_b": w((1, sv_size)),
        # Decoder: embedding + conditioned GRU + vocab projection
        "dec_emb": w((V, H)),
        "dec_wz": w((L, H)), "dec_wd": w((D, H)), "dec_bh0": w((1, H)),
        "dec_wih": w((H, 3 * H)), "dec_whh": w((H, 3 * H)),
        "dec_bih": w((1, 3 * H)), "dec_bhh": w((1, 3 * H)),
        "dec_wout": w((H, V)), "dec_bout": w((1, V)),
    }


def pack_params(raw):
    f32 = jnp.float32
    H = raw["enc_whh_f"].shape[0]
    GP = _round_up(H, 128)
    VP = _round_up(raw["dec_wout"].shape[1], 128)
    hi = jax.lax.Precision.HIGHEST

    def pad_c(x, n):
        return jnp.pad(x, ((0, 0), (0, n - x.shape[1])))

    def pad_r(x, n):
        return jnp.pad(x, ((0, n - x.shape[0]), (0, 0)))

    def gate(w, g):                    # (in, 3H), PyTorch gate order r|z|n
        return w[:, g * H:(g + 1) * H]

    def fuse_emb(emb, wih):            # fold embedding into input projection
        return jnp.concatenate(
            [pad_c(jnp.dot(emb, gate(wih, g), precision=hi), GP)
             for g in range(3)], axis=1)

    def pad_gates_c(w):
        return jnp.concatenate([pad_c(gate(w, g), GP) for g in range(3)], axis=1)

    # encoder: grouped gate layout [r_f | r_b | z_f | z_b | n_f | n_b]
    enc_bias = jnp.concatenate([
        pad_c(gate(raw["enc_bih_f"], 0) + gate(raw["enc_bhh_f"], 0), GP),
        pad_c(gate(raw["enc_bih_b"], 0) + gate(raw["enc_bhh_b"], 0), GP),
        pad_c(gate(raw["enc_bih_f"], 1) + gate(raw["enc_bhh_f"], 1), GP),
        pad_c(gate(raw["enc_bih_b"], 1) + gate(raw["enc_bhh_b"], 1), GP),
        pad_c(gate(raw["enc_bih_f"], 2), GP),
        pad_c(gate(raw["enc_bih_b"], 2), GP),
    ], axis=1)
    enc_bhh_n = jnp.concatenate([pad_c(gate(raw["enc_bhh_f"], 2), GP),
                                 pad_c(gate(raw["enc_bhh_b"], 2), GP)], axis=1)

    enc_whh = jnp.zeros((2 * GP, 6 * GP), f32)
    for g in range(3):
        enc_whh = enc_whh.at[:H, (2 * g) * GP:(2 * g) * GP + H].set(
            gate(raw["enc_whh_f"], g))
        enc_whh = enc_whh.at[GP:GP + H, (2 * g + 1) * GP:(2 * g + 1) * GP + H].set(
            gate(raw["enc_whh_b"], g))

    recog_w = raw["recog_w"]
    recog_wh = jnp.zeros((2 * GP, recog_w.shape[1]), f32)
    recog_wh = recog_wh.at[:H].set(recog_w[:H])
    recog_wh = recog_wh.at[GP:GP + H].set(recog_w[H:2 * H])

    return {
        "m_enc_f": fuse_emb(raw["enc_emb"], raw["enc_wih_f"]),
        "m_enc_b": fuse_emb(raw["enc_emb"], raw["enc_wih_b"]),
        "enc_bias": enc_bias,
        "enc_whh": enc_whh,
        "enc_bhh_n": enc_bhh_n,
        "recog_wh": recog_wh,
        "recog_wc": recog_w[2 * H:],
        "recog_b": raw["recog_b"],
        "fc_w": raw["fc_w"], "fc_b": raw["fc_b"],
        "prior_w": raw["prior_w"], "prior_b": raw["prior_b"],
        "heads_w": jnp.concatenate(
            [raw["pred_do_w"], raw["pred_da_w"], raw["pred_sv_w"]], axis=1),
        "heads_b": jnp.concatenate(
            [raw["pred_do_b"], raw["pred_da_b"], raw["pred_sv_b"]], axis=1),
        "m_dec": fuse_emb(raw["dec_emb"], raw["dec_wih"]),
        "dec_bias": jnp.concatenate([
            pad_c(gate(raw["dec_bih"], 0) + gate(raw["dec_bhh"], 0), GP),
            pad_c(gate(raw["dec_bih"], 1) + gate(raw["dec_bhh"], 1), GP),
            pad_c(gate(raw["dec_bih"], 2), GP)], axis=1),
        "dec_wz": pad_c(raw["dec_wz"], GP),
        "dec_wd": pad_c(raw["dec_wd"], GP),
        "dec_bh0": pad_c(raw["dec_bh0"], GP),
        "dec_whh": pad_r(pad_gates_c(raw["dec_whh"]), GP),
        "dec_bhh_n": pad_c(gate(raw["dec_bhh"], 2), GP),
        "dec_wout": pad_r(pad_c(raw["dec_wout"], VP), GP),
        "dec_bout": pad_c(raw["dec_bout"], VP),
    }


# ---------------------------------------------------------------------------
# Pure-JAX reference of the same forward (unpadded, PyTorch layout) for a
# numerical check of the fused kernel.
# ---------------------------------------------------------------------------
def _gru_cell_ref(x, h, wih, whh, bih, bhh, H):
    gi = x @ wih + bih
    gh = h @ whh + bhh
    r = jax.nn.sigmoid(gi[:, :H] + gh[:, :H])
    z = jax.nn.sigmoid(gi[:, H:2 * H] + gh[:, H:2 * H])
    n = jnp.tanh(gi[:, 2 * H:] + r * gh[:, 2 * H:])
    return (1.0 - z) * n + z * h


def cvae_forward_ref(raw, input_seq, target_seq, conds, eps, std, head_sizes):
    del head_sizes
    H = raw["enc_whh_f"].shape[0]
    L = eps.shape[1]
    B, T_enc = input_seq.shape
    T_dec = target_seq.shape[1]
    x = raw["enc_emb"][input_seq]                       # (B, T, H)
    h_f = jnp.zeros((B, H), jnp.float32)
    h_b = jnp.zeros((B, H), jnp.float32)
    for t in range(T_enc):
        h_f = _gru_cell_ref(x[:, t], h_f, raw["enc_wih_f"], raw["enc_whh_f"],
                            raw["enc_bih_f"], raw["enc_bhh_f"], H)
        h_b = _gru_cell_ref(x[:, T_enc - 1 - t], h_b, raw["enc_wih_b"],
                            raw["enc_whh_b"], raw["enc_bih_b"], raw["enc_bhh_b"], H)
    enc_hidden = jnp.concatenate([h_f, h_b], axis=1)
    recog = jnp.concatenate([enc_hidden, conds], axis=1) @ raw["recog_w"] + raw["recog_b"]
    recog_mu, recog_lv = recog[:, :L], recog[:, L:]
    prior_fc = jnp.tanh(conds @ raw["fc_w"] + raw["fc_b"])
    prior = prior_fc @ raw["prior_w"] + raw["prior_b"]
    prior_mu, prior_lv = prior[:, :L], prior[:, L:]
    z = recog_mu + jnp.exp(0.5 * recog_lv) * (eps * std)
    do_out = z @ raw["pred_do_w"] + raw["pred_do_b"]
    da_out = z @ raw["pred_da_w"] + raw["pred_da_b"]
    sv_out = z @ raw["pred_sv_w"] + raw["pred_sv_b"]
    y = raw["dec_emb"][target_seq]
    h = jnp.tanh(z @ raw["dec_wz"] + conds @ raw["dec_wd"] + raw["dec_bh0"])
    logits = []
    for t in range(T_dec):
        h = _gru_cell_ref(y[:, t], h, raw["dec_wih"], raw["dec_whh"],
                          raw["dec_bih"], raw["dec_bhh"], H)
        logits.append(h @ raw["dec_wout"] + raw["dec_bout"])
    logits = jnp.stack(logits, axis=1)
    decoded = jnp.argmax(logits, axis=-1).astype(jnp.int32)
    aux = dict(recog_mu=recog_mu, recog_logvar=recog_lv,
               prior_mu=prior_mu, prior_logvar=prior_lv, z=z,
               do_output=do_out, da_output=da_out, sv_output=sv_out)
    return logits, decoded, aux


if __name__ == "__main__":
    B, T_enc, T_dec = 2, 8, 8
    vocab_size, hidden_size, latent_size = 32, 32, 16
    d_size, da_size, sv_size = 16, 8, 10
    std = 1.0

    key = jax.random.PRNGKey(0)
    kp, ki, kt, kc, ke = jax.random.split(key, 5)
    raw_params = init_params(kp, vocab_size, hidden_size, latent_size,
                             d_size, da_size, sv_size)
    params = pack_params(raw_params)

    input_seq = jax.random.randint(ki, (B, T_enc), 0, vocab_size, dtype=jnp.int32)
    target_seq = jax.random.randint(kt, (B, T_dec), 0, vocab_size, dtype=jnp.int32)
    input_lengths = jnp.full((B,), T_enc, jnp.int32)
    target_lengths = jnp.full((B,), T_dec, jnp.int32)
    conds_seq = jax.random.normal(kc, (B, d_size), dtype=jnp.float32)
    eps = jax.random.normal(ke, (B, latent_size), dtype=jnp.float32)

    output_all, decoded_words, aux = cvae_forward(
        params, input_seq, input_lengths, target_seq, target_lengths,
        conds_seq, eps, std=std, head_sizes=(4, da_size, sv_size))
    jax.block_until_ready((output_all, decoded_words, aux))

    assert output_all.shape == (B, T_dec, vocab_size)
    assert decoded_words.shape == (B, T_dec)
    assert int(jnp.max(decoded_words)) < vocab_size
    assert aux["z"].shape == (B, latent_size)
    assert aux["recog_mu"].shape == (B, latent_size)
    assert aux["prior_logvar"].shape == (B, latent_size)
    assert aux["do_output"].shape == (B, 4)
    assert aux["da_output"].shape == (B, da_size)
    assert aux["sv_output"].shape == (B, sv_size)

    # numerical check against the pure-JAX reference of the same forward
    with jax.default_matmul_precision("float32"):
        ref_logits, _, ref_aux = cvae_forward_ref(
            raw_params, input_seq, target_seq, conds_seq, eps, std,
            (4, da_size, sv_size))
    assert jnp.allclose(output_all, ref_logits, rtol=2e-2, atol=2e-2), (
        "logits mismatch, max abs err "
        + str(float(jnp.max(jnp.abs(output_all - ref_logits)))))
    for k in ("recog_mu", "recog_logvar", "prior_mu", "prior_logvar", "z",
              "do_output", "da_output", "sv_output"):
        assert jnp.allclose(aux[k], ref_aux[k], rtol=2e-2, atol=2e-2), k

    print("KERNEL_OK")
</pallas_src>

<mosaic_0001>
module attributes {stable_mosaic.version = 11 : i64} {
  func.func @_cvae_fused_kernel(%arg0: memref<16x1xi32, #tpu.memory_space<vmem>>, %arg1: memref<16x1xi32, #tpu.memory_space<vmem>>, %arg2: memref<16x1xi32, #tpu.memory_space<vmem>>, %arg3: memref<2x16xf32, #tpu.memory_space<vmem>>, %arg4: memref<2x16xf32, #tpu.memory_space<vmem>>, %arg5: memref<32x384xf32, #tpu.memory_space<vmem>>, %arg6: memref<32x384xf32, #tpu.memory_space<vmem>>, %arg7: memref<1x768xf32, #tpu.memory_space<vmem>>, %arg8: memref<256x768xf32, #tpu.memory_space<vmem>>, %arg9: memref<1x256xf32, #tpu.memory_space<vmem>>, %arg10: memref<256x32xf32, #tpu.memory_space<vmem>>, %arg11: memref<16x32xf32, #tpu.memory_space<vmem>>, %arg12: memref<1x32xf32, #tpu.memory_space<vmem>>, %arg13: memref<16x32xf32, #tpu.memory_space<vmem>>, %arg14: memref<1x32xf32, #tpu.memory_space<vmem>>, %arg15: memref<32x32xf32, #tpu.memory_space<vmem>>, %arg16: memref<1x32xf32, #tpu.memory_space<vmem>>, %arg17: memref<16x22xf32, #tpu.memory_space<vmem>>, %arg18: memref<1x22xf32, #tpu.memory_space<vmem>>, %arg19: memref<32x384xf32, #tpu.memory_space<vmem>>, %arg20: memref<1x384xf32, #tpu.memory_space<vmem>>, %arg21: memref<16x128xf32, #tpu.memory_space<vmem>>, %arg22: memref<16x128xf32, #tpu.memory_space<vmem>>, %arg23: memref<1x128xf32, #tpu.memory_space<vmem>>, %arg24: memref<128x384xf32, #tpu.memory_space<vmem>>, %arg25: memref<1x128xf32, #tpu.memory_space<vmem>>, %arg26: memref<128x128xf32, #tpu.memory_space<vmem>>, %arg27: memref<1x128xf32, #tpu.memory_space<vmem>>, %arg28: memref<16x128xf32, #tpu.memory_space<vmem>>, %arg29: memref<2x128xf32, #tpu.memory_space<vmem>>, %arg30: memref<16x128xf32, #tpu.memory_space<vmem>>) attributes {dimension_semantics = [], scalar_prefetch = 0 : i64, scratch_operands = 1 : i64, tpu.core_type = #tpu.core_type<tc>} {
    %c0 = arith.constant 0 : index
    %c0_0 = arith.constant 0 : index
    %0 = vector.load %arg3[%c0, %c0_0] : memref<2x16xf32, #tpu.memory_space<vmem>>, vector<2x16xf32>
    %c0_1 = arith.constant 0 : index
    %c0_2 = arith.constant 0 : index
    %1 = vector.load %arg4[%c0_1, %c0_2] : memref<2x16xf32, #tpu.memory_space<vmem>>, vector<2x16xf32>
    %2 = tpu.iota {dimensions = array<i32: 1>} : vector<16x32xi32>
    %c0_3 = arith.constant 0 : index
    %c0_4 = arith.constant 0 : index
    %3 = vector.load %arg0[%c0_3, %c0_4] : memref<16x1xi32, #tpu.memory_space<vmem>>, vector<16x1xi32>
    %4 = vector.broadcast %3 : vector<16x1xi32> to vector<16x32xi32>
    %5 = arith.cmpi eq, %2, %4 : vector<16x32xi32>
    %6 = arith.extui %5 : vector<16x32xi1> to vector<16x32xi32>
    %7 = arith.sitofp %6 : vector<16x32xi32> to vector<16x32xf32>
    %8 = tpu.iota {dimensions = array<i32: 1>} : vector<16x32xi32>
    %c0_5 = arith.constant 0 : index
    %c0_6 = arith.constant 0 : index
    %9 = vector.load %arg1[%c0_5, %c0_6] : memref<16x1xi32, #tpu.memory_space<vmem>>, vector<16x1xi32>
    %10 = vector.broadcast %9 : vector<16x1xi32> to vector<16x32xi32>
    %11 = arith.cmpi eq, %8, %10 : vector<16x32xi32>
    %12 = arith.extui %11 : vector<16x32xi1> to vector<16x32xi32>
    %13 = arith.sitofp %12 : vector<16x32xi32> to vector<16x32xf32>
    %c0_7 = arith.constant 0 : index
    %c0_8 = arith.constant 0 : index
    %14 = vector.load %arg5[%c0_7, %c0_8] : memref<32x384xf32, #tpu.memory_space<vmem>>, vector<32x384xf32>
    %cst = arith.constant dense<0.000000e+00> : vector<16x384xf32>
    %15 = tpu.matmul %7, %14, %cst {dimension_numbers = #tpu.dot_dimension_numbers<[1], [0], [0], [1], [0, 0, 1, 1], [], []>} : vector<16x32xf32>, vector<32x384xf32>, vector<16x384xf32> -> vector<16x384xf32>
    %c0_9 = arith.constant 0 : index
    %c0_10 = arith.constant 0 : index
    %16 = vector.load %arg6[%c0_9, %c0_10] : memref<32x384xf32, #tpu.memory_space<vmem>>, vector<32x384xf32>
    %cst_11 = arith.constant dense<0.000000e+00> : vector<16x384xf32>
    %17 = tpu.matmul %13, %16, %cst_11 {dimension_numbers = #tpu.dot_dimension_numbers<[1], [0], [0], [1], [0, 0, 1, 1], [], []>} : vector<16x32xf32>, vector<32x384xf32>, vector<16x384xf32> -> vector<16x384xf32>
    %18 = vector.extract_strided_slice %15 {offsets = [0, 0], sizes = [16, 128], strides = [1, 1]} : vector<16x384xf32> to vector<16x128xf32>
    %19 = vector.extract_strided_slice %17 {offsets = [0, 0], sizes = [16, 128], strides = [1, 1]} : vector<16x384xf32> to vector<16x128xf32>
    %20 = vector.extract_strided_slice %15 {offsets = [0, 128], sizes = [16, 128], strides = [1, 1]} : vector<16x384xf32> to vector<16x128xf32>
    %21 = vector.extract_strided_slice %17 {offsets = [0, 128], sizes = [16, 128], strides = [1, 1]} : vector<16x384xf32> to vector<16x128xf32>
    %22 = vector.extract_strided_slice %15 {offsets = [0, 256], sizes = [16, 128], strides = [1, 1]} : vector<16x384xf32> to vector<16x128xf32>
    %23 = vector.extract_strided_slice %17 {offsets = [0, 256], sizes = [16, 128], strides = [1, 1]} : vector<16x384xf32> to vector<16x128xf32>
    %24 = tpu.concatenate %18, %19, %20, %21, %22, %23 in 1 : vector<16x128xf32>, vector<16x128xf32>, vector<16x128xf32>, vector<16x128xf32>, vector<16x128xf32>, vector<16x128xf32> -> vector<16x768xf32>
    %c0_12 = arith.constant 0 : index
    %c0_13 = arith.constant 0 : index
    %25 = vector.load %arg7[%c0_12, %c0_13] : memref<1x768xf32, #tpu.memory_space<vmem>>, vector<1x768xf32>
    %26 = vector.broadcast %25 : vector<1x768xf32> to vector<16x768xf32>
    %27 = arith.addf %24, %26 : vector<16x768xf32>
    %c0_14 = arith.constant 0 : index
    %c0_15 = arith.constant 0 : index
    %28 = vector.load %arg8[%c0_14, %c0_15] : memref<256x768xf32, #tpu.memory_space<vmem>>, vector<256x768xf32>
    %c0_16 = arith.constant 0 : index
    %c0_17 = arith.constant 0 : index
    %29 = vector.load %arg9[%c0_16, %c0_17] : memref<1x256xf32, #tpu.memory_space<vmem>>, vector<1x256xf32>
    %30 = vector.shape_cast %29 : vector<1x256xf32> to vector<1x256xf32>
    %31 = vector.broadcast %30 : vector<1x256xf32> to vector<2x256xf32>
    %cst_18 = arith.constant 0.000000e+00 : f32
    %32 = vector.broadcast %cst_18 : f32 to vector<2x256xf32>
    %cst_19 = arith.constant dense<0.000000e+00> : vector<2x768xf32>
    %33 = tpu.matmul %32, %28, %cst_19 {dimension_numbers = #tpu.dot_dimension_numbers<[1], [0], [0], [1], [0, 0, 1, 1], [], []>} : vector<2x256xf32>, vector<256x768xf32>, vector<2x768xf32> -> vector<2x768xf32>
    %34 = vector.extract_strided_slice %27 {offsets = [0, 0], sizes = [2, 768], strides = [1, 1]} : vector<16x768xf32> to vector<2x768xf32>
    %35 = vector.extract_strided_slice %34 {offsets = [0, 0], sizes = [2, 256], strides = [1, 1]} : vector<2x768xf32> to vector<2x256xf32>
    %36 = vector.extract_strided_slice %33 {offsets = [0, 0], sizes = [2, 256], strides = [1, 1]} : vector<2x768xf32> to vector<2x256xf32>
    %37 = arith.addf %35, %36 : vector<2x256xf32>
    %38 = arith.negf %37 : vector<2x256xf32>
    %39 = math.exp %38 : vector<2x256xf32>
    %cst_20 = arith.constant 1.000000e+00 : f32
    %40 = vector.broadcast %cst_20 : f32 to vector<2x256xf32>
    %41 = arith.addf %40, %39 : vector<2x256xf32>
    %42 = arith.divf %40, %41 : vector<2x256xf32>
    %43 = vector.extract_strided_slice %34 {offsets = [0, 256], sizes = [2, 256], strides = [1, 1]} : vector<2x768xf32> to vector<2x256xf32>
    %44 = vector.extract_strided_slice %33 {offsets = [0, 256], sizes = [2, 256], strides = [1, 1]} : vector<2x768xf32> to vector<2x256xf32>
    %45 = arith.addf %43, %44 : vector<2x256xf32>
    %46 = arith.negf %45 : vector<2x256xf32>
    %47 = math.exp %46 : vector<2x256xf32>
    %cst_21 = arith.constant 1.000000e+00 : f32
    %48 = vector.broadcast %cst_21 : f32 to vector<2x256xf32>
    %49 = arith.addf %48, %47 : vector<2x256xf32>
    %50 = arith.divf %48, %49 : vector<2x256xf32>
    %51 = vector.extract_strided_slice %34 {offsets = [0, 512], sizes = [2, 256], strides = [1, 1]} : vector<2x768xf32> to vector<2x256xf32>
    %52 = vector.extract_strided_slice %33 {offsets = [0, 512], sizes = [2, 256], strides = [1, 1]} : vector<2x768xf32> to vector<2x256xf32>
    %53 = arith.addf %52, %31 : vector<2x256xf32>
    %54 = arith.mulf %42, %53 : vector<2x256xf32>
    %55 = arith.addf %51, %54 : vector<2x256xf32>
    %56 = math.tanh %55 : vector<2x256xf32>
    %57 = arith.subf %32, %56 : vector<2x256xf32>
    %58 = arith.mulf %50, %57 : vector<2x256xf32>
    %59 = arith.addf %56, %58 : vector<2x256xf32>
    %cst_22 = arith.constant dense<0.000000e+00> : vector<2x768xf32>
    %60 = tpu.matmul %59, %28, %cst_22 {dimension_numbers = #tpu.dot_dimension_numbers<[1], [0], [0], [1], [0, 0, 1, 1], [], []>} : vector<2x256xf32>, vector<256x768xf32>, vector<2x768xf32> -> vector<2x768xf32>
    %61 = vector.extract_strided_slice %27 {offsets = [2, 0], sizes = [2, 768], strides = [1, 1]} : vector<16x768xf32> to vector<2x768xf32>
    %62 = vector.extract_strided_slice %61 {offsets = [0, 0], sizes = [2, 256], strides = [1, 1]} : vector<2x768xf32> to vector<2x256xf32>
    %63 = vector.extract_strided_slice %60 {offsets = [0, 0], sizes = [2, 256], strides = [1, 1]} : vector<2x768xf32> to vector<2x256xf32>
    %64 = arith.addf %62, %63 : vector<2x256xf32>
    %65 = arith.negf %64 : vector<2x256xf32>
    %66 = math.exp %65 : vector<2x256xf32>
    %cst_23 = arith.constant 1.000000e+00 : f32
    %67 = vector.broadcast %cst_23 : f32 to vector<2x256xf32>
    %68 = arith.addf %67, %66 : vector<2x256xf32>
    %69 = arith.divf %67, %68 : vector<2x256xf32>
    %70 = vector.extract_strided_slice %61 {offsets = [0, 256], sizes = [2, 256], strides = [1, 1]} : vector<2x768xf32> to vector<2x256xf32>
    %71 = vector.extract_strided_slice %60 {offsets = [0, 256], sizes = [2, 256], strides = [1, 1]} : vector<2x768xf32> to vector<2x256xf32>
    %72 = arith.addf %70, %71 : vector<2x256xf32>
    %73 = arith.negf %72 : vector<2x256xf32>
    %74 = math.exp %73 : vector<2x256xf32>
    %cst_24 = arith.constant 1.000000e+00 : f32
    %75 = vector.broadcast %cst_24 : f32 to vector<2x256xf32>
    %76 = arith.addf %75, %74 : vector<2x256xf32>
    %77 = arith.divf %75, %76 : vector<2x256xf32>
    %78 = vector.extract_strided_slice %61 {offsets = [0, 512], sizes = [2, 256], strides = [1, 1]} : vector<2x768xf32> to vector<2x256xf32>
    %79 = vector.extract_strided_slice %60 {offsets = [0, 512], sizes = [2, 256], strides = [1, 1]} : vector<2x768xf32> to vector<2x256xf32>
    %80 = arith.addf %79, %31 : vector<2x256xf32>
    %81 = arith.mulf %69, %80 : vector<2x256xf32>
    %82 = arith.addf %78, %81 : vector<2x256xf32>
    %83 = math.tanh %82 : vector<2x256xf32>
    %84 = arith.subf %59, %83 : vector<2x256xf32>
    %85 = arith.mulf %77, %84 : vector<2x256xf32>
    %86 = arith.addf %83, %85 : vector<2x256xf32>
    %cst_25 = arith.constant dense<0.000000e+00> : vector<2x768xf32>
    %87 = tpu.matmul %86, %28, %cst_25 {dimension_numbers = #tpu.dot_dimension_numbers<[1], [0], [0], [1], [0, 0, 1, 1], [], []>} : vector<2x256xf32>, vector<256x768xf32>, vector<2x768xf32> -> vector<2x768xf32>
    %88 = vector.extract_strided_slice %27 {offsets = [4, 0], sizes = [2, 768], strides = [1, 1]} : vector<16x768xf32> to vector<2x768xf32>
    %89 = vector.extract_strided_slice %88 {offsets = [0, 0], sizes = [2, 256], strides = [1, 1]} : vector<2x768xf32> to vector<2x256xf32>
    %90 = vector.extract_strided_slice %87 {offsets = [0, 0], sizes = [2, 256], strides = [1, 1]} : vector<2x768xf32> to vector<2x256xf32>
    %91 = arith.addf %89, %90 : vector<2x256xf32>
    %92 = arith.negf %91 : vector<2x256xf32>
    %93 = math.exp %92 : vector<2x256xf32>
    %cst_26 = arith.constant 1.000000e+00 : f32
    %94 = vector.broadcast %cst_26 : f32 to vector<2x256xf32>
    %95 = arith.addf %94, %93 : vector<2x256xf32>
    %96 = arith.divf %94, %95 : vector<2x256xf32>
    %97 = vector.extract_strided_slice %88 {offsets = [0, 256], sizes = [2, 256], strides = [1, 1]} : vector<2x768xf32> to vector<2x256xf32>
    %98 = vector.extract_strided_slice %87 {offsets = [0, 256], sizes = [2, 256], strides = [1, 1]} : vector<2x768xf32> to vector<2x256xf32>
    %99 = arith.addf %97, %98 : vector<2x256xf32>
    %100 = arith.negf %99 : vector<2x256xf32>
    %101 = math.exp %100 : vector<2x256xf32>
    %cst_27 = arith.constant 1.000000e+00 : f32
    %102 = vector.broadcast %cst_27 : f32 to vector<2x256xf32>
    %103 = arith.addf %102, %101 : vector<2x256xf32>
    %104 = arith.divf %102, %103 : vector<2x256xf32>
    %105 = vector.extract_strided_slice %88 {offsets = [0, 512], sizes = [2, 256], strides = [1, 1]} : vector<2x768xf32> to vector<2x256xf32>
    %106 = vector.extract_strided_slice %87 {offsets = [0, 512], sizes = [2, 256], strides = [1, 1]} : vector<2x768xf32> to vector<2x256xf32>
    %107 = arith.addf %106, %31 : vector<2x256xf32>
    %108 = arith.mulf %96, %107 : vector<2x256xf32>
    %109 = arith.addf %105, %108 : vector<2x256xf32>
    %110 = math.tanh %109 : vector<2x256xf32>
    %111 = arith.subf %86, %110 : vector<2x256xf32>
    %112 = arith.mulf %104, %111 : vector<2x256xf32>
    %113 = arith.addf %110, %112 : vector<2x256xf32>
    %cst_28 = arith.constant dense<0.000000e+00> : vector<2x768xf32>
    %114 = tpu.matmul %113, %28, %cst_28 {dimension_numbers = #tpu.dot_dimension_numbers<[1], [0], [0], [1], [0, 0, 1, 1], [], []>} : vector<2x256xf32>, vector<256x768xf32>, vector<2x768xf32> -> vector<2x768xf32>
    %115 = vector.extract_strided_slice %27 {offsets = [6, 0], sizes = [2, 768], strides = [1, 1]} : vector<16x768xf32> to vector<2x768xf32>
    %116 = vector.extract_strided_slice %115 {offsets = [0, 0], sizes = [2, 256], strides = [1, 1]} : vector<2x768xf32> to vector<2x256xf32>
    %117 = vector.extract_strided_slice %114 {offsets = [0, 0], sizes = [2, 256], strides = [1, 1]} : vector<2x768xf32> to vector<2x256xf32>
    %118 = arith.addf %116, %117 : vector<2x256xf32>
    %119 = arith.negf %118 : vector<2x256xf32>
    %120 = math.exp %119 : vector<2x256xf32>
    %cst_29 = arith.constant 1.000000e+00 : f32
    %121 = vector.broadcast %cst_29 : f32 to vector<2x256xf32>
    %122 = arith.addf %121, %120 : vector<2x256xf32>
    %123 = arith.divf %121, %122 : vector<2x256xf32>
    %124 = vector.extract_strided_slice %115 {offsets = [0, 256], sizes = [2, 256], strides = [1, 1]} : vector<2x768xf32> to vector<2x256xf32>
    %125 = vector.extract_strided_slice %114 {offsets = [0, 256], sizes = [2, 256], strides = [1, 1]} : vector<2x768xf32> to vector<2x256xf32>
    %126 = arith.addf %124, %125 : vector<2x256xf32>
    %127 = arith.negf %126 : vector<2x256xf32>
    %128 = math.exp %127 : vector<2x256xf32>
    %cst_30 = arith.constant 1.000000e+00 : f32
    %129 = vector.broadcast %cst_30 : f32 to vector<2x256xf32>
    %130 = arith.addf %129, %128 : vector<2x256xf32>
    %131 = arith.divf %129, %130 : vector<2x256xf32>
    %132 = vector.extract_strided_slice %115 {offsets = [0, 512], sizes = [2, 256], strides = [1, 1]} : vector<2x768xf32> to vector<2x256xf32>
    %133 = vector.extract_strided_slice %114 {offsets = [0, 512], sizes = [2, 256], strides = [1, 1]} : vector<2x768xf32> to vector<2x256xf32>
    %134 = arith.addf %133, %31 : vector<2x256xf32>
    %135 = arith.mulf %123, %134 : vector<2x256xf32>
    %136 = arith.addf %132, %135 : vector<2x256xf32>
    %137 = math.tanh %136 : vector<2x256xf32>
    %138 = arith.subf %113, %137 : vector<2x256xf32>
    %139 = arith.mulf %131, %138 : vector<2x256xf32>
    %140 = arith.addf %137, %139 : vector<2x256xf32>
    %cst_31 = arith.constant dense<0.000000e+00> : vector<2x768xf32>
    %141 = tpu.matmul %140, %28, %cst_31 {dimension_numbers = #tpu.dot_dimension_numbers<[1], [0], [0], [1], [0, 0, 1, 1], [], []>} : vector<2x256xf32>, vector<256x768xf32>, vector<2x768xf32> -> vector<2x768xf32>
    %142 = vector.extract_strided_slice %27 {offsets = [8, 0], sizes = [2, 768], strides = [1, 1]} : vector<16x768xf32> to vector<2x768xf32>
    %143 = vector.extract_strided_slice %142 {offsets = [0, 0], sizes = [2, 256], strides = [1, 1]} : vector<2x768xf32> to vector<2x256xf32>
    %144 = vector.extract_strided_slice %141 {offsets = [0, 0], sizes = [2, 256], strides = [1, 1]} : vector<2x768xf32> to vector<2x256xf32>
    %145 = arith.addf %143, %144 : vector<2x256xf32>
    %146 = arith.negf %145 : vector<2x256xf32>
    %147 = math.exp %146 : vector<2x256xf32>
    %cst_32 = arith.constant 1.000000e+00 : f32
    %148 = vector.broadcast %cst_32 : f32 to vector<2x256xf32>
    %149 = arith.addf %148, %147 : vector<2x256xf32>
    %150 = arith.divf %148, %149 : vector<2x256xf32>
    %151 = vector.extract_strided_slice %142 {offsets = [0, 256], sizes = [2, 256], strides = [1, 1]} : vector<2x768xf32> to vector<2x256xf32>
    %152 = vector.extract_strided_slice %141 {offsets = [0, 256], sizes = [2, 256], strides = [1, 1]} : vector<2x768xf32> to vector<2x256xf32>
    %153 = arith.addf %151, %152 : vector<2x256xf32>
    %154 = arith.negf %153 : vector<2x256xf32>
    %155 = math.exp %154 : vector<2x256xf32>
    %cst_33 = arith.constant 1.000000e+00 : f32
    %156 = vector.broadcast %cst_33 : f32 to vector<2x256xf32>
    %157 = arith.addf %156, %155 : vector<2x256xf32>
    %158 = arith.divf %156, %157 : vector<2x256xf32>
    %159 = vector.extract_strided_slice %142 {offsets = [0, 512], sizes = [2, 256], strides = [1, 1]} : vector<2x768xf32> to vector<2x256xf32>
    %160 = vector.extract_strided_slice %141 {offsets = [0, 512], sizes = [2, 256], strides = [1, 1]} : vector<2x768xf32> to vector<2x256xf32>
    %161 = arith.addf %160, %31 : vector<2x256xf32>
    %162 = arith.mulf %150, %161 : vector<2x256xf32>
    %163 = arith.addf %159, %162 : vector<2x256xf32>
    %164 = math.tanh %163 : vector<2x256xf32>
    %165 = arith.subf %140, %164 : vector<2x256xf32>
    %166 = arith.mulf %158, %165 : vector<2x256xf32>
    %167 = arith.addf %164, %166 : vector<2x256xf32>
    %cst_34 = arith.constant dense<0.000000e+00> : vector<2x768xf32>
    %168 = tpu.matmul %167, %28, %cst_34 {dimension_numbers = #tpu.dot_dimension_numbers<[1], [0], [0], [1], [0, 0, 1, 1], [], []>} : vector<2x256xf32>, vector<256x768xf32>, vector<2x768xf32> -> vector<2x768xf32>
    %169 = vector.extract_strided_slice %27 {offsets = [10, 0], sizes = [2, 768], strides = [1, 1]} : vector<16x768xf32> to vector<2x768xf32>
    %170 = vector.extract_strided_slice %169 {offsets = [0, 0], sizes = [2, 256], strides = [1, 1]} : vector<2x768xf32> to vector<2x256xf32>
    %171 = vector.extract_strided_slice %168 {offsets = [0, 0], sizes = [2, 256], strides = [1, 1]} : vector<2x768xf32> to vector<2x256xf32>
    %172 = arith.addf %170, %171 : vector<2x256xf32>
    %173 = arith.negf %172 : vector<2x256xf32>
    %174 = math.exp %173 : vector<2x256xf32>
    %cst_35 = arith.constant 1.000000e+00 : f32
    %175 = vector.broadcast %cst_35 : f32 to vector<2x256xf32>
    %176 = arith.addf %175, %174 : vector<2x256xf32>
    %177 = arith.divf %175, %176 : vector<2x256xf32>
    %178 = vector.extract_strided_slice %169 {offsets = [0, 256], sizes = [2, 256], strides = [1, 1]} : vector<2x768xf32> to vector<2x256xf32>
    %179 = vector.extract_strided_slice %168 {offsets = [0, 256], sizes = [2, 256], strides = [1, 1]} : vector<2x768xf32> to vector<2x256xf32>
    %180 = arith.addf %178, %179 : vector<2x256xf32>
    %181 = arith.negf %180 : vector<2x256xf32>
    %182 = math.exp %181 : vector<2x256xf32>
    %cst_36 = arith.constant 1.000000e+00 : f32
    %183 = vector.broadcast %cst_36 : f32 to vector<2x256xf32>
    %184 = arith.addf %183, %182 : vector<2x256xf32>
    %185 = arith.divf %183, %184 : vector<2x256xf32>
    %186 = vector.extract_strided_slice %169 {offsets = [0, 512], sizes = [2, 256], strides = [1, 1]} : vector<2x768xf32> to vector<2x256xf32>
    %187 = vector.extract_strided_slice %168 {offsets = [0, 512], sizes = [2, 256], strides = [1, 1]} : vector<2x768xf32> to vector<2x256xf32>
    %188 = arith.addf %187, %31 : vector<2x256xf32>
    %189 = arith.mulf %177, %188 : vector<2x256xf32>
    %190 = arith.addf %186, %189 : vector<2x256xf32>
    %191 = math.tanh %190 : vector<2x256xf32>
    %192 = arith.subf %167, %191 : vector<2x256xf32>
    %193 = arith.mulf %185, %192 : vector<2x256xf32>
    %194 = arith.addf %191, %193 : vector<2x256xf32>
    %cst_37 = arith.constant dense<0.000000e+00> : vector<2x768xf32>
    %195 = tpu.matmul %194, %28, %cst_37 {dimension_numbers = #tpu.dot_dimension_numbers<[1], [0], [0], [1], [0, 0, 1, 1], [], []>} : vector<2x256xf32>, vector<256x768xf32>, vector<2x768xf32> -> vector<2x768xf32>
    %196 = vector.extract_strided_slice %27 {offsets = [12, 0], sizes = [2, 768], strides = [1, 1]} : vector<16x768xf32> to vector<2x768xf32>
    %197 = vector.extract_strided_slice %196 {offsets = [0, 0], sizes = [2, 256], strides = [1, 1]} : vector<2x768xf32> to vector<2x256xf32>
    %198 = vector.extract_strided_slice %195 {offsets = [0, 0], sizes = [2, 256], strides = [1, 1]} : vector<2x768xf32> to vector<2x256xf32>
    %199 = arith.addf %197, %198 : vector<2x256xf32>
    %200 = arith.negf %199 : vector<2x256xf32>
    %201 = math.exp %200 : vector<2x256xf32>
    %cst_38 = arith.constant 1.000000e+00 : f32
    %202 = vector.broadcast %cst_38 : f32 to vector<2x256xf32>
    %203 = arith.addf %202, %201 : vector<2x256xf32>
    %204 = arith.divf %202, %203 : vector<2x256xf32>
    %205 = vector.extract_strided_slice %196 {offsets = [0, 256], sizes = [2, 256], strides = [1, 1]} : vector<2x768xf32> to vector<2x256xf32>
    %206 = vector.extract_strided_slice %195 {offsets = [0, 256], sizes = [2, 256], strides = [1, 1]} : vector<2x768xf32> to vector<2x256xf32>
    %207 = arith.addf %205, %206 : vector<2x256xf32>
    %208 = arith.negf %207 : vector<2x256xf32>
    %209 = math.exp %208 : vector<2x256xf32>
    %cst_39 = arith.constant 1.000000e+00 : f32
    %210 = vector.broadcast %cst_39 : f32 to vector<2x256xf32>
    %211 = arith.addf %210, %209 : vector<2x256xf32>
    %212 = arith.divf %210, %211 : vector<2x256xf32>
    %213 = vector.extract_strided_slice %196 {offsets = [0, 512], sizes = [2, 256], strides = [1, 1]} : vector<2x768xf32> to vector<2x256xf32>
    %214 = vector.extract_strided_slice %195 {offsets = [0, 512], sizes = [2, 256], strides = [1, 1]} : vector<2x768xf32> to vector<2x256xf32>
    %215 = arith.addf %214, %31 : vector<2x256xf32>
    %216 = arith.mulf %204, %215 : vector<2x256xf32>
    %217 = arith.addf %213, %216 : vector<2x256xf32>
    %218 = math.tanh %217 : vector<2x256xf32>
    %219 = arith.subf %194, %218 : vector<2x256xf32>
    %220 = arith.mulf %212, %219 : vector<2x256xf32>
    %221 = arith.addf %218, %220 : vector<2x256xf32>
    %cst_40 = arith.constant dense<0.000000e+00> : vector<2x768xf32>
    %222 = tpu.matmul %221, %28, %cst_40 {dimension_numbers = #tpu.dot_dimension_numbers<[1], [0], [0], [1], [0, 0, 1, 1], [], []>} : vector<2x256xf32>, vector<256x768xf32>, vector<2x768xf32> -> vector<2x768xf32>
    %223 = vector.extract_strided_slice %27 {offsets = [14, 0], sizes = [2, 768], strides = [1, 1]} : vector<16x768xf32> to vector<2x768xf32>
    %224 = vector.extract_strided_slice %223 {offsets = [0, 0], sizes = [2, 256], strides = [1, 1]} : vector<2x768xf32> to vector<2x256xf32>
    %225 = vector.extract_strided_slice %222 {offsets = [0, 0], sizes = [2, 256], strides = [1, 1]} : vector<2x768xf32> to vector<2x256xf32>
    %226 = arith.addf %224, %225 : vector<2x256xf32>
    %227 = arith.negf %226 : vector<2x256xf32>
    %228 = math.exp %227 : vector<2x256xf32>
    %cst_41 = arith.constant 1.000000e+00 : f32
    %229 = vector.broadcast %cst_41 : f32 to vector<2x256xf32>
    %230 = arith.addf %229, %228 : vector<2x256xf32>
    %231 = arith.divf %229, %230 : vector<2x256xf32>
    %232 = vector.extract_strided_slice %223 {offsets = [0, 256], sizes = [2, 256], strides = [1, 1]} : vector<2x768xf32> to vector<2x256xf32>
    %233 = vector.extract_strided_slice %222 {offsets = [0, 256], sizes = [2, 256], strides = [1, 1]} : vector<2x768xf32> to vector<2x256xf32>
    %234 = arith.addf %232, %233 : vector<2x256xf32>
    %235 = arith.negf %234 : vector<2x256xf32>
    %236 = math.exp %235 : vector<2x256xf32>
    %cst_42 = arith.constant 1.000000e+00 : f32
    %237 = vector.broadcast %cst_42 : f32 to vector<2x256xf32>
    %238 = arith.addf %237, %236 : vector<2x256xf32>
    %239 = arith.divf %237, %238 : vector<2x256xf32>
    %240 = vector.extract_strided_slice %223 {offsets = [0, 512], sizes = [2, 256], strides = [1, 1]} : vector<2x768xf32> to vector<2x256xf32>
    %241 = vector.extract_strided_slice %222 {offsets = [0, 512], sizes = [2, 256], strides = [1, 1]} : vector<2x768xf32> to vector<2x256xf32>
    %242 = arith.addf %241, %31 : vector<2x256xf32>
    %243 = arith.mulf %231, %242 : vector<2x256xf32>
    %244 = arith.addf %240, %243 : vector<2x256xf32>
    %245 = math.tanh %244 : vector<2x256xf32>
    %246 = arith.subf %221, %245 : vector<2x256xf32>
    %247 = arith.mulf %239, %246 : vector<2x256xf32>
    %248 = arith.addf %245, %247 : vector<2x256xf32>
    %c0_43 = arith.constant 0 : index
    %c0_44 = arith.constant 0 : index
    %249 = vector.load %arg10[%c0_43, %c0_44] : memref<256x32xf32, #tpu.memory_space<vmem>>, vector<256x32xf32>
    %cst_45 = arith.constant dense<0.000000e+00> : vector<2x32xf32>
    %250 = tpu.matmul %248, %249, %cst_45 {dimension_numbers = #tpu.dot_dimension_numbers<[1], [0], [0], [1], [0, 0, 1, 1], [], []>} : vector<2x256xf32>, vector<256x32xf32>, vector<2x32xf32> -> vector<2x32xf32>
    %c0_46 = arith.constant 0 : index
    %c0_47 = arith.constant 0 : index
    %251 = vector.load %arg11[%c0_46, %c0_47] : memref<16x32xf32, #tpu.memory_space<vmem>>, vector<16x32xf32>
    %cst_48 = arith.constant dense<0.000000e+00> : vector<2x32xf32>
    %252 = tpu.matmul %0, %251, %cst_48 {dimension_numbers = #tpu.dot_dimension_numbers<[1], [0], [0], [1], [0, 0, 1, 1], [], []>} : vector<2x16xf32>, vector<16x32xf32>, vector<2x32xf32> -> vector<2x32xf32>
    %253 = arith.addf %250, %252 : vector<2x32xf32>
    %c0_49 = arith.constant 0 : index
    %c0_50 = arith.constant 0 : index
    %254 = vector.load %arg12[%c0_49, %c0_50] : memref<1x32xf32, #tpu.memory_space<vmem>>, vector<1x32xf32>
    %255 = vector.broadcast %254 : vector<1x32xf32> to vector<2x32xf32>
    %256 = arith.addf %253, %255 : vector<2x32xf32>
    %c0_51 = arith.constant 0 : index
    %c0_52 = arith.constant 0 : index
    %257 = vector.load %arg13[%c0_51, %c0_52] : memref<16x32xf32, #tpu.memory_space<vmem>>, vector<16x32xf32>
    %cst_53 = arith.constant dense<0.000000e+00> : vector<2x32xf32>
    %258 = tpu.matmul %0, %257, %cst_53 {dimension_numbers = #tpu.dot_dimension_numbers<[1], [0], [0], [1], [0, 0, 1, 1], [], []>} : vector<2x16xf32>, vector<16x32xf32>, vector<2x32xf32> -> vector<2x32xf32>
    %c0_54 = arith.constant 0 : index
    %c0_55 = arith.constant 0 : index
    %259 = vector.load %arg14[%c0_54, %c0_55] : memref<1x32xf32, #tpu.memory_space<vmem>>, vector<1x32xf32>
    %260 = vector.broadcast %259 : vector<1x32xf32> to vector<2x32xf32>
    %261 = arith.addf %258, %260 : vector<2x32xf32>
    %262 = math.tanh %261 : vector<2x32xf32>
    %c0_56 = arith.constant 0 : index
    %c0_57 = arith.constant 0 : index
    %263 = vector.load %arg15[%c0_56, %c0_57] : memref<32x32xf32, #tpu.memory_space<vmem>>, vector<32x32xf32>
    %cst_58 = arith.constant dense<0.000000e+00> : vector<2x32xf32>
    %264 = tpu.matmul %262, %263, %cst_58 {dimension_numbers = #tpu.dot_dimension_numbers<[1], [0], [0], [1], [0, 0, 1, 1], [], []>} : vector<2x32xf32>, vector<32x32xf32>, vector<2x32xf32> -> vector<2x32xf32>
    %c0_59 = arith.constant 0 : index
    %c0_60 = arith.constant 0 : index
    %265 = vector.load %arg16[%c0_59, %c0_60] : memref<1x32xf32, #tpu.memory_space<vmem>>, vector<1x32xf32>
    %266 = vector.broadcast %265 : vector<1x32xf32> to vector<2x32xf32>
    %267 = arith.addf %264, %266 : vector<2x32xf32>
    %268 = vector.extract_strided_slice %256 {offsets = [0, 0], sizes = [2, 16], strides = [1, 1]} : vector<2x32xf32> to vector<2x16xf32>
    %269 = vector.extract_strided_slice %256 {offsets = [0, 16], sizes = [2, 16], strides = [1, 1]} : vector<2x32xf32> to vector<2x16xf32>
    %cst_61 = arith.constant 5.000000e-01 : f32
    %270 = vector.broadcast %cst_61 : f32 to vector<2x16xf32>
    %271 = arith.mulf %270, %269 : vector<2x16xf32>
    %272 = math.exp %271 : vector<2x16xf32>
    %cst_62 = arith.constant 1.000000e+00 : f32
    %273 = vector.broadcast %cst_62 : f32 to vector<2x16xf32>
    %274 = arith.mulf %1, %273 : vector<2x16xf32>
    %275 = arith.mulf %272, %274 : vector<2x16xf32>
    %276 = arith.addf %268, %275 : vector<2x16xf32>
    %c0_63 = arith.constant 0 : index
    %c0_64 = arith.constant 0 : index
    %277 = vector.load %arg17[%c0_63, %c0_64] : memref<16x22xf32, #tpu.memory_space<vmem>>, vector<16x22xf32>
    %cst_65 = arith.constant dense<0.000000e+00> : vector<2x22xf32>
    %278 = tpu.matmul %276, %277, %cst_65 {dimension_numbers = #tpu.dot_dimension_numbers<[1], [0], [0], [1], [0, 0, 1, 1], [], []>} : vector<2x16xf32>, vector<16x22xf32>, vector<2x22xf32> -> vector<2x22xf32>
    %c0_66 = arith.constant 0 : index
    %c0_67 = arith.constant 0 : index
    %279 = vector.load %arg18[%c0_66, %c0_67] : memref<1x22xf32, #tpu.memory_space<vmem>>, vector<1x22xf32>
    %280 = vector.broadcast %279 : vector<1x22xf32> to vector<2x22xf32>
    %281 = arith.addf %278, %280 : vector<2x22xf32>
    %cst_68 = arith.constant 0.000000e+00 : f32
    %282 = vector.broadcast %cst_68 : f32 to vector<2x26xf32>
    %283 = tpu.concatenate %256, %267, %276, %281, %282 in 1 : vector<2x32xf32>, vector<2x32xf32>, vector<2x16xf32>, vector<2x22xf32>, vector<2x26xf32> -> vector<2x128xf32>
    %c0_69 = arith.constant 0 : index
    %c0_70 = arith.constant 0 : index
    %284 = vector.load %arg29[%c0_69, %c0_70] : memref<2x128xf32, #tpu.memory_space<vmem>>, vector<2x128xf32>
    tpu.vector_store %arg29[%c0_69, %c0_70], %283 {strides = array<i32>} : memref<2x128xf32, #tpu.memory_space<vmem>>, vector<2x128xf32>,
    %285 = tpu.iota {dimensions = array<i32: 1>} : vector<16x32xi32>
    %c0_71 = arith.constant 0 : index
    %c0_72 = arith.constant 0 : index
    %286 = vector.load %arg2[%c0_71, %c0_72] : memref<16x1xi32, #tpu.memory_space<vmem>>, vector<16x1xi32>
    %287 = vector.broadcast %286 : vector<16x1xi32> to vector<16x32xi32>
    %288 = arith.cmpi eq, %285, %287 : vector<16x32xi32>
    %289 = arith.extui %288 : vector<16x32xi1> to vector<16x32xi32>
    %290 = arith.sitofp %289 : vector<16x32xi32> to vector<16x32xf32>
    %c0_73 = arith.constant 0 : index
    %c0_74 = arith.constant 0 : index
    %291 = vector.load %arg19[%c0_73, %c0_74] : memref<32x384xf32, #tpu.memory_space<vmem>>, vector<32x384xf32>
    %cst_75 = arith.constant dense<0.000000e+00> : vector<16x384xf32>
    %292 = tpu.matmul %290, %291, %cst_75 {dimension_numbers = #tpu.dot_dimension_numbers<[1], [0], [0], [1], [0, 0, 1, 1], [], []>} : vector<16x32xf32>, vector<32x384xf32>, vector<16x384xf32> -> vector<16x384xf32>
    %c0_76 = arith.constant 0 : index
    %c0_77 = arith.constant 0 : index
    %293 = vector.load %arg20[%c0_76, %c0_77] : memref<1x384xf32, #tpu.memory_space<vmem>>, vector<1x384xf32>
    %294 = vector.broadcast %293 : vector<1x384xf32> to vector<16x384xf32>
    %295 = arith.addf %292, %294 : vector<16x384xf32>
    %c0_78 = arith.constant 0 : index
    %c0_79 = arith.constant 0 : index
    %296 = vector.load %arg24[%c0_78, %c0_79] : memref<128x384xf32, #tpu.memory_space<vmem>>, vector<128x384xf32>
    %c0_80 = arith.constant 0 : index
    %c0_81 = arith.constant 0 : index
    %297 = vector.load %arg25[%c0_80, %c0_81] : memref<1x128xf32, #tpu.memory_space<vmem>>, vector<1x128xf32>
    %298 = vector.shape_cast %297 : vector<1x128xf32> to vector<1x128xf32>
    %299 = vector.broadcast %298 : vector<1x128xf32> to vector<2x128xf32>
    %c0_82 = arith.constant 0 : index
    %c0_83 = arith.constant 0 : index
    %300 = vector.load %arg21[%c0_82, %c0_83] : memref<16x128xf32, #tpu.memory_space<vmem>>, vector<16x128xf32>
    %cst_84 = arith.constant dense<0.000000e+00> : vector<2x128xf32>
    %301 = tpu.matmul %276, %300, %cst_84 {dimension_numbers = #tpu.dot_dimension_numbers<[1], [0], [0], [1], [0, 0, 1, 1], [], []>} : vector<2x16xf32>, vector<16x128xf32>, vector<2x128xf32> -> vector<2x128xf32>
    %c0_85 = arith.constant 0 : index
    %c0_86 = arith.constant 0 : index
    %302 = vector.load %arg22[%c0_85, %c0_86] : memref<16x128xf32, #tpu.memory_space<vmem>>, vector<16x128xf32>
    %cst_87 = arith.constant dense<0.000000e+00> : vector<2x128xf32>
    %303 = tpu.matmul %0, %302, %cst_87 {dimension_numbers = #tpu.dot_dimension_numbers<[1], [0], [0], [1], [0, 0, 1, 1], [], []>} : vector<2x16xf32>, vector<16x128xf32>, vector<2x128xf32> -> vector<2x128xf32>
    %304 = arith.addf %301, %303 : vector<2x128xf32>
    %c0_88 = arith.constant 0 : index
    %c0_89 = arith.constant 0 : index
    %305 = vector.load %arg23[%c0_88, %c0_89] : memref<1x128xf32, #tpu.memory_space<vmem>>, vector<1x128xf32>
    %306 = vector.broadcast %305 : vector<1x128xf32> to vector<2x128xf32>
    %307 = arith.addf %304, %306 : vector<2x128xf32>
    %308 = math.tanh %307 : vector<2x128xf32>
    %cst_90 = arith.constant dense<0.000000e+00> : vector<2x384xf32>
    %309 = tpu.matmul %308, %296, %cst_90 {dimension_numbers = #tpu.dot_dimension_numbers<[1], [0], [0], [1], [0, 0, 1, 1], [], []>} : vector<2x128xf32>, vector<128x384xf32>, vector<2x384xf32> -> vector<2x384xf32>
    %310 = vector.extract_strided_slice %295 {offsets = [0, 0], sizes = [2, 384], strides = [1, 1]} : vector<16x384xf32> to vector<2x384xf32>
    %311 = vector.extract_strided_slice %310 {offsets = [0, 0], sizes = [2, 128], strides = [1, 1]} : vector<2x384xf32> to vector<2x128xf32>
    %312 = vector.extract_strided_slice %309 {offsets = [0, 0], sizes = [2, 128], strides = [1, 1]} : vector<2x384xf32> to vector<2x128xf32>
    %313 = arith.addf %311, %312 : vector<2x128xf32>
    %314 = arith.negf %313 : vector<2x128xf32>
    %315 = math.exp %314 : vector<2x128xf32>
    %cst_91 = arith.constant 1.000000e+00 : f32
    %316 = vector.broadcast %cst_91 : f32 to vector<2x128xf32>
    %317 = arith.addf %316, %315 : vector<2x128xf32>
    %318 = arith.divf %316, %317 : vector<2x128xf32>
    %319 = vector.extract_strided_slice %310 {offsets = [0, 128], sizes = [2, 128], strides = [1, 1]} : vector<2x384xf32> to vector<2x128xf32>
    %320 = vector.extract_strided_slice %309 {offsets = [0, 128], sizes = [2, 128], strides = [1, 1]} : vector<2x384xf32> to vector<2x128xf32>
    %321 = arith.addf %319, %320 : vector<2x128xf32>
    %322 = arith.negf %321 : vector<2x128xf32>
    %323 = math.exp %322 : vector<2x128xf32>
    %cst_92 = arith.constant 1.000000e+00 : f32
    %324 = vector.broadcast %cst_92 : f32 to vector<2x128xf32>
    %325 = arith.addf %324, %323 : vector<2x128xf32>
    %326 = arith.divf %324, %325 : vector<2x128xf32>
    %327 = vector.extract_strided_slice %310 {offsets = [0, 256], sizes = [2, 128], strides = [1, 1]} : vector<2x384xf32> to vector<2x128xf32>
    %328 = vector.extract_strided_slice %309 {offsets = [0, 256], sizes = [2, 128], strides = [1, 1]} : vector<2x384xf32> to vector<2x128xf32>
    %329 = arith.addf %328, %299 : vector<2x128xf32>
    %330 = arith.mulf %318, %329 : vector<2x128xf32>
    %331 = arith.addf %327, %330 : vector<2x128xf32>
    %332 = math.tanh %331 : vector<2x128xf32>
    %333 = arith.subf %308, %332 : vector<2x128xf32>
    %334 = arith.mulf %326, %333 : vector<2x128xf32>
    %335 = arith.addf %332, %334 : vector<2x128xf32>
    %c0_93 = arith.constant 0 : index
    %c0_94 = arith.constant 0 : index
    %336 = vector.load %arg30[%c0_93, %c0_94] : memref<16x128xf32, #tpu.memory_space<vmem>>, vector<2x128xf32>
    tpu.vector_store %arg30[%c0_93, %c0_94], %335 {strides = array<i32>} : memref<16x128xf32, #tpu.memory_space<vmem>>, vector<2x128xf32>,
    %cst_95 = arith.constant dense<0.000000e+00> : vector<2x384xf32>
    %337 = tpu.matmul %335, %296, %cst_95 {dimension_numbers = #tpu.dot_dimension_numbers<[1], [0], [0], [1], [0, 0, 1, 1], [], []>} : vector<2x128xf32>, vector<128x384xf32>, vector<2x384xf32> -> vector<2x384xf32>
    %338 = vector.extract_strided_slice %295 {offsets = [2, 0], sizes = [2, 384], strides = [1, 1]} : vector<16x384xf32> to vector<2x384xf32>
    %339 = vector.extract_strided_slice %338 {offsets = [0, 0], sizes = [2, 128], strides = [1, 1]} : vector<2x384xf32> to vector<2x128xf32>
    %340 = vector.extract_strided_slice %337 {offsets = [0, 0], sizes = [2, 128], strides = [1, 1]} : vector<2x384xf32> to vector<2x128xf32>
    %341 = arith.addf %339, %340 : vector<2x128xf32>
    %342 = arith.negf %341 : vector<2x128xf32>
    %343 = math.exp %342 : vector<2x128xf32>
    %cst_96 = arith.constant 1.000000e+00 : f32
    %344 = vector.broadcast %cst_96 : f32 to vector<2x128xf32>
    %345 = arith.addf %344, %343 : vector<2x128xf32>
    %346 = arith.divf %344, %345 : vector<2x128xf32>
    %347 = vector.extract_strided_slice %338 {offsets = [0, 128], sizes = [2, 128], strides = [1, 1]} : vector<2x384xf32> to vector<2x128xf32>
    %348 = vector.extract_strided_slice %337 {offsets = [0, 128], sizes = [2, 128], strides = [1, 1]} : vector<2x384xf32> to vector<2x128xf32>
    %349 = arith.addf %347, %348 : vector<2x128xf32>
    %350 = arith.negf %349 : vector<2x128xf32>
    %351 = math.exp %350 : vector<2x128xf32>
    %cst_97 = arith.constant 1.000000e+00 : f32
    %352 = vector.broadcast %cst_97 : f32 to vector<2x128xf32>
    %353 = arith.addf %352, %351 : vector<2x128xf32>
    %354 = arith.divf %352, %353 : vector<2x128xf32>
    %355 = vector.extract_strided_slice %338 {offsets = [0, 256], sizes = [2, 128], strides = [1, 1]} : vector<2x384xf32> to vector<2x128xf32>
    %356 = vector.extract_strided_slice %337 {offsets = [0, 256], sizes = [2, 128], strides = [1, 1]} : vector<2x384xf32> to vector<2x128xf32>
    %357 = arith.addf %356, %299 : vector<2x128xf32>
    %358 = arith.mulf %346, %357 : vector<2x128xf32>
    %359 = arith.addf %355, %358 : vector<2x128xf32>
    %360 = math.tanh %359 : vector<2x128xf32>
    %361 = arith.subf %335, %360 : vector<2x128xf32>
    %362 = arith.mulf %354, %361 : vector<2x128xf32>
    %363 = arith.addf %360, %362 : vector<2x128xf32>
    %c2 = arith.constant 2 : index
    %c0_98 = arith.constant 0 : index
    %364 = vector.load %arg30[%c2, %c0_98] : memref<16x128xf32, #tpu.memory_space<vmem>>, vector<2x128xf32>
    tpu.vector_store %arg30[%c2, %c0_98], %363 {strides = array<i32>} : memref<16x128xf32, #tpu.memory_space<vmem>>, vector<2x128xf32>,
    %cst_99 = arith.constant dense<0.000000e+00> : vector<2x384xf32>
    %365 = tpu.matmul %363, %296, %cst_99 {dimension_numbers = #tpu.dot_dimension_numbers<[1], [0], [0], [1], [0, 0, 1, 1], [], []>} : vector<2x128xf32>, vector<128x384xf32>, vector<2x384xf32> -> vector<2x384xf32>
    %366 = vector.extract_strided_slice %295 {offsets = [4, 0], sizes = [2, 384], strides = [1, 1]} : vector<16x384xf32> to vector<2x384xf32>
    %367 = vector.extract_strided_slice %366 {offsets = [0, 0], sizes = [2, 128], strides = [1, 1]} : vector<2x384xf32> to vector<2x128xf32>
    %368 = vector.extract_strided_slice %365 {offsets = [0, 0], sizes = [2, 128], strides = [1, 1]} : vector<2x384xf32> to vector<2x128xf32>
    %369 = arith.addf %367, %368 : vector<2x128xf32>
    %370 = arith.negf %369 : vector<2x128xf32>
    %371 = math.exp %370 : vector<2x128xf32>
    %cst_100 = arith.constant 1.000000e+00 : f32
    %372 = vector.broadcast %cst_100 : f32 to vector<2x128xf32>
    %373 = arith.addf %372, %371 : vector<2x128xf32>
    %374 = arith.divf %372, %373 : vector<2x128xf32>
    %375 = vector.extract_strided_slice %366 {offsets = [0, 128], sizes = [2, 128], strides = [1, 1]} : vector<2x384xf32> to vector<2x128xf32>
    %376 = vector.extract_strided_slice %365 {offsets = [0, 128], sizes = [2, 128], strides = [1, 1]} : vector<2x384xf32> to vector<2x128xf32>
    %377 = arith.addf %375, %376 : vector<2x128xf32>
    %378 = arith.negf %377 : vector<2x128xf32>
    %379 = math.exp %378 : vector<2x128xf32>
    %cst_101 = arith.constant 1.000000e+00 : f32
    %380 = vector.broadcast %cst_101 : f32 to vector<2x128xf32>
    %381 = arith.addf %380, %379 : vector<2x128xf32>
    %382 = arith.divf %380, %381 : vector<2x128xf32>
    %383 = vector.extract_strided_slice %366 {offsets = [0, 256], sizes = [2, 128], strides = [1, 1]} : vector<2x384xf32> to vector<2x128xf32>
    %384 = vector.extract_strided_slice %365 {offsets = [0, 256], sizes = [2, 128], strides = [1, 1]} : vector<2x384xf32> to vector<2x128xf32>
    %385 = arith.addf %384, %299 : vector<2x128xf32>
    %386 = arith.mulf %374, %385 : vector<2x128xf32>
    %387 = arith.addf %383, %386 : vector<2x128xf32>
    %388 = math.tanh %387 : vector<2x128xf32>
    %389 = arith.subf %363, %388 : vector<2x128xf32>
    %390 = arith.mulf %382, %389 : vector<2x128xf32>
    %391 = arith.addf %388, %390 : vector<2x128xf32>
    %c4 = arith.constant 4 : index
    %c0_102 = arith.constant 0 : index
    %392 = vector.load %arg30[%c4, %c0_102] : memref<16x128xf32, #tpu.memory_space<vmem>>, vector<2x128xf32>
    tpu.vector_store %arg30[%c4, %c0_102], %391 {strides = array<i32>} : memref<16x128xf32, #tpu.memory_space<vmem>>, vector<2x128xf32>,
    %cst_103 = arith.constant dense<0.000000e+00> : vector<2x384xf32>
    %393 = tpu.matmul %391, %296, %cst_103 {dimension_numbers = #tpu.dot_dimension_numbers<[1], [0], [0], [1], [0, 0, 1, 1], [], []>} : vector<2x128xf32>, vector<128x384xf32>, vector<2x384xf32> -> vector<2x384xf32>
    %394 = vector.extract_strided_slice %295 {offsets = [6, 0], sizes = [2, 384], strides = [1, 1]} : vector<16x384xf32> to vector<2x384xf32>
    %395 = vector.extract_strided_slice %394 {offsets = [0, 0], sizes = [2, 128], strides = [1, 1]} : vector<2x384xf32> to vector<2x128xf32>
    %396 = vector.extract_strided_slice %393 {offsets = [0, 0], sizes = [2, 128], strides = [1, 1]} : vector<2x384xf32> to vector<2x128xf32>
    %397 = arith.addf %395, %396 : vector<2x128xf32>
    %398 = arith.negf %397 : vector<2x128xf32>
    %399 = math.exp %398 : vector<2x128xf32>
    %cst_104 = arith.constant 1.000000e+00 : f32
    %400 = vector.broadcast %cst_104 : f32 to vector<2x128xf32>
    %401 = arith.addf %400, %399 : vector<2x128xf32>
    %402 = arith.divf %400, %401 : vector<2x128xf32>
    %403 = vector.extract_strided_slice %394 {offsets = [0, 128], sizes = [2, 128], strides = [1, 1]} : vector<2x384xf32> to vector<2x128xf32>
    %404 = vector.extract_strided_slice %393 {offsets = [0, 128], sizes = [2, 128], strides = [1, 1]} : vector<2x384xf32> to vector<2x128xf32>
    %405 = arith.addf %403, %404 : vector<2x128xf32>
    %406 = arith.negf %405 : vector<2x128xf32>
    %407 = math.exp %406 : vector<2x128xf32>
    %cst_105 = arith.constant 1.000000e+00 : f32
    %408 = vector.broadcast %cst_105 : f32 to vector<2x128xf32>
    %409 = arith.addf %408, %407 : vector<2x128xf32>
    %410 = arith.divf %408, %409 : vector<2x128xf32>
    %411 = vector.extract_strided_slice %394 {offsets = [0, 256], sizes = [2, 128], strides = [1, 1]} : vector<2x384xf32> to vector<2x128xf32>
    %412 = vector.extract_strided_slice %393 {offsets = [0, 256], sizes = [2, 128], strides = [1, 1]} : vector<2x384xf32> to vector<2x128xf32>
    %413 = arith.addf %412, %299 : vector<2x128xf32>
    %414 = arith.mulf %402, %413 : vector<2x128xf32>
    %415 = arith.addf %411, %414 : vector<2x128xf32>
    %416 = math.tanh %415 : vector<2x128xf32>
    %417 = arith.subf %391, %416 : vector<2x128xf32>
    %418 = arith.mulf %410, %417 : vector<2x128xf32>
    %419 = arith.addf %416, %418 : vector<2x128xf32>
    %c6 = arith.constant 6 : index
    %c0_106 = arith.constant 0 : index
    %420 = vector.load %arg30[%c6, %c0_106] : memref<16x128xf32, #tpu.memory_space<vmem>>, vector<2x128xf32>
    tpu.vector_store %arg30[%c6, %c0_106], %419 {strides = array<i32>} : memref<16x128xf32, #tpu.memory_space<vmem>>, vector<2x128xf32>,
    %cst_107 = arith.constant dense<0.000000e+00> : vector<2x384xf32>
    %421 = tpu.matmul %419, %296, %cst_107 {dimension_numbers = #tpu.dot_dimension_numbers<[1], [0], [0], [1], [0, 0, 1, 1], [], []>} : vector<2x128xf32>, vector<128x384xf32>, vector<2x384xf32> -> vector<2x384xf32>
    %422 = vector.extract_strided_slice %295 {offsets = [8, 0], sizes = [2, 384], strides = [1, 1]} : vector<16x384xf32> to vector<2x384xf32>
    %423 = vector.extract_strided_slice %422 {offsets = [0, 0], sizes = [2, 128], strides = [1, 1]} : vector<2x384xf32> to vector<2x128xf32>
    %424 = vector.extract_strided_slice %421 {offsets = [0, 0], sizes = [2, 128], strides = [1, 1]} : vector<2x384xf32> to vector<2x128xf32>
    %425 = arith.addf %423, %424 : vector<2x128xf32>
    %426 = arith.negf %425 : vector<2x128xf32>
    %427 = math.exp %426 : vector<2x128xf32>
    %cst_108 = arith.constant 1.000000e+00 : f32
    %428 = vector.broadcast %cst_108 : f32 to vector<2x128xf32>
    %429 = arith.addf %428, %427 : vector<2x128xf32>
    %430 = arith.divf %428, %429 : vector<2x128xf32>
    %431 = vector.extract_strided_slice %422 {offsets = [0, 128], sizes = [2, 128], strides = [1, 1]} : vector<2x384xf32> to vector<2x128xf32>
    %432 = vector.extract_strided_slice %421 {offsets = [0, 128], sizes = [2, 128], strides = [1, 1]} : vector<2x384xf32> to vector<2x128xf32>
    %433 = arith.addf %431, %432 : vector<2x128xf32>
    %434 = arith.negf %433 : vector<2x128xf32>
    %435 = math.exp %434 : vector<2x128xf32>
    %cst_109 = arith.constant 1.000000e+00 : f32
    %436 = vector.broadcast %cst_109 : f32 to vector<2x128xf32>
    %437 = arith.addf %436, %435 : vector<2x128xf32>
    %438 = arith.divf %436, %437 : vector<2x128xf32>
    %439 = vector.extract_strided_slice %422 {offsets = [0, 256], sizes = [2, 128], strides = [1, 1]} : vector<2x384xf32> to vector<2x128xf32>
    %440 = vector.extract_strided_slice %421 {offsets = [0, 256], sizes = [2, 128], strides = [1, 1]} : vector<2x384xf32> to vector<2x128xf32>
    %441 = arith.addf %440, %299 : vector<2x128xf32>
    %442 = arith.mulf %430, %441 : vector<2x128xf32>
    %443 = arith.addf %439, %442 : vector<2x128xf32>
    %444 = math.tanh %443 : vector<2x128xf32>
    %445 = arith.subf %419, %444 : vector<2x128xf32>
    %446 = arith.mulf %438, %445 : vector<2x128xf32>
    %447 = arith.addf %444, %446 : vector<2x128xf32>
    %c8 = arith.constant 8 : index
    %c0_110 = arith.constant 0 : index
    %448 = vector.load %arg30[%c8, %c0_110] : memref<16x128xf32, #tpu.memory_space<vmem>>, vector<2x128xf32>
    tpu.vector_store %arg30[%c8, %c0_110], %447 {strides = array<i32>} : memref<16x128xf32, #tpu.memory_space<vmem>>, vector<2x128xf32>,
    %cst_111 = arith.constant dense<0.000000e+00> : vector<2x384xf32>
    %449 = tpu.matmul %447, %296, %cst_111 {dimension_numbers = #tpu.dot_dimension_numbers<[1], [0], [0], [1], [0, 0, 1, 1], [], []>} : vector<2x128xf32>, vector<128x384xf32>, vector<2x384xf32> -> vector<2x384xf32>
    %450 = vector.extract_strided_slice %295 {offsets = [10, 0], sizes = [2, 384], strides = [1, 1]} : vector<16x384xf32> to vector<2x384xf32>
    %451 = vector.extract_strided_slice %450 {offsets = [0, 0], sizes = [2, 128], strides = [1, 1]} : vector<2x384xf32> to vector<2x128xf32>
    %452 = vector.extract_strided_slice %449 {offsets = [0, 0], sizes = [2, 128], strides = [1, 1]} : vector<2x384xf32> to vector<2x128xf32>
    %453 = arith.addf %451, %452 : vector<2x128xf32>
    %454 = arith.negf %453 : vector<2x128xf32>
    %455 = math.exp %454 : vector<2x128xf32>
    %cst_112 = arith.constant 1.000000e+00 : f32
    %456 = vector.broadcast %cst_112 : f32 to vector<2x128xf32>
    %457 = arith.addf %456, %455 : vector<2x128xf32>
    %458 = arith.divf %456, %457 : vector<2x128xf32>
    %459 = vector.extract_strided_slice %450 {offsets = [0, 128], sizes = [2, 128], strides = [1, 1]} : vector<2x384xf32> to vector<2x128xf32>
    %460 = vector.extract_strided_slice %449 {offsets = [0, 128], sizes = [2, 128], strides = [1, 1]} : vector<2x384xf32> to vector<2x128xf32>
    %461 = arith.addf %459, %460 : vector<2x128xf32>
    %462 = arith.negf %461 : vector<2x128xf32>
    %463 = math.exp %462 : vector<2x128xf32>
    %cst_113 = arith.constant 1.000000e+00 : f32
    %464 = vector.broadcast %cst_113 : f32 to vector<2x128xf32>
    %465 = arith.addf %464, %463 : vector<2x128xf32>
    %466 = arith.divf %464, %465 : vector<2x128xf32>
    %467 = vector.extract_strided_slice %450 {offsets = [0, 256], sizes = [2, 128], strides = [1, 1]} : vector<2x384xf32> to vector<2x128xf32>
    %468 = vector.extract_strided_slice %449 {offsets = [0, 256], sizes = [2, 128], strides = [1, 1]} : vector<2x384xf32> to vector<2x128xf32>
    %469 = arith.addf %468, %299 : vector<2x128xf32>
    %470 = arith.mulf %458, %469 : vector<2x128xf32>
    %471 = arith.addf %467, %470 : vector<2x128xf32>
    %472 = math.tanh %471 : vector<2x128xf32>
    %473 = arith.subf %447, %472 : vector<2x128xf32>
    %474 = arith.mulf %466, %473 : vector<2x128xf32>
    %475 = arith.addf %472, %474 : vector<2x128xf32>
    %c10 = arith.constant 10 : index
    %c0_114 = arith.constant 0 : index
    %476 = vector.load %arg30[%c10, %c0_114] : memref<16x128xf32, #tpu.memory_space<vmem>>, vector<2x128xf32>
    tpu.vector_store %arg30[%c10, %c0_114], %475 {strides = array<i32>} : memref<16x128xf32, #tpu.memory_space<vmem>>, vector<2x128xf32>,
    %cst_115 = arith.constant dense<0.000000e+00> : vector<2x384xf32>
    %477 = tpu.matmul %475, %296, %cst_115 {dimension_numbers = #tpu.dot_dimension_numbers<[1], [0], [0], [1], [0, 0, 1, 1], [], []>} : vector<2x128xf32>, vector<128x384xf32>, vector<2x384xf32> -> vector<2x384xf32>
    %478 = vector.extract_strided_slice %295 {offsets = [12, 0], sizes = [2, 384], strides = [1, 1]} : vector<16x384xf32> to vector<2x384xf32>
    %479 = vector.extract_strided_slice %478 {offsets = [0, 0], sizes = [2, 128], strides = [1, 1]} : vector<2x384xf32> to vector<2x128xf32>
    %480 = vector.extract_strided_slice %477 {offsets = [0, 0], sizes = [2, 128], strides = [1, 1]} : vector<2x384xf32> to vector<2x128xf32>
    %481 = arith.addf %479, %480 : vector<2x128xf32>
    %482 = arith.negf %481 : vector<2x128xf32>
    %483 = math.exp %482 : vector<2x128xf32>
    %cst_116 = arith.constant 1.000000e+00 : f32
    %484 = vector.broadcast %cst_116 : f32 to vector<2x128xf32>
    %485 = arith.addf %484, %483 : vector<2x128xf32>
    %486 = arith.divf %484, %485 : vector<2x128xf32>
    %487 = vector.extract_strided_slice %478 {offsets = [0, 128], sizes = [2, 128], strides = [1, 1]} : vector<2x384xf32> to vector<2x128xf32>
    %488 = vector.extract_strided_slice %477 {offsets = [0, 128], sizes = [2, 128], strides = [1, 1]} : vector<2x384xf32> to vector<2x128xf32>
    %489 = arith.addf %487, %488 : vector<2x128xf32>
    %490 = arith.negf %489 : vector<2x128xf32>
    %491 = math.exp %490 : vector<2x128xf32>
    %cst_117 = arith.constant 1.000000e+00 : f32
    %492 = vector.broadcast %cst_117 : f32 to vector<2x128xf32>
    %493 = arith.addf %492, %491 : vector<2x128xf32>
    %494 = arith.divf %492, %493 : vector<2x128xf32>
    %495 = vector.extract_strided_slice %478 {offsets = [0, 256], sizes = [2, 128], strides = [1, 1]} : vector<2x384xf32> to vector<2x128xf32>
    %496 = vector.extract_strided_slice %477 {offsets = [0, 256], sizes = [2, 128], strides = [1, 1]} : vector<2x384xf32> to vector<2x128xf32>
    %497 = arith.addf %496, %299 : vector<2x128xf32>
    %498 = arith.mulf %486, %497 : vector<2x128xf32>
    %499 = arith.addf %495, %498 : vector<2x128xf32>
    %500 = math.tanh %499 : vector<2x128xf32>
    %501 = arith.subf %475, %500 : vector<2x128xf32>
    %502 = arith.mulf %494, %501 : vector<2x128xf32>
    %503 = arith.addf %500, %502 : vector<2x128xf32>
    %c12 = arith.constant 12 : index
    %c0_118 = arith.constant 0 : index
    %504 = vector.load %arg30[%c12, %c0_118] : memref<16x128xf32, #tpu.memory_space<vmem>>, vector<2x128xf32>
    tpu.vector_store %arg30[%c12, %c0_118], %503 {strides = array<i32>} : memref<16x128xf32, #tpu.memory_space<vmem>>, vector<2x128xf32>,
    %cst_119 = arith.constant dense<0.000000e+00> : vector<2x384xf32>
    %505 = tpu.matmul %503, %296, %cst_119 {dimension_numbers = #tpu.dot_dimension_numbers<[1], [0], [0], [1], [0, 0, 1, 1], [], []>} : vector<2x128xf32>, vector<128x384xf32>, vector<2x384xf32> -> vector<2x384xf32>
    %506 = vector.extract_strided_slice %295 {offsets = [14, 0], sizes = [2, 384], strides = [1, 1]} : vector<16x384xf32> to vector<2x384xf32>
    %507 = vector.extract_strided_slice %506 {offsets = [0, 0], sizes = [2, 128], strides = [1, 1]} : vector<2x384xf32> to vector<2x128xf32>
    %508 = vector.extract_strided_slice %505 {offsets = [0, 0], sizes = [2, 128], strides = [1, 1]} : vector<2x384xf32> to vector<2x128xf32>
    %509 = arith.addf %507, %508 : vector<2x128xf32>
    %510 = arith.negf %509 : vector<2x128xf32>
    %511 = math.exp %510 : vector<2x128xf32>
    %cst_120 = arith.constant 1.000000e+00 : f32
    %512 = vector.broadcast %cst_120 : f32 to vector<2x128xf32>
    %513 = arith.addf %512, %511 : vector<2x128xf32>
    %514 = arith.divf %512, %513 : vector<2x128xf32>
    %515 = vector.extract_strided_slice %506 {offsets = [0, 128], sizes = [2, 128], strides = [1, 1]} : vector<2x384xf32> to vector<2x128xf32>
    %516 = vector.extract_strided_slice %505 {offsets = [0, 128], sizes = [2, 128], strides = [1, 1]} : vector<2x384xf32> to vector<2x128xf32>
    %517 = arith.addf %515, %516 : vector<2x128xf32>
    %518 = arith.negf %517 : vector<2x128xf32>
    %519 = math.exp %518 : vector<2x128xf32>
    %cst_121 = arith.constant 1.000000e+00 : f32
    %520 = vector.broadcast %cst_121 : f32 to vector<2x128xf32>
    %521 = arith.addf %520, %519 : vector<2x128xf32>
    %522 = arith.divf %520, %521 : vector<2x128xf32>
    %523 = vector.extract_strided_slice %506 {offsets = [0, 256], sizes = [2, 128], strides = [1, 1]} : vector<2x384xf32> to vector<2x128xf32>
    %524 = vector.extract_strided_slice %505 {offsets = [0, 256], sizes = [2, 128], strides = [1, 1]} : vector<2x384xf32> to vector<2x128xf32>
    %525 = arith.addf %524, %299 : vector<2x128xf32>
    %526 = arith.mulf %514, %525 : vector<2x128xf32>
    %527 = arith.addf %523, %526 : vector<2x128xf32>
    %528 = math.tanh %527 : vector<2x128xf32>
    %529 = arith.subf %503, %528 : vector<2x128xf32>
    %530 = arith.mulf %522, %529 : vector<2x128xf32>
    %531 = arith.addf %528, %530 : vector<2x128xf32>
    %c14 = arith.constant 14 : index
    %c0_122 = arith.constant 0 : index
    %532 = vector.load %arg30[%c14, %c0_122] : memref<16x128xf32, #tpu.memory_space<vmem>>, vector<2x128xf32>
    tpu.vector_store %arg30[%c14, %c0_122], %531 {strides = array<i32>} : memref<16x128xf32, #tpu.memory_space<vmem>>, vector<2x128xf32>,
    %c0_123 = arith.constant 0 : index
    %c0_124 = arith.constant 0 : index
    %533 = vector.load %arg30[%c0_123, %c0_124] : memref<16x128xf32, #tpu.memory_space<vmem>>, vector<16x128xf32>
    %c0_125 = arith.constant 0 : index
    %c0_126 = arith.constant 0 : index
    %534 = vector.load %arg26[%c0_125, %c0_126] : memref<128x128xf32, #tpu.memory_space<vmem>>, vector<128x128xf32>
    %cst_127 = arith.constant dense<0.000000e+00> : vector<16x128xf32>
    %535 = tpu.matmul %533, %534, %cst_127 {dimension_numbers = #tpu.dot_dimension_numbers<[1], [0], [0], [1], [0, 0, 1, 1], [], []>} : vector<16x128xf32>, vector<128x128xf32>, vector<16x128xf32> -> vector<16x128xf32>
    %c0_128 = arith.constant 0 : index
    %c0_129 = arith.constant 0 : index
    %536 = vector.load %arg27[%c0_128, %c0_129] : memref<1x128xf32, #tpu.memory_space<vmem>>, vector<1x128xf32>
    %537 = vector.broadcast %536 : vector<1x128xf32> to vector<16x128xf32>
    %538 = arith.addf %535, %537 : vector<16x128xf32>
    %c0_130 = arith.constant 0 : index
    %c0_131 = arith.constant 0 : index
    %539 = vector.load %arg28[%c0_130, %c0_131] : memref<16x128xf32, #tpu.memory_space<vmem>>, vector<16x128xf32>
    tpu.vector_store %arg28[%c0_130, %c0_131], %538 {strides = array<i32>} : memref<16x128xf32, #tpu.memory_space<vmem>>, vector<16x128xf32>,
    return
  }
}

</mosaic_0001>

<llo_original>
// kernel: cvae_forward.1
$region0: #{cvae_forward.1}
  #allocation0 [shape = 'u32[]', space=smem, size = 0x4, offset = 0x4, fixed_abs, tag = 'smem constant byte address 0x4 - core index']
  #allocation1 [shape = 'u32[144,128]{1,0:T(1,128)}', space=vmem, size = 0x12000, scoped, tag = 'internal scratch']
  #allocation2 [shape = 'f32[16,128]{1,0:T(8,128)}', space=vmem, size = 0x2000, scoped, tag = 'scratch operand']
  %s0 = inlined_call_operand.smem [shape: u32[30], index: -1, kind: input, shape index: {}]
  %s1 = sld [smem:[%s0]]
  %s2 = scalar_lea.smem %s0, 1
  %s3 = sld [smem:[%s2]]
  %s4 = scalar_lea.smem %s0, 2
  %s5 = sld [smem:[%s4]]
  %s6 = scalar_lea.smem %s0, 3
  %s7 = sld [smem:[%s6]]
  %s8 = scalar_lea.smem %s0, 4
  %s9 = sld [smem:[%s8]]
  %s10 = scalar_lea.smem %s0, 5
  %s11 = sld [smem:[%s10]]
  %s12 = scalar_lea.smem %s0, 6
  %s13 = sld [smem:[%s12]]
  %s14 = scalar_lea.smem %s0, 7
  %s15 = sld [smem:[%s14]]
  %s16 = scalar_lea.smem %s0, 8
  %s17 = sld [smem:[%s16]]
  %s18 = scalar_lea.smem %s0, 9
  %s19 = sld [smem:[%s18]]
  %s20 = scalar_lea.smem %s0, 10
  %s21 = sld [smem:[%s20]]
  %s22 = scalar_lea.smem %s0, 11
  %s23 = sld [smem:[%s22]]
  %s24 = scalar_lea.smem %s0, 12
  %s25 = sld [smem:[%s24]]
  %s26 = scalar_lea.smem %s0, 13
  %s27 = sld [smem:[%s26]]
  %s28 = scalar_lea.smem %s0, 14
  %s29 = sld [smem:[%s28]]
  %s30 = scalar_lea.smem %s0, 15
  %s31 = sld [smem:[%s30]]
  %s32 = scalar_lea.smem %s0, 16
  %s33 = sld [smem:[%s32]]
  %s34 = scalar_lea.smem %s0, 17
  %s35 = sld [smem:[%s34]]
  %s36 = scalar_lea.smem %s0, 18
  %s37 = sld [smem:[%s36]]
  %s38 = scalar_lea.smem %s0, 19
  %s39 = sld [smem:[%s38]]
  %s40 = scalar_lea.smem %s0, 20
  %s41 = sld [smem:[%s40]]
  %s42 = scalar_lea.smem %s0, 21
  %s43 = sld [smem:[%s42]]
  %s44 = scalar_lea.smem %s0, 22
  %s45 = sld [smem:[%s44]]
  %s46 = scalar_lea.smem %s0, 23
  %s47 = sld [smem:[%s46]]
  %s48 = scalar_lea.smem %s0, 24
  %s49 = sld [smem:[%s48]]
  %s50 = scalar_lea.smem %s0, 25
  %s51 = sld [smem:[%s50]]
  %s52 = scalar_lea.smem %s0, 26
  %s53 = sld [smem:[%s52]]
  %s54 = scalar_lea.smem %s0, 27
  %s55 = sld [smem:[%s54]]
  %s56 = scalar_lea.smem %s0, 28
  %s57 = sld [smem:[%s56]]
  %s58 = scalar_lea.smem %s0, 29
  %s59 = sld [smem:[%s58]]
  %60 = xla_tuple %s57, %s59
  %s61 = sld [smem:[#allocation0]]
  $region210: #{cvae_forward.1} parent=0
    _
  %s63 = ssub.s32 1, %s61
  %s64 = scalar_select 0, %s63, %s61
  $region1: #{cvae_forward.1} parent=0
    #allocation3 [shape = 'u8[49152]{0}', space=vmem, size = 0xc000, scoped, tag = 'input window, operand 5, single buffered']
    #allocation4 [shape = 's32[1]{0}', space=sflag, size = 0x4, scoped, tag = 'scoped memory for cvae_forward.1']
    #allocation5 [shape = 'u8[49152]{0}', space=vmem, size = 0xc000, scoped, tag = 'input window, operand 6, single buffered']
    #allocation6 [shape = 's32[1]{0}', space=sflag, size = 0x4, scoped, tag = 'scoped memory for cvae_forward.1']
    #allocation7 [shape = 'u8[3072]{0}', space=vmem, size = 0xc00, scoped, tag = 'input window, operand 7, single buffered']
    #allocation8 [shape = 'u8[786432]{0}', space=vmem, size = 0xc0000, scoped, tag = 'input window, operand 8, single buffered']
    #allocation9 [shape = 's32[1]{0}', space=sflag, size = 0x4, scoped, tag = 'scoped memory for cvae_forward.1']
    #allocation10 [shape = 'u8[1024]{0}', space=vmem, size = 0x400, scoped, tag = 'input window, operand 9, single buffered']
    #allocation11 [shape = 'u8[512]{0}', space=vmem, size = 0x400, scoped, tag = 'input window, operand 12, single buffered']
    #allocation12 [shape = 's32[1]{0}', space=sflag, size = 0x4, scoped, tag = 'scoped memory for cvae_forward.1']
    #allocation13 [shape = 'u8[8192]{0}', space=vmem, size = 0x2000, scoped, tag = 'input window, operand 13, single buffered']
    #allocation14 [shape = 'u8[512]{0}', space=vmem, size = 0x400, scoped, tag = 'input window, operand 14, single buffered']
    #allocation15 [shape = 's32[1]{0}', space=sflag, size = 0x4, scoped, tag = 'scoped memory for cvae_forward.1']
    #allocation16 [shape = 'u8[16384]{0}', space=vmem, size = 0x4000, scoped, tag = 'input window, operand 15, single buffered']
    #allocation17 [shape = 'u8[512]{0}', space=vmem, size = 0x400, scoped, tag = 'input window, operand 16, single buffered']
    #allocation18 [shape = 's32[1]{0}', space=sflag, size = 0x4, scoped, tag = 'scoped memory for cvae_forward.1']
    #allocation19 [shape = 'u8[8192]{0}', space=vmem, size = 0x2000, scoped, tag = 'input window, operand 17, single buffered']
    #allocation20 [shape = 'u8[512]{0}', space=vmem, size = 0x400, scoped, tag = 'input window, operand 18, single buffered']
    #allocation21 [shape = 's32[1]{0}', space=sflag, size = 0x4, scoped, tag = 'scoped memory for cvae_forward.1']
    #allocation22 [shape = 'u8[49152]{0}', space=vmem, size = 0xc000, scoped, tag = 'input window, operand 19, single buffered']
    #allocation23 [shape = 'u8[1536]{0}', space=vmem, size = 0x800, scoped, tag = 'input window, operand 20, single buffered']
    #allocation24 [shape = 's32[1]{0}', space=sflag, size = 0x4, scoped, tag = 'scoped memory for cvae_forward.1']
    #allocation25 [shape = 'u8[8192]{0}', space=vmem, size = 0x2000, scoped, tag = 'input window, operand 21, single buffered']
    #allocation26 [shape = 'u8[8192]{0}', space=vmem, size = 0x2000, scoped, tag = 'input window, operand 22, single buffered']
    #allocation27 [shape = 's32[1]{0}', space=sflag, size = 0x4, scoped, tag = 'scoped memory for cvae_forward.1']
    #allocation28 [shape = 'u8[512]{0}', space=vmem, size = 0x400, scoped, tag = 'input window, operand 23, single buffered']
    #allocation29 [shape = 'u8[512]{0}', space=vmem, size = 0x400, scoped, tag = 'input window, operand 25, single buffered']
    #allocation30 [shape = 's32[1]{0}', space=sflag, size = 0x4, scoped, tag = 'scoped memory for cvae_forward.1']
    #allocation31 [shape = 'u8[65536]{0}', space=vmem, size = 0x10000, scoped, tag = 'input window, operand 26, single buffered']
    #allocation32 [shape = 'u8[512]{0}', space=vmem, size = 0x400, scoped, tag = 'input window, operand 27, single buffered']
    #allocation33 [shape = 's32[1]{0}', space=sflag, size = 0x4, scoped, tag = 'scoped memory for cvae_forward.1']
    %65 = vsyncpa [#allocation4], 0
    %66 = vsyncpa [#allocation6], 0
    %67 = vsyncpa [#allocation9], 0
    %68 = vsyncpa [#allocation12], 0
    %69 = vsyncpa [#allocation15], 0
    %70 = vsyncpa [#allocation18], 0
    %71 = vsyncpa [#allocation21], 0
    %72 = vsyncpa [#allocation24], 0
    %73 = vsyncpa [#allocation27], 0
    %74 = vsyncpa [#allocation30], 0
    %75 = vsyncpa [#allocation33], 0
    // Predicated region
    $region2: #{cvae_forward.1} parent=1 // pred_check
      _
    $region3: #{cvae_forward.1} parent=1 // pred_check_branch
      %77 = sbr.rel (0) target = $region5
    $region4: #{cvae_forward.1} parent=1 // pred_region
      _
    $region5: #{cvae_forward.1} parent=1 // pred_fallthru
      _
    // Predicated region
    $region6: #{cvae_forward.1} parent=1 // pred_check
      _
    $region7: #{cvae_forward.1} parent=1 // pred_check_branch
      %79 = sbr.rel (0) target = $region9
    $region8: #{cvae_forward.1} parent=1 // pred_region
      _
    $region9: #{cvae_forward.1} parent=1 // pred_fallthru
      _
    // Predicated region
    $region10: #{cvae_forward.1} parent=1 // pred_check
      _
    $region11: #{cvae_forward.1} parent=1 // pred_check_branch
      %81 = sbr.rel (0) target = $region13
    $region12: #{cvae_forward.1} parent=1 // pred_region
      _
    $region13: #{cvae_forward.1} parent=1 // pred_fallthru
      _
    // Predicated region
    $region14: #{cvae_forward.1} parent=1 // pred_check
      _
    $region15: #{cvae_forward.1} parent=1 // pred_check_branch
      %83 = sbr.rel (0) target = $region17
    $region16: #{cvae_forward.1} parent=1 // pred_region
      _
    $region17: #{cvae_forward.1} parent=1 // pred_fallthru
      _
    // Predicated region
    $region18: #{cvae_forward.1} parent=1 // pred_check
      _
    $region19: #{cvae_forward.1} parent=1 // pred_check_branch
      %85 = sbr.rel (0) target = $region21
    $region20: #{cvae_forward.1} parent=1 // pred_region
      _
    $region21: #{cvae_forward.1} parent=1 // pred_fallthru
      _
    // Predicated region
    $region22: #{cvae_forward.1} parent=1 // pred_check
      _
    $region23: #{cvae_forward.1} parent=1 // pred_check_branch
      %87 = sbr.rel (0) target = $region25
    $region24: #{cvae_forward.1} parent=1 // pred_region
      %s89 = ssub.s32 1536, 1536
      %90 = vsyncadd [#allocation4], %s89
      %s91 = sshll.u32 [#allocation3], 4
      %s92 = int_to_ptr.vmem [resolvable:$true] %s91
      %97 = dma.hbm_to_vmem [thread:$0]  %s11, 1536, %s92, [#allocation4], 384, 384, 24
    $region25: #{cvae_forward.1} parent=1 // pred_fallthru
      _
    // Predicated region
    $region26: #{cvae_forward.1} parent=1 // pred_check
      _
    $region27: #{cvae_forward.1} parent=1 // pred_check_branch
      %99 = sbr.rel (0) target = $region29
    $region28: #{cvae_forward.1} parent=1 // pred_region
      %s101 = ssub.s32 1536, 1536
      %102 = vsyncadd [#allocation6], %s101
      %s103 = sshll.u32 [#allocation5], 4
      %s104 = int_to_ptr.vmem [resolvable:$true] %s103
      %109 = dma.hbm_to_vmem [thread:$0]  %s13, 1536, %s104, [#allocation6], 384, 384, 24
    $region29: #{cvae_forward.1} parent=1 // pred_fallthru
      _
    // Predicated region
    $region30: #{cvae_forward.1} parent=1 // pred_check
      _
    $region31: #{cvae_forward.1} parent=1 // pred_check_branch
      %111 = sbr.rel (0) target = $region33
    $region32: #{cvae_forward.1} parent=1 // pred_region
      %s113 = ssub.s32 96, 96
      %114 = vsyncadd [#allocation6], %s113
      %s116 = sshll.u32 [#allocation7], 4
      %s117 = int_to_ptr.vmem [resolvable:$true] %s116
      %119 = dma.hbm_to_vmem [thread:$0]  %s15, 96, %s117, [#allocation6]
    $region33: #{cvae_forward.1} parent=1 // pred_fallthru
      _
    // Predicated region
    $region34: #{cvae_forward.1} parent=1 // pred_check
      _
    $region35: #{cvae_forward.1} parent=1 // pred_check_branch
      %121 = sbr.rel (0) target = $region37
    $region36: #{cvae_forward.1} parent=1 // pred_region
      %s123 = ssub.s32 24576, 24576
      %124 = vsyncadd [#allocation9], %s123
      %s125 = sshll.u32 [#allocation8], 4
      %s126 = int_to_ptr.vmem [resolvable:$true] %s125
      %131 = dma.hbm_to_vmem [thread:$0]  %s17, 24576, %s126, [#allocation9], 768, 768, 48
    $region37: #{cvae_forward.1} parent=1 // pred_fallthru
      _
    // Predicated region
    $region38: #{cvae_forward.1} parent=1 // pred_check
      _
    $region39: #{cvae_forward.1} parent=1 // pred_check_branch
      %133 = sbr.rel (0) target = $region41
    $region40: #{cvae_forward.1} parent=1 // pred_region
      %s135 = ssub.s32 32, 32
      %136 = vsyncadd [#allocation9], %s135
      %s138 = sshll.u32 [#allocation10], 4
      %s139 = int_to_ptr.vmem [resolvable:$true] %s138
      %141 = dma.hbm_to_vmem [thread:$0]  %s19, 32, %s139, [#allocation9]
    $region41: #{cvae_forward.1} parent=1 // pred_fallthru
      _
    // Predicated region
    $region42: #{cvae_forward.1} parent=1 // pred_check
      _
    $region43: #{cvae_forward.1} parent=1 // pred_check_branch
      %143 = sbr.rel (0) target = $region45
    $region44: #{cvae_forward.1} parent=1 // pred_region
      _
    $region45: #{cvae_forward.1} parent=1 // pred_fallthru
      _
    // Predicated region
    $region46: #{cvae_forward.1} parent=1 // pred_check
      _
    $region47: #{cvae_forward.1} parent=1 // pred_check_branch
      %145 = sbr.rel (0) target = $region49
    $region48: #{cvae_forward.1} parent=1 // pred_region
      _
    $region49: #{cvae_forward.1} parent=1 // pred_fallthru
      _
    // Predicated region
    $region50: #{cvae_forward.1} parent=1 // pred_check
      _
    $region51: #{cvae_forward.1} parent=1 // pred_check_branch
      %147 = sbr.rel (0) target = $region53
    $region52: #{cvae_forward.1} parent=1 // pred_region
      %s149 = ssub.s32 16, 16
      %150 = vsyncadd [#allocation12], %s149
      %s152 = sshll.u32 [#allocation11], 4
      %s153 = int_to_ptr.vmem [resolvable:$true] %s152
      %155 = dma.hbm_to_vmem [thread:$0]  %s25, 16, %s153, [#allocation12]
    $region53: #{cvae_forward.1} parent=1 // pred_fallthru
      _
    // Predicated region
    $region54: #{cvae_forward.1} parent=1 // pred_check
      _
    $region55: #{cvae_forward.1} parent=1 // pred_check_branch
      %157 = sbr.rel (0) target = $region57
    $region56: #{cvae_forward.1} parent=1 // pred_region
      %s159 = ssub.s32 256, 256
      %160 = vsyncadd [#allocation12], %s159
      %s161 = sshll.u32 [#allocation13], 4
      %s162 = int_to_ptr.vmem [resolvable:$true] %s161
      %167 = dma.hbm_to_vmem [thread:$0]  %s27, 256, %s162, [#allocation12], 128, 128, 8
    $region57: #{cvae_forward.1} parent=1 // pred_fallthru
      _
    // Predicated region
    $region58: #{cvae_forward.1} parent=1 // pred_check
      _
    $region59: #{cvae_forward.1} parent=1 // pred_check_branch
      %169 = sbr.rel (0) target = $region61
    $region60: #{cvae_forward.1} parent=1 // pred_region
      %s171 = ssub.s32 16, 16
      %172 = vsyncadd [#allocation15], %s171
      %s174 = sshll.u32 [#allocation14], 4
      %s175 = int_to_ptr.vmem [resolvable:$true] %s174
      %177 = dma.hbm_to_vmem [thread:$0]  %s29, 16, %s175, [#allocation15]
    $region61: #{cvae_forward.1} parent=1 // pred_fallthru
      _
    // Predicated region
    $region62: #{cvae_forward.1} parent=1 // pred_check
      _
    $region63: #{cvae_forward.1} parent=1 // pred_check_branch
      %179 = sbr.rel (0) target = $region65
    $region64: #{cvae_forward.1} parent=1 // pred_region
      %s181 = ssub.s32 512, 512
      %182 = vsyncadd [#allocation15], %s181
      %s183 = sshll.u32 [#allocation16], 4
      %s184 = int_to_ptr.vmem [resolvable:$true] %s183
      %189 = dma.hbm_to_vmem [thread:$0]  %s31, 512, %s184, [#allocation15], 128, 128, 8
    $region65: #{cvae_forward.1} parent=1 // pred_fallthru
      _
    // Predicated region
    $region66: #{cvae_forward.1} parent=1 // pred_check
      _
    $region67: #{cvae_forward.1} parent=1 // pred_check_branch
      %191 = sbr.rel (0) target = $region69
    $region68: #{cvae_forward.1} parent=1 // pred_region
      %s193 = ssub.s32 16, 16
      %194 = vsyncadd [#allocation18], %s193
      %s196 = sshll.u32 [#allocation17], 4
      %s197 = int_to_ptr.vmem [resolvable:$true] %s196
      %199 = dma.hbm_to_vmem [thread:$0]  %s33, 16, %s197, [#allocation18]
    $region69: #{cvae_forward.1} parent=1 // pred_fallthru
      _
    // Predicated region
    $region70: #{cvae_forward.1} parent=1 // pred_check
      _
    $region71: #{cvae_forward.1} parent=1 // pred_check_branch
      %201 = sbr.rel (0) target = $region73
    $region72: #{cvae_forward.1} parent=1 // pred_region
      %s203 = ssub.s32 256, 256
      %204 = vsyncadd [#allocation18], %s203
      %s205 = sshll.u32 [#allocation19], 4
      %s206 = int_to_ptr.vmem [resolvable:$true] %s205
      %211 = dma.hbm_to_vmem [thread:$0]  %s35, 256, %s206, [#allocation18], 128, 128, 8
    $region73: #{cvae_forward.1} parent=1 // pred_fallthru
      _
    // Predicated region
    $region74: #{cvae_forward.1} parent=1 // pred_check
      _
    $region75: #{cvae_forward.1} parent=1 // pred_check_branch
      %213 = sbr.rel (0) target = $region77
    $region76: #{cvae_forward.1} parent=1 // pred_region
      %s215 = ssub.s32 16, 16
      %216 = vsyncadd [#allocation21], %s215
      %s218 = sshll.u32 [#allocation20], 4
      %s219 = int_to_ptr.vmem [resolvable:$true] %s218
      %221 = dma.hbm_to_vmem [thread:$0]  %s37, 16, %s219, [#allocation21]
    $region77: #{cvae_forward.1} parent=1 // pred_fallthru
      _
    // Predicated region
    $region78: #{cvae_forward.1} parent=1 // pred_check
      _
    $region79: #{cvae_forward.1} parent=1 // pred_check_branch
      %223 = sbr.rel (0) target = $region81
    $region80: #{cvae_forward.1} parent=1 // pred_region
      %s225 = ssub.s32 1536, 1536
      %226 = vsyncadd [#allocation21], %s225
      %s227 = sshll.u32 [#allocation22], 4
      %s228 = int_to_ptr.vmem [resolvable:$true] %s227
      %233 = dma.hbm_to_vmem [thread:$0]  %s39, 1536, %s228, [#allocation21], 384, 384, 24
    $region81: #{cvae_forward.1} parent=1 // pred_fallthru
      _
    // Predicated region
    $region82: #{cvae_forward.1} parent=1 // pred_check
      _
    $region83: #{cvae_forward.1} parent=1 // pred_check_branch
      %235 = sbr.rel (0) target = $region85
    $region84: #{cvae_forward.1} parent=1 // pred_region
      %s237 = ssub.s32 48, 48
      %238 = vsyncadd [#allocation24], %s237
      %s240 = sshll.u32 [#allocation23], 4
      %s241 = int_to_ptr.vmem [resolvable:$true] %s240
      %243 = dma.hbm_to_vmem [thread:$0]  %s41, 48, %s241, [#allocation24]
    $region85: #{cvae_forward.1} parent=1 // pred_fallthru
      _
    // Predicated region
    $region86: #{cvae_forward.1} parent=1 // pred_check
      _
    $region87: #{cvae_forward.1} parent=1 // pred_check_branch
      %245 = sbr.rel (0) target = $region89
    $region88: #{cvae_forward.1} parent=1 // pred_region
      %s247 = ssub.s32 256, 256
      %248 = vsyncadd [#allocation24], %s247
      %s249 = sshll.u32 [#allocation25], 4
      %s250 = int_to_ptr.vmem [resolvable:$true] %s249
      %255 = dma.hbm_to_vmem [thread:$0]  %s43, 256, %s250, [#allocation24], 128, 128, 8
    $region89: #{cvae_forward.1} parent=1 // pred_fallthru
      _
    // Predicated region
    $region90: #{cvae_forward.1} parent=1 // pred_check
      _
    $region91: #{cvae_forward.1} parent=1 // pred_check_branch
      %257 = sbr.rel (0) target = $region93
    $region92: #{cvae_forward.1} parent=1 // pred_region
      %s259 = ssub.s32 256, 256
      %260 = vsyncadd [#allocation27], %s259
      %s261 = sshll.u32 [#allocation26], 4
      %s262 = int_to_ptr.vmem [resolvable:$true] %s261
      %267 = dma.hbm_to_vmem [thread:$0]  %s45, 256, %s262, [#allocation27], 128, 128, 8
    $region93: #{cvae_forward.1} parent=1 // pred_fallthru
      _
    // Predicated region
    $region94: #{cvae_forward.1} parent=1 // pred_check
      _
    $region95: #{cvae_forward.1} parent=1 // pred_check_branch
      %269 = sbr.rel (0) target = $region97
    $region96: #{cvae_forward.1} parent=1 // pred_region
      %s271 = ssub.s32 16, 16
      %272 = vsyncadd [#allocation27], %s271
      %s274 = sshll.u32 [#allocation28], 4
      %s275 = int_to_ptr.vmem [resolvable:$true] %s274
      %277 = dma.hbm_to_vmem [thread:$0]  %s47, 16, %s275, [#allocation27]
    $region97: #{cvae_forward.1} parent=1 // pred_fallthru
      _
    // Predicated region
    $region98: #{cvae_forward.1} parent=1 // pred_check
      _
    $region99: #{cvae_forward.1} parent=1 // pred_check_branch
      %279 = sbr.rel (0) target = $region101
    $region100: #{cvae_forward.1} parent=1 // pred_region
      _
    $region101: #{cvae_forward.1} parent=1 // pred_fallthru
      _
    // Predicated region
    $region102: #{cvae_forward.1} parent=1 // pred_check
      _
    $region103: #{cvae_forward.1} parent=1 // pred_check_branch
      %281 = sbr.rel (0) target = $region105
    $region104: #{cvae_forward.1} parent=1 // pred_region
      %s283 = ssub.s32 16, 16
      %284 = vsyncadd [#allocation30], %s283
      %s286 = sshll.u32 [#allocation29], 4
      %s287 = int_to_ptr.vmem [resolvable:$true] %s286
      %289 = dma.hbm_to_vmem [thread:$0]  %s51, 16, %s287, [#allocation30]
    $region105: #{cvae_forward.1} parent=1 // pred_fallthru
      _
    // Predicated region
    $region106: #{cvae_forward.1} parent=1 // pred_check
      _
    $region107: #{cvae_forward.1} parent=1 // pred_check_branch
      %291 = sbr.rel (0) target = $region109
    $region108: #{cvae_forward.1} parent=1 // pred_region
      %s293 = ssub.s32 2048, 2048
      %294 = vsyncadd [#allocation30], %s293
      %s295 = sshll.u32 [#allocation31], 4
      %s296 = int_to_ptr.vmem [resolvable:$true] %s295
      %301 = dma.hbm_to_vmem [thread:$0]  %s53, 2048, %s296, [#allocation30], 128, 128, 8
    $region109: #{cvae_forward.1} parent=1 // pred_fallthru
      _
    // Predicated region
    $region110: #{cvae_forward.1} parent=1 // pred_check
      _
    $region111: #{cvae_forward.1} parent=1 // pred_check_branch
      %303 = sbr.rel (0) target = $region113
    $region112: #{cvae_forward.1} parent=1 // pred_region
      %s305 = ssub.s32 16, 16
      %306 = vsyncadd [#allocation33], %s305
      %s308 = sshll.u32 [#allocation32], 4
      %s309 = int_to_ptr.vmem [resolvable:$true] %s308
      %311 = dma.hbm_to_vmem [thread:$0]  %s55, 16, %s309, [#allocation33]
    $region113: #{cvae_forward.1} parent=1 // pred_fallthru
      _
    // Predicated region
    $region114: #{cvae_forward.1} parent=1 // pred_check
      _
    $region115: #{cvae_forward.1} parent=1 // pred_check_branch
      %313 = sbr.rel (0) target = $region117
    $region116: #{cvae_forward.1} parent=1 // pred_region
      %314 = dma.done [#allocation4], 1536
    $region117: #{cvae_forward.1} parent=1 // pred_fallthru
      _
    // Predicated region
    $region118: #{cvae_forward.1} parent=1 // pred_check
      _
    $region119: #{cvae_forward.1} parent=1 // pred_check_branch
      %316 = sbr.rel (0) target = $region121
    $region120: #{cvae_forward.1} parent=1 // pred_region
      %317 = dma.done [#allocation6], 1536
    $region121: #{cvae_forward.1} parent=1 // pred_fallthru
      _
    // Predicated region
    $region122: #{cvae_forward.1} parent=1 // pred_check
      _
    $region123: #{cvae_forward.1} parent=1 // pred_check_branch
      %319 = sbr.rel (0) target = $region125
    $region124: #{cvae_forward.1} parent=1 // pred_region
      %320 = dma.done [#allocation6], 96
    $region125: #{cvae_forward.1} parent=1 // pred_fallthru
      _
    // Predicated region
    $region126: #{cvae_forward.1} parent=1 // pred_check
      _
    $region127: #{cvae_forward.1} parent=1 // pred_check_branch
      %322 = sbr.rel (0) target = $region129
    $region128: #{cvae_forward.1} parent=1 // pred_region
      %323 = dma.done [#allocation9], 24576
    $region129: #{cvae_forward.1} parent=1 // pred_fallthru
      _
    // Predicated region
    $region130: #{cvae_forward.1} parent=1 // pred_check
      _
    $region131: #{cvae_forward.1} parent=1 // pred_check_branch
      %325 = sbr.rel (0) target = $region133
    $region132: #{cvae_forward.1} parent=1 // pred_region
      %326 = dma.done [#allocation9], 32
    $region133: #{cvae_forward.1} parent=1 // pred_fallthru
      _
    // Predicated region
    $region134: #{cvae_forward.1} parent=1 // pred_check
      _
    $region135: #{cvae_forward.1} parent=1 // pred_check_branch
      %328 = sbr.rel (0) target = $region137
    $region136: #{cvae_forward.1} parent=1 // pred_region
      %329 = dma.done [#allocation12], 16
    $region137: #{cvae_forward.1} parent=1 // pred_fallthru
      _
    // Predicated region
    $region138: #{cvae_forward.1} parent=1 // pred_check
      _
    $region139: #{cvae_forward.1} parent=1 // pred_check_branch
      %331 = sbr.rel (0) target = $region141
    $region140: #{cvae_forward.1} parent=1 // pred_region
      %332 = dma.done [#allocation12], 256
    $region141: #{cvae_forward.1} parent=1 // pred_fallthru
      _
    // Predicated region
    $region142: #{cvae_forward.1} parent=1 // pred_check
      _
    $region143: #{cvae_forward.1} parent=1 // pred_check_branch
      %334 = sbr.rel (0) target = $region145
    $region144: #{cvae_forward.1} parent=1 // pred_region
      %335 = dma.done [#allocation15], 16
    $region145: #{cvae_forward.1} parent=1 // pred_fallthru
      _
    // Predicated region
    $region146: #{cvae_forward.1} parent=1 // pred_check
      _
    $region147: #{cvae_forward.1} parent=1 // pred_check_branch
      %337 = sbr.rel (0) target = $region149
    $region148: #{cvae_forward.1} parent=1 // pred_region
      %338 = dma.done [#allocation15], 512
    $region149: #{cvae_forward.1} parent=1 // pred_fallthru
      _
    // Predicated region
    $region150: #{cvae_forward.1} parent=1 // pred_check
      _
    $region151: #{cvae_forward.1} parent=1 // pred_check_branch
      %340 = sbr.rel (0) target = $region153
    $region152: #{cvae_forward.1} parent=1 // pred_region
      %341 = dma.done [#allocation18], 16
    $region153: #{cvae_forward.1} parent=1 // pred_fallthru
      _
    // Predicated region
    $region154: #{cvae_forward.1} parent=1 // pred_check
      _
    $region155: #{cvae_forward.1} parent=1 // pred_check_branch
      %343 = sbr.rel (0) target = $region157
    $region156: #{cvae_forward.1} parent=1 // pred_region
      %344 = dma.done [#allocation18], 256
    $region157: #{cvae_forward.1} parent=1 // pred_fallthru
      _
    // Predicated region
    $region158: #{cvae_forward.1} parent=1 // pred_check
      _
    $region159: #{cvae_forward.1} parent=1 // pred_check_branch
      %346 = sbr.rel (0) target = $region161
    $region160: #{cvae_forward.1} parent=1 // pred_region
      %347 = dma.done [#allocation21], 16
    $region161: #{cvae_forward.1} parent=1 // pred_fallthru
      _
    // Predicated region
    $region162: #{cvae_forward.1} parent=1 // pred_check
      _
    $region163: #{cvae_forward.1} parent=1 // pred_check_branch
      %349 = sbr.rel (0) target = $region165
    $region164: #{cvae_forward.1} parent=1 // pred_region
      %350 = dma.done [#allocation21], 1536
    $region165: #{cvae_forward.1} parent=1 // pred_fallthru
      _
    // Predicated region
    $region166: #{cvae_forward.1} parent=1 // pred_check
      _
    $region167: #{cvae_forward.1} parent=1 // pred_check_branch
      %352 = sbr.rel (0) target = $region169
    $region168: #{cvae_forward.1} parent=1 // pred_region
      %353 = dma.done [#allocation24], 48
    $region169: #{cvae_forward.1} parent=1 // pred_fallthru
      _
    // Predicated region
    $region170: #{cvae_forward.1} parent=1 // pred_check
      _
    $region171: #{cvae_forward.1} parent=1 // pred_check_branch
      %355 = sbr.rel (0) target = $region173
    $region172: #{cvae_forward.1} parent=1 // pred_region
      %356 = dma.done [#allocation24], 256
    $region173: #{cvae_forward.1} parent=1 // pred_fallthru
      _
    // Predicated region
    $region174: #{cvae_forward.1} parent=1 // pred_check
      _
    $region175: #{cvae_forward.1} parent=1 // pred_check_branch
      %358 = sbr.rel (0) target = $region177
    $region176: #{cvae_forward.1} parent=1 // pred_region
      %359 = dma.done [#allocation27], 256
    $region177: #{cvae_forward.1} parent=1 // pred_fallthru
      _
    // Predicated region
    $region178: #{cvae_forward.1} parent=1 // pred_check
      _
    $region179: #{cvae_forward.1} parent=1 // pred_check_branch
      %361 = sbr.rel (0) target = $region181
    $region180: #{cvae_forward.1} parent=1 // pred_region
      %362 = dma.done [#allocation27], 16
    $region181: #{cvae_forward.1} parent=1 // pred_fallthru
      _
    // Predicated region
    $region182: #{cvae_forward.1} parent=1 // pred_check
      _
    $region183: #{cvae_forward.1} parent=1 // pred_check_branch
      %364 = sbr.rel (0) target = $region185
    $region184: #{cvae_forward.1} parent=1 // pred_region
      %365 = dma.done [#allocation30], 16
    $region185: #{cvae_forward.1} parent=1 // pred_fallthru
      _
    // Predicated region
    $region186: #{cvae_forward.1} parent=1 // pred_check
      _
    $region187: #{cvae_forward.1} parent=1 // pred_check_branch
      %367 = sbr.rel (0) target = $region189
    $region188: #{cvae_forward.1} parent=1 // pred_region
      %368 = dma.done [#allocation30], 2048
    $region189: #{cvae_forward.1} parent=1 // pred_fallthru
      _
    // Predicated region
    $region190: #{cvae_forward.1} parent=1 // pred_check
      _
    $region191: #{cvae_forward.1} parent=1 // pred_check_branch
      %370 = sbr.rel (0) target = $region193
    $region192: #{cvae_forward.1} parent=1 // pred_region
      %371 = dma.done [#allocation33], 16
    $region193: #{cvae_forward.1} parent=1 // pred_fallthru
      _
    %v372 = vld [vmem:[%s7] sm:$0x3]
    %v373 = vld [vmem:[%s9] sm:$0x3]
    %v374 = vlaneseq
    %v375 = vand.u32 %v374, 127
    %v376 = vld [vmem:[%s1] sm:$0xff]
    %v377 = vld [vmem:[%s1 + $0x8] sm:$0xff]
    %378 = vset.pattern.permute.xlu0 0
    %379 = vperm.xlu0 %378, %v376
    %v380 = vpop.permute.xlu0 %379
    %381 = vset.pattern.permute.xlu0 0
    %382 = vperm.xlu0 %381, %v377
    %v383 = vpop.permute.xlu0 %382
    %vm384 = vcmp.eq.s32.totalorder %v375, %v380
    %vm385 = vcmp.eq.s32.totalorder %v375, %v383
    %v386 = vsel %vm384, 1, 0
    %v387 = vsel %vm385, 1, 0
    %v388 = vcvt.s32.f32 %v386
    %v389 = vcvt.s32.f32 %v387
    %v390 = vld [vmem:[%s3] sm:$0xff]
    %v391 = vld [vmem:[%s3 + $0x8] sm:$0xff]
    %392 = vset.pattern.permute.xlu0 0
    %393 = vperm.xlu0 %392, %v390
    %v394 = vpop.permute.xlu0 %393
    %395 = vset.pattern.permute.xlu0 0
    %396 = vperm.xlu0 %395, %v391
    %v397 = vpop.permute.xlu0 %396
    %vm398 = vcmp.eq.s32.totalorder %v375, %v394
    %vm399 = vcmp.eq.s32.totalorder %v375, %v397
    %v400 = vsel %vm398, 1, 0
    %v401 = vsel %vm399, 1, 0
    %v402 = vcvt.s32.f32 %v400
    %v403 = vcvt.s32.f32 %v401
    %v404 = vld [vmem:[#allocation3] sm:$0xff]
    %v405 = vld [vmem:[#allocation3 + $0x8] sm:$0xff]
    %v406 = vld [vmem:[#allocation3 + $0x10] sm:$0xff]
    %v407 = vld [vmem:[#allocation3 + $0x18] sm:$0xff]
    %v408 = vld [vmem:[#allocation3 + $0x20] sm:$0xff]
    %v409 = vld [vmem:[#allocation3 + $0x28] sm:$0xff]
    %v410 = vld [vmem:[#allocation3 + $0x30] sm:$0xff]
    %v411 = vld [vmem:[#allocation3 + $0x38] sm:$0xff]
    %v412 = vld [vmem:[#allocation3 + $0x40] sm:$0xff]
    %v413 = vld [vmem:[#allocation3 + $0x48] sm:$0xff]
    %v414 = vld [vmem:[#allocation3 + $0x50] sm:$0xff]
    %v415 = vld [vmem:[#allocation3 + $0x58] sm:$0xff]
    %vm416 = vcmask 261120
    %v418 = vsel %vm416, %v388, 0
    %v421 = vsel %vm416, %v389, 0
    %423 = vmatprep.subr.mxu0 0.0
    %424 = vmatpush1.msra.mxu0 0.0
    %425 = vmatprep.subr.mxu0 0.0
    %426 = vmatpush1.msra.mxu0 0.0
    %427 = vmatprep.subr.mxu0 0.0
    %428 = vmatpush1.msra.mxu0 0.0
    %429 = vmatprep.subr.mxu0 0.0
    %430 = vmatpush1.msra.mxu0 0.0
    %431 = vmatprep.subr.mxu0 0.0
    %432 = vmatpush1.msra.mxu0 0.0
    %433 = vmatprep.subr.mxu0 0.0
    %434 = vmatpush1.msra.mxu0 0.0
    %435 = vmatprep.subr.mxu0 0.0
    %436 = vmatpush1.msra.mxu0 0.0
    %437 = vmatprep.subr.mxu0 0.0
    %438 = vmatpush1.msra.mxu0 0.0
    %439 = vmatprep.subr.mxu0 0.0
    %440 = vmatpush1.msra.mxu0 0.0
    %441 = vmatprep.subr.mxu0 0.0
    %442 = vmatpush1.msra.mxu0 0.0
    %443 = vmatprep.subr.mxu0 0.0
    %444 = vmatpush1.msra.mxu0 0.0
    %445 = vmatprep.subr.mxu0 0.0
    %446 = vmatpush1.msra.mxu0 0.0
    %447 = vmatprep.subr.mxu0 %v414
    %448 = vmatpush1.msra.mxu0 %v413
    %449 = vmatprep.subr.mxu0 %v411
    %450 = vmatpush1.msra.mxu0 %v410
    %451 = vmatprep.subr.mxu0 %v408
    %452 = vmatpush1.msra.mxu0 %v407
    %453 = vmatprep.subr.mxu0 %v405
    %454 = vmatpush1.msra.mxu0 %v404
    %455 = vmatprep.subr.mxu0 0.0
    %456 = vmatpush2.msra.mxu0 0.0
    %457 = vmatprep.subr.mxu0 0.0
    %458 = vmatpush2.msra.mxu0 0.0
    %459 = vmatprep.subr.mxu0 0.0
    %460 = vmatpush2.msra.mxu0 0.0
    %461 = vmatprep.subr.mxu0 0.0
    %462 = vmatpush2.msra.mxu0 0.0
    %463 = vmatprep.subr.mxu0 0.0
    %464 = vmatpush2.msra.mxu0 0.0
    %465 = vmatprep.subr.mxu0 0.0
    %466 = vmatpush2.msra.mxu0 0.0
    %467 = vmatprep.subr.mxu0 0.0
    %468 = vmatpush2.msra.mxu0 0.0
    %469 = vmatprep.subr.mxu0 0.0
    %470 = vmatpush2.msra.mxu0 0.0
    %471 = vmatprep.subr.mxu0 0.0
    %472 = vmatpush2.msra.mxu0 0.0
    %473 = vmatprep.subr.mxu0 0.0
    %474 = vmatpush2.msra.mxu0 0.0
    %475 = vmatprep.subr.mxu0 0.0
    %476 = vmatpush2.msra.mxu0 0.0
    %477 = vmatprep.subr.mxu0 0.0
    %478 = vmatpush2.msra.mxu0 0.0
    %479 = vmatprep.subr.mxu0 0.0
    %480 = vmatpush2.msra.mxu0 0.0
    %481 = vmatprep.subr.mxu0 0.0
    %482 = vmatpush2.msra.mxu0 0.0
    %483 = vmatprep.subr.mxu0 0.0
    %484 = vmatpush2.msra.mxu0 0.0
    %485 = vmatprep.subr.mxu0 0.0
    %486 = vmatpush2.msra.mxu0 0.0
    %487 = vmatprep.mubr.f32.mxu0 0.0
    %488 = vmatmul.mubr.f32.gmra.mxu0 %v418
    %v489 = vpop.f32.mrf.mxu0
    %v490 = vadd.f32 0.0, %v489
    %v491 = vpop.f32.mrf.mxu0
    %v492 = vadd.f32 0.0, %v491
    %493 = vmatprep.mubr.f32.mxu0 0.0
    %494 = vmatmul.mubr.f32.gmra.mxu0 %v421
    %v495 = vpop.f32.mrf.mxu0
    %v496 = vadd.f32 0.0, %v495
    %v497 = vpop.f32.mrf.mxu0
    %v498 = vadd.f32 0.0, %v497
    %499 = vdwg.mxu0
    %500 = vmatprep.subr.mxu0 0.0
    %501 = vmatpush1.msra.mxu0 0.0
    %502 = vmatprep.subr.mxu0 0.0
    %503 = vmatpush1.msra.mxu0 0.0
    %504 = vmatprep.subr.mxu0 0.0
    %505 = vmatpush1.msra.mxu0 0.0
    %506 = vmatprep.subr.mxu0 0.0
    %507 = vmatpush1.msra.mxu0 0.0
    %508 = vmatprep.subr.mxu0 0.0
    %509 = vmatpush1.msra.mxu0 0.0
    %510 = vmatprep.subr.mxu0 0.0
    %511 = vmatpush1.msra.mxu0 0.0
    %512 = vmatprep.subr.mxu0 0.0
    %513 = vmatpush1.msra.mxu0 0.0
    %514 = vmatprep.subr.mxu0 0.0
    %515 = vmatpush1.msra.mxu0 0.0
    %516 = vmatprep.subr.mxu0 0.0
    %517 = vmatpush1.msra.mxu0 0.0
    %518 = vmatprep.subr.mxu0 0.0
    %519 = vmatpush1.msra.mxu0 0.0
    %520 = vmatprep.subr.mxu0 0.0
    %521 = vmatpush1.msra.mxu0 0.0
    %522 = vmatprep.subr.mxu0 0.0
    %523 = vmatpush1.msra.mxu0 0.0
    %524 = vmatprep.subr.mxu0 0.0
    %525 = vmatpush1.msra.mxu0 %v415
    %526 = vmatprep.subr.mxu0 0.0
    %527 = vmatpush1.msra.mxu0 %v412
    %528 = vmatprep.subr.mxu0 0.0
    %529 = vmatpush1.msra.mxu0 %v409
    %530 = vmatprep.subr.mxu0 0.0
    %531 = vmatpush1.msra.mxu0 %v406
    %532 = vmatprep.subr.mxu0 0.0
    %533 = vmatpush2.msra.mxu0 0.0
    %534 = vmatprep.subr.mxu0 0.0
    %535 = vmatpush2.msra.mxu0 0.0
    %536 = vmatprep.subr.mxu0 0.0
    %537 = vmatpush2.msra.mxu0 0.0
    %538 = vmatprep.subr.mxu0 0.0
    %539 = vmatpush2.msra.mxu0 0.0
    %540 = vmatprep.subr.mxu0 0.0
    %541 = vmatpush2.msra.mxu0 0.0
    %542 = vmatprep.subr.mxu0 0.0
    %543 = vmatpush2.msra.mxu0 0.0
    %544 = vmatprep.subr.mxu0 0.0
    %545 = vmatpush2.msra.mxu0 0.0
    %546 = vmatprep.subr.mxu0 0.0
    %547 = vmatpush2.msra.mxu0 0.0
    %548 = vmatprep.subr.mxu0 0.0
    %549 = vmatpush2.msra.mxu0 0.0
    %550 = vmatprep.subr.mxu0 0.0
    %551 = vmatpush2.msra.mxu0 0.0
    %552 = vmatprep.subr.mxu0 0.0
    %553 = vmatpush2.msra.mxu0 0.0
    %554 = vmatprep.subr.mxu0 0.0
    %555 = vmatpush2.msra.mxu0 0.0
    %556 = vmatprep.subr.mxu0 0.0
    %557 = vmatpush2.msra.mxu0 0.0
    %558 = vmatprep.subr.mxu0 0.0
    %559 = vmatpush2.msra.mxu0 0.0
    %560 = vmatprep.subr.mxu0 0.0
    %561 = vmatpush2.msra.mxu0 0.0
    %562 = vmatprep.subr.mxu0 0.0
    %563 = vmatpush2.msra.mxu0 0.0
    %564 = vmatprep.mubr.f32.mxu0 0.0
    %565 = vmatmul.mubr.f32.gmra.mxu0 %v418
    %v566 = vpop.f32.mrf.mxu0
    %v567 = vadd.f32 0.0, %v566
    %v568 = vpop.f32.mrf.mxu0
    %569 = vmatprep.mubr.f32.mxu0 0.0
    %570 = vmatmul.mubr.f32.gmra.mxu0 %v421
    %v571 = vpop.f32.mrf.mxu0
    %v572 = vadd.f32 0.0, %v571
    %v573 = vpop.f32.mrf.mxu0
    %574 = vdwg.mxu0
    %v575 = vld [vmem:[#allocation5] sm:$0xff]
    %v576 = vld [vmem:[#allocation5 + $0x8] sm:$0xff]
    %v577 = vld [vmem:[#allocation5 + $0x10] sm:$0xff]
    %v578 = vld [vmem:[#allocation5 + $0x18] sm:$0xff]
    %v579 = vld [vmem:[#allocation5 + $0x20] sm:$0xff]
    %v580 = vld [vmem:[#allocation5 + $0x28] sm:$0xff]
    %v581 = vld [vmem:[#allocation5 + $0x30] sm:$0xff]
    %v582 = vld [vmem:[#allocation5 + $0x38] sm:$0xff]
    %v583 = vld [vmem:[#allocation5 + $0x40] sm:$0xff]
    %v584 = vld [vmem:[#allocation5 + $0x48] sm:$0xff]
    %v585 = vld [vmem:[#allocation5 + $0x50] sm:$0xff]
    %v586 = vld [vmem:[#allocation5 + $0x58] sm:$0xff]
    %v588 = vsel %vm416, %v402, 0
    %v591 = vsel %vm416, %v403, 0
    %593 = vmatprep.subr.mxu0 0.0
    %594 = vmatpush1.msra.mxu0 0.0
    %595 = vmatprep.subr.mxu0 0.0
    %596 = vmatpush1.msra.mxu0 0.0
    %597 = vmatprep.subr.mxu0 0.0
    %598 = vmatpush1.msra.mxu0 0.0
    %599 = vmatprep.subr.mxu0 0.0
    %600 = vmatpush1.msra.mxu0 0.0
    %601 = vmatprep.subr.mxu0 0.0
    %602 = vmatpush1.msra.mxu0 0.0
    %603 = vmatprep.subr.mxu0 0.0
    %604 = vmatpush1.msra.mxu0 0.0
    %605 = vmatprep.subr.mxu0 0.0
    %606 = vmatpush1.msra.mxu0 0.0
    %607 = vmatprep.subr.mxu0 0.0
    %608 = vmatpush1.msra.mxu0 0.0
    %609 = vmatprep.subr.mxu0 0.0
    %610 = vmatpush1.msra.mxu0 0.0
    %611 = vmatprep.subr.mxu0 0.0
    %612 = vmatpush1.msra.mxu0 0.0
    %613 = vmatprep.subr.mxu0 0.0
    %614 = vmatpush1.msra.mxu0 0.0
    %615 = vmatprep.subr.mxu0 0.0
    %616 = vmatpush1.msra.mxu0 0.0
    %617 = vmatprep.subr.mxu0 %v585
    %618 = vmatpush1.msra.mxu0 %v584
    %619 = vmatprep.subr.mxu0 %v582
    %620 = vmatpush1.msra.mxu0 %v581
    %621 = vmatprep.subr.mxu0 %v579
    %622 = vmatpush1.msra.mxu0 %v578
    %623 = vmatprep.subr.mxu0 %v576
    %624 = vmatpush1.msra.mxu0 %v575
    %625 = vmatprep.subr.mxu0 0.0
    %626 = vmatpush2.msra.mxu0 0.0
    %627 = vmatprep.subr.mxu0 0.0
    %628 = vmatpush2.msra.mxu0 0.0
    %629 = vmatprep.subr.mxu0 0.0
    %630 = vmatpush2.msra.mxu0 0.0
    %631 = vmatprep.subr.mxu0 0.0
    %632 = vmatpush2.msra.mxu0 0.0
    %633 = vmatprep.subr.mxu0 0.0
    %634 = vmatpush2.msra.mxu0 0.0
    %635 = vmatprep.subr.mxu0 0.0
    %636 = vmatpush2.msra.mxu0 0.0
    %637 = vmatprep.subr.mxu0 0.0
    %638 = vmatpush2.msra.mxu0 0.0
    %639 = vmatprep.subr.mxu0 0.0
    %640 = vmatpush2.msra.mxu0 0.0
    %641 = vmatprep.subr.mxu0 0.0
    %642 = vmatpush2.msra.mxu0 0.0
    %643 = vmatprep.subr.mxu0 0.0
    %644 = vmatpush2.msra.mxu0 0.0
    %645 = vmatprep.subr.mxu0 0.0
    %646 = vmatpush2.msra.mxu0 0.0
    %647 = vmatprep.subr.mxu0 0.0
    %648 = vmatpush2.msra.mxu0 0.0
    %649 = vmatprep.subr.mxu0 0.0
    %650 = vmatpush2.msra.mxu0 0.0
    %651 = vmatprep.subr.mxu0 0.0
    %652 = vmatpush2.msra.mxu0 0.0
    %653 = vmatprep.subr.mxu0 0.0
    %654 = vmatpush2.msra.mxu0 0.0
    %655 = vmatprep.subr.mxu0 0.0
    %656 = vmatpush2.msra.mxu0 0.0
    %657 = vmatprep.mubr.f32.mxu0 0.0
    %658 = vmatmul.mubr.f32.gmra.mxu0 %v588
    %v659 = vpop.f32.mrf.mxu0
    %v660 = vadd.f32 0.0, %v659
    %v661 = vpop.f32.mrf.mxu0
    %v662 = vadd.f32 0.0, %v661
    %663 = vmatprep.mubr.f32.mxu0 0.0
    %664 = vmatmul.mubr.f32.gmra.mxu0 %v591
    %v665 = vpop.f32.mrf.mxu0
    %v666 = vadd.f32 0.0, %v665
    %v667 = vpop.f32.mrf.mxu0
    %v668 = vadd.f32 0.0, %v667
    %669 = vdwg.mxu0
    %670 = vmatprep.subr.mxu0 0.0
    %671 = vmatpush1.msra.mxu0 0.0
    %672 = vmatprep.subr.mxu0 0.0
    %673 = vmatpush1.msra.mxu0 0.0
    %674 = vmatprep.subr.mxu0 0.0
    %675 = vmatpush1.msra.mxu0 0.0
    %676 = vmatprep.subr.mxu0 0.0
    %677 = vmatpush1.msra.mxu0 0.0
    %678 = vmatprep.subr.mxu0 0.0
    %679 = vmatpush1.msra.mxu0 0.0
    %680 = vmatprep.subr.mxu0 0.0
    %681 = vmatpush1.msra.mxu0 0.0
    %682 = vmatprep.subr.mxu0 0.0
    %683 = vmatpush1.msra.mxu0 0.0
    %684 = vmatprep.subr.mxu0 0.0
    %685 = vmatpush1.msra.mxu0 0.0
    %686 = vmatprep.subr.mxu0 0.0
    %687 = vmatpush1.msra.mxu0 0.0
    %688 = vmatprep.subr.mxu0 0.0
    %689 = vmatpush1.msra.mxu0 0.0
    %690 = vmatprep.subr.mxu0 0.0
    %691 = vmatpush1.msra.mxu0 0.0
    %692 = vmatprep.subr.mxu0 0.0
    %693 = vmatpush1.msra.mxu0 0.0
    %694 = vmatprep.subr.mxu0 0.0
    %695 = vmatpush1.msra.mxu0 %v586
    %696 = vmatprep.subr.mxu0 0.0
    %697 = vmatpush1.msra.mxu0 %v583
    %698 = vmatprep.subr.mxu0 0.0
    %699 = vmatpush1.msra.mxu0 %v580
    %700 = vmatprep.subr.mxu0 0.0
    %701 = vmatpush1.msra.mxu0 %v577
    %702 = vmatprep.subr.mxu0 0.0
    %703 = vmatpush2.msra.mxu0 0.0
    %704 = vmatprep.subr.mxu0 0.0
    %705 = vmatpush2.msra.mxu0 0.0
    %706 = vmatprep.subr.mxu0 0.0
    %707 = vmatpush2.msra.mxu0 0.0
    %708 = vmatprep.subr.mxu0 0.0
    %709 = vmatpush2.msra.mxu0 0.0
    %710 = vmatprep.subr.mxu0 0.0
    %711 = vmatpush2.msra.mxu0 0.0
    %712 = vmatprep.subr.mxu0 0.0
    %713 = vmatpush2.msra.mxu0 0.0
    %714 = vmatprep.subr.mxu0 0.0
    %715 = vmatpush2.msra.mxu0 0.0
    %716 = vmatprep.subr.mxu0 0.0
    %717 = vmatpush2.msra.mxu0 0.0
    %718 = vmatprep.subr.mxu0 0.0
    %719 = vmatpush2.msra.mxu0 0.0
    %720 = vmatprep.subr.mxu0 0.0
    %721 = vmatpush2.msra.mxu0 0.0
    %722 = vmatprep.subr.mxu0 0.0
    %723 = vmatpush2.msra.mxu0 0.0
    %724 = vmatprep.subr.mxu0 0.0
    %725 = vmatpush2.msra.mxu0 0.0
    %726 = vmatprep.subr.mxu0 0.0
    %727 = vmatpush2.msra.mxu0 0.0
    %728 = vmatprep.subr.mxu0 0.0
    %729 = vmatpush2.msra.mxu0 0.0
    %730 = vmatprep.subr.mxu0 0.0
    %731 = vmatpush2.msra.mxu0 0.0
    %732 = vmatprep.subr.mxu0 0.0
    %733 = vmatpush2.msra.mxu0 0.0
    %734 = vmatprep.mubr.f32.mxu0 0.0
    %735 = vmatmul.mubr.f32.gmra.mxu0 %v588
    %v736 = vpop.f32.mrf.mxu0
    %v737 = vadd.f32 0.0, %v736
    %v738 = vpop.f32.mrf.mxu0
    %739 = vmatprep.mubr.f32.mxu0 0.0
    %740 = vmatmul.mubr.f32.gmra.mxu0 %v591
    %v741 = vpop.f32.mrf.mxu0
    %v742 = vadd.f32 0.0, %v741
    %v743 = vpop.f32.mrf.mxu0
    %744 = vdwg.mxu0
    %v745 = vld [vmem:[#allocation7] sm:$0x3f]
    %v747 = vlaneseq
    %v748 = vshrl.u32 %v747, 7
    %v749 = vsub.s32 0, %v748
    %v750 = vrot.slane %v745, %v749
    %v751 = vlaneseq
    %v752 = vshrl.u32 %v751, 7
    %v753 = vsub.s32 1, %v752
    %v754 = vrot.slane %v745, %v753
    %v755 = vlaneseq
    %v756 = vshrl.u32 %v755, 7
    %v757 = vsub.s32 2, %v756
    %v758 = vrot.slane %v745, %v757
    %v759 = vlaneseq
    %v760 = vshrl.u32 %v759, 7
    %v761 = vsub.s32 3, %v760
    %v762 = vrot.slane %v745, %v761
    %v763 = vlaneseq
    %v764 = vshrl.u32 %v763, 7
    %v765 = vsub.s32 4, %v764
    %v766 = vrot.slane %v745, %v765
    %v767 = vlaneseq
    %v768 = vshrl.u32 %v767, 7
    %v769 = vsub.s32 5, %v768
    %v770 = vrot.slane %v745, %v769
    %v777 = vadd.f32 %v490, %v750
    %v778 = vadd.f32 %v660, %v754
    %v779 = vadd.f32 %v492, %v758
    %v780 = vadd.f32 %v662, %v762
    %v781 = vadd.f32 %v567, %v766
    %v782 = vadd.f32 %v737, %v770
    %v783 = vadd.f32 %v496, %v750
    %v784 = vadd.f32 %v666, %v754
    %v785 = vadd.f32 %v498, %v758
    %v786 = vadd.f32 %v668, %v762
    %v787 = vadd.f32 %v572, %v766
    %v788 = vadd.f32 %v742, %v770
    %v789 = vld [vmem:[#allocation8] sm:$0xff]
    %v790 = vld [vmem:[#allocation8 + $0x8] sm:$0xff]
    %v791 = vld [vmem:[#allocation8 + $0x10] sm:$0xff]
    %v792 = vld [vmem:[#allocation8 + $0x18] sm:$0xff]
    %v793 = vld [vmem:[#allocation8 + $0x20] sm:$0xff]
    %v794 = vld [vmem:[#allocation8 + $0x28] sm:$0xff]
    %v795 = vld [vmem:[#allocation8 + $0x30] sm:$0xff]
    %v796 = vld [vmem:[#allocation8 + $0x38] sm:$0xff]
    %v797 = vld [vmem:[#allocation8 + $0x40] sm:$0xff]
    %v798 = vld [vmem:[#allocation8 + $0x48] sm:$0xff]
    %v799 = vld [vmem:[#allocation8 + $0x50] sm:$0xff]
    %v800 = vld [vmem:[#allocation8 + $0x58] sm:$0xff]
    %v801 = vld [vmem:[#allocation8 + $0x60] sm:$0xff]
    %v802 = vld [vmem:[#allocation8 + $0x68] sm:$0xff]
    %v803 = vld [vmem:[#allocation8 + $0x70] sm:$0xff]
    %v804 = vld [vmem:[#allocation8 + $0x78] sm:$0xff]
    %v805 = vld [vmem:[#allocation8 + $0x80] sm:$0xff]
    %v806 = vld [vmem:[#allocation8 + $0x88] sm:$0xff]
    %v807 = vld [vmem:[#allocation8 + $0x90] sm:$0xff]
    %v808 = vld [vmem:[#allocation8 + $0x98] sm:$0xff]
    %v809 = vld [vmem:[#allocation8 + $0xa0] sm:$0xff]
    %v810 = vld [vmem:[#allocation8 + $0xa8] sm:$0xff]
    %v811 = vld [vmem:[#allocation8 + $0xb0] sm:$0xff]
    %v812 = vld [vmem:[#allocation8 + $0xb8] sm:$0xff]
    %v813 = vld [vmem:[#allocation8 + $0xc0] sm:$0xff]
    %v814 = vld [vmem:[#allocation8 + $0xc8] sm:$0xff]
    %v815 = vld [vmem:[#allocation8 + $0xd0] sm:$0xff]
    %v816 = vld [vmem:[#allocation8 + $0xd8] sm:$0xff]
    %v817 = vld [vmem:[#allocation8 + $0xe0] sm:$0xff]
    %v818 = vld [vmem:[#allocation8 + $0xe8] sm:$0xff]
    %v819 = vld [vmem:[#allocation8 + $0xf0] sm:$0xff]
    %v820 = vld [vmem:[#allocation8 + $0xf8] sm:$0xff]
    %v821 = vld [vmem:[#allocation8 + $0x100] sm:$0xff]
    %v822 = vld [vmem:[#allocation8 + $0x108] sm:$0xff]
    %v823 = vld [vmem:[#allocation8 + $0x110] sm:$0xff]
    %v824 = vld [vmem:[#allocation8 + $0x118] sm:$0xff]
    %v825 = vld [vmem:[#allocation8 + $0x120] sm:$0xff]
    %v826 = vld [vmem:[#allocation8 + $0x128] sm:$0xff]
    %v827 = vld [vmem:[#allocation8 + $0x130] sm:$0xff]
    %v828 = vld [vmem:[#allocation8 + $0x138] sm:$0xff]
    %v829 = vld [vmem:[#allocation8 + $0x140] sm:$0xff]
    %v830 = vld [vmem:[#allocation8 + $0x148] sm:$0xff]
    %v831 = vld [vmem:[#allocation8 + $0x150] sm:$0xff]
    %v832 = vld [vmem:[#allocation8 + $0x158] sm:$0xff]
    %v833 = vld [vmem:[#allocation8 + $0x160] sm:$0xff]
    %v834 = vld [vmem:[#allocation8 + $0x168] sm:$0xff]
    %v835 = vld [vmem:[#allocation8 + $0x170] sm:$0xff]
    %v836 = vld [vmem:[#allocation8 + $0x178] sm:$0xff]
    %v837 = vld [vmem:[#allocation8 + $0x180] sm:$0xff]
    %v838 = vld [vmem:[#allocation8 + $0x188] sm:$0xff]
    %v839 = vld [vmem:[#allocation8 + $0x190] sm:$0xff]
    %v840 = vld [vmem:[#allocation8 + $0x198] sm:$0xff]
    %v841 = vld [vmem:[#allocation8 + $0x1a0] sm:$0xff]
    %v842 = vld [vmem:[#allocation8 + $0x1a8] sm:$0xff]
    %v843 = vld [vmem:[#allocation8 + $0x1b0] sm:$0xff]
    %v844 = vld [vmem:[#allocation8 + $0x1b8] sm:$0xff]
    %v845 = vld [vmem:[#allocation8 + $0x1c0] sm:$0xff]
    %v846 = vld [vmem:[#allocation8 + $0x1c8] sm:$0xff]
    %v847 = vld [vmem:[#allocation8 + $0x1d0] sm:$0xff]
    %v848 = vld [vmem:[#allocation8 + $0x1d8] sm:$0xff]
    %v849 = vld [vmem:[#allocation8 + $0x1e0] sm:$0xff]
    %v850 = vld [vmem:[#allocation8 + $0x1e8] sm:$0xff]
    %v851 = vld [vmem:[#allocation8 + $0x1f0] sm:$0xff]
    %v852 = vld [vmem:[#allocation8 + $0x1f8] sm:$0xff]
    %v853 = vld [vmem:[#allocation8 + $0x200] sm:$0xff]
    %v854 = vld [vmem:[#allocation8 + $0x208] sm:$0xff]
    %v855 = vld [vmem:[#allocation8 + $0x210] sm:$0xff]
    %v856 = vld [vmem:[#allocation8 + $0x218] sm:$0xff]
    %v857 = vld [vmem:[#allocation8 + $0x220] sm:$0xff]
    %v858 = vld [vmem:[#allocation8 + $0x228] sm:$0xff]
    %v859 = vld [vmem:[#allocation8 + $0x230] sm:$0xff]
    %v860 = vld [vmem:[#allocation8 + $0x238] sm:$0xff]
    %v861 = vld [vmem:[#allocation8 + $0x240] sm:$0xff]
    %v862 = vld [vmem:[#allocation8 + $0x248] sm:$0xff]
    %v863 = vld [vmem:[#allocation8 + $0x250] sm:$0xff]
    %v864 = vld [vmem:[#allocation8 + $0x258] sm:$0xff]
    %v865 = vld [vmem:[#allocation8 + $0x260] sm:$0xff]
    %v866 = vld [vmem:[#allocation8 + $0x268] sm:$0xff]
    %v867 = vld [vmem:[#allocation8 + $0x270] sm:$0xff]
    %v868 = vld [vmem:[#allocation8 + $0x278] sm:$0xff]
    %v869 = vld [vmem:[#allocation8 + $0x280] sm:$0xff]
    %v870 = vld [vmem:[#allocation8 + $0x288] sm:$0xff]
    %v871 = vld [vmem:[#allocation8 + $0x290] sm:$0xff]
    %v872 = vld [vmem:[#allocation8 + $0x298] sm:$0xff]
    %v873 = vld [vmem:[#allocation8 + $0x2a0] sm:$0xff]
    %v874 = vld [vmem:[#allocation8 + $0x2a8] sm:$0xff]
    %v875 = vld [vmem:[#allocation8 + $0x2b0] sm:$0xff]
    %v876 = vld [vmem:[#allocation8 + $0x2b8] sm:$0xff]
    %v877 = vld [vmem:[#allocation8 + $0x2c0] sm:$0xff]
    %v878 = vld [vmem:[#allocation8 + $0x2c8] sm:$0xff]
    %v879 = vld [vmem:[#allocation8 + $0x2d0] sm:$0xff]
    %v880 = vld [vmem:[#allocation8 + $0x2d8] sm:$0xff]
    %v881 = vld [vmem:[#allocation8 + $0x2e0] sm:$0xff]
    %v882 = vld [vmem:[#allocation8 + $0x2e8] sm:$0xff]
    %v883 = vld [vmem:[#allocation8 + $0x2f0] sm:$0xff]
    %v884 = vld [vmem:[#allocation8 + $0x2f8] sm:$0xff]
    %v885 = vld [vmem:[#allocation8 + $0x300] sm:$0xff]
    %v886 = vld [vmem:[#allocation8 + $0x308] sm:$0xff]
    %v887 = vld [vmem:[#allocation8 + $0x310] sm:$0xff]
    %v888 = vld [vmem:[#allocation8 + $0x318] sm:$0xff]
    %v889 = vld [vmem:[#allocation8 + $0x320] sm:$0xff]
    %v890 = vld [vmem:[#allocation8 + $0x328] sm:$0xff]
    %v891 = vld [vmem:[#allocation8 + $0x330] sm:$0xff]
    %v892 = vld [vmem:[#allocation8 + $0x338] sm:$0xff]
    %v893 = vld [vmem:[#allocation8 + $0x340] sm:$0xff]
    %v894 = vld [vmem:[#allocation8 + $0x348] sm:$0xff]
    %v895 = vld [vmem:[#allocation8 + $0x350] sm:$0xff]
    %v896 = vld [vmem:[#allocation8 + $0x358] sm:$0xff]
    %v897 = vld [vmem:[#allocation8 + $0x360] sm:$0xff]
    %v898 = vld [vmem:[#allocation8 + $0x368] sm:$0xff]
    %v899 = vld [vmem:[#allocation8 + $0x370] sm:$0xff]
    %v900 = vld [vmem:[#allocation8 + $0x378] sm:$0xff]
    %v901 = vld [vmem:[#allocation8 + $0x380] sm:$0xff]
    %v902 = vld [vmem:[#allocation8 + $0x388] sm:$0xff]
    %v903 = vld [vmem:[#allocation8 + $0x390] sm:$0xff]
    %v904 = vld [vmem:[#allocation8 + $0x398] sm:$0xff]
    %v905 = vld [vmem:[#allocation8 + $0x3a0] sm:$0xff]
    %v906 = vld [vmem:[#allocation8 + $0x3a8] sm:$0xff]
    %v907 = vld [vmem:[#allocation8 + $0x3b0] sm:$0xff]
    %v908 = vld [vmem:[#allocation8 + $0x3b8] sm:$0xff]
    %v909 = vld [vmem:[#allocation8 + $0x3c0] sm:$0xff]
    %v910 = vld [vmem:[#allocation8 + $0x3c8] sm:$0xff]
    %v911 = vld [vmem:[#allocation8 + $0x3d0] sm:$0xff]
    %v912 = vld [vmem:[#allocation8 + $0x3d8] sm:$0xff]
    %v913 = vld [vmem:[#allocation8 + $0x3e0] sm:$0xff]
    %v914 = vld [vmem:[#allocation8 + $0x3e8] sm:$0xff]
    %v915 = vld [vmem:[#allocation8 + $0x3f0] sm:$0xff]
    %v916 = vld [vmem:[#allocation8 + $0x3f8] sm:$0xff]
    %v917 = vld [vmem:[#allocation8 + $0x400] sm:$0xff]
    %v918 = vld [vmem:[#allocation8 + $0x408] sm:$0xff]
    %v919 = vld [vmem:[#allocation8 + $0x410] sm:$0xff]
    %v920 = vld [vmem:[#allocation8 + $0x418] sm:$0xff]
    %v921 = vld [vmem:[#allocation8 + $0x420] sm:$0xff]
    %v922 = vld [vmem:[#allocation8 + $0x428] sm:$0xff]
    %v923 = vld [vmem:[#allocation8 + $0x430] sm:$0xff]
    %v924 = vld [vmem:[#allocation8 + $0x438] sm:$0xff]
    %v925 = vld [vmem:[#allocation8 + $0x440] sm:$0xff]
    %v926 = vld [vmem:[#allocation8 + $0x448] sm:$0xff]
    %v927 = vld [vmem:[#allocation8 + $0x450] sm:$0xff]
    %v928 = vld [vmem:[#allocation8 + $0x458] sm:$0xff]
    %v929 = vld [vmem:[#allocation8 + $0x460] sm:$0xff]
    %v930 = vld [vmem:[#allocation8 + $0x468] sm:$0xff]
    %v931 = vld [vmem:[#allocation8 + $0x470] sm:$0xff]
    %v932 = vld [vmem:[#allocation8 + $0x478] sm:$0xff]
    %v933 = vld [vmem:[#allocation8 + $0x480] sm:$0xff]
    %v934 = vld [vmem:[#allocation8 + $0x488] sm:$0xff]
    %v935 = vld [vmem:[#allocation8 + $0x490] sm:$0xff]
    %v936 = vld [vmem:[#allocation8 + $0x498] sm:$0xff]
    %v937 = vld [vmem:[#allocation8 + $0x4a0] sm:$0xff]
    %v938 = vld [vmem:[#allocation8 + $0x4a8] sm:$0xff]
    %v939 = vld [vmem:[#allocation8 + $0x4b0] sm:$0xff]
    %v940 = vld [vmem:[#allocation8 + $0x4b8] sm:$0xff]
    %v941 = vld [vmem:[#allocation8 + $0x4c0] sm:$0xff]
    %v942 = vld [vmem:[#allocation8 + $0x4c8] sm:$0xff]
    %v943 = vld [vmem:[#allocation8 + $0x4d0] sm:$0xff]
    %v944 = vld [vmem:[#allocation8 + $0x4d8] sm:$0xff]
    %v945 = vld [vmem:[#allocation8 + $0x4e0] sm:$0xff]
    %v946 = vld [vmem:[#allocation8 + $0x4e8] sm:$0xff]
    %v947 = vld [vmem:[#allocation8 + $0x4f0] sm:$0xff]
    %v948 = vld [vmem:[#allocation8 + $0x4f8] sm:$0xff]
    %v949 = vld [vmem:[#allocation8 + $0x500] sm:$0xff]
    %v950 = vld [vmem:[#allocation8 + $0x508] sm:$0xff]
    %v951 = vld [vmem:[#allocation8 + $0x510] sm:$0xff]
    %v952 = vld [vmem:[#allocation8 + $0x518] sm:$0xff]
    %v953 = vld [vmem:[#allocation8 + $0x520] sm:$0xff]
    %v954 = vld [vmem:[#allocation8 + $0x528] sm:$0xff]
    %v955 = vld [vmem:[#allocation8 + $0x530] sm:$0xff]
    %v956 = vld [vmem:[#allocation8 + $0x538] sm:$0xff]
    %v957 = vld [vmem:[#allocation8 + $0x540] sm:$0xff]
    %v958 = vld [vmem:[#allocation8 + $0x548] sm:$0xff]
    %v959 = vld [vmem:[#allocation8 + $0x550] sm:$0xff]
    %v960 = vld [vmem:[#allocation8 + $0x558] sm:$0xff]
    %v961 = vld [vmem:[#allocation8 + $0x560] sm:$0xff]
    %v962 = vld [vmem:[#allocation8 + $0x568] sm:$0xff]
    %v963 = vld [vmem:[#allocation8 + $0x570] sm:$0xff]
    %v964 = vld [vmem:[#allocation8 + $0x578] sm:$0xff]
    %v965 = vld [vmem:[#allocation8 + $0x580] sm:$0xff]
    %v966 = vld [vmem:[#allocation8 + $0x588] sm:$0xff]
    %v967 = vld [vmem:[#allocation8 + $0x590] sm:$0xff]
    %v968 = vld [vmem:[#allocation8 + $0x598] sm:$0xff]
    %v969 = vld [vmem:[#allocation8 + $0x5a0] sm:$0xff]
    %v970 = vld [vmem:[#allocation8 + $0x5a8] sm:$0xff]
    %v971 = vld [vmem:[#allocation8 + $0x5b0] sm:$0xff]
    %v972 = vld [vmem:[#allocation8 + $0x5b8] sm:$0xff]
    %v973 = vld [vmem:[#allocation8 + $0x5c0] sm:$0xff]
    %v974 = vld [vmem:[#allocation8 + $0x5c8] sm:$0xff]
    %v975 = vld [vmem:[#allocation8 + $0x5d0] sm:$0xff]
    %v976 = vld [vmem:[#allocation8 + $0x5d8] sm:$0xff]
    %v977 = vld [vmem:[#allocation8 + $0x5e0] sm:$0xff]
    %v978 = vld [vmem:[#allocation8 + $0x5e8] sm:$0xff]
    %v979 = vld [vmem:[#allocation8 + $0x5f0] sm:$0xff]
    %v980 = vld [vmem:[#allocation8 + $0x5f8] sm:$0xff]
    %v981 = vld [vmem:[#allocation10] sm:$0x3]
    %v983 = vlaneseq
    %v984 = vshrl.u32 %v983, 7
    %v985 = vsub.s32 0, %v984
    %v986 = vrot.slane %v981, %v985
    %v987 = vlaneseq
    %v988 = vshrl.u32 %v987, 7
    %v989 = vsub.s32 1, %v988
    %v990 = vrot.slane %v981, %v989
    %993 = vmatprep.subr.mxu0 %v880
    %994 = vmatpush1.msra.mxu0 %v879
    %995 = vmatprep.subr.mxu0 %v874
    %996 = vmatpush1.msra.mxu0 %v873
    %997 = vmatprep.subr.mxu0 %v868
    %998 = vmatpush1.msra.mxu0 %v867
    %999 = vmatprep.subr.mxu0 %v862
    %1000 = vmatpush1.msra.mxu0 %v861
    %1001 = vmatprep.subr.mxu0 %v856
    %1002 = vmatpush1.msra.mxu0 %v855
    %1003 = vmatprep.subr.mxu0 %v850
    %1004 = vmatpush1.msra.mxu0 %v849
    %1005 = vmatprep.subr.mxu0 %v844
    %1006 = vmatpush1.msra.mxu0 %v843
    %1007 = vmatprep.subr.mxu0 %v838
    %1008 = vmatpush1.msra.mxu0 %v837
    %1009 = vmatprep.subr.mxu0 %v832
    %1010 = vmatpush1.msra.mxu0 %v831
    %1011 = vmatprep.subr.mxu0 %v826
    %1012 = vmatpush1.msra.mxu0 %v825
    %1013 = vmatprep.subr.mxu0 %v820
    %1014 = vmatpush1.msra.mxu0 %v819
    %1015 = vmatprep.subr.mxu0 %v814
    %1016 = vmatpush1.msra.mxu0 %v813
    %1017 = vmatprep.subr.mxu0 %v808
    %1018 = vmatpush1.msra.mxu0 %v807
    %1019 = vmatprep.subr.mxu0 %v802
    %1020 = vmatpush1.msra.mxu0 %v801
    %1021 = vmatprep.subr.mxu0 %v796
    %1022 = vmatpush1.msra.mxu0 %v795
    %1023 = vmatprep.subr.mxu0 %v790
    %1024 = vmatpush1.msra.mxu0 %v789
    %1025 = vmatprep.subr.mxu0 %v976
    %1026 = vmatpush2.msra.mxu0 %v975
    %1027 = vmatprep.subr.mxu0 %v970
    %1028 = vmatpush2.msra.mxu0 %v969
    %1029 = vmatprep.subr.mxu0 %v964
    %1030 = vmatpush2.msra.mxu0 %v963
    %1031 = vmatprep.subr.mxu0 %v958
    %1032 = vmatpush2.msra.mxu0 %v957
    %1033 = vmatprep.subr.mxu0 %v952
    %1034 = vmatpush2.msra.mxu0 %v951
    %1035 = vmatprep.subr.mxu0 %v946
    %1036 = vmatpush2.msra.mxu0 %v945
    %1037 = vmatprep.subr.mxu0 %v940
    %1038 = vmatpush2.msra.mxu0 %v939
    %1039 = vmatprep.subr.mxu0 %v934
    %1040 = vmatpush2.msra.mxu0 %v933
    %1041 = vmatprep.subr.mxu0 %v928
    %1042 = vmatpush2.msra.mxu0 %v927
    %1043 = vmatprep.subr.mxu0 %v922
    %1044 = vmatpush2.msra.mxu0 %v921
    %1045 = vmatprep.subr.mxu0 %v916
    %1046 = vmatpush2.msra.mxu0 %v915
    %1047 = vmatprep.subr.mxu0 %v910
    %1048 = vmatpush2.msra.mxu0 %v909
    %1049 = vmatprep.subr.mxu0 %v904
    %1050 = vmatpush2.msra.mxu0 %v903
    %1051 = vmatprep.subr.mxu0 %v898
    %1052 = vmatpush2.msra.mxu0 %v897
    %1053 = vmatprep.subr.mxu0 %v892
    %1054 = vmatpush2.msra.mxu0 %v891
    %1055 = vmatprep.subr.mxu0 %v886
    %1056 = vmatpush2.msra.mxu0 %v885
    %1057 = vmatprep.mubr.f32.mxu0 0.0
    %1058 = vmatmul.mubr.f32.gmra.mxu0 0.0
    %v1059 = vpop.f32.mrf.mxu0
    %v1060 = vadd.f32 0.0, %v1059
    %v1061 = vpop.f32.mrf.mxu0
    %v1062 = vadd.f32 0.0, %v1061
    %1063 = vdwg.mxu0
    %1064 = vmatprep.subr.mxu0 %v882
    %1065 = vmatpush1.msra.mxu0 %v881
    %1066 = vmatprep.subr.mxu0 %v876
    %1067 = vmatpush1.msra.mxu0 %v875
    %1068 = vmatprep.subr.mxu0 %v870
    %1069 = vmatpush1.msra.mxu0 %v869
    %1070 = vmatprep.subr.mxu0 %v864
    %1071 = vmatpush1.msra.mxu0 %v863
    %1072 = vmatprep.subr.mxu0 %v858
    %1073 = vmatpush1.msra.mxu0 %v857
    %1074 = vmatprep.subr.mxu0 %v852
    %1075 = vmatpush1.msra.mxu0 %v851
    %1076 = vmatprep.subr.mxu0 %v846
    %1077 = vmatpush1.msra.mxu0 %v845
    %1078 = vmatprep.subr.mxu0 %v840
    %1079 = vmatpush1.msra.mxu0 %v839
    %1080 = vmatprep.subr.mxu0 %v834
    %1081 = vmatpush1.msra.mxu0 %v833
    %1082 = vmatprep.subr.mxu0 %v828
    %1083 = vmatpush1.msra.mxu0 %v827
    %1084 = vmatprep.subr.mxu0 %v822
    %1085 = vmatpush1.msra.mxu0 %v821
    %1086 = vmatprep.subr.mxu0 %v816
    %1087 = vmatpush1.msra.mxu0 %v815
    %1088 = vmatprep.subr.mxu0 %v810
    %1089 = vmatpush1.msra.mxu0 %v809
    %1090 = vmatprep.subr.mxu0 %v804
    %1091 = vmatpush1.msra.mxu0 %v803
    %1092 = vmatprep.subr.mxu0 %v798
    %1093 = vmatpush1.msra.mxu0 %v797
    %1094 = vmatprep.subr.mxu0 %v792
    %1095 = vmatpush1.msra.mxu0 %v791
    %1096 = vmatprep.subr.mxu0 %v978
    %1097 = vmatpush2.msra.mxu0 %v977
    %1098 = vmatprep.subr.mxu0 %v972
    %1099 = vmatpush2.msra.mxu0 %v971
    %1100 = vmatprep.subr.mxu0 %v966
    %1101 = vmatpush2.msra.mxu0 %v965
    %1102 = vmatprep.subr.mxu0 %v960
    %1103 = vmatpush2.msra.mxu0 %v959
    %1104 = vmatprep.subr.mxu0 %v954
    %1105 = vmatpush2.msra.mxu0 %v953
    %1106 = vmatprep.subr.mxu0 %v948
    %1107 = vmatpush2.msra.mxu0 %v947
    %1108 = vmatprep.subr.mxu0 %v942
    %1109 = vmatpush2.msra.mxu0 %v941
    %1110 = vmatprep.subr.mxu0 %v936
    %1111 = vmatpush2.msra.mxu0 %v935
    %1112 = vmatprep.subr.mxu0 %v930
    %1113 = vmatpush2.msra.mxu0 %v929
    %1114 = vmatprep.subr.mxu0 %v924
    %1115 = vmatpush2.msra.mxu0 %v923
    %1116 = vmatprep.subr.mxu0 %v918
    %1117 = vmatpush2.msra.mxu0 %v917
    %1118 = vmatprep.subr.mxu0 %v912
    %1119 = vmatpush2.msra.mxu0 %v911
    %1120 = vmatprep.subr.mxu0 %v906
    %1121 = vmatpush2.msra.mxu0 %v905
    %1122 = vmatprep.subr.mxu0 %v900
    %1123 = vmatpush2.msra.mxu0 %v899
    %1124 = vmatprep.subr.mxu0 %v894
    %1125 = vmatpush2.msra.mxu0 %v893
    %1126 = vmatprep.subr.mxu0 %v888
    %1127 = vmatpush2.msra.mxu0 %v887
    %1128 = vmatprep.mubr.f32.mxu0 0.0
    %1129 = vmatmul.mubr.f32.gmra.mxu0 0.0
    %v1130 = vpop.f32.mrf.mxu0
    %v1131 = vadd.f32 0.0, %v1130
    %v1132 = vpop.f32.mrf.mxu0
    %v1133 = vadd.f32 0.0, %v1132
    %1134 = vdwg.mxu0
    %1135 = vmatprep.subr.mxu0 %v884
    %1136 = vmatpush1.msra.mxu0 %v883
    %1137 = vmatprep.subr.mxu0 %v878
    %1138 = vmatpush1.msra.mxu0 %v877
    %1139 = vmatprep.subr.mxu0 %v872
    %1140 = vmatpush1.msra.mxu0 %v871
    %1141 = vmatprep.subr.mxu0 %v866
    %1142 = vmatpush1.msra.mxu0 %v865
    %1143 = vmatprep.subr.mxu0 %v860
    %1144 = vmatpush1.msra.mxu0 %v859
    %1145 = vmatprep.subr.mxu0 %v854
    %1146 = vmatpush1.msra.mxu0 %v853
    %1147 = vmatprep.subr.mxu0 %v848
    %1148 = vmatpush1.msra.mxu0 %v847
    %1149 = vmatprep.subr.mxu0 %v842
    %1150 = vmatpush1.msra.mxu0 %v841
    %1151 = vmatprep.subr.mxu0 %v836
    %1152 = vmatpush1.msra.mxu0 %v835
    %1153 = vmatprep.subr.mxu0 %v830
    %1154 = vmatpush1.msra.mxu0 %v829
    %1155 = vmatprep.subr.mxu0 %v824
    %1156 = vmatpush1.msra.mxu0 %v823
    %1157 = vmatprep.subr.mxu0 %v818
    %1158 = vmatpush1.msra.mxu0 %v817
    %1159 = vmatprep.subr.mxu0 %v812
    %1160 = vmatpush1.msra.mxu0 %v811
    %1161 = vmatprep.subr.mxu0 %v806
    %1162 = vmatpush1.msra.mxu0 %v805
    %1163 = vmatprep.subr.mxu0 %v800
    %1164 = vmatpush1.msra.mxu0 %v799
    %1165 = vmatprep.subr.mxu0 %v794
    %1166 = vmatpush1.msra.mxu0 %v793
    %1167 = vmatprep.subr.mxu0 %v980
    %1168 = vmatpush2.msra.mxu0 %v979
    %1169 = vmatprep.subr.mxu0 %v974
    %1170 = vmatpush2.msra.mxu0 %v973
    %1171 = vmatprep.subr.mxu0 %v968
    %1172 = vmatpush2.msra.mxu0 %v967
    %1173 = vmatprep.subr.mxu0 %v962
    %1174 = vmatpush2.msra.mxu0 %v961
    %1175 = vmatprep.subr.mxu0 %v956
    %1176 = vmatpush2.msra.mxu0 %v955
    %1177 = vmatprep.subr.mxu0 %v950
    %1178 = vmatpush2.msra.mxu0 %v949
    %1179 = vmatprep.subr.mxu0 %v944
    %1180 = vmatpush2.msra.mxu0 %v943
    %1181 = vmatprep.subr.mxu0 %v938
    %1182 = vmatpush2.msra.mxu0 %v937
    %1183 = vmatprep.subr.mxu0 %v932
    %1184 = vmatpush2.msra.mxu0 %v931
    %1185 = vmatprep.subr.mxu0 %v926
    %1186 = vmatpush2.msra.mxu0 %v925
    %1187 = vmatprep.subr.mxu0 %v920
    %1188 = vmatpush2.msra.mxu0 %v919
    %1189 = vmatprep.subr.mxu0 %v914
    %1190 = vmatpush2.msra.mxu0 %v913
    %1191 = vmatprep.subr.mxu0 %v908
    %1192 = vmatpush2.msra.mxu0 %v907
    %1193 = vmatprep.subr.mxu0 %v902
    %1194 = vmatpush2.msra.mxu0 %v901
    %1195 = vmatprep.subr.mxu0 %v896
    %1196 = vmatpush2.msra.mxu0 %v895
    %1197 = vmatprep.subr.mxu0 %v890
    %1198 = vmatpush2.msra.mxu0 %v889
    %1199 = vmatprep.mubr.f32.mxu0 0.0
    %1200 = vmatmul.mubr.f32.gmra.mxu0 0.0
    %v1201 = vpop.f32.mrf.mxu0
    %v1202 = vadd.f32 0.0, %v1201
    %v1203 = vpop.f32.mrf.mxu0
    %v1204 = vadd.f32 0.0, %v1203
    %1205 = vdwg.mxu0
    %v1206 = vadd.f32 %v777, %v1060
    %v1207 = vadd.f32 %v778, %v1062
    %v1208 = vxor.u32 %v1206, 2147483648
    %v1209 = vxor.u32 %v1207, 2147483648
    %v1210 = vmul.f32 %v1208, 1.442695
    %v1211 = vpow.pop %v1210
    %v1212 = vmul.f32 %v1209, 1.442695
    %v1213 = vpow.pop %v1212
    %v1214 = vadd.f32 %v1211, 1.0
    %v1215 = vadd.f32 %v1213, 1.0
    %v1216 = vrcp.pop %v1214
    %v1217 = vmul.f32 1.0, %v1216
    %v1218 = vrcp.pop %v1215
    %v1219 = vmul.f32 1.0, %v1218
    %v1220 = vadd.f32 %v779, %v1131
    %v1221 = vadd.f32 %v780, %v1133
    %v1222 = vxor.u32 %v1220, 2147483648
    %v1223 = vxor.u32 %v1221, 2147483648
    %v1224 = vmul.f32 %v1222, 1.442695
    %v1225 = vpow.pop %v1224
    %v1226 = vmul.f32 %v1223, 1.442695
    %v1227 = vpow.pop %v1226
    %v1228 = vadd.f32 %v1225, 1.0
    %v1229 = vadd.f32 %v1227, 1.0
    %v1230 = vrcp.pop %v1228
    %v1231 = vmul.f32 1.0, %v1230
    %v1232 = vrcp.pop %v1229
    %v1233 = vmul.f32 1.0, %v1232
    %v1234 = vadd.f32 %v1202, %v986
    %v1235 = vadd.f32 %v1204, %v990
    %v1236 = vmul.f32 %v1217, %v1234
    %v1237 = vmul.f32 %v1219, %v1235
    %v1238 = vadd.f32 %v781, %v1236
    %v1239 = vadd.f32 %v782, %v1237
    %v1240 = vtanh.pop %v1238
    %v1241 = vtanh.pop %v1239
    %v1242 = vsub.f32 0.0, %v1240
    %v1243 = vsub.f32 0.0, %v1241
    %v1244 = vmul.f32 %v1231, %v1242
    %v1245 = vmul.f32 %v1233, %v1243
    %v1246 = vadd.f32 %v1240, %v1244
    %v1247 = vadd.f32 %v1241, %v1245
    %1248 = vmatprep.subr.mxu0 %v880
    %1249 = vmatpush1.msra.mxu0 %v879
    %1250 = vmatprep.subr.mxu0 %v874
    %1251 = vmatpush1.msra.mxu0 %v873
    %1252 = vmatprep.subr.mxu0 %v868
    %1253 = vmatpush1.msra.mxu0 %v867
    %1254 = vmatprep.subr.mxu0 %v862
    %1255 = vmatpush1.msra.mxu0 %v861
    %1256 = vmatprep.subr.mxu0 %v856
    %1257 = vmatpush1.msra.mxu0 %v855
    %1258 = vmatprep.subr.mxu0 %v850
    %1259 = vmatpush1.msra.mxu0 %v849
    %1260 = vmatprep.subr.mxu0 %v844
    %1261 = vmatpush1.msra.mxu0 %v843
    %1262 = vmatprep.subr.mxu0 %v838
    %1263 = vmatpush1.msra.mxu0 %v837
    %1264 = vmatprep.subr.mxu0 %v832
    %1265 = vmatpush1.msra.mxu0 %v831
    %1266 = vmatprep.subr.mxu0 %v826
    %1267 = vmatpush1.msra.mxu0 %v825
    %1268 = vmatprep.subr.mxu0 %v820
    %1269 = vmatpush1.msra.mxu0 %v819
    %1270 = vmatprep.subr.mxu0 %v814
    %1271 = vmatpush1.msra.mxu0 %v813
    %1272 = vmatprep.subr.mxu0 %v808
    %1273 = vmatpush1.msra.mxu0 %v807
    %1274 = vmatprep.subr.mxu0 %v802
    %1275 = vmatpush1.msra.mxu0 %v801
    %1276 = vmatprep.subr.mxu0 %v796
    %1277 = vmatpush1.msra.mxu0 %v795
    %1278 = vmatprep.subr.mxu0 %v790
    %1279 = vmatpush1.msra.mxu0 %v789
    %1280 = vmatprep.subr.mxu0 %v976
    %1281 = vmatpush2.msra.mxu0 %v975
    %1282 = vmatprep.subr.mxu0 %v970
    %1283 = vmatpush2.msra.mxu0 %v969
    %1284 = vmatprep.subr.mxu0 %v964
    %1285 = vmatpush2.msra.mxu0 %v963
    %1286 = vmatprep.subr.mxu0 %v958
    %1287 = vmatpush2.msra.mxu0 %v957
    %1288 = vmatprep.subr.mxu0 %v952
    %1289 = vmatpush2.msra.mxu0 %v951
    %1290 = vmatprep.subr.mxu0 %v946
    %1291 = vmatpush2.msra.mxu0 %v945
    %1292 = vmatprep.subr.mxu0 %v940
    %1293 = vmatpush2.msra.mxu0 %v939
    %1294 = vmatprep.subr.mxu0 %v934
    %1295 = vmatpush2.msra.mxu0 %v933
    %1296 = vmatprep.subr.mxu0 %v928
    %1297 = vmatpush2.msra.mxu0 %v927
    %1298 = vmatprep.subr.mxu0 %v922
    %1299 = vmatpush2.msra.mxu0 %v921
    %1300 = vmatprep.subr.mxu0 %v916
    %1301 = vmatpush2.msra.mxu0 %v915
    %1302 = vmatprep.subr.mxu0 %v910
    %1303 = vmatpush2.msra.mxu0 %v909
    %1304 = vmatprep.subr.mxu0 %v904
    %1305 = vmatpush2.msra.mxu0 %v903
    %1306 = vmatprep.subr.mxu0 %v898
    %1307 = vmatpush2.msra.mxu0 %v897
    %1308 = vmatprep.subr.mxu0 %v892
    %1309 = vmatpush2.msra.mxu0 %v891
    %1310 = vmatprep.subr.mxu0 %v886
    %1311 = vmatpush2.msra.mxu0 %v885
    %1312 = vmatprep.mubr.f32.mxu0 %v1247
    %1313 = vmatmul.mubr.f32.gmra.mxu0 %v1246
    %v1314 = vpop.f32.mrf.mxu0
    %v1315 = vadd.f32 0.0, %v1314
    %v1316 = vpop.f32.mrf.mxu0
    %v1317 = vadd.f32 0.0, %v1316
    %1318 = vdwg.mxu0
    %1319 = vmatprep.subr.mxu0 %v882
    %1320 = vmatpush1.msra.mxu0 %v881
    %1321 = vmatprep.subr.mxu0 %v876
    %1322 = vmatpush1.msra.mxu0 %v875
    %1323 = vmatprep.subr.mxu0 %v870
    %1324 = vmatpush1.msra.mxu0 %v869
    %1325 = vmatprep.subr.mxu0 %v864
    %1326 = vmatpush1.msra.mxu0 %v863
    %1327 = vmatprep.subr.mxu0 %v858
    %1328 = vmatpush1.msra.mxu0 %v857
    %1329 = vmatprep.subr.mxu0 %v852
    %1330 = vmatpush1.msra.mxu0 %v851
    %1331 = vmatprep.subr.mxu0 %v846
    %1332 = vmatpush1.msra.mxu0 %v845
    %1333 = vmatprep.subr.mxu0 %v840
    %1334 = vmatpush1.msra.mxu0 %v839
    %1335 = vmatprep.subr.mxu0 %v834
    %1336 = vmatpush1.msra.mxu0 %v833
    %1337 = vmatprep.subr.mxu0 %v828
    %1338 = vmatpush1.msra.mxu0 %v827
    %1339 = vmatprep.subr.mxu0 %v822
    %1340 = vmatpush1.msra.mxu0 %v821
    %1341 = vmatprep.subr.mxu0 %v816
    %1342 = vmatpush1.msra.mxu0 %v815
    %1343 = vmatprep.subr.mxu0 %v810
    %1344 = vmatpush1.msra.mxu0 %v809
    %1345 = vmatprep.subr.mxu0 %v804
    %1346 = vmatpush1.msra.mxu0 %v803
    %1347 = vmatprep.subr.mxu0 %v798
    %1348 = vmatpush1.msra.mxu0 %v797
    %1349 = vmatprep.subr.mxu0 %v792
    %1350 = vmatpush1.msra.mxu0 %v791
    %1351 = vmatprep.subr.mxu0 %v978
    %1352 = vmatpush2.msra.mxu0 %v977
    %1353 = vmatprep.subr.mxu0 %v972
    %1354 = vmatpush2.msra.mxu0 %v971
    %1355 = vmatprep.subr.mxu0 %v966
    %1356 = vmatpush2.msra.mxu0 %v965
    %1357 = vmatprep.subr.mxu0 %v960
    %1358 = vmatpush2.msra.mxu0 %v959
    %1359 = vmatprep.subr.mxu0 %v954
    %1360 = vmatpush2.msra.mxu0 %v953
    %1361 = vmatprep.subr.mxu0 %v948
    %1362 = vmatpush2.msra.mxu0 %v947
    %1363 = vmatprep.subr.mxu0 %v942
    %1364 = vmatpush2.msra.mxu0 %v941
    %1365 = vmatprep.subr.mxu0 %v936
    %1366 = vmatpush2.msra.mxu0 %v935
    %1367 = vmatprep.subr.mxu0 %v930
    %1368 = vmatpush2.msra.mxu0 %v929
    %1369 = vmatprep.subr.mxu0 %v924
    %1370 = vmatpush2.msra.mxu0 %v923
    %1371 = vmatprep.subr.mxu0 %v918
    %1372 = vmatpush2.msra.mxu0 %v917
    %1373 = vmatprep.subr.mxu0 %v912
    %1374 = vmatpush2.msra.mxu0 %v911
    %1375 = vmatprep.subr.mxu0 %v906
    %1376 = vmatpush2.msra.mxu0 %v905
    %1377 = vmatprep.subr.mxu0 %v900
    %1378 = vmatpush2.msra.mxu0 %v899
    %1379 = vmatprep.subr.mxu0 %v894
    %1380 = vmatpush2.msra.mxu0 %v893
    %1381 = vmatprep.subr.mxu0 %v888
    %1382 = vmatpush2.msra.mxu0 %v887
    %1383 = vmatprep.mubr.f32.mxu0 %v1247
    %1384 = vmatmul.mubr.f32.gmra.mxu0 %v1246
    %v1385 = vpop.f32.mrf.mxu0
    %v1386 = vadd.f32 0.0, %v1385
    %v1387 = vpop.f32.mrf.mxu0
    %v1388 = vadd.f32 0.0, %v1387
    %1389 = vdwg.mxu0
    %1390 = vmatprep.subr.mxu0 %v884
    %1391 = vmatpush1.msra.mxu0 %v883
    %1392 = vmatprep.subr.mxu0 %v878
    %1393 = vmatpush1.msra.mxu0 %v877
    %1394 = vmatprep.subr.mxu0 %v872
    %1395 = vmatpush1.msra.mxu0 %v871
    %1396 = vmatprep.subr.mxu0 %v866
    %1397 = vmatpush1.msra.mxu0 %v865
    %1398 = vmatprep.subr.mxu0 %v860
    %1399 = vmatpush1.msra.mxu0 %v859
    %1400 = vmatprep.subr.mxu0 %v854
    %1401 = vmatpush1.msra.mxu0 %v853
    %1402 = vmatprep.subr.mxu0 %v848
    %1403 = vmatpush1.msra.mxu0 %v847
    %1404 = vmatprep.subr.mxu0 %v842
    %1405 = vmatpush1.msra.mxu0 %v841
    %1406 = vmatprep.subr.mxu0 %v836
    %1407 = vmatpush1.msra.mxu0 %v835
    %1408 = vmatprep.subr.mxu0 %v830
    %1409 = vmatpush1.msra.mxu0 %v829
    %1410 = vmatprep.subr.mxu0 %v824
    %1411 = vmatpush1.msra.mxu0 %v823
    %1412 = vmatprep.subr.mxu0 %v818
    %1413 = vmatpush1.msra.mxu0 %v817
    %1414 = vmatprep.subr.mxu0 %v812
    %1415 = vmatpush1.msra.mxu0 %v811
    %1416 = vmatprep.subr.mxu0 %v806
    %1417 = vmatpush1.msra.mxu0 %v805
    %1418 = vmatprep.subr.mxu0 %v800
    %1419 = vmatpush1.msra.mxu0 %v799
    %1420 = vmatprep.subr.mxu0 %v794
    %1421 = vmatpush1.msra.mxu0 %v793
    %1422 = vmatprep.subr.mxu0 %v980
    %1423 = vmatpush2.msra.mxu0 %v979
    %1424 = vmatprep.subr.mxu0 %v974
    %1425 = vmatpush2.msra.mxu0 %v973
    %1426 = vmatprep.subr.mxu0 %v968
    %1427 = vmatpush2.msra.mxu0 %v967
    %1428 = vmatprep.subr.mxu0 %v962
    %1429 = vmatpush2.msra.mxu0 %v961
    %1430 = vmatprep.subr.mxu0 %v956
    %1431 = vmatpush2.msra.mxu0 %v955
    %1432 = vmatprep.subr.mxu0 %v950
    %1433 = vmatpush2.msra.mxu0 %v949
    %1434 = vmatprep.subr.mxu0 %v944
    %1435 = vmatpush2.msra.mxu0 %v943
    %1436 = vmatprep.subr.mxu0 %v938
    %1437 = vmatpush2.msra.mxu0 %v937
    %1438 = vmatprep.subr.mxu0 %v932
    %1439 = vmatpush2.msra.mxu0 %v931
    %1440 = vmatprep.subr.mxu0 %v926
    %1441 = vmatpush2.msra.mxu0 %v925
    %1442 = vmatprep.subr.mxu0 %v920
    %1443 = vmatpush2.msra.mxu0 %v919
    %1444 = vmatprep.subr.mxu0 %v914
    %1445 = vmatpush2.msra.mxu0 %v913
    %1446 = vmatprep.subr.mxu0 %v908
    %1447 = vmatpush2.msra.mxu0 %v907
    %1448 = vmatprep.subr.mxu0 %v902
    %1449 = vmatpush2.msra.mxu0 %v901
    %1450 = vmatprep.subr.mxu0 %v896
    %1451 = vmatpush2.msra.mxu0 %v895
    %1452 = vmatprep.subr.mxu0 %v890
    %1453 = vmatpush2.msra.mxu0 %v889
    %1454 = vmatprep.mubr.f32.mxu0 %v1247
    %1455 = vmatmul.mubr.f32.gmra.mxu0 %v1246
    %v1456 = vpop.f32.mrf.mxu0
    %v1457 = vadd.f32 0.0, %v1456
    %v1458 = vpop.f32.mrf.mxu0
    %v1459 = vadd.f32 0.0, %v1458
    %1460 = vdwg.mxu0
    %v1463 = vrot.slane %v1315, 6
    %v1464 = vrot.slane %v1317, 6
    %v1467 = vadd.f32 %v777, %v1463
    %v1468 = vadd.f32 %v778, %v1464
    %v1469 = vxor.u32 %v1467, 2147483648
    %v1470 = vxor.u32 %v1468, 2147483648
    %v1471 = vmul.f32 %v1469, 1.442695
    %v1472 = vpow.pop %v1471
    %v1473 = vmul.f32 %v1470, 1.442695
    %v1474 = vpow.pop %v1473
    %v1475 = vadd.f32 %v1472, 1.0
    %v1476 = vadd.f32 %v1474, 1.0
    %v1477 = vrcp.pop %v1475
    %v1478 = vmul.f32 1.0, %v1477
    %v1479 = vrcp.pop %v1476
    %v1480 = vmul.f32 1.0, %v1479
    %v1483 = vrot.slane %v1386, 6
    %v1484 = vrot.slane %v1388, 6
    %v1487 = vadd.f32 %v779, %v1483
    %v1488 = vadd.f32 %v780, %v1484
    %v1489 = vxor.u32 %v1487, 2147483648
    %v1490 = vxor.u32 %v1488, 2147483648
    %v1491 = vmul.f32 %v1489, 1.442695
    %v1492 = vpow.pop %v1491
    %v1493 = vmul.f32 %v1490, 1.442695
    %v1494 = vpow.pop %v1493
    %v1495 = vadd.f32 %v1492, 1.0
    %v1496 = vadd.f32 %v1494, 1.0
    %v1497 = vrcp.pop %v1495
    %v1498 = vmul.f32 1.0, %v1497
    %v1499 = vrcp.pop %v1496
    %v1500 = vmul.f32 1.0, %v1499
    %v1501 = vadd.f32 %v1457, %v986
    %v1502 = vadd.f32 %v1459, %v990
    %v1505 = vrot.slane %v1501, 6
    %v1506 = vrot.slane %v1502, 6
    %v1509 = vmul.f32 %v1478, %v1505
    %v1510 = vmul.f32 %v1480, %v1506
    %v1511 = vadd.f32 %v781, %v1509
    %v1512 = vadd.f32 %v782, %v1510
    %v1513 = vtanh.pop %v1511
    %v1514 = vtanh.pop %v1512
    %v1517 = vrot.slane %v1513, 2
    %v1518 = vrot.slane %v1514, 2
    %v1521 = vsub.f32 %v1246, %v1517
    %v1522 = vsub.f32 %v1247, %v1518
    %v1525 = vrot.slane %v1521, 6
    %v1526 = vrot.slane %v1522, 6
    %v1529 = vmul.f32 %v1498, %v1525
    %v1530 = vmul.f32 %v1500, %v1526
    %v1531 = vadd.f32 %v1513, %v1529
    %v1532 = vadd.f32 %v1514, %v1530
    %v1535 = vrot.slane %v1531, 2
    %v1536 = vrot.slane %v1532, 2
    %1539 = vmatprep.subr.mxu0 %v880
    %1540 = vmatpush1.msra.mxu0 %v879
    %1541 = vmatprep.subr.mxu0 %v874
    %1542 = vmatpush1.msra.mxu0 %v873
    %1543 = vmatprep.subr.mxu0 %v868
    %1544 = vmatpush1.msra.mxu0 %v867
    %1545 = vmatprep.subr.mxu0 %v862
    %1546 = vmatpush1.msra.mxu0 %v861
    %1547 = vmatprep.subr.mxu0 %v856
    %1548 = vmatpush1.msra.mxu0 %v855
    %1549 = vmatprep.subr.mxu0 %v850
    %1550 = vmatpush1.msra.mxu0 %v849
    %1551 = vmatprep.subr.mxu0 %v844
    %1552 = vmatpush1.msra.mxu0 %v843
    %1553 = vmatprep.subr.mxu0 %v838
    %1554 = vmatpush1.msra.mxu0 %v837
    %1555 = vmatprep.subr.mxu0 %v832
    %1556 = vmatpush1.msra.mxu0 %v831
    %1557 = vmatprep.subr.mxu0 %v826
    %1558 = vmatpush1.msra.mxu0 %v825
    %1559 = vmatprep.subr.mxu0 %v820
    %1560 = vmatpush1.msra.mxu0 %v819
    %1561 = vmatprep.subr.mxu0 %v814
    %1562 = vmatpush1.msra.mxu0 %v813
    %1563 = vmatprep.subr.mxu0 %v808
    %1564 = vmatpush1.msra.mxu0 %v807
    %1565 = vmatprep.subr.mxu0 %v802
    %1566 = vmatpush1.msra.mxu0 %v801
    %1567 = vmatprep.subr.mxu0 %v796
    %1568 = vmatpush1.msra.mxu0 %v795
    %1569 = vmatprep.subr.mxu0 %v790
    %1570 = vmatpush1.msra.mxu0 %v789
    %1571 = vmatprep.subr.mxu0 %v976
    %1572 = vmatpush2.msra.mxu0 %v975
    %1573 = vmatprep.subr.mxu0 %v970
    %1574 = vmatpush2.msra.mxu0 %v969
    %1575 = vmatprep.subr.mxu0 %v964
    %1576 = vmatpush2.msra.mxu0 %v963
    %1577 = vmatprep.subr.mxu0 %v958
    %1578 = vmatpush2.msra.mxu0 %v957
    %1579 = vmatprep.subr.mxu0 %v952
    %1580 = vmatpush2.msra.mxu0 %v951
    %1581 = vmatprep.subr.mxu0 %v946
    %1582 = vmatpush2.msra.mxu0 %v945
    %1583 = vmatprep.subr.mxu0 %v940
    %1584 = vmatpush2.msra.mxu0 %v939
    %1585 = vmatprep.subr.mxu0 %v934
    %1586 = vmatpush2.msra.mxu0 %v933
    %1587 = vmatprep.subr.mxu0 %v928
    %1588 = vmatpush2.msra.mxu0 %v927
    %1589 = vmatprep.subr.mxu0 %v922
    %1590 = vmatpush2.msra.mxu0 %v921
    %1591 = vmatprep.subr.mxu0 %v916
    %1592 = vmatpush2.msra.mxu0 %v915
    %1593 = vmatprep.subr.mxu0 %v910
    %1594 = vmatpush2.msra.mxu0 %v909
    %1595 = vmatprep.subr.mxu0 %v904
    %1596 = vmatpush2.msra.mxu0 %v903
    %1597 = vmatprep.subr.mxu0 %v898
    %1598 = vmatpush2.msra.mxu0 %v897
    %1599 = vmatprep.subr.mxu0 %v892
    %1600 = vmatpush2.msra.mxu0 %v891
    %1601 = vmatprep.subr.mxu0 %v886
    %1602 = vmatpush2.msra.mxu0 %v885
    %1603 = vmatprep.mubr.f32.mxu0 %v1536
    %1604 = vmatmul.mubr.f32.gmra.mxu0 %v1535
    %v1605 = vpop.f32.mrf.mxu0
    %v1606 = vadd.f32 0.0, %v1605
    %v1607 = vpop.f32.mrf.mxu0
    %v1608 = vadd.f32 0.0, %v1607
    %1609 = vdwg.mxu0
    %1610 = vmatprep.subr.mxu0 %v882
    %1611 = vmatpush1.msra.mxu0 %v881
    %1612 = vmatprep.subr.mxu0 %v876
    %1613 = vmatpush1.msra.mxu0 %v875
    %1614 = vmatprep.subr.mxu0 %v870
    %1615 = vmatpush1.msra.mxu0 %v869
    %1616 = vmatprep.subr.mxu0 %v864
    %1617 = vmatpush1.msra.mxu0 %v863
    %1618 = vmatprep.subr.mxu0 %v858
    %1619 = vmatpush1.msra.mxu0 %v857
    %1620 = vmatprep.subr.mxu0 %v852
    %1621 = vmatpush1.msra.mxu0 %v851
    %1622 = vmatprep.subr.mxu0 %v846
    %1623 = vmatpush1.msra.mxu0 %v845
    %1624 = vmatprep.subr.mxu0 %v840
    %1625 = vmatpush1.msra.mxu0 %v839
    %1626 = vmatprep.subr.mxu0 %v834
    %1627 = vmatpush1.msra.mxu0 %v833
    %1628 = vmatprep.subr.mxu0 %v828
    %1629 = vmatpush1.msra.mxu0 %v827
    %1630 = vmatprep.subr.mxu0 %v822
    %1631 = vmatpush1.msra.mxu0 %v821
    %1632 = vmatprep.subr.mxu0 %v816
    %1633 = vmatpush1.msra.mxu0 %v815
    %1634 = vmatprep.subr.mxu0 %v810
    %1635 = vmatpush1.msra.mxu0 %v809
    %1636 = vmatprep.subr.mxu0 %v804
    %1637 = vmatpush1.msra.mxu0 %v803
    %1638 = vmatprep.subr.mxu0 %v798
    %1639 = vmatpush1.msra.mxu0 %v797
    %1640 = vmatprep.subr.mxu0 %v792
    %1641 = vmatpush1.msra.mxu0 %v791
    %1642 = vmatprep.subr.mxu0 %v978
    %1643 = vmatpush2.msra.mxu0 %v977
    %1644 = vmatprep.subr.mxu0 %v972
    %1645 = vmatpush2.msra.mxu0 %v971
    %1646 = vmatprep.subr.mxu0 %v966
    %1647 = vmatpush2.msra.mxu0 %v965
    %1648 = vmatprep.subr.mxu0 %v960
    %1649 = vmatpush2.msra.mxu0 %v959
    %1650 = vmatprep.subr.mxu0 %v954
    %1651 = vmatpush2.msra.mxu0 %v953
    %1652 = vmatprep.subr.mxu0 %v948
    %1653 = vmatpush2.msra.mxu0 %v947
    %1654 = vmatprep.subr.mxu0 %v942
    %1655 = vmatpush2.msra.mxu0 %v941
    %1656 = vmatprep.subr.mxu0 %v936
    %1657 = vmatpush2.msra.mxu0 %v935
    %1658 = vmatprep.subr.mxu0 %v930
    %1659 = vmatpush2.msra.mxu0 %v929
    %1660 = vmatprep.subr.mxu0 %v924
    %1661 = vmatpush2.msra.mxu0 %v923
    %1662 = vmatprep.subr.mxu0 %v918
    %1663 = vmatpush2.msra.mxu0 %v917
    %1664 = vmatprep.subr.mxu0 %v912
    %1665 = vmatpush2.msra.mxu0 %v911
    %1666 = vmatprep.subr.mxu0 %v906
    %1667 = vmatpush2.msra.mxu0 %v905
    %1668 = vmatprep.subr.mxu0 %v900
    %1669 = vmatpush2.msra.mxu0 %v899
    %1670 = vmatprep.subr.mxu0 %v894
    %1671 = vmatpush2.msra.mxu0 %v893
    %1672 = vmatprep.subr.mxu0 %v888
    %1673 = vmatpush2.msra.mxu0 %v887
    %1674 = vmatprep.mubr.f32.mxu0 %v1536
    %1675 = vmatmul.mubr.f32.gmra.mxu0 %v1535
    %v1676 = vpop.f32.mrf.mxu0
    %v1677 = vadd.f32 0.0, %v1676
    %v1678 = vpop.f32.mrf.mxu0
    %v1679 = vadd.f32 0.0, %v1678
    %1680 = vdwg.mxu0
    %1681 = vmatprep.subr.mxu0 %v884
    %1682 = vmatpush1.msra.mxu0 %v883
    %1683 = vmatprep.subr.mxu0 %v878
    %1684 = vmatpush1.msra.mxu0 %v877
    %1685 = vmatprep.subr.mxu0 %v872
    %1686 = vmatpush1.msra.mxu0 %v871
    %1687 = vmatprep.subr.mxu0 %v866
    %1688 = vmatpush1.msra.mxu0 %v865
    %1689 = vmatprep.subr.mxu0 %v860
    %1690 = vmatpush1.msra.mxu0 %v859
    %1691 = vmatprep.subr.mxu0 %v854
    %1692 = vmatpush1.msra.mxu0 %v853
    %1693 = vmatprep.subr.mxu0 %v848
    %1694 = vmatpush1.msra.mxu0 %v847
    %1695 = vmatprep.subr.mxu0 %v842
    %1696 = vmatpush1.msra.mxu0 %v841
    %1697 = vmatprep.subr.mxu0 %v836
    %1698 = vmatpush1.msra.mxu0 %v835
    %1699 = vmatprep.subr.mxu0 %v830
    %1700 = vmatpush1.msra.mxu0 %v829
    %1701 = vmatprep.subr.mxu0 %v824
    %1702 = vmatpush1.msra.mxu0 %v823
    %1703 = vmatprep.subr.mxu0 %v818
    %1704 = vmatpush1.msra.mxu0 %v817
    %1705 = vmatprep.subr.mxu0 %v812
    %1706 = vmatpush1.msra.mxu0 %v811
    %1707 = vmatprep.subr.mxu0 %v806
    %1708 = vmatpush1.msra.mxu0 %v805
    %1709 = vmatprep.subr.mxu0 %v800
    %1710 = vmatpush1.msra.mxu0 %v799
    %1711 = vmatprep.subr.mxu0 %v794
    %1712 = vmatpush1.msra.mxu0 %v793
    %1713 = vmatprep.subr.mxu0 %v980
    %1714 = vmatpush2.msra.mxu0 %v979
    %1715 = vmatprep.subr.mxu0 %v974
    %1716 = vmatpush2.msra.mxu0 %v973
    %1717 = vmatprep.subr.mxu0 %v968
    %1718 = vmatpush2.msra.mxu0 %v967
    %1719 = vmatprep.subr.mxu0 %v962
    %1720 = vmatpush2.msra.mxu0 %v961
    %1721 = vmatprep.subr.mxu0 %v956
    %1722 = vmatpush2.msra.mxu0 %v955
    %1723 = vmatprep.subr.mxu0 %v950
    %1724 = vmatpush2.msra.mxu0 %v949
    %1725 = vmatprep.subr.mxu0 %v944
    %1726 = vmatpush2.msra.mxu0 %v943
    %1727 = vmatprep.subr.mxu0 %v938
    %1728 = vmatpush2.msra.mxu0 %v937
    %1729 = vmatprep.subr.mxu0 %v932
    %1730 = vmatpush2.msra.mxu0 %v931
    %1731 = vmatprep.subr.mxu0 %v926
    %1732 = vmatpush2.msra.mxu0 %v925
    %1733 = vmatprep.subr.mxu0 %v920
    %1734 = vmatpush2.msra.mxu0 %v919
    %1735 = vmatprep.subr.mxu0 %v914
    %1736 = vmatpush2.msra.mxu0 %v913
    %1737 = vmatprep.subr.mxu0 %v908
    %1738 = vmatpush2.msra.mxu0 %v907
    %1739 = vmatprep.subr.mxu0 %v902
    %1740 = vmatpush2.msra.mxu0 %v901
    %1741 = vmatprep.subr.mxu0 %v896
    %1742 = vmatpush2.msra.mxu0 %v895
    %1743 = vmatprep.subr.mxu0 %v890
    %1744 = vmatpush2.msra.mxu0 %v889
    %1745 = vmatprep.mubr.f32.mxu0 %v1536
    %1746 = vmatmul.mubr.f32.gmra.mxu0 %v1535
    %v1747 = vpop.f32.mrf.mxu0
    %v1748 = vadd.f32 0.0, %v1747
    %v1749 = vpop.f32.mrf.mxu0
    %v1750 = vadd.f32 0.0, %v1749
    %1751 = vdwg.mxu0
    %v1754 = vrot.slane %v1606, 4
    %v1755 = vrot.slane %v1608, 4
    %v1758 = vadd.f32 %v777, %v1754
    %v1759 = vadd.f32 %v778, %v1755
    %v1760 = vxor.u32 %v1758, 2147483648
    %v1761 = vxor.u32 %v1759, 2147483648
    %v1762 = vmul.f32 %v1760, 1.442695
    %v1763 = vpow.pop %v1762
    %v1764 = vmul.f32 %v1761, 1.442695
    %v1765 = vpow.pop %v1764
    %v1766 = vadd.f32 %v1763, 1.0
    %v1767 = vadd.f32 %v1765, 1.0
    %v1768 = vrcp.pop %v1766
    %v1769 = vmul.f32 1.0, %v1768
    %v1770 = vrcp.pop %v1767
    %v1771 = vmul.f32 1.0, %v1770
    %v1774 = vrot.slane %v1677, 4
    %v1775 = vrot.slane %v1679, 4
    %v1778 = vadd.f32 %v779, %v1774
    %v1779 = vadd.f32 %v780, %v1775
    %v1780 = vxor.u32 %v1778, 2147483648
    %v1781 = vxor.u32 %v1779, 2147483648
    %v1782 = vmul.f32 %v1780, 1.442695
    %v1783 = vpow.pop %v1782
    %v1784 = vmul.f32 %v1781, 1.442695
    %v1785 = vpow.pop %v1784
    %v1786 = vadd.f32 %v1783, 1.0
    %v1787 = vadd.f32 %v1785, 1.0
    %v1788 = vrcp.pop %v1786
    %v1789 = vmul.f32 1.0, %v1788
    %v1790 = vrcp.pop %v1787
    %v1791 = vmul.f32 1.0, %v1790
    %v1792 = vadd.f32 %v1748, %v986
    %v1793 = vadd.f32 %v1750, %v990
    %v1796 = vrot.slane %v1792, 4
    %v1797 = vrot.slane %v1793, 4
    %v1800 = vmul.f32 %v1769, %v1796
    %v1801 = vmul.f32 %v1771, %v1797
    %v1802 = vadd.f32 %v781, %v1800
    %v1803 = vadd.f32 %v782, %v1801
    %v1804 = vtanh.pop %v1802
    %v1805 = vtanh.pop %v1803
    %v1808 = vrot.slane %v1804, 2
    %v1809 = vrot.slane %v1805, 2
    %v1812 = vsub.f32 %v1531, %v1808
    %v1813 = vsub.f32 %v1532, %v1809
    %v1816 = vrot.slane %v1812, 6
    %v1817 = vrot.slane %v1813, 6
    %v1820 = vmul.f32 %v1789, %v1816
    %v1821 = vmul.f32 %v1791, %v1817
    %v1822 = vadd.f32 %v1804, %v1820
    %v1823 = vadd.f32 %v1805, %v1821
    %v1826 = vrot.slane %v1822, 4
    %v1827 = vrot.slane %v1823, 4
    %1830 = vmatprep.subr.mxu0 %v880
    %1831 = vmatpush1.msra.mxu0 %v879
    %1832 = vmatprep.subr.mxu0 %v874
    %1833 = vmatpush1.msra.mxu0 %v873
    %1834 = vmatprep.subr.mxu0 %v868
    %1835 = vmatpush1.msra.mxu0 %v867
    %1836 = vmatprep.subr.mxu0 %v862
    %1837 = vmatpush1.msra.mxu0 %v861
    %1838 = vmatprep.subr.mxu0 %v856
    %1839 = vmatpush1.msra.mxu0 %v855
    %1840 = vmatprep.subr.mxu0 %v850
    %1841 = vmatpush1.msra.mxu0 %v849
    %1842 = vmatprep.subr.mxu0 %v844
    %1843 = vmatpush1.msra.mxu0 %v843
    %1844 = vmatprep.subr.mxu0 %v838
    %1845 = vmatpush1.msra.mxu0 %v837
    %1846 = vmatprep.subr.mxu0 %v832
    %1847 = vmatpush1.msra.mxu0 %v831
    %1848 = vmatprep.subr.mxu0 %v826
    %1849 = vmatpush1.msra.mxu0 %v825
    %1850 = vmatprep.subr.mxu0 %v820
    %1851 = vmatpush1.msra.mxu0 %v819
    %1852 = vmatprep.subr.mxu0 %v814
    %1853 = vmatpush1.msra.mxu0 %v813
    %1854 = vmatprep.subr.mxu0 %v808
    %1855 = vmatpush1.msra.mxu0 %v807
    %1856 = vmatprep.subr.mxu0 %v802
    %1857 = vmatpush1.msra.mxu0 %v801
    %1858 = vmatprep.subr.mxu0 %v796
    %1859 = vmatpush1.msra.mxu0 %v795
    %1860 = vmatprep.subr.mxu0 %v790
    %1861 = vmatpush1.msra.mxu0 %v789
    %1862 = vmatprep.subr.mxu0 %v976
    %1863 = vmatpush2.msra.mxu0 %v975
    %1864 = vmatprep.subr.mxu0 %v970
    %1865 = vmatpush2.msra.mxu0 %v969
    %1866 = vmatprep.subr.mxu0 %v964
    %1867 = vmatpush2.msra.mxu0 %v963
    %1868 = vmatprep.subr.mxu0 %v958
    %1869 = vmatpush2.msra.mxu0 %v957
    %1870 = vmatprep.subr.mxu0 %v952
    %1871 = vmatpush2.msra.mxu0 %v951
    %1872 = vmatprep.subr.mxu0 %v946
    %1873 = vmatpush2.msra.mxu0 %v945
    %1874 = vmatprep.subr.mxu0 %v940
    %1875 = vmatpush2.msra.mxu0 %v939
    %1876 = vmatprep.subr.mxu0 %v934
    %1877 = vmatpush2.msra.mxu0 %v933
    %1878 = vmatprep.subr.mxu0 %v928
    %1879 = vmatpush2.msra.mxu0 %v927
    %1880 = vmatprep.subr.mxu0 %v922
    %1881 = vmatpush2.msra.mxu0 %v921
    %1882 = vmatprep.subr.mxu0 %v916
    %1883 = vmatpush2.msra.mxu0 %v915
    %1884 = vmatprep.subr.mxu0 %v910
    %1885 = vmatpush2.msra.mxu0 %v909
    %1886 = vmatprep.subr.mxu0 %v904
    %1887 = vmatpush2.msra.mxu0 %v903
    %1888 = vmatprep.subr.mxu0 %v898
    %1889 = vmatpush2.msra.mxu0 %v897
    %1890 = vmatprep.subr.mxu0 %v892
    %1891 = vmatpush2.msra.mxu0 %v891
    %1892 = vmatprep.subr.mxu0 %v886
    %1893 = vmatpush2.msra.mxu0 %v885
    %1894 = vmatprep.mubr.f32.mxu0 %v1827
    %1895 = vmatmul.mubr.f32.gmra.mxu0 %v1826
    %v1896 = vpop.f32.mrf.mxu0
    %v1897 = vadd.f32 0.0, %v1896
    %v1898 = vpop.f32.mrf.mxu0
    %v1899 = vadd.f32 0.0, %v1898
    %1900 = vdwg.mxu0
    %1901 = vmatprep.subr.mxu0 %v882
    %1902 = vmatpush1.msra.mxu0 %v881
    %1903 = vmatprep.subr.mxu0 %v876
    %1904 = vmatpush1.msra.mxu0 %v875
    %1905 = vmatprep.subr.mxu0 %v870
    %1906 = vmatpush1.msra.mxu0 %v869
    %1907 = vmatprep.subr.mxu0 %v864
    %1908 = vmatpush1.msra.mxu0 %v863
    %1909 = vmatprep.subr.mxu0 %v858
    %1910 = vmatpush1.msra.mxu0 %v857
    %1911 = vmatprep.subr.mxu0 %v852
    %1912 = vmatpush1.msra.mxu0 %v851
    %1913 = vmatprep.subr.mxu0 %v846
    %1914 = vmatpush1.msra.mxu0 %v845
    %1915 = vmatprep.subr.mxu0 %v840
    %1916 = vmatpush1.msra.mxu0 %v839
    %1917 = vmatprep.subr.mxu0 %v834
    %1918 = vmatpush1.msra.mxu0 %v833
    %1919 = vmatprep.subr.mxu0 %v828
    %1920 = vmatpush1.msra.mxu0 %v827
    %1921 = vmatprep.subr.mxu0 %v822
    %1922 = vmatpush1.msra.mxu0 %v821
    %1923 = vmatprep.subr.mxu0 %v816
    %1924 = vmatpush1.msra.mxu0 %v815
    %1925 = vmatprep.subr.mxu0 %v810
    %1926 = vmatpush1.msra.mxu0 %v809
    %1927 = vmatprep.subr.mxu0 %v804
    %1928 = vmatpush1.msra.mxu0 %v803
    %1929 = vmatprep.subr.mxu0 %v798
    %1930 = vmatpush1.msra.mxu0 %v797
    %1931 = vmatprep.subr.mxu0 %v792
    %1932 = vmatpush1.msra.mxu0 %v791
    %1933 = vmatprep.subr.mxu0 %v978
    %1934 = vmatpush2.msra.mxu0 %v977
    %1935 = vmatprep.subr.mxu0 %v972
    %1936 = vmatpush2.msra.mxu0 %v971
    %1937 = vmatprep.subr.mxu0 %v966
    %1938 = vmatpush2.msra.mxu0 %v965
    %1939 = vmatprep.subr.mxu0 %v960
    %1940 = vmatpush2.msra.mxu0 %v959
    %1941 = vmatprep.subr.mxu0 %v954
    %1942 = vmatpush2.msra.mxu0 %v953
    %1943 = vmatprep.subr.mxu0 %v948
    %1944 = vmatpush2.msra.mxu0 %v947
    %1945 = vmatprep.subr.mxu0 %v942
    %1946 = vmatpush2.msra.mxu0 %v941
    %1947 = vmatprep.subr.mxu0 %v936
    %1948 = vmatpush2.msra.mxu0 %v935
    %1949 = vmatprep.subr.mxu0 %v930
    %1950 = vmatpush2.msra.mxu0 %v929
    %1951 = vmatprep.subr.mxu0 %v924
    %1952 = vmatpush2.msra.mxu0 %v923
    %1953 = vmatprep.subr.mxu0 %v918
    %1954 = vmatpush2.msra.mxu0 %v917
    %1955 = vmatprep.subr.mxu0 %v912
    %1956 = vmatpush2.msra.mxu0 %v911
    %1957 = vmatprep.subr.mxu0 %v906
    %1958 = vmatpush2.msra.mxu0 %v905
    %1959 = vmatprep.subr.mxu0 %v900
    %1960 = vmatpush2.msra.mxu0 %v899
    %1961 = vmatprep.subr.mxu0 %v894
    %1962 = vmatpush2.msra.mxu0 %v893
    %1963 = vmatprep.subr.mxu0 %v888
    %1964 = vmatpush2.msra.mxu0 %v887
    %1965 = vmatprep.mubr.f32.mxu0 %v1827
    %1966 = vmatmul.mubr.f32.gmra.mxu0 %v1826
    %v1967 = vpop.f32.mrf.mxu0
    %v1968 = vadd.f32 0.0, %v1967
    %v1969 = vpop.f32.mrf.mxu0
    %v1970 = vadd.f32 0.0, %v1969
    %1971 = vdwg.mxu0
    %1972 = vmatprep.subr.mxu0 %v884
    %1973 = vmatpush1.msra.mxu0 %v883
    %1974 = vmatprep.subr.mxu0 %v878
    %1975 = vmatpush1.msra.mxu0 %v877
    %1976 = vmatprep.subr.mxu0 %v872
    %1977 = vmatpush1.msra.mxu0 %v871
    %1978 = vmatprep.subr.mxu0 %v866
    %1979 = vmatpush1.msra.mxu0 %v865
    %1980 = vmatprep.subr.mxu0 %v860
    %1981 = vmatpush1.msra.mxu0 %v859
    %1982 = vmatprep.subr.mxu0 %v854
    %1983 = vmatpush1.msra.mxu0 %v853
    %1984 = vmatprep.subr.mxu0 %v848
    %1985 = vmatpush1.msra.mxu0 %v847
    %1986 = vmatprep.subr.mxu0 %v842
    %1987 = vmatpush1.msra.mxu0 %v841
    %1988 = vmatprep.subr.mxu0 %v836
    %1989 = vmatpush1.msra.mxu0 %v835
    %1990 = vmatprep.subr.mxu0 %v830
    %1991 = vmatpush1.msra.mxu0 %v829
    %1992 = vmatprep.subr.mxu0 %v824
    %1993 = vmatpush1.msra.mxu0 %v823
    %1994 = vmatprep.subr.mxu0 %v818
    %1995 = vmatpush1.msra.mxu0 %v817
    %1996 = vmatprep.subr.mxu0 %v812
    %1997 = vmatpush1.msra.mxu0 %v811
    %1998 = vmatprep.subr.mxu0 %v806
    %1999 = vmatpush1.msra.mxu0 %v805
    %2000 = vmatprep.subr.mxu0 %v800
    %2001 = vmatpush1.msra.mxu0 %v799
    %2002 = vmatprep.subr.mxu0 %v794
    %2003 = vmatpush1.msra.mxu0 %v793
    %2004 = vmatprep.subr.mxu0 %v980
    %2005 = vmatpush2.msra.mxu0 %v979
    %2006 = vmatprep.subr.mxu0 %v974
    %2007 = vmatpush2.msra.mxu0 %v973
    %2008 = vmatprep.subr.mxu0 %v968
    %2009 = vmatpush2.msra.mxu0 %v967
    %2010 = vmatprep.subr.mxu0 %v962
    %2011 = vmatpush2.msra.mxu0 %v961
    %2012 = vmatprep.subr.mxu0 %v956
    %2013 = vmatpush2.msra.mxu0 %v955
    %2014 = vmatprep.subr.mxu0 %v950
    %2015 = vmatpush2.msra.mxu0 %v949
    %2016 = vmatprep.subr.mxu0 %v944
    %2017 = vmatpush2.msra.mxu0 %v943
    %2018 = vmatprep.subr.mxu0 %v938
    %2019 = vmatpush2.msra.mxu0 %v937
    %2020 = vmatprep.subr.mxu0 %v932
    %2021 = vmatpush2.msra.mxu0 %v931
    %2022 = vmatprep.subr.mxu0 %v926
    %2023 = vmatpush2.msra.mxu0 %v925
    %2024 = vmatprep.subr.mxu0 %v920
    %2025 = vmatpush2.msra.mxu0 %v919
    %2026 = vmatprep.subr.mxu0 %v914
    %2027 = vmatpush2.msra.mxu0 %v913
    %2028 = vmatprep.subr.mxu0 %v908
    %2029 = vmatpush2.msra.mxu0 %v907
    %2030 = vmatprep.subr.mxu0 %v902
    %2031 = vmatpush2.msra.mxu0 %v901
    %2032 = vmatprep.subr.mxu0 %v896
    %2033 = vmatpush2.msra.mxu0 %v895
    %2034 = vmatprep.subr.mxu0 %v890
    %2035 = vmatpush2.msra.mxu0 %v889
    %2036 = vmatprep.mubr.f32.mxu0 %v1827
    %2037 = vmatmul.mubr.f32.gmra.mxu0 %v1826
    %v2038 = vpop.f32.mrf.mxu0
    %v2039 = vadd.f32 0.0, %v2038
    %v2040 = vpop.f32.mrf.mxu0
    %v2041 = vadd.f32 0.0, %v2040
    %2042 = vdwg.mxu0
    %v2045 = vrot.slane %v1897, 2
    %v2046 = vrot.slane %v1899, 2
    %v2049 = vadd.f32 %v777, %v2045
    %v2050 = vadd.f32 %v778, %v2046
    %v2051 = vxor.u32 %v2049, 2147483648
    %v2052 = vxor.u32 %v2050, 2147483648
    %v2053 = vmul.f32 %v2051, 1.442695
    %v2054 = vpow.pop %v2053
    %v2055 = vmul.f32 %v2052, 1.442695
    %v2056 = vpow.pop %v2055
    %v2057 = vadd.f32 %v2054, 1.0
    %v2058 = vadd.f32 %v2056, 1.0
    %v2059 = vrcp.pop %v2057
    %v2060 = vmul.f32 1.0, %v2059
    %v2061 = vrcp.pop %v2058
    %v2062 = vmul.f32 1.0, %v2061
    %v2065 = vrot.slane %v1968, 2
    %v2066 = vrot.slane %v1970, 2
    %v2069 = vadd.f32 %v779, %v2065
    %v2070 = vadd.f32 %v780, %v2066
    %v2071 = vxor.u32 %v2069, 2147483648
    %v2072 = vxor.u32 %v2070, 2147483648
    %v2073 = vmul.f32 %v2071, 1.442695
    %v2074 = vpow.pop %v2073
    %v2075 = vmul.f32 %v2072, 1.442695
    %v2076 = vpow.pop %v2075
    %v2077 = vadd.f32 %v2074, 1.0
    %v2078 = vadd.f32 %v2076, 1.0
    %v2079 = vrcp.pop %v2077
    %v2080 = vmul.f32 1.0, %v2079
    %v2081 = vrcp.pop %v2078
    %v2082 = vmul.f32 1.0, %v2081
    %v2083 = vadd.f32 %v2039, %v986
    %v2084 = vadd.f32 %v2041, %v990
    %v2087 = vrot.slane %v2083, 2
    %v2088 = vrot.slane %v2084, 2
    %v2091 = vmul.f32 %v2060, %v2087
    %v2092 = vmul.f32 %v2062, %v2088
    %v2093 = vadd.f32 %v781, %v2091
    %v2094 = vadd.f32 %v782, %v2092
    %v2095 = vtanh.pop %v2093
    %v2096 = vtanh.pop %v2094
    %v2099 = vrot.slane %v2095, 2
    %v2100 = vrot.slane %v2096, 2
    %v2103 = vsub.f32 %v1822, %v2099
    %v2104 = vsub.f32 %v1823, %v2100
    %v2107 = vrot.slane %v2103, 6
    %v2108 = vrot.slane %v2104, 6
    %v2111 = vmul.f32 %v2080, %v2107
    %v2112 = vmul.f32 %v2082, %v2108
    %v2113 = vadd.f32 %v2095, %v2111
    %v2114 = vadd.f32 %v2096, %v2112
    %v2117 = vrot.slane %v2113, 6
    %v2118 = vrot.slane %v2114, 6
    %2121 = vmatprep.subr.mxu0 %v880
    %2122 = vmatpush1.msra.mxu0 %v879
    %2123 = vmatprep.subr.mxu0 %v874
    %2124 = vmatpush1.msra.mxu0 %v873
    %2125 = vmatprep.subr.mxu0 %v868
    %2126 = vmatpush1.msra.mxu0 %v867
    %2127 = vmatprep.subr.mxu0 %v862
    %2128 = vmatpush1.msra.mxu0 %v861
    %2129 = vmatprep.subr.mxu0 %v856
    %2130 = vmatpush1.msra.mxu0 %v855
    %2131 = vmatprep.subr.mxu0 %v850
    %2132 = vmatpush1.msra.mxu0 %v849
    %2133 = vmatprep.subr.mxu0 %v844
    %2134 = vmatpush1.msra.mxu0 %v843
    %2135 = vmatprep.subr.mxu0 %v838
    %2136 = vmatpush1.msra.mxu0 %v837
    %2137 = vmatprep.subr.mxu0 %v832
    %2138 = vmatpush1.msra.mxu0 %v831
    %2139 = vmatprep.subr.mxu0 %v826
    %2140 = vmatpush1.msra.mxu0 %v825
    %2141 = vmatprep.subr.mxu0 %v820
    %2142 = vmatpush1.msra.mxu0 %v819
    %2143 = vmatprep.subr.mxu0 %v814
    %2144 = vmatpush1.msra.mxu0 %v813
    %2145 = vmatprep.subr.mxu0 %v808
    %2146 = vmatpush1.msra.mxu0 %v807
    %2147 = vmatprep.subr.mxu0 %v802
    %2148 = vmatpush1.msra.mxu0 %v801
    %2149 = vmatprep.subr.mxu0 %v796
    %2150 = vmatpush1.msra.mxu0 %v795
    %2151 = vmatprep.subr.mxu0 %v790
    %2152 = vmatpush1.msra.mxu0 %v789
    %2153 = vmatprep.subr.mxu0 %v976
    %2154 = vmatpush2.msra.mxu0 %v975
    %2155 = vmatprep.subr.mxu0 %v970
    %2156 = vmatpush2.msra.mxu0 %v969
    %2157 = vmatprep.subr.mxu0 %v964
    %2158 = vmatpush2.msra.mxu0 %v963
    %2159 = vmatprep.subr.mxu0 %v958
    %2160 = vmatpush2.msra.mxu0 %v957
    %2161 = vmatprep.subr.mxu0 %v952
    %2162 = vmatpush2.msra.mxu0 %v951
    %2163 = vmatprep.subr.mxu0 %v946
    %2164 = vmatpush2.msra.mxu0 %v945
    %2165 = vmatprep.subr.mxu0 %v940
    %2166 = vmatpush2.msra.mxu0 %v939
    %2167 = vmatprep.subr.mxu0 %v934
    %2168 = vmatpush2.msra.mxu0 %v933
    %2169 = vmatprep.subr.mxu0 %v928
    %2170 = vmatpush2.msra.mxu0 %v927
    %2171 = vmatprep.subr.mxu0 %v922
    %2172 = vmatpush2.msra.mxu0 %v921
    %2173 = vmatprep.subr.mxu0 %v916
    %2174 = vmatpush2.msra.mxu0 %v915
    %2175 = vmatprep.subr.mxu0 %v910
    %2176 = vmatpush2.msra.mxu0 %v909
    %2177 = vmatprep.subr.mxu0 %v904
    %2178 = vmatpush2.msra.mxu0 %v903
    %2179 = vmatprep.subr.mxu0 %v898
    %2180 = vmatpush2.msra.mxu0 %v897
    %2181 = vmatprep.subr.mxu0 %v892
    %2182 = vmatpush2.msra.mxu0 %v891
    %2183 = vmatprep.subr.mxu0 %v886
    %2184 = vmatpush2.msra.mxu0 %v885
    %2185 = vmatprep.mubr.f32.mxu0 %v2118
    %2186 = vmatmul.mubr.f32.gmra.mxu0 %v2117
    %v2187 = vpop.f32.mrf.mxu0
    %v2188 = vadd.f32 0.0, %v2187
    %v2189 = vpop.f32.mrf.mxu0
    %v2190 = vadd.f32 0.0, %v2189
    %2191 = vdwg.mxu0
    %2192 = vmatprep.subr.mxu0 %v882
    %2193 = vmatpush1.msra.mxu0 %v881
    %2194 = vmatprep.subr.mxu0 %v876
    %2195 = vmatpush1.msra.mxu0 %v875
    %2196 = vmatprep.subr.mxu0 %v870
    %2197 = vmatpush1.msra.mxu0 %v869
    %2198 = vmatprep.subr.mxu0 %v864
    %2199 = vmatpush1.msra.mxu0 %v863
    %2200 = vmatprep.subr.mxu0 %v858
    %2201 = vmatpush1.msra.mxu0 %v857
    %2202 = vmatprep.subr.mxu0 %v852
    %2203 = vmatpush1.msra.mxu0 %v851
    %2204 = vmatprep.subr.mxu0 %v846
    %2205 = vmatpush1.msra.mxu0 %v845
    %2206 = vmatprep.subr.mxu0 %v840
    %2207 = vmatpush1.msra.mxu0 %v839
    %2208 = vmatprep.subr.mxu0 %v834
    %2209 = vmatpush1.msra.mxu0 %v833
    %2210 = vmatprep.subr.mxu0 %v828
    %2211 = vmatpush1.msra.mxu0 %v827
    %2212 = vmatprep.subr.mxu0 %v822
    %2213 = vmatpush1.msra.mxu0 %v821
    %2214 = vmatprep.subr.mxu0 %v816
    %2215 = vmatpush1.msra.mxu0 %v815
    %2216 = vmatprep.subr.mxu0 %v810
    %2217 = vmatpush1.msra.mxu0 %v809
    %2218 = vmatprep.subr.mxu0 %v804
    %2219 = vmatpush1.msra.mxu0 %v803
    %2220 = vmatprep.subr.mxu0 %v798
    %2221 = vmatpush1.msra.mxu0 %v797
    %2222 = vmatprep.subr.mxu0 %v792
    %2223 = vmatpush1.msra.mxu0 %v791
    %2224 = vmatprep.subr.mxu0 %v978
    %2225 = vmatpush2.msra.mxu0 %v977
    %2226 = vmatprep.subr.mxu0 %v972
    %2227 = vmatpush2.msra.mxu0 %v971
    %2228 = vmatprep.subr.mxu0 %v966
    %2229 = vmatpush2.msra.mxu0 %v965
    %2230 = vmatprep.subr.mxu0 %v960
    %2231 = vmatpush2.msra.mxu0 %v959
    %2232 = vmatprep.subr.mxu0 %v954
    %2233 = vmatpush2.msra.mxu0 %v953
    %2234 = vmatprep.subr.mxu0 %v948
    %2235 = vmatpush2.msra.mxu0 %v947
    %2236 = vmatprep.subr.mxu0 %v942
    %2237 = vmatpush2.msra.mxu0 %v941
    %2238 = vmatprep.subr.mxu0 %v936
    %2239 = vmatpush2.msra.mxu0 %v935
    %2240 = vmatprep.subr.mxu0 %v930
    %2241 = vmatpush2.msra.mxu0 %v929
    %2242 = vmatprep.subr.mxu0 %v924
    %2243 = vmatpush2.msra.mxu0 %v923
    %2244 = vmatprep.subr.mxu0 %v918
    %2245 = vmatpush2.msra.mxu0 %v917
    %2246 = vmatprep.subr.mxu0 %v912
    %2247 = vmatpush2.msra.mxu0 %v911
    %2248 = vmatprep.subr.mxu0 %v906
    %2249 = vmatpush2.msra.mxu0 %v905
    %2250 = vmatprep.subr.mxu0 %v900
    %2251 = vmatpush2.msra.mxu0 %v899
    %2252 = vmatprep.subr.mxu0 %v894
    %2253 = vmatpush2.msra.mxu0 %v893
    %2254 = vmatprep.subr.mxu0 %v888
    %2255 = vmatpush2.msra.mxu0 %v887
    %2256 = vmatprep.mubr.f32.mxu0 %v2118
    %2257 = vmatmul.mubr.f32.gmra.mxu0 %v2117
    %v2258 = vpop.f32.mrf.mxu0
    %v2259 = vadd.f32 0.0, %v2258
    %v2260 = vpop.f32.mrf.mxu0
    %v2261 = vadd.f32 0.0, %v2260
    %2262 = vdwg.mxu0
    %2263 = vmatprep.subr.mxu0 %v884
    %2264 = vmatpush1.msra.mxu0 %v883
    %2265 = vmatprep.subr.mxu0 %v878
    %2266 = vmatpush1.msra.mxu0 %v877
    %2267 = vmatprep.subr.mxu0 %v872
    %2268 = vmatpush1.msra.mxu0 %v871
    %2269 = vmatprep.subr.mxu0 %v866
    %2270 = vmatpush1.msra.mxu0 %v865
    %2271 = vmatprep.subr.mxu0 %v860
    %2272 = vmatpush1.msra.mxu0 %v859
    %2273 = vmatprep.subr.mxu0 %v854
    %2274 = vmatpush1.msra.mxu0 %v853
    %2275 = vmatprep.subr.mxu0 %v848
    %2276 = vmatpush1.msra.mxu0 %v847
    %2277 = vmatprep.subr.mxu0 %v842
    %2278 = vmatpush1.msra.mxu0 %v841
    %2279 = vmatprep.subr.mxu0 %v836
    %2280 = vmatpush1.msra.mxu0 %v835
    %2281 = vmatprep.subr.mxu0 %v830
    %2282 = vmatpush1.msra.mxu0 %v829
    %2283 = vmatprep.subr.mxu0 %v824
    %2284 = vmatpush1.msra.mxu0 %v823
    %2285 = vmatprep.subr.mxu0 %v818
    %2286 = vmatpush1.msra.mxu0 %v817
    %2287 = vmatprep.subr.mxu0 %v812
    %2288 = vmatpush1.msra.mxu0 %v811
    %2289 = vmatprep.subr.mxu0 %v806
    %2290 = vmatpush1.msra.mxu0 %v805
    %2291 = vmatprep.subr.mxu0 %v800
    %2292 = vmatpush1.msra.mxu0 %v799
    %2293 = vmatprep.subr.mxu0 %v794
    %2294 = vmatpush1.msra.mxu0 %v793
    %2295 = vmatprep.subr.mxu0 %v980
    %2296 = vmatpush2.msra.mxu0 %v979
    %2297 = vmatprep.subr.mxu0 %v974
    %2298 = vmatpush2.msra.mxu0 %v973
    %2299 = vmatprep.subr.mxu0 %v968
    %2300 = vmatpush2.msra.mxu0 %v967
    %2301 = vmatprep.subr.mxu0 %v962
    %2302 = vmatpush2.msra.mxu0 %v961
    %2303 = vmatprep.subr.mxu0 %v956
    %2304 = vmatpush2.msra.mxu0 %v955
    %2305 = vmatprep.subr.mxu0 %v950
    %2306 = vmatpush2.msra.mxu0 %v949
    %2307 = vmatprep.subr.mxu0 %v944
    %2308 = vmatpush2.msra.mxu0 %v943
    %2309 = vmatprep.subr.mxu0 %v938
    %2310 = vmatpush2.msra.mxu0 %v937
    %2311 = vmatprep.subr.mxu0 %v932
    %2312 = vmatpush2.msra.mxu0 %v931
    %2313 = vmatprep.subr.mxu0 %v926
    %2314 = vmatpush2.msra.mxu0 %v925
    %2315 = vmatprep.subr.mxu0 %v920
    %2316 = vmatpush2.msra.mxu0 %v919
    %2317 = vmatprep.subr.mxu0 %v914
    %2318 = vmatpush2.msra.mxu0 %v913
    %2319 = vmatprep.subr.mxu0 %v908
    %2320 = vmatpush2.msra.mxu0 %v907
    %2321 = vmatprep.subr.mxu0 %v902
    %2322 = vmatpush2.msra.mxu0 %v901
    %2323 = vmatprep.subr.mxu0 %v896
    %2324 = vmatpush2.msra.mxu0 %v895
    %2325 = vmatprep.subr.mxu0 %v890
    %2326 = vmatpush2.msra.mxu0 %v889
    %2327 = vmatprep.mubr.f32.mxu0 %v2118
    %2328 = vmatmul.mubr.f32.gmra.mxu0 %v2117
    %v2329 = vpop.f32.mrf.mxu0
    %v2330 = vadd.f32 0.0, %v2329
    %v2331 = vpop.f32.mrf.mxu0
    %v2332 = vadd.f32 0.0, %v2331
    %2333 = vdwg.mxu0
    %v2334 = vadd.f32 %v783, %v2188
    %v2335 = vadd.f32 %v784, %v2190
    %v2336 = vxor.u32 %v2334, 2147483648
    %v2337 = vxor.u32 %v2335, 2147483648
    %v2338 = vmul.f32 %v2336, 1.442695
    %v2339 = vpow.pop %v2338
    %v2340 = vmul.f32 %v2337, 1.442695
    %v2341 = vpow.pop %v2340
    %v2342 = vadd.f32 %v2339, 1.0
    %v2343 = vadd.f32 %v2341, 1.0
    %v2344 = vrcp.pop %v2342
    %v2345 = vmul.f32 1.0, %v2344
    %v2346 = vrcp.pop %v2343
    %v2347 = vmul.f32 1.0, %v2346
    %v2348 = vadd.f32 %v785, %v2259
    %v2349 = vadd.f32 %v786, %v2261
    %v2350 = vxor.u32 %v2348, 2147483648
    %v2351 = vxor.u32 %v2349, 2147483648
    %v2352 = vmul.f32 %v2350, 1.442695
    %v2353 = vpow.pop %v2352
    %v2354 = vmul.f32 %v2351, 1.442695
    %v2355 = vpow.pop %v2354
    %v2356 = vadd.f32 %v2353, 1.0
    %v2357 = vadd.f32 %v2355, 1.0
    %v2358 = vrcp.pop %v2356
    %v2359 = vmul.f32 1.0, %v2358
    %v2360 = vrcp.pop %v2357
    %v2361 = vmul.f32 1.0, %v2360
    %v2362 = vadd.f32 %v2330, %v986
    %v2363 = vadd.f32 %v2332, %v990
    %v2364 = vmul.f32 %v2345, %v2362
    %v2365 = vmul.f32 %v2347, %v2363
    %v2366 = vadd.f32 %v787, %v2364
    %v2367 = vadd.f32 %v788, %v2365
    %v2368 = vtanh.pop %v2366
    %v2369 = vtanh.pop %v2367
    %v2372 = vrot.slane %v2368, 2
    %v2373 = vrot.slane %v2369, 2
    %v2376 = vsub.f32 %v2113, %v2372
    %v2377 = vsub.f32 %v2114, %v2373
    %v2380 = vrot.slane %v2376, 6
    %v2381 = vrot.slane %v2377, 6
    %v2384 = vmul.f32 %v2359, %v2380
    %v2385 = vmul.f32 %v2361, %v2381
    %v2386 = vadd.f32 %v2368, %v2384
    %v2387 = vadd.f32 %v2369, %v2385
    %2388 = vmatprep.subr.mxu0 %v880
    %2389 = vmatpush1.msra.mxu0 %v879
    %2390 = vmatprep.subr.mxu0 %v874
    %2391 = vmatpush1.msra.mxu0 %v873
    %2392 = vmatprep.subr.mxu0 %v868
    %2393 = vmatpush1.msra.mxu0 %v867
    %2394 = vmatprep.subr.mxu0 %v862
    %2395 = vmatpush1.msra.mxu0 %v861
    %2396 = vmatprep.subr.mxu0 %v856
    %2397 = vmatpush1.msra.mxu0 %v855
    %2398 = vmatprep.subr.mxu0 %v850
    %2399 = vmatpush1.msra.mxu0 %v849
    %2400 = vmatprep.subr.mxu0 %v844
    %2401 = vmatpush1.msra.mxu0 %v843
    %2402 = vmatprep.subr.mxu0 %v838
    %2403 = vmatpush1.msra.mxu0 %v837
    %2404 = vmatprep.subr.mxu0 %v832
    %2405 = vmatpush1.msra.mxu0 %v831
    %2406 = vmatprep.subr.mxu0 %v826
    %2407 = vmatpush1.msra.mxu0 %v825
    %2408 = vmatprep.subr.mxu0 %v820
    %2409 = vmatpush1.msra.mxu0 %v819
    %2410 = vmatprep.subr.mxu0 %v814
    %2411 = vmatpush1.msra.mxu0 %v813
    %2412 = vmatprep.subr.mxu0 %v808
    %2413 = vmatpush1.msra.mxu0 %v807
    %2414 = vmatprep.subr.mxu0 %v802
    %2415 = vmatpush1.msra.mxu0 %v801
    %2416 = vmatprep.subr.mxu0 %v796
    %2417 = vmatpush1.msra.mxu0 %v795
    %2418 = vmatprep.subr.mxu0 %v790
    %2419 = vmatpush1.msra.mxu0 %v789
    %2420 = vmatprep.subr.mxu0 %v976
    %2421 = vmatpush2.msra.mxu0 %v975
    %2422 = vmatprep.subr.mxu0 %v970
    %2423 = vmatpush2.msra.mxu0 %v969
    %2424 = vmatprep.subr.mxu0 %v964
    %2425 = vmatpush2.msra.mxu0 %v963
    %2426 = vmatprep.subr.mxu0 %v958
    %2427 = vmatpush2.msra.mxu0 %v957
    %2428 = vmatprep.subr.mxu0 %v952
    %2429 = vmatpush2.msra.mxu0 %v951
    %2430 = vmatprep.subr.mxu0 %v946
    %2431 = vmatpush2.msra.mxu0 %v945
    %2432 = vmatprep.subr.mxu0 %v940
    %2433 = vmatpush2.msra.mxu0 %v939
    %2434 = vmatprep.subr.mxu0 %v934
    %2435 = vmatpush2.msra.mxu0 %v933
    %2436 = vmatprep.subr.mxu0 %v928
    %2437 = vmatpush2.msra.mxu0 %v927
    %2438 = vmatprep.subr.mxu0 %v922
    %2439 = vmatpush2.msra.mxu0 %v921
    %2440 = vmatprep.subr.mxu0 %v916
    %2441 = vmatpush2.msra.mxu0 %v915
    %2442 = vmatprep.subr.mxu0 %v910
    %2443 = vmatpush2.msra.mxu0 %v909
    %2444 = vmatprep.subr.mxu0 %v904
    %2445 = vmatpush2.msra.mxu0 %v903
    %2446 = vmatprep.subr.mxu0 %v898
    %2447 = vmatpush2.msra.mxu0 %v897
    %2448 = vmatprep.subr.mxu0 %v892
    %2449 = vmatpush2.msra.mxu0 %v891
    %2450 = vmatprep.subr.mxu0 %v886
    %2451 = vmatpush2.msra.mxu0 %v885
    %2452 = vmatprep.mubr.f32.mxu0 %v2387
    %2453 = vmatmul.mubr.f32.gmra.mxu0 %v2386
    %v2454 = vpop.f32.mrf.mxu0
    %v2455 = vadd.f32 0.0, %v2454
    %v2456 = vpop.f32.mrf.mxu0
    %v2457 = vadd.f32 0.0, %v2456
    %2458 = vdwg.mxu0
    %2459 = vmatprep.subr.mxu0 %v882
    %2460 = vmatpush1.msra.mxu0 %v881
    %2461 = vmatprep.subr.mxu0 %v876
    %2462 = vmatpush1.msra.mxu0 %v875
    %2463 = vmatprep.subr.mxu0 %v870
    %2464 = vmatpush1.msra.mxu0 %v869
    %2465 = vmatprep.subr.mxu0 %v864
    %2466 = vmatpush1.msra.mxu0 %v863
    %2467 = vmatprep.subr.mxu0 %v858
    %2468 = vmatpush1.msra.mxu0 %v857
    %2469 = vmatprep.subr.mxu0 %v852
    %2470 = vmatpush1.msra.mxu0 %v851
    %2471 = vmatprep.subr.mxu0 %v846
    %2472 = vmatpush1.msra.mxu0 %v845
    %2473 = vmatprep.subr.mxu0 %v840
    %2474 = vmatpush1.msra.mxu0 %v839
    %2475 = vmatprep.subr.mxu0 %v834
    %2476 = vmatpush1.msra.mxu0 %v833
    %2477 = vmatprep.subr.mxu0 %v828
    %2478 = vmatpush1.msra.mxu0 %v827
    %2479 = vmatprep.subr.mxu0 %v822
    %2480 = vmatpush1.msra.mxu0 %v821
    %2481 = vmatprep.subr.mxu0 %v816
    %2482 = vmatpush1.msra.mxu0 %v815
    %2483 = vmatprep.subr.mxu0 %v810
    %2484 = vmatpush1.msra.mxu0 %v809
    %2485 = vmatprep.subr.mxu0 %v804
    %2486 = vmatpush1.msra.mxu0 %v803
    %2487 = vmatprep.subr.mxu0 %v798
    %2488 = vmatpush1.msra.mxu0 %v797
    %2489 = vmatprep.subr.mxu0 %v792
    %2490 = vmatpush1.msra.mxu0 %v791
    %2491 = vmatprep.subr.mxu0 %v978
    %2492 = vmatpush2.msra.mxu0 %v977
    %2493 = vmatprep.subr.mxu0 %v972
    %2494 = vmatpush2.msra.mxu0 %v971
    %2495 = vmatprep.subr.mxu0 %v966
    %2496 = vmatpush2.msra.mxu0 %v965
    %2497 = vmatprep.subr.mxu0 %v960
    %2498 = vmatpush2.msra.mxu0 %v959
    %2499 = vmatprep.subr.mxu0 %v954
    %2500 = vmatpush2.msra.mxu0 %v953
    %2501 = vmatprep.subr.mxu0 %v948
    %2502 = vmatpush2.msra.mxu0 %v947
    %2503 = vmatprep.subr.mxu0 %v942
    %2504 = vmatpush2.msra.mxu0 %v941
    %2505 = vmatprep.subr.mxu0 %v936
    %2506 = vmatpush2.msra.mxu0 %v935
    %2507 = vmatprep.subr.mxu0 %v930
    %2508 = vmatpush2.msra.mxu0 %v929
    %2509 = vmatprep.subr.mxu0 %v924
    %2510 = vmatpush2.msra.mxu0 %v923
    %2511 = vmatprep.subr.mxu0 %v918
    %2512 = vmatpush2.msra.mxu0 %v917
    %2513 = vmatprep.subr.mxu0 %v912
    %2514 = vmatpush2.msra.mxu0 %v911
    %2515 = vmatprep.subr.mxu0 %v906
    %2516 = vmatpush2.msra.mxu0 %v905
    %2517 = vmatprep.subr.mxu0 %v900
    %2518 = vmatpush2.msra.mxu0 %v899
    %2519 = vmatprep.subr.mxu0 %v894
    %2520 = vmatpush2.msra.mxu0 %v893
    %2521 = vmatprep.subr.mxu0 %v888
    %2522 = vmatpush2.msra.mxu0 %v887
    %2523 = vmatprep.mubr.f32.mxu0 %v2387
    %2524 = vmatmul.mubr.f32.gmra.mxu0 %v2386
    %v2525 = vpop.f32.mrf.mxu0
    %v2526 = vadd.f32 0.0, %v2525
    %v2527 = vpop.f32.mrf.mxu0
    %v2528 = vadd.f32 0.0, %v2527
    %2529 = vdwg.mxu0
    %2530 = vmatprep.subr.mxu0 %v884
    %2531 = vmatpush1.msra.mxu0 %v883
    %2532 = vmatprep.subr.mxu0 %v878
    %2533 = vmatpush1.msra.mxu0 %v877
    %2534 = vmatprep.subr.mxu0 %v872
    %2535 = vmatpush1.msra.mxu0 %v871
    %2536 = vmatprep.subr.mxu0 %v866
    %2537 = vmatpush1.msra.mxu0 %v865
    %2538 = vmatprep.subr.mxu0 %v860
    %2539 = vmatpush1.msra.mxu0 %v859
    %2540 = vmatprep.subr.mxu0 %v854
    %2541 = vmatpush1.msra.mxu0 %v853
    %2542 = vmatprep.subr.mxu0 %v848
    %2543 = vmatpush1.msra.mxu0 %v847
    %2544 = vmatprep.subr.mxu0 %v842
    %2545 = vmatpush1.msra.mxu0 %v841
    %2546 = vmatprep.subr.mxu0 %v836
    %2547 = vmatpush1.msra.mxu0 %v835
    %2548 = vmatprep.subr.mxu0 %v830
    %2549 = vmatpush1.msra.mxu0 %v829
    %2550 = vmatprep.subr.mxu0 %v824
    %2551 = vmatpush1.msra.mxu0 %v823
    %2552 = vmatprep.subr.mxu0 %v818
    %2553 = vmatpush1.msra.mxu0 %v817
    %2554 = vmatprep.subr.mxu0 %v812
    %2555 = vmatpush1.msra.mxu0 %v811
    %2556 = vmatprep.subr.mxu0 %v806
    %2557 = vmatpush1.msra.mxu0 %v805
    %2558 = vmatprep.subr.mxu0 %v800
    %2559 = vmatpush1.msra.mxu0 %v799
    %2560 = vmatprep.subr.mxu0 %v794
    %2561 = vmatpush1.msra.mxu0 %v793
    %2562 = vmatprep.subr.mxu0 %v980
    %2563 = vmatpush2.msra.mxu0 %v979
    %2564 = vmatprep.subr.mxu0 %v974
    %2565 = vmatpush2.msra.mxu0 %v973
    %2566 = vmatprep.subr.mxu0 %v968
    %2567 = vmatpush2.msra.mxu0 %v967
    %2568 = vmatprep.subr.mxu0 %v962
    %2569 = vmatpush2.msra.mxu0 %v961
    %2570 = vmatprep.subr.mxu0 %v956
    %2571 = vmatpush2.msra.mxu0 %v955
    %2572 = vmatprep.subr.mxu0 %v950
    %2573 = vmatpush2.msra.mxu0 %v949
    %2574 = vmatprep.subr.mxu0 %v944
    %2575 = vmatpush2.msra.mxu0 %v943
    %2576 = vmatprep.subr.mxu0 %v938
    %2577 = vmatpush2.msra.mxu0 %v937
    %2578 = vmatprep.subr.mxu0 %v932
    %2579 = vmatpush2.msra.mxu0 %v931
    %2580 = vmatprep.subr.mxu0 %v926
    %2581 = vmatpush2.msra.mxu0 %v925
    %2582 = vmatprep.subr.mxu0 %v920
    %2583 = vmatpush2.msra.mxu0 %v919
    %2584 = vmatprep.subr.mxu0 %v914
    %2585 = vmatpush2.msra.mxu0 %v913
    %2586 = vmatprep.subr.mxu0 %v908
    %2587 = vmatpush2.msra.mxu0 %v907
    %2588 = vmatprep.subr.mxu0 %v902
    %2589 = vmatpush2.msra.mxu0 %v901
    %2590 = vmatprep.subr.mxu0 %v896
    %2591 = vmatpush2.msra.mxu0 %v895
    %2592 = vmatprep.subr.mxu0 %v890
    %2593 = vmatpush2.msra.mxu0 %v889
    %2594 = vmatprep.mubr.f32.mxu0 %v2387
    %2595 = vmatmul.mubr.f32.gmra.mxu0 %v2386
    %v2596 = vpop.f32.mrf.mxu0
    %v2597 = vadd.f32 0.0, %v2596
    %v2598 = vpop.f32.mrf.mxu0
    %v2599 = vadd.f32 0.0, %v2598
    %2600 = vdwg.mxu0
    %v2603 = vrot.slane %v2455, 6
    %v2604 = vrot.slane %v2457, 6
    %v2607 = vadd.f32 %v783, %v2603
    %v2608 = vadd.f32 %v784, %v2604
    %v2609 = vxor.u32 %v2607, 2147483648
    %v2610 = vxor.u32 %v2608, 2147483648
    %v2611 = vmul.f32 %v2609, 1.442695
    %v2612 = vpow.pop %v2611
    %v2613 = vmul.f32 %v2610, 1.442695
    %v2614 = vpow.pop %v2613
    %v2615 = vadd.f32 %v2612, 1.0
    %v2616 = vadd.f32 %v2614, 1.0
    %v2617 = vrcp.pop %v2615
    %v2618 = vmul.f32 1.0, %v2617
    %v2619 = vrcp.pop %v2616
    %v2620 = vmul.f32 1.0, %v2619
    %v2623 = vrot.slane %v2526, 6
    %v2624 = vrot.slane %v2528, 6
    %v2627 = vadd.f32 %v785, %v2623
    %v2628 = vadd.f32 %v786, %v2624
    %v2629 = vxor.u32 %v2627, 2147483648
    %v2630 = vxor.u32 %v2628, 2147483648
    %v2631 = vmul.f32 %v2629, 1.442695
    %v2632 = vpow.pop %v2631
    %v2633 = vmul.f32 %v2630, 1.442695
    %v2634 = vpow.pop %v2633
    %v2635 = vadd.f32 %v2632, 1.0
    %v2636 = vadd.f32 %v2634, 1.0
    %v2637 = vrcp.pop %v2635
    %v2638 = vmul.f32 1.0, %v2637
    %v2639 = vrcp.pop %v2636
    %v2640 = vmul.f32 1.0, %v2639
    %v2641 = vadd.f32 %v2597, %v986
    %v2642 = vadd.f32 %v2599, %v990
    %v2645 = vrot.slane %v2641, 6
    %v2646 = vrot.slane %v2642, 6
    %v2649 = vmul.f32 %v2618, %v2645
    %v2650 = vmul.f32 %v2620, %v2646
    %v2651 = vadd.f32 %v787, %v2649
    %v2652 = vadd.f32 %v788, %v2650
    %v2653 = vtanh.pop %v2651
    %v2654 = vtanh.pop %v2652
    %v2657 = vrot.slane %v2653, 2
    %v2658 = vrot.slane %v2654, 2
    %v2661 = vsub.f32 %v2386, %v2657
    %v2662 = vsub.f32 %v2387, %v2658
    %v2665 = vrot.slane %v2661, 6
    %v2666 = vrot.slane %v2662, 6
    %v2669 = vmul.f32 %v2638, %v2665
    %v2670 = vmul.f32 %v2640, %v2666
    %v2671 = vadd.f32 %v2653, %v2669
    %v2672 = vadd.f32 %v2654, %v2670
    %v2675 = vrot.slane %v2671, 2
    %v2676 = vrot.slane %v2672, 2
    %2679 = vmatprep.subr.mxu0 %v880
    %2680 = vmatpush1.msra.mxu0 %v879
    %2681 = vmatprep.subr.mxu0 %v874
    %2682 = vmatpush1.msra.mxu0 %v873
    %2683 = vmatprep.subr.mxu0 %v868
    %2684 = vmatpush1.msra.mxu0 %v867
    %2685 = vmatprep.subr.mxu0 %v862
    %2686 = vmatpush1.msra.mxu0 %v861
    %2687 = vmatprep.subr.mxu0 %v856
    %2688 = vmatpush1.msra.mxu0 %v855
    %2689 = vmatprep.subr.mxu0 %v850
    %2690 = vmatpush1.msra.mxu0 %v849
    %2691 = vmatprep.subr.mxu0 %v844
    %2692 = vmatpush1.msra.mxu0 %v843
    %2693 = vmatprep.subr.mxu0 %v838
    %2694 = vmatpush1.msra.mxu0 %v837
    %2695 = vmatprep.subr.mxu0 %v832
    %2696 = vmatpush1.msra.mxu0 %v831
    %2697 = vmatprep.subr.mxu0 %v826
    %2698 = vmatpush1.msra.mxu0 %v825
    %2699 = vmatprep.subr.mxu0 %v820
    %2700 = vmatpush1.msra.mxu0 %v819
    %2701 = vmatprep.subr.mxu0 %v814
    %2702 = vmatpush1.msra.mxu0 %v813
    %2703 = vmatprep.subr.mxu0 %v808
    %2704 = vmatpush1.msra.mxu0 %v807
    %2705 = vmatprep.subr.mxu0 %v802
    %2706 = vmatpush1.msra.mxu0 %v801
    %2707 = vmatprep.subr.mxu0 %v796
    %2708 = vmatpush1.msra.mxu0 %v795
    %2709 = vmatprep.subr.mxu0 %v790
    %2710 = vmatpush1.msra.mxu0 %v789
    %2711 = vmatprep.subr.mxu0 %v976
    %2712 = vmatpush2.msra.mxu0 %v975
    %2713 = vmatprep.subr.mxu0 %v970
    %2714 = vmatpush2.msra.mxu0 %v969
    %2715 = vmatprep.subr.mxu0 %v964
    %2716 = vmatpush2.msra.mxu0 %v963
    %2717 = vmatprep.subr.mxu0 %v958
    %2718 = vmatpush2.msra.mxu0 %v957
    %2719 = vmatprep.subr.mxu0 %v952
    %2720 = vmatpush2.msra.mxu0 %v951
    %2721 = vmatprep.subr.mxu0 %v946
    %2722 = vmatpush2.msra.mxu0 %v945
    %2723 = vmatprep.subr.mxu0 %v940
    %2724 = vmatpush2.msra.mxu0 %v939
    %2725 = vmatprep.subr.mxu0 %v934
    %2726 = vmatpush2.msra.mxu0 %v933
    %2727 = vmatprep.subr.mxu0 %v928
    %2728 = vmatpush2.msra.mxu0 %v927
    %2729 = vmatprep.subr.mxu0 %v922
    %2730 = vmatpush2.msra.mxu0 %v921
    %2731 = vmatprep.subr.mxu0 %v916
    %2732 = vmatpush2.msra.mxu0 %v915
    %2733 = vmatprep.subr.mxu0 %v910
    %2734 = vmatpush2.msra.mxu0 %v909
    %2735 = vmatprep.subr.mxu0 %v904
    %2736 = vmatpush2.msra.mxu0 %v903
    %2737 = vmatprep.subr.mxu0 %v898
    %2738 = vmatpush2.msra.mxu0 %v897
    %2739 = vmatprep.subr.mxu0 %v892
    %2740 = vmatpush2.msra.mxu0 %v891
    %2741 = vmatprep.subr.mxu0 %v886
    %2742 = vmatpush2.msra.mxu0 %v885
    %2743 = vmatprep.mubr.f32.mxu0 %v2676
    %2744 = vmatmul.mubr.f32.gmra.mxu0 %v2675
    %v2745 = vpop.f32.mrf.mxu0
    %v2746 = vadd.f32 0.0, %v2745
    %v2747 = vpop.f32.mrf.mxu0
    %v2748 = vadd.f32 0.0, %v2747
    %2749 = vdwg.mxu0
    %2750 = vmatprep.subr.mxu0 %v882
    %2751 = vmatpush1.msra.mxu0 %v881
    %2752 = vmatprep.subr.mxu0 %v876
    %2753 = vmatpush1.msra.mxu0 %v875
    %2754 = vmatprep.subr.mxu0 %v870
    %2755 = vmatpush1.msra.mxu0 %v869
    %2756 = vmatprep.subr.mxu0 %v864
    %2757 = vmatpush1.msra.mxu0 %v863
    %2758 = vmatprep.subr.mxu0 %v858
    %2759 = vmatpush1.msra.mxu0 %v857
    %2760 = vmatprep.subr.mxu0 %v852
    %2761 = vmatpush1.msra.mxu0 %v851
    %2762 = vmatprep.subr.mxu0 %v846
    %2763 = vmatpush1.msra.mxu0 %v845
    %2764 = vmatprep.subr.mxu0 %v840
    %2765 = vmatpush1.msra.mxu0 %v839
    %2766 = vmatprep.subr.mxu0 %v834
    %2767 = vmatpush1.msra.mxu0 %v833
    %2768 = vmatprep.subr.mxu0 %v828
    %2769 = vmatpush1.msra.mxu0 %v827
    %2770 = vmatprep.subr.mxu0 %v822
    %2771 = vmatpush1.msra.mxu0 %v821
    %2772 = vmatprep.subr.mxu0 %v816
    %2773 = vmatpush1.msra.mxu0 %v815
    %2774 = vmatprep.subr.mxu0 %v810
    %2775 = vmatpush1.msra.mxu0 %v809
    %2776 = vmatprep.subr.mxu0 %v804
    %2777 = vmatpush1.msra.mxu0 %v803
    %2778 = vmatprep.subr.mxu0 %v798
    %2779 = vmatpush1.msra.mxu0 %v797
    %2780 = vmatprep.subr.mxu0 %v792
    %2781 = vmatpush1.msra.mxu0 %v791
    %2782 = vmatprep.subr.mxu0 %v978
    %2783 = vmatpush2.msra.mxu0 %v977
    %2784 = vmatprep.subr.mxu0 %v972
    %2785 = vmatpush2.msra.mxu0 %v971
    %2786 = vmatprep.subr.mxu0 %v966
    %2787 = vmatpush2.msra.mxu0 %v965
    %2788 = vmatprep.subr.mxu0 %v960
    %2789 = vmatpush2.msra.mxu0 %v959
    %2790 = vmatprep.subr.mxu0 %v954
    %2791 = vmatpush2.msra.mxu0 %v953
    %2792 = vmatprep.subr.mxu0 %v948
    %2793 = vmatpush2.msra.mxu0 %v947
    %2794 = vmatprep.subr.mxu0 %v942
    %2795 = vmatpush2.msra.mxu0 %v941
    %2796 = vmatprep.subr.mxu0 %v936
    %2797 = vmatpush2.msra.mxu0 %v935
    %2798 = vmatprep.subr.mxu0 %v930
    %2799 = vmatpush2.msra.mxu0 %v929
    %2800 = vmatprep.subr.mxu0 %v924
    %2801 = vmatpush2.msra.mxu0 %v923
    %2802 = vmatprep.subr.mxu0 %v918
    %2803 = vmatpush2.msra.mxu0 %v917
    %2804 = vmatprep.subr.mxu0 %v912
    %2805 = vmatpush2.msra.mxu0 %v911
    %2806 = vmatprep.subr.mxu0 %v906
    %2807 = vmatpush2.msra.mxu0 %v905
    %2808 = vmatprep.subr.mxu0 %v900
    %2809 = vmatpush2.msra.mxu0 %v899
    %2810 = vmatprep.subr.mxu0 %v894
    %2811 = vmatpush2.msra.mxu0 %v893
    %2812 = vmatprep.subr.mxu0 %v888
    %2813 = vmatpush2.msra.mxu0 %v887
    %2814 = vmatprep.mubr.f32.mxu0 %v2676
    %2815 = vmatmul.mubr.f32.gmra.mxu0 %v2675
    %v2816 = vpop.f32.mrf.mxu0
    %v2817 = vadd.f32 0.0, %v2816
    %v2818 = vpop.f32.mrf.mxu0
    %v2819 = vadd.f32 0.0, %v2818
    %2820 = vdwg.mxu0
    %2821 = vmatprep.subr.mxu0 %v884
    %2822 = vmatpush1.msra.mxu0 %v883
    %2823 = vmatprep.subr.mxu0 %v878
    %2824 = vmatpush1.msra.mxu0 %v877
    %2825 = vmatprep.subr.mxu0 %v872
    %2826 = vmatpush1.msra.mxu0 %v871
    %2827 = vmatprep.subr.mxu0 %v866
    %2828 = vmatpush1.msra.mxu0 %v865
    %2829 = vmatprep.subr.mxu0 %v860
    %2830 = vmatpush1.msra.mxu0 %v859
    %2831 = vmatprep.subr.mxu0 %v854
    %2832 = vmatpush1.msra.mxu0 %v853
    %2833 = vmatprep.subr.mxu0 %v848
    %2834 = vmatpush1.msra.mxu0 %v847
    %2835 = vmatprep.subr.mxu0 %v842
    %2836 = vmatpush1.msra.mxu0 %v841
    %2837 = vmatprep.subr.mxu0 %v836
    %2838 = vmatpush1.msra.mxu0 %v835
    %2839 = vmatprep.subr.mxu0 %v830
    %2840 = vmatpush1.msra.mxu0 %v829
    %2841 = vmatprep.subr.mxu0 %v824
    %2842 = vmatpush1.msra.mxu0 %v823
    %2843 = vmatprep.subr.mxu0 %v818
    %2844 = vmatpush1.msra.mxu0 %v817
    %2845 = vmatprep.subr.mxu0 %v812
    %2846 = vmatpush1.msra.mxu0 %v811
    %2847 = vmatprep.subr.mxu0 %v806
    %2848 = vmatpush1.msra.mxu0 %v805
    %2849 = vmatprep.subr.mxu0 %v800
    %2850 = vmatpush1.msra.mxu0 %v799
    %2851 = vmatprep.subr.mxu0 %v794
    %2852 = vmatpush1.msra.mxu0 %v793
    %2853 = vmatprep.subr.mxu0 %v980
    %2854 = vmatpush2.msra.mxu0 %v979
    %2855 = vmatprep.subr.mxu0 %v974
    %2856 = vmatpush2.msra.mxu0 %v973
    %2857 = vmatprep.subr.mxu0 %v968
    %2858 = vmatpush2.msra.mxu0 %v967
    %2859 = vmatprep.subr.mxu0 %v962
    %2860 = vmatpush2.msra.mxu0 %v961
    %2861 = vmatprep.subr.mxu0 %v956
    %2862 = vmatpush2.msra.mxu0 %v955
    %2863 = vmatprep.subr.mxu0 %v950
    %2864 = vmatpush2.msra.mxu0 %v949
    %2865 = vmatprep.subr.mxu0 %v944
    %2866 = vmatpush2.msra.mxu0 %v943
    %2867 = vmatprep.subr.mxu0 %v938
    %2868 = vmatpush2.msra.mxu0 %v937
    %2869 = vmatprep.subr.mxu0 %v932
    %2870 = vmatpush2.msra.mxu0 %v931
    %2871 = vmatprep.subr.mxu0 %v926
    %2872 = vmatpush2.msra.mxu0 %v925
    %2873 = vmatprep.subr.mxu0 %v920
    %2874 = vmatpush2.msra.mxu0 %v919
    %2875 = vmatprep.subr.mxu0 %v914
    %2876 = vmatpush2.msra.mxu0 %v913
    %2877 = vmatprep.subr.mxu0 %v908
    %2878 = vmatpush2.msra.mxu0 %v907
    %2879 = vmatprep.subr.mxu0 %v902
    %2880 = vmatpush2.msra.mxu0 %v901
    %2881 = vmatprep.subr.mxu0 %v896
    %2882 = vmatpush2.msra.mxu0 %v895
    %2883 = vmatprep.subr.mxu0 %v890
    %2884 = vmatpush2.msra.mxu0 %v889
    %2885 = vmatprep.mubr.f32.mxu0 %v2676
    %2886 = vmatmul.mubr.f32.gmra.mxu0 %v2675
    %v2887 = vpop.f32.mrf.mxu0
    %v2888 = vadd.f32 0.0, %v2887
    %v2889 = vpop.f32.mrf.mxu0
    %v2890 = vadd.f32 0.0, %v2889
    %2891 = vdwg.mxu0
    %v2894 = vrot.slane %v2746, 4
    %v2895 = vrot.slane %v2748, 4
    %v2898 = vadd.f32 %v783, %v2894
    %v2899 = vadd.f32 %v784, %v2895
    %v2900 = vxor.u32 %v2898, 2147483648
    %v2901 = vxor.u32 %v2899, 2147483648
    %v2902 = vmul.f32 %v2900, 1.442695
    %v2903 = vpow.pop %v2902
    %v2904 = vmul.f32 %v2901, 1.442695
    %v2905 = vpow.pop %v2904
    %v2906 = vadd.f32 %v2903, 1.0
    %v2907 = vadd.f32 %v2905, 1.0
    %v2908 = vrcp.pop %v2906
    %v2909 = vmul.f32 1.0, %v2908
    %v2910 = vrcp.pop %v2907
    %v2911 = vmul.f32 1.0, %v2910
    %v2914 = vrot.slane %v2817, 4
    %v2915 = vrot.slane %v2819, 4
    %v2918 = vadd.f32 %v785, %v2914
    %v2919 = vadd.f32 %v786, %v2915
    %v2920 = vxor.u32 %v2918, 2147483648
    %v2921 = vxor.u32 %v2919, 2147483648
    %v2922 = vmul.f32 %v2920, 1.442695
    %v2923 = vpow.pop %v2922
    %v2924 = vmul.f32 %v2921, 1.442695
    %v2925 = vpow.pop %v2924
    %v2926 = vadd.f32 %v2923, 1.0
    %v2927 = vadd.f32 %v2925, 1.0
    %v2928 = vrcp.pop %v2926
    %v2929 = vmul.f32 1.0, %v2928
    %v2930 = vrcp.pop %v2927
    %v2931 = vmul.f32 1.0, %v2930
    %v2932 = vadd.f32 %v2888, %v986
    %v2933 = vadd.f32 %v2890, %v990
    %v2936 = vrot.slane %v2932, 4
    %v2937 = vrot.slane %v2933, 4
    %v2940 = vmul.f32 %v2909, %v2936
    %v2941 = vmul.f32 %v2911, %v2937
    %v2942 = vadd.f32 %v787, %v2940
    %v2943 = vadd.f32 %v788, %v2941
    %v2944 = vtanh.pop %v2942
    %v2945 = vtanh.pop %v2943
    %v2948 = vrot.slane %v2944, 2
    %v2949 = vrot.slane %v2945, 2
    %v2952 = vsub.f32 %v2671, %v2948
    %v2953 = vsub.f32 %v2672, %v2949
    %v2956 = vrot.slane %v2952, 6
    %v2957 = vrot.slane %v2953, 6
    %v2960 = vmul.f32 %v2929, %v2956
    %v2961 = vmul.f32 %v2931, %v2957
    %v2962 = vadd.f32 %v2944, %v2960
    %v2963 = vadd.f32 %v2945, %v2961
    %v2966 = vrot.slane %v2962, 4
    %v2967 = vrot.slane %v2963, 4
    %2970 = vmatprep.subr.mxu0 %v880
    %2971 = vmatpush1.msra.mxu0 %v879
    %2972 = vmatprep.subr.mxu0 %v874
    %2973 = vmatpush1.msra.mxu0 %v873
    %2974 = vmatprep.subr.mxu0 %v868
    %2975 = vmatpush1.msra.mxu0 %v867
    %2976 = vmatprep.subr.mxu0 %v862
    %2977 = vmatpush1.msra.mxu0 %v861
    %2978 = vmatprep.subr.mxu0 %v856
    %2979 = vmatpush1.msra.mxu0 %v855
    %2980 = vmatprep.subr.mxu0 %v850
    %2981 = vmatpush1.msra.mxu0 %v849
    %2982 = vmatprep.subr.mxu0 %v844
    %2983 = vmatpush1.msra.mxu0 %v843
    %2984 = vmatprep.subr.mxu0 %v838
    %2985 = vmatpush1.msra.mxu0 %v837
    %2986 = vmatprep.subr.mxu0 %v832
    %2987 = vmatpush1.msra.mxu0 %v831
    %2988 = vmatprep.subr.mxu0 %v826
    %2989 = vmatpush1.msra.mxu0 %v825
    %2990 = vmatprep.subr.mxu0 %v820
    %2991 = vmatpush1.msra.mxu0 %v819
    %2992 = vmatprep.subr.mxu0 %v814
    %2993 = vmatpush1.msra.mxu0 %v813
    %2994 = vmatprep.subr.mxu0 %v808
    %2995 = vmatpush1.msra.mxu0 %v807
    %2996 = vmatprep.subr.mxu0 %v802
    %2997 = vmatpush1.msra.mxu0 %v801
    %2998 = vmatprep.subr.mxu0 %v796
    %2999 = vmatpush1.msra.mxu0 %v795
    %3000 = vmatprep.subr.mxu0 %v790
    %3001 = vmatpush1.msra.mxu0 %v789
    %3002 = vmatprep.subr.mxu0 %v976
    %3003 = vmatpush2.msra.mxu0 %v975
    %3004 = vmatprep.subr.mxu0 %v970
    %3005 = vmatpush2.msra.mxu0 %v969
    %3006 = vmatprep.subr.mxu0 %v964
    %3007 = vmatpush2.msra.mxu0 %v963
    %3008 = vmatprep.subr.mxu0 %v958
    %3009 = vmatpush2.msra.mxu0 %v957
    %3010 = vmatprep.subr.mxu0 %v952
    %3011 = vmatpush2.msra.mxu0 %v951
    %3012 = vmatprep.subr.mxu0 %v946
    %3013 = vmatpush2.msra.mxu0 %v945
    %3014 = vmatprep.subr.mxu0 %v940
    %3015 = vmatpush2.msra.mxu0 %v939
    %3016 = vmatprep.subr.mxu0 %v934
    %3017 = vmatpush2.msra.mxu0 %v933
    %3018 = vmatprep.subr.mxu0 %v928
    %3019 = vmatpush2.msra.mxu0 %v927
    %3020 = vmatprep.subr.mxu0 %v922
    %3021 = vmatpush2.msra.mxu0 %v921
    %3022 = vmatprep.subr.mxu0 %v916
    %3023 = vmatpush2.msra.mxu0 %v915
    %3024 = vmatprep.subr.mxu0 %v910
    %3025 = vmatpush2.msra.mxu0 %v909
    %3026 = vmatprep.subr.mxu0 %v904
    %3027 = vmatpush2.msra.mxu0 %v903
    %3028 = vmatprep.subr.mxu0 %v898
    %3029 = vmatpush2.msra.mxu0 %v897
    %3030 = vmatprep.subr.mxu0 %v892
    %3031 = vmatpush2.msra.mxu0 %v891
    %3032 = vmatprep.subr.mxu0 %v886
    %3033 = vmatpush2.msra.mxu0 %v885
    %3034 = vmatprep.mubr.f32.mxu0 %v2967
    %3035 = vmatmul.mubr.f32.gmra.mxu0 %v2966
    %v3036 = vpop.f32.mrf.mxu0
    %v3037 = vadd.f32 0.0, %v3036
    %v3038 = vpop.f32.mrf.mxu0
    %v3039 = vadd.f32 0.0, %v3038
    %3040 = vdwg.mxu0
    %3041 = vmatprep.subr.mxu0 %v882
    %3042 = vmatpush1.msra.mxu0 %v881
    %3043 = vmatprep.subr.mxu0 %v876
    %3044 = vmatpush1.msra.mxu0 %v875
    %3045 = vmatprep.subr.mxu0 %v870
    %3046 = vmatpush1.msra.mxu0 %v869
    %3047 = vmatprep.subr.mxu0 %v864
    %3048 = vmatpush1.msra.mxu0 %v863
    %3049 = vmatprep.subr.mxu0 %v858
    %3050 = vmatpush1.msra.mxu0 %v857
    %3051 = vmatprep.subr.mxu0 %v852
    %3052 = vmatpush1.msra.mxu0 %v851
    %3053 = vmatprep.subr.mxu0 %v846
    %3054 = vmatpush1.msra.mxu0 %v845
    %3055 = vmatprep.subr.mxu0 %v840
    %3056 = vmatpush1.msra.mxu0 %v839
    %3057 = vmatprep.subr.mxu0 %v834
    %3058 = vmatpush1.msra.mxu0 %v833
    %3059 = vmatprep.subr.mxu0 %v828
    %3060 = vmatpush1.msra.mxu0 %v827
    %3061 = vmatprep.subr.mxu0 %v822
    %3062 = vmatpush1.msra.mxu0 %v821
    %3063 = vmatprep.subr.mxu0 %v816
    %3064 = vmatpush1.msra.mxu0 %v815
    %3065 = vmatprep.subr.mxu0 %v810
    %3066 = vmatpush1.msra.mxu0 %v809
    %3067 = vmatprep.subr.mxu0 %v804
    %3068 = vmatpush1.msra.mxu0 %v803
    %3069 = vmatprep.subr.mxu0 %v798
    %3070 = vmatpush1.msra.mxu0 %v797
    %3071 = vmatprep.subr.mxu0 %v792
    %3072 = vmatpush1.msra.mxu0 %v791
    %3073 = vmatprep.subr.mxu0 %v978
    %3074 = vmatpush2.msra.mxu0 %v977
    %3075 = vmatprep.subr.mxu0 %v972
    %3076 = vmatpush2.msra.mxu0 %v971
    %3077 = vmatprep.subr.mxu0 %v966
    %3078 = vmatpush2.msra.mxu0 %v965
    %3079 = vmatprep.subr.mxu0 %v960
    %3080 = vmatpush2.msra.mxu0 %v959
    %3081 = vmatprep.subr.mxu0 %v954
    %3082 = vmatpush2.msra.mxu0 %v953
    %3083 = vmatprep.subr.mxu0 %v948
    %3084 = vmatpush2.msra.mxu0 %v947
    %3085 = vmatprep.subr.mxu0 %v942
    %3086 = vmatpush2.msra.mxu0 %v941
    %3087 = vmatprep.subr.mxu0 %v936
    %3088 = vmatpush2.msra.mxu0 %v935
    %3089 = vmatprep.subr.mxu0 %v930
    %3090 = vmatpush2.msra.mxu0 %v929
    %3091 = vmatprep.subr.mxu0 %v924
    %3092 = vmatpush2.msra.mxu0 %v923
    %3093 = vmatprep.subr.mxu0 %v918
    %3094 = vmatpush2.msra.mxu0 %v917
    %3095 = vmatprep.subr.mxu0 %v912
    %3096 = vmatpush2.msra.mxu0 %v911
    %3097 = vmatprep.subr.mxu0 %v906
    %3098 = vmatpush2.msra.mxu0 %v905
    %3099 = vmatprep.subr.mxu0 %v900
    %3100 = vmatpush2.msra.mxu0 %v899
    %3101 = vmatprep.subr.mxu0 %v894
    %3102 = vmatpush2.msra.mxu0 %v893
    %3103 = vmatprep.subr.mxu0 %v888
    %3104 = vmatpush2.msra.mxu0 %v887
    %3105 = vmatprep.mubr.f32.mxu0 %v2967
    %3106 = vmatmul.mubr.f32.gmra.mxu0 %v2966
    %v3107 = vpop.f32.mrf.mxu0
    %v3108 = vadd.f32 0.0, %v3107
    %v3109 = vpop.f32.mrf.mxu0
    %v3110 = vadd.f32 0.0, %v3109
    %3111 = vdwg.mxu0
    %3112 = vmatprep.subr.mxu0 %v884
    %3113 = vmatpush1.msra.mxu0 %v883
    %3114 = vmatprep.subr.mxu0 %v878
    %3115 = vmatpush1.msra.mxu0 %v877
    %3116 = vmatprep.subr.mxu0 %v872
    %3117 = vmatpush1.msra.mxu0 %v871
    %3118 = vmatprep.subr.mxu0 %v866
    %3119 = vmatpush1.msra.mxu0 %v865
    %3120 = vmatprep.subr.mxu0 %v860
    %3121 = vmatpush1.msra.mxu0 %v859
    %3122 = vmatprep.subr.mxu0 %v854
    %3123 = vmatpush1.msra.mxu0 %v853
    %3124 = vmatprep.subr.mxu0 %v848
    %3125 = vmatpush1.msra.mxu0 %v847
    %3126 = vmatprep.subr.mxu0 %v842
    %3127 = vmatpush1.msra.mxu0 %v841
    %3128 = vmatprep.subr.mxu0 %v836
    %3129 = vmatpush1.msra.mxu0 %v835
    %3130 = vmatprep.subr.mxu0 %v830
    %3131 = vmatpush1.msra.mxu0 %v829
    %3132 = vmatprep.subr.mxu0 %v824
    %3133 = vmatpush1.msra.mxu0 %v823
    %3134 = vmatprep.subr.mxu0 %v818
    %3135 = vmatpush1.msra.mxu0 %v817
    %3136 = vmatprep.subr.mxu0 %v812
    %3137 = vmatpush1.msra.mxu0 %v811
    %3138 = vmatprep.subr.mxu0 %v806
    %3139 = vmatpush1.msra.mxu0 %v805
    %3140 = vmatprep.subr.mxu0 %v800
    %3141 = vmatpush1.msra.mxu0 %v799
    %3142 = vmatprep.subr.mxu0 %v794
    %3143 = vmatpush1.msra.mxu0 %v793
    %3144 = vmatprep.subr.mxu0 %v980
    %3145 = vmatpush2.msra.mxu0 %v979
    %3146 = vmatprep.subr.mxu0 %v974
    %3147 = vmatpush2.msra.mxu0 %v973
    %3148 = vmatprep.subr.mxu0 %v968
    %3149 = vmatpush2.msra.mxu0 %v967
    %3150 = vmatprep.subr.mxu0 %v962
    %3151 = vmatpush2.msra.mxu0 %v961
    %3152 = vmatprep.subr.mxu0 %v956
    %3153 = vmatpush2.msra.mxu0 %v955
    %3154 = vmatprep.subr.mxu0 %v950
    %3155 = vmatpush2.msra.mxu0 %v949
    %3156 = vmatprep.subr.mxu0 %v944
    %3157 = vmatpush2.msra.mxu0 %v943
    %3158 = vmatprep.subr.mxu0 %v938
    %3159 = vmatpush2.msra.mxu0 %v937
    %3160 = vmatprep.subr.mxu0 %v932
    %3161 = vmatpush2.msra.mxu0 %v931
    %3162 = vmatprep.subr.mxu0 %v926
    %3163 = vmatpush2.msra.mxu0 %v925
    %3164 = vmatprep.subr.mxu0 %v920
    %3165 = vmatpush2.msra.mxu0 %v919
    %3166 = vmatprep.subr.mxu0 %v914
    %3167 = vmatpush2.msra.mxu0 %v913
    %3168 = vmatprep.subr.mxu0 %v908
    %3169 = vmatpush2.msra.mxu0 %v907
    %3170 = vmatprep.subr.mxu0 %v902
    %3171 = vmatpush2.msra.mxu0 %v901
    %3172 = vmatprep.subr.mxu0 %v896
    %3173 = vmatpush2.msra.mxu0 %v895
    %3174 = vmatprep.subr.mxu0 %v890
    %3175 = vmatpush2.msra.mxu0 %v889
    %3176 = vmatprep.mubr.f32.mxu0 %v2967
    %3177 = vmatmul.mubr.f32.gmra.mxu0 %v2966
    %v3178 = vpop.f32.mrf.mxu0
    %v3179 = vadd.f32 0.0, %v3178
    %v3180 = vpop.f32.mrf.mxu0
    %v3181 = vadd.f32 0.0, %v3180
    %3182 = vdwg.mxu0
    %v3185 = vrot.slane %v3037, 2
    %v3186 = vrot.slane %v3039, 2
    %v3189 = vadd.f32 %v783, %v3185
    %v3190 = vadd.f32 %v784, %v3186
    %v3191 = vxor.u32 %v3189, 2147483648
    %v3192 = vxor.u32 %v3190, 2147483648
    %v3193 = vmul.f32 %v3191, 1.442695
    %v3194 = vpow.pop %v3193
    %v3195 = vmul.f32 %v3192, 1.442695
    %v3196 = vpow.pop %v3195
    %v3197 = vadd.f32 %v3194, 1.0
    %v3198 = vadd.f32 %v3196, 1.0
    %v3199 = vrcp.pop %v3197
    %v3200 = vmul.f32 1.0, %v3199
    %v3201 = vrcp.pop %v3198
    %v3202 = vmul.f32 1.0, %v3201
    %v3205 = vrot.slane %v3108, 2
    %v3206 = vrot.slane %v3110, 2
    %v3209 = vadd.f32 %v785, %v3205
    %v3210 = vadd.f32 %v786, %v3206
    %v3211 = vxor.u32 %v3209, 2147483648
    %v3212 = vxor.u32 %v3210, 2147483648
    %v3213 = vmul.f32 %v3211, 1.442695
    %v3214 = vpow.pop %v3213
    %v3215 = vmul.f32 %v3212, 1.442695
    %v3216 = vpow.pop %v3215
    %v3217 = vadd.f32 %v3214, 1.0
    %v3218 = vadd.f32 %v3216, 1.0
    %v3219 = vrcp.pop %v3217
    %v3220 = vmul.f32 1.0, %v3219
    %v3221 = vrcp.pop %v3218
    %v3222 = vmul.f32 1.0, %v3221
    %v3223 = vadd.f32 %v3179, %v986
    %v3224 = vadd.f32 %v3181, %v990
    %v3227 = vrot.slane %v3223, 2
    %v3228 = vrot.slane %v3224, 2
    %v3231 = vmul.f32 %v3200, %v3227
    %v3232 = vmul.f32 %v3202, %v3228
    %v3233 = vadd.f32 %v787, %v3231
    %v3234 = vadd.f32 %v788, %v3232
    %v3235 = vtanh.pop %v3233
    %v3236 = vtanh.pop %v3234
    %v3239 = vrot.slane %v3235, 2
    %v3240 = vrot.slane %v3236, 2
    %v3243 = vsub.f32 %v2962, %v3239
    %v3244 = vsub.f32 %v2963, %v3240
    %v3247 = vrot.slane %v3243, 6
    %v3248 = vrot.slane %v3244, 6
    %v3251 = vmul.f32 %v3220, %v3247
    %v3252 = vmul.f32 %v3222, %v3248
    %v3253 = vadd.f32 %v3235, %v3251
    %v3254 = vadd.f32 %v3236, %v3252
    %v3255 = vld [vmem:[%s21] sm:$0xff]
    %v3256 = vld [vmem:[%s21 + $0x8] sm:$0xff]
    %v3257 = vld [vmem:[%s21 + $0x10] sm:$0xff]
    %v3258 = vld [vmem:[%s21 + $0x18] sm:$0xff]
    %v3259 = vld [vmem:[%s21 + $0x20] sm:$0xff]
    %v3260 = vld [vmem:[%s21 + $0x28] sm:$0xff]
    %v3261 = vld [vmem:[%s21 + $0x30] sm:$0xff]
    %v3262 = vld [vmem:[%s21 + $0x38] sm:$0xff]
    %v3263 = vld [vmem:[%s21 + $0x40] sm:$0xff]
    %v3264 = vld [vmem:[%s21 + $0x48] sm:$0xff]
    %v3265 = vld [vmem:[%s21 + $0x50] sm:$0xff]
    %v3266 = vld [vmem:[%s21 + $0x58] sm:$0xff]
    %v3267 = vld [vmem:[%s21 + $0x60] sm:$0xff]
    %v3268 = vld [vmem:[%s21 + $0x68] sm:$0xff]
    %v3269 = vld [vmem:[%s21 + $0x70] sm:$0xff]
    %v3270 = vld [vmem:[%s21 + $0x78] sm:$0xff]
    %v3271 = vld [vmem:[%s21 + $0x80] sm:$0xff]
    %v3272 = vld [vmem:[%s21 + $0x88] sm:$0xff]
    %v3273 = vld [vmem:[%s21 + $0x90] sm:$0xff]
    %v3274 = vld [vmem:[%s21 + $0x98] sm:$0xff]
    %v3275 = vld [vmem:[%s21 + $0xa0] sm:$0xff]
    %v3276 = vld [vmem:[%s21 + $0xa8] sm:$0xff]
    %v3277 = vld [vmem:[%s21 + $0xb0] sm:$0xff]
    %v3278 = vld [vmem:[%s21 + $0xb8] sm:$0xff]
    %v3279 = vld [vmem:[%s21 + $0xc0] sm:$0xff]
    %v3280 = vld [vmem:[%s21 + $0xc8] sm:$0xff]
    %v3281 = vld [vmem:[%s21 + $0xd0] sm:$0xff]
    %v3282 = vld [vmem:[%s21 + $0xd8] sm:$0xff]
    %v3283 = vld [vmem:[%s21 + $0xe0] sm:$0xff]
    %v3284 = vld [vmem:[%s21 + $0xe8] sm:$0xff]
    %v3285 = vld [vmem:[%s21 + $0xf0] sm:$0xff]
    %v3286 = vld [vmem:[%s21 + $0xf8] sm:$0xff]
    %v3287 = vld [vmem:[%s23] sm:$0xff]
    %v3288 = vld [vmem:[%s23 + $0x8] sm:$0xff]
    %vm3289 = vcmask 130048
    %v3291 = vsel %vm3289, %v372, 0
    %3293 = vmatprep.subr.mxu0 0.0
    %3294 = vmatpush1.msra.mxu0 0.0
    %3295 = vmatprep.subr.mxu0 0.0
    %3296 = vmatpush1.msra.mxu0 0.0
    %3297 = vmatprep.subr.mxu0 0.0
    %3298 = vmatpush1.msra.mxu0 0.0
    %3299 = vmatprep.subr.mxu0 0.0
    %3300 = vmatpush1.msra.mxu0 0.0
    %3301 = vmatprep.subr.mxu0 0.0
    %3302 = vmatpush1.msra.mxu0 0.0
    %3303 = vmatprep.subr.mxu0 0.0
    %3304 = vmatpush1.msra.mxu0 0.0
    %3305 = vmatprep.subr.mxu0 0.0
    %3306 = vmatpush1.msra.mxu0 0.0
    %3307 = vmatprep.subr.mxu0 0.0
    %3308 = vmatpush1.msra.mxu0 0.0
    %3309 = vmatprep.subr.mxu0 0.0
    %3310 = vmatpush1.msra.mxu0 0.0
    %3311 = vmatprep.subr.mxu0 0.0
    %3312 = vmatpush1.msra.mxu0 0.0
    %3313 = vmatprep.subr.mxu0 0.0
    %3314 = vmatpush1.msra.mxu0 0.0
    %3315 = vmatprep.subr.mxu0 0.0
    %3316 = vmatpush1.msra.mxu0 0.0
    %3317 = vmatprep.subr.mxu0 0.0
    %3318 = vmatpush1.msra.mxu0 0.0
    %3319 = vmatprep.subr.mxu0 0.0
    %3320 = vmatpush1.msra.mxu0 0.0
    %3321 = vmatprep.subr.mxu0 0.0
    %3322 = vmatpush1.msra.mxu0 %v3288
    %3323 = vmatprep.subr.mxu0 0.0
    %3324 = vmatpush1.msra.mxu0 %v3287
    %3325 = vmatprep.subr.mxu0 0.0
    %3326 = vmatpush2.msra.mxu0 0.0
    %3327 = vmatprep.subr.mxu0 0.0
    %3328 = vmatpush2.msra.mxu0 0.0
    %3329 = vmatprep.subr.mxu0 0.0
    %3330 = vmatpush2.msra.mxu0 0.0
    %3331 = vmatprep.subr.mxu0 0.0
    %3332 = vmatpush2.msra.mxu0 0.0
    %3333 = vmatprep.subr.mxu0 0.0
    %3334 = vmatpush2.msra.mxu0 0.0
    %3335 = vmatprep.subr.mxu0 0.0
    %3336 = vmatpush2.msra.mxu0 0.0
    %3337 = vmatprep.subr.mxu0 0.0
    %3338 = vmatpush2.msra.mxu0 0.0
    %3339 = vmatprep.subr.mxu0 0.0
    %3340 = vmatpush2.msra.mxu0 0.0
    %3341 = vmatprep.subr.mxu0 0.0
    %3342 = vmatpush2.msra.mxu0 0.0
    %3343 = vmatprep.subr.mxu0 0.0
    %3344 = vmatpush2.msra.mxu0 0.0
    %3345 = vmatprep.subr.mxu0 0.0
    %3346 = vmatpush2.msra.mxu0 0.0
    %3347 = vmatprep.subr.mxu0 0.0
    %3348 = vmatpush2.msra.mxu0 0.0
    %3349 = vmatprep.subr.mxu0 0.0
    %3350 = vmatpush2.msra.mxu0 0.0
    %3351 = vmatprep.subr.mxu0 0.0
    %3352 = vmatpush2.msra.mxu0 0.0
    %3353 = vmatprep.subr.mxu0 0.0
    %3354 = vmatpush2.msra.mxu0 0.0
    %3355 = vmatprep.subr.mxu0 0.0
    %3356 = vmatpush2.msra.mxu0 0.0
    %3357 = vmatprep.mubr.f32.mxu0 0.0
    %3358 = vmatmul.mubr.f32.gmra.mxu0 %v3291
    %v3359 = vpop.f32.mrf.mxu0
    %v3360 = vadd.f32 0.0, %v3359
    %v3361 = vpop.f32.mrf.mxu0
    %3362 = vdwg.mxu0
    %v3365 = vrot.slane %v3253, 6
    %v3366 = vrot.slane %v3254, 6
    %3369 = vmatprep.subr.mxu0 0.0
    %3370 = vmatpush1.msra.mxu0 %v3270
    %3371 = vmatprep.subr.mxu0 0.0
    %3372 = vmatpush1.msra.mxu0 %v3269
    %3373 = vmatprep.subr.mxu0 0.0
    %3374 = vmatpush1.msra.mxu0 %v3268
    %3375 = vmatprep.subr.mxu0 0.0
    %3376 = vmatpush1.msra.mxu0 %v3267
    %3377 = vmatprep.subr.mxu0 0.0
    %3378 = vmatpush1.msra.mxu0 %v3266
    %3379 = vmatprep.subr.mxu0 0.0
    %3380 = vmatpush1.msra.mxu0 %v3265
    %3381 = vmatprep.subr.mxu0 0.0
    %3382 = vmatpush1.msra.mxu0 %v3264
    %3383 = vmatprep.subr.mxu0 0.0
    %3384 = vmatpush1.msra.mxu0 %v3263
    %3385 = vmatprep.subr.mxu0 0.0
    %3386 = vmatpush1.msra.mxu0 %v3262
    %3387 = vmatprep.subr.mxu0 0.0
    %3388 = vmatpush1.msra.mxu0 %v3261
    %3389 = vmatprep.subr.mxu0 0.0
    %3390 = vmatpush1.msra.mxu0 %v3260
    %3391 = vmatprep.subr.mxu0 0.0
    %3392 = vmatpush1.msra.mxu0 %v3259
    %3393 = vmatprep.subr.mxu0 0.0
    %3394 = vmatpush1.msra.mxu0 %v3258
    %3395 = vmatprep.subr.mxu0 0.0
    %3396 = vmatpush1.msra.mxu0 %v3257
    %3397 = vmatprep.subr.mxu0 0.0
    %3398 = vmatpush1.msra.mxu0 %v3256
    %3399 = vmatprep.subr.mxu0 0.0
    %3400 = vmatpush1.msra.mxu0 %v3255
    %3401 = vmatprep.subr.mxu0 0.0
    %3402 = vmatpush2.msra.mxu0 %v3286
    %3403 = vmatprep.subr.mxu0 0.0
    %3404 = vmatpush2.msra.mxu0 %v3285
    %3405 = vmatprep.subr.mxu0 0.0
    %3406 = vmatpush2.msra.mxu0 %v3284
    %3407 = vmatprep.subr.mxu0 0.0
    %3408 = vmatpush2.msra.mxu0 %v3283
    %3409 = vmatprep.subr.mxu0 0.0
    %3410 = vmatpush2.msra.mxu0 %v3282
    %3411 = vmatprep.subr.mxu0 0.0
    %3412 = vmatpush2.msra.mxu0 %v3281
    %3413 = vmatprep.subr.mxu0 0.0
    %3414 = vmatpush2.msra.mxu0 %v3280
    %3415 = vmatprep.subr.mxu0 0.0
    %3416 = vmatpush2.msra.mxu0 %v3279
    %3417 = vmatprep.subr.mxu0 0.0
    %3418 = vmatpush2.msra.mxu0 %v3278
    %3419 = vmatprep.subr.mxu0 0.0
    %3420 = vmatpush2.msra.mxu0 %v3277
    %3421 = vmatprep.subr.mxu0 0.0
    %3422 = vmatpush2.msra.mxu0 %v3276
    %3423 = vmatprep.subr.mxu0 0.0
    %3424 = vmatpush2.msra.mxu0 %v3275
    %3425 = vmatprep.subr.mxu0 0.0
    %3426 = vmatpush2.msra.mxu0 %v3274
    %3427 = vmatprep.subr.mxu0 0.0
    %3428 = vmatpush2.msra.mxu0 %v3273
    %3429 = vmatprep.subr.mxu0 0.0
    %3430 = vmatpush2.msra.mxu0 %v3272
    %3431 = vmatprep.subr.mxu0 0.0
    %3432 = vmatpush2.msra.mxu0 %v3271
    %3433 = vmatprep.mubr.f32.mxu0 %v3366
    %3434 = vmatmul.mubr.f32.gmra.mxu0 %v3365
    %v3435 = vpop.f32.mrf.mxu0
    %v3436 = vadd.f32 %v3360, %v3435
    %v3437 = vpop.f32.mrf.mxu0
    %3438 = vdwg.mxu0
    %v3439 = vld [vmem:[#allocation11] sm:$0x1]
    %v3441 = vlaneseq
    %v3442 = vshrl.u32 %v3441, 7
    %v3443 = vsub.s32 0, %v3442
    %v3444 = vrot.slane %v3439, %v3443
    %v3446 = vadd.f32 %v3436, %v3444
    %v3447 = vld [vmem:[#allocation13] sm:$0xff]
    %v3448 = vld [vmem:[#allocation13 + $0x8] sm:$0xff]
    %v3449 = vld [vmem:[#allocation14] sm:$0x1]
    %v3451 = vlaneseq
    %v3452 = vshrl.u32 %v3451, 7
    %v3453 = vsub.s32 0, %v3452
    %v3454 = vrot.slane %v3449, %v3453
    %3456 = vmatprep.subr.mxu0 0.0
    %3457 = vmatpush1.msra.mxu0 0.0
    %3458 = vmatprep.subr.mxu0 0.0
    %3459 = vmatpush1.msra.mxu0 0.0
    %3460 = vmatprep.subr.mxu0 0.0
    %3461 = vmatpush1.msra.mxu0 0.0
    %3462 = vmatprep.subr.mxu0 0.0
    %3463 = vmatpush1.msra.mxu0 0.0
    %3464 = vmatprep.subr.mxu0 0.0
    %3465 = vmatpush1.msra.mxu0 0.0
    %3466 = vmatprep.subr.mxu0 0.0
    %3467 = vmatpush1.msra.mxu0 0.0
    %3468 = vmatprep.subr.mxu0 0.0
    %3469 = vmatpush1.msra.mxu0 0.0
    %3470 = vmatprep.subr.mxu0 0.0
    %3471 = vmatpush1.msra.mxu0 0.0
    %3472 = vmatprep.subr.mxu0 0.0
    %3473 = vmatpush1.msra.mxu0 0.0
    %3474 = vmatprep.subr.mxu0 0.0
    %3475 = vmatpush1.msra.mxu0 0.0
    %3476 = vmatprep.subr.mxu0 0.0
    %3477 = vmatpush1.msra.mxu0 0.0
    %3478 = vmatprep.subr.mxu0 0.0
    %3479 = vmatpush1.msra.mxu0 0.0
    %3480 = vmatprep.subr.mxu0 0.0
    %3481 = vmatpush1.msra.mxu0 0.0
    %3482 = vmatprep.subr.mxu0 0.0
    %3483 = vmatpush1.msra.mxu0 0.0
    %3484 = vmatprep.subr.mxu0 0.0
    %3485 = vmatpush1.msra.mxu0 %v3448
    %3486 = vmatprep.subr.mxu0 0.0
    %3487 = vmatpush1.msra.mxu0 %v3447
    %3488 = vmatprep.subr.mxu0 0.0
    %3489 = vmatpush2.msra.mxu0 0.0
    %3490 = vmatprep.subr.mxu0 0.0
    %3491 = vmatpush2.msra.mxu0 0.0
    %3492 = vmatprep.subr.mxu0 0.0
    %3493 = vmatpush2.msra.mxu0 0.0
    %3494 = vmatprep.subr.mxu0 0.0
    %3495 = vmatpush2.msra.mxu0 0.0
    %3496 = vmatprep.subr.mxu0 0.0
    %3497 = vmatpush2.msra.mxu0 0.0
    %3498 = vmatprep.subr.mxu0 0.0
    %3499 = vmatpush2.msra.mxu0 0.0
    %3500 = vmatprep.subr.mxu0 0.0
    %3501 = vmatpush2.msra.mxu0 0.0
    %3502 = vmatprep.subr.mxu0 0.0
    %3503 = vmatpush2.msra.mxu0 0.0
    %3504 = vmatprep.subr.mxu0 0.0
    %3505 = vmatpush2.msra.mxu0 0.0
    %3506 = vmatprep.subr.mxu0 0.0
    %3507 = vmatpush2.msra.mxu0 0.0
    %3508 = vmatprep.subr.mxu0 0.0
    %3509 = vmatpush2.msra.mxu0 0.0
    %3510 = vmatprep.subr.mxu0 0.0
    %3511 = vmatpush2.msra.mxu0 0.0
    %3512 = vmatprep.subr.mxu0 0.0
    %3513 = vmatpush2.msra.mxu0 0.0
    %3514 = vmatprep.subr.mxu0 0.0
    %3515 = vmatpush2.msra.mxu0 0.0
    %3516 = vmatprep.subr.mxu0 0.0
    %3517 = vmatpush2.msra.mxu0 0.0
    %3518 = vmatprep.subr.mxu0 0.0
    %3519 = vmatpush2.msra.mxu0 0.0
    %3520 = vmatprep.mubr.f32.mxu0 0.0
    %3521 = vmatmul.mubr.f32.gmra.mxu0 %v3291
    %v3522 = vpop.f32.mrf.mxu0
    %v3523 = vadd.f32 %v3454, %v3522
    %v3524 = vpop.f32.mrf.mxu0
    %3525 = vdwg.mxu0
    %v3526 = vtanh.pop %v3523
    %v3527 = vld [vmem:[#allocation16] sm:$0xff]
    %v3528 = vld [vmem:[#allocation16 + $0x8] sm:$0xff]
    %v3529 = vld [vmem:[#allocation16 + $0x10] sm:$0xff]
    %v3530 = vld [vmem:[#allocation16 + $0x18] sm:$0xff]
    %v3531 = vld [vmem:[#allocation17] sm:$0x1]
    %v3533 = vlaneseq
    %v3534 = vshrl.u32 %v3533, 7
    %v3535 = vsub.s32 0, %v3534
    %v3536 = vrot.slane %v3531, %v3535
    %v3539 = vsel %vm416, %v3526, 0
    %3541 = vmatprep.subr.mxu0 0.0
    %3542 = vmatpush1.msra.mxu0 0.0
    %3543 = vmatprep.subr.mxu0 0.0
    %3544 = vmatpush1.msra.mxu0 0.0
    %3545 = vmatprep.subr.mxu0 0.0
    %3546 = vmatpush1.msra.mxu0 0.0
    %3547 = vmatprep.subr.mxu0 0.0
    %3548 = vmatpush1.msra.mxu0 0.0
    %3549 = vmatprep.subr.mxu0 0.0
    %3550 = vmatpush1.msra.mxu0 0.0
    %3551 = vmatprep.subr.mxu0 0.0
    %3552 = vmatpush1.msra.mxu0 0.0
    %3553 = vmatprep.subr.mxu0 0.0
    %3554 = vmatpush1.msra.mxu0 0.0
    %3555 = vmatprep.subr.mxu0 0.0
    %3556 = vmatpush1.msra.mxu0 0.0
    %3557 = vmatprep.subr.mxu0 0.0
    %3558 = vmatpush1.msra.mxu0 0.0
    %3559 = vmatprep.subr.mxu0 0.0
    %3560 = vmatpush1.msra.mxu0 0.0
    %3561 = vmatprep.subr.mxu0 0.0
    %3562 = vmatpush1.msra.mxu0 0.0
    %3563 = vmatprep.subr.mxu0 0.0
    %3564 = vmatpush1.msra.mxu0 0.0
    %3565 = vmatprep.subr.mxu0 0.0
    %3566 = vmatpush1.msra.mxu0 %v3530
    %3567 = vmatprep.subr.mxu0 0.0
    %3568 = vmatpush1.msra.mxu0 %v3529
    %3569 = vmatprep.subr.mxu0 0.0
    %3570 = vmatpush1.msra.mxu0 %v3528
    %3571 = vmatprep.subr.mxu0 0.0
    %3572 = vmatpush1.msra.mxu0 %v3527
    %3573 = vmatprep.subr.mxu0 0.0
    %3574 = vmatpush2.msra.mxu0 0.0
    %3575 = vmatprep.subr.mxu0 0.0
    %3576 = vmatpush2.msra.mxu0 0.0
    %3577 = vmatprep.subr.mxu0 0.0
    %3578 = vmatpush2.msra.mxu0 0.0
    %3579 = vmatprep.subr.mxu0 0.0
    %3580 = vmatpush2.msra.mxu0 0.0
    %3581 = vmatprep.subr.mxu0 0.0
    %3582 = vmatpush2.msra.mxu0 0.0
    %3583 = vmatprep.subr.mxu0 0.0
    %3584 = vmatpush2.msra.mxu0 0.0
    %3585 = vmatprep.subr.mxu0 0.0
    %3586 = vmatpush2.msra.mxu0 0.0
    %3587 = vmatprep.subr.mxu0 0.0
    %3588 = vmatpush2.msra.mxu0 0.0
    %3589 = vmatprep.subr.mxu0 0.0
    %3590 = vmatpush2.msra.mxu0 0.0
    %3591 = vmatprep.subr.mxu0 0.0
    %3592 = vmatpush2.msra.mxu0 0.0
    %3593 = vmatprep.subr.mxu0 0.0
    %3594 = vmatpush2.msra.mxu0 0.0
    %3595 = vmatprep.subr.mxu0 0.0
    %3596 = vmatpush2.msra.mxu0 0.0
    %3597 = vmatprep.subr.mxu0 0.0
    %3598 = vmatpush2.msra.mxu0 0.0
    %3599 = vmatprep.subr.mxu0 0.0
    %3600 = vmatpush2.msra.mxu0 0.0
    %3601 = vmatprep.subr.mxu0 0.0
    %3602 = vmatpush2.msra.mxu0 0.0
    %3603 = vmatprep.subr.mxu0 0.0
    %3604 = vmatpush2.msra.mxu0 0.0
    %3605 = vmatprep.mubr.f32.mxu0 0.0
    %3606 = vmatmul.mubr.f32.gmra.mxu0 %v3539
    %v3607 = vpop.f32.mrf.mxu0
    %v3608 = vadd.f32 %v3536, %v3607
    %v3609 = vpop.f32.mrf.mxu0
    %3610 = vdwg.mxu0
    %v3611 = vmul.f32 %v3446, 0.5
    %v3612 = vmul.f32 %v3611, 1.442695
    %v3613 = vpow.pop %v3612
    %3615 = vrot.lane.b32.xlu0 %v373, 16
    %v3616 = vpop.permute.xlu0 %3615
    %v3618 = vmul.f32 %v3613, %v3616
    %3620 = vrot.lane.b32.xlu0 %v3618, 112
    %v3621 = vpop.permute.xlu0 %3620
    %v3623 = vadd.f32 %v3446, %v3621
    %v3624 = vld [vmem:[#allocation19] sm:$0xff]
    %v3625 = vld [vmem:[#allocation19 + $0x8] sm:$0xff]
    %v3626 = vld [vmem:[#allocation20] sm:$0x1]
    %v3628 = vlaneseq
    %v3629 = vshrl.u32 %v3628, 7
    %v3630 = vsub.s32 0, %v3629
    %v3631 = vrot.slane %v3626, %v3630
    %v3634 = vsel %vm3289, %v3623, 0
    %3636 = vmatprep.subr.mxu0 0.0
    %3637 = vmatpush1.msra.mxu0 0.0
    %3638 = vmatprep.subr.mxu0 0.0
    %3639 = vmatpush1.msra.mxu0 0.0
    %3640 = vmatprep.subr.mxu0 0.0
    %3641 = vmatpush1.msra.mxu0 0.0
    %3642 = vmatprep.subr.mxu0 0.0
    %3643 = vmatpush1.msra.mxu0 0.0
    %3644 = vmatprep.subr.mxu0 0.0
    %3645 = vmatpush1.msra.mxu0 0.0
    %3646 = vmatprep.subr.mxu0 0.0
    %3647 = vmatpush1.msra.mxu0 0.0
    %3648 = vmatprep.subr.mxu0 0.0
    %3649 = vmatpush1.msra.mxu0 0.0
    %3650 = vmatprep.subr.mxu0 0.0
    %3651 = vmatpush1.msra.mxu0 0.0
    %3652 = vmatprep.subr.mxu0 0.0
    %3653 = vmatpush1.msra.mxu0 0.0
    %3654 = vmatprep.subr.mxu0 0.0
    %3655 = vmatpush1.msra.mxu0 0.0
    %3656 = vmatprep.subr.mxu0 0.0
    %3657 = vmatpush1.msra.mxu0 0.0
    %3658 = vmatprep.subr.mxu0 0.0
    %3659 = vmatpush1.msra.mxu0 0.0
    %3660 = vmatprep.subr.mxu0 0.0
    %3661 = vmatpush1.msra.mxu0 0.0
    %3662 = vmatprep.subr.mxu0 0.0
    %3663 = vmatpush1.msra.mxu0 0.0
    %3664 = vmatprep.subr.mxu0 0.0
    %3665 = vmatpush1.msra.mxu0 %v3625
    %3666 = vmatprep.subr.mxu0 0.0
    %3667 = vmatpush1.msra.mxu0 %v3624
    %3668 = vmatprep.subr.mxu0 0.0
    %3669 = vmatpush2.msra.mxu0 0.0
    %3670 = vmatprep.subr.mxu0 0.0
    %3671 = vmatpush2.msra.mxu0 0.0
    %3672 = vmatprep.subr.mxu0 0.0
    %3673 = vmatpush2.msra.mxu0 0.0
    %3674 = vmatprep.subr.mxu0 0.0
    %3675 = vmatpush2.msra.mxu0 0.0
    %3676 = vmatprep.subr.mxu0 0.0
    %3677 = vmatpush2.msra.mxu0 0.0
    %3678 = vmatprep.subr.mxu0 0.0
    %3679 = vmatpush2.msra.mxu0 0.0
    %3680 = vmatprep.subr.mxu0 0.0
    %3681 = vmatpush2.msra.mxu0 0.0
    %3682 = vmatprep.subr.mxu0 0.0
    %3683 = vmatpush2.msra.mxu0 0.0
    %3684 = vmatprep.subr.mxu0 0.0
    %3685 = vmatpush2.msra.mxu0 0.0
    %3686 = vmatprep.subr.mxu0 0.0
    %3687 = vmatpush2.msra.mxu0 0.0
    %3688 = vmatprep.subr.mxu0 0.0
    %3689 = vmatpush2.msra.mxu0 0.0
    %3690 = vmatprep.subr.mxu0 0.0
    %3691 = vmatpush2.msra.mxu0 0.0
    %3692 = vmatprep.subr.mxu0 0.0
    %3693 = vmatpush2.msra.mxu0 0.0
    %3694 = vmatprep.subr.mxu0 0.0
    %3695 = vmatpush2.msra.mxu0 0.0
    %3696 = vmatprep.subr.mxu0 0.0
    %3697 = vmatpush2.msra.mxu0 0.0
    %3698 = vmatprep.subr.mxu0 0.0
    %3699 = vmatpush2.msra.mxu0 0.0
    %3700 = vmatprep.mubr.f32.mxu0 0.0
    %3701 = vmatmul.mubr.f32.gmra.mxu0 %v3634
    %v3702 = vpop.f32.mrf.mxu0
    %v3703 = vadd.f32 %v3631, %v3702
    %v3704 = vpop.f32.mrf.mxu0
    %3705 = vdwg.mxu0
    %3707 = vrot.lane.b32.xlu0 %v3608, 32
    %v3708 = vpop.permute.xlu0 %3707
    %3710 = vrot.lane.b32.xlu0 %v3623, 64
    %v3711 = vpop.permute.xlu0 %3710
    %3714 = vrot.lane.b32.xlu0 %v3703, 80
    %v3715 = vpop.permute.xlu0 %3714
    %v3717 = vsel %vm416, %v3446, %v3708
    %vm3718 = vcmask 523264
    %v3719 = vsel %vm3718, %v3717, %v3711
    %vm3720 = vcmask 654336
    %v3721 = vsel %vm3720, %v3719, %v3715
    %vm3722 = vcmask 834560
    %v3723 = vsel %vm3722, %v3721, 0.0
    %3724 = vst [vmem:[%s59] sm:$0x3] %v3723
    %v3725 = vld [vmem:[%s5] sm:$0xff]
    %v3726 = vld [vmem:[%s5 + $0x8] sm:$0xff]
    %3727 = vset.pattern.permute.xlu0 0
    %3728 = vperm.xlu0 %3727, %v3725
    %v3729 = vpop.permute.xlu0 %3728
    %3730 = vset.pattern.permute.xlu0 0
    %3731 = vperm.xlu0 %3730, %v3726
    %v3732 = vpop.permute.xlu0 %3731
    %vm3733 = vcmp.eq.s32.totalorder %v375, %v3729
    %vm3734 = vcmp.eq.s32.totalorder %v375, %v3732
    %v3735 = vsel %vm3733, 1, 0
    %v3736 = vsel %vm3734, 1, 0
    %v3737 = vcvt.s32.f32 %v3735
    %v3738 = vcvt.s32.f32 %v3736
    %v3739 = vld [vmem:[#allocation22] sm:$0xff]
    %v3740 = vld [vmem:[#allocation22 + $0x8] sm:$0xff]
    %v3741 = vld [vmem:[#allocation22 + $0x10] sm:$0xff]
    %v3742 = vld [vmem:[#allocation22 + $0x18] sm:$0xff]
    %v3743 = vld [vmem:[#allocation22 + $0x20] sm:$0xff]
    %v3744 = vld [vmem:[#allocation22 + $0x28] sm:$0xff]
    %v3745 = vld [vmem:[#allocation22 + $0x30] sm:$0xff]
    %v3746 = vld [vmem:[#allocation22 + $0x38] sm:$0xff]
    %v3747 = vld [vmem:[#allocation22 + $0x40] sm:$0xff]
    %v3748 = vld [vmem:[#allocation22 + $0x48] sm:$0xff]
    %v3749 = vld [vmem:[#allocation22 + $0x50] sm:$0xff]
    %v3750 = vld [vmem:[#allocation22 + $0x58] sm:$0xff]
    %v3751 = vld [vmem:[#allocation23] sm:$0x7]
    %v3753 = vlaneseq
    %v3754 = vshrl.u32 %v3753, 7
    %v3755 = vsub.s32 0, %v3754
    %v3756 = vrot.slane %v3751, %v3755
    %v3757 = vlaneseq
    %v3758 = vshrl.u32 %v3757, 7
    %v3759 = vsub.s32 1, %v3758
    %v3760 = vrot.slane %v3751, %v3759
    %v3761 = vlaneseq
    %v3762 = vshrl.u32 %v3761, 7
    %v3763 = vsub.s32 2, %v3762
    %v3764 = vrot.slane %v3751, %v3763
    %v3769 = vsel %vm416, %v3737, 0
    %v3772 = vsel %vm416, %v3738, 0
    %3774 = vmatprep.subr.mxu0 0.0
    %3775 = vmatpush1.msra.mxu0 0.0
    %3776 = vmatprep.subr.mxu0 0.0
    %3777 = vmatpush1.msra.mxu0 0.0
    %3778 = vmatprep.subr.mxu0 0.0
    %3779 = vmatpush1.msra.mxu0 0.0
    %3780 = vmatprep.subr.mxu0 0.0
    %3781 = vmatpush1.msra.mxu0 0.0
    %3782 = vmatprep.subr.mxu0 0.0
    %3783 = vmatpush1.msra.mxu0 0.0
    %3784 = vmatprep.subr.mxu0 0.0
    %3785 = vmatpush1.msra.mxu0 0.0
    %3786 = vmatprep.subr.mxu0 0.0
    %3787 = vmatpush1.msra.mxu0 0.0
    %3788 = vmatprep.subr.mxu0 0.0
    %3789 = vmatpush1.msra.mxu0 0.0
    %3790 = vmatprep.subr.mxu0 0.0
    %3791 = vmatpush1.msra.mxu0 0.0
    %3792 = vmatprep.subr.mxu0 0.0
    %3793 = vmatpush1.msra.mxu0 0.0
    %3794 = vmatprep.subr.mxu0 0.0
    %3795 = vmatpush1.msra.mxu0 0.0
    %3796 = vmatprep.subr.mxu0 0.0
    %3797 = vmatpush1.msra.mxu0 0.0
    %3798 = vmatprep.subr.mxu0 %v3749
    %3799 = vmatpush1.msra.mxu0 %v3748
    %3800 = vmatprep.subr.mxu0 %v3746
    %3801 = vmatpush1.msra.mxu0 %v3745
    %3802 = vmatprep.subr.mxu0 %v3743
    %3803 = vmatpush1.msra.mxu0 %v3742
    %3804 = vmatprep.subr.mxu0 %v3740
    %3805 = vmatpush1.msra.mxu0 %v3739
    %3806 = vmatprep.subr.mxu0 0.0
    %3807 = vmatpush2.msra.mxu0 0.0
    %3808 = vmatprep.subr.mxu0 0.0
    %3809 = vmatpush2.msra.mxu0 0.0
    %3810 = vmatprep.subr.mxu0 0.0
    %3811 = vmatpush2.msra.mxu0 0.0
    %3812 = vmatprep.subr.mxu0 0.0
    %3813 = vmatpush2.msra.mxu0 0.0
    %3814 = vmatprep.subr.mxu0 0.0
    %3815 = vmatpush2.msra.mxu0 0.0
    %3816 = vmatprep.subr.mxu0 0.0
    %3817 = vmatpush2.msra.mxu0 0.0
    %3818 = vmatprep.subr.mxu0 0.0
    %3819 = vmatpush2.msra.mxu0 0.0
    %3820 = vmatprep.subr.mxu0 0.0
    %3821 = vmatpush2.msra.mxu0 0.0
    %3822 = vmatprep.subr.mxu0 0.0
    %3823 = vmatpush2.msra.mxu0 0.0
    %3824 = vmatprep.subr.mxu0 0.0
    %3825 = vmatpush2.msra.mxu0 0.0
    %3826 = vmatprep.subr.mxu0 0.0
    %3827 = vmatpush2.msra.mxu0 0.0
    %3828 = vmatprep.subr.mxu0 0.0
    %3829 = vmatpush2.msra.mxu0 0.0
    %3830 = vmatprep.subr.mxu0 0.0
    %3831 = vmatpush2.msra.mxu0 0.0
    %3832 = vmatprep.subr.mxu0 0.0
    %3833 = vmatpush2.msra.mxu0 0.0
    %3834 = vmatprep.subr.mxu0 0.0
    %3835 = vmatpush2.msra.mxu0 0.0
    %3836 = vmatprep.subr.mxu0 0.0
    %3837 = vmatpush2.msra.mxu0 0.0
    %3838 = vmatprep.mubr.f32.mxu0 0.0
    %3839 = vmatmul.mubr.f32.gmra.mxu0 %v3769
    %v3840 = vpop.f32.mrf.mxu0
    %v3841 = vadd.f32 %v3756, %v3840
    %v3842 = vpop.f32.mrf.mxu0
    %v3843 = vadd.f32 %v3760, %v3842
    %3844 = vmatprep.mubr.f32.mxu0 0.0
    %3845 = vmatmul.mubr.f32.gmra.mxu0 %v3772
    %v3846 = vpop.f32.mrf.mxu0
    %v3847 = vadd.f32 %v3756, %v3846
    %v3848 = vpop.f32.mrf.mxu0
    %v3849 = vadd.f32 %v3760, %v3848
    %3850 = vdwg.mxu0
    %3851 = vmatprep.subr.mxu0 0.0
    %3852 = vmatpush1.msra.mxu0 0.0
    %3853 = vmatprep.subr.mxu0 0.0
    %3854 = vmatpush1.msra.mxu0 0.0
    %3855 = vmatprep.subr.mxu0 0.0
    %3856 = vmatpush1.msra.mxu0 0.0
    %3857 = vmatprep.subr.mxu0 0.0
    %3858 = vmatpush1.msra.mxu0 0.0
    %3859 = vmatprep.subr.mxu0 0.0
    %3860 = vmatpush1.msra.mxu0 0.0
    %3861 = vmatprep.subr.mxu0 0.0
    %3862 = vmatpush1.msra.mxu0 0.0
    %3863 = vmatprep.subr.mxu0 0.0
    %3864 = vmatpush1.msra.mxu0 0.0
    %3865 = vmatprep.subr.mxu0 0.0
    %3866 = vmatpush1.msra.mxu0 0.0
    %3867 = vmatprep.subr.mxu0 0.0
    %3868 = vmatpush1.msra.mxu0 0.0
    %3869 = vmatprep.subr.mxu0 0.0
    %3870 = vmatpush1.msra.mxu0 0.0
    %3871 = vmatprep.subr.mxu0 0.0
    %3872 = vmatpush1.msra.mxu0 0.0
    %3873 = vmatprep.subr.mxu0 0.0
    %3874 = vmatpush1.msra.mxu0 0.0
    %3875 = vmatprep.subr.mxu0 0.0
    %3876 = vmatpush1.msra.mxu0 %v3750
    %3877 = vmatprep.subr.mxu0 0.0
    %3878 = vmatpush1.msra.mxu0 %v3747
    %3879 = vmatprep.subr.mxu0 0.0
    %3880 = vmatpush1.msra.mxu0 %v3744
    %3881 = vmatprep.subr.mxu0 0.0
    %3882 = vmatpush1.msra.mxu0 %v3741
    %3883 = vmatprep.subr.mxu0 0.0
    %3884 = vmatpush2.msra.mxu0 0.0
    %3885 = vmatprep.subr.mxu0 0.0
    %3886 = vmatpush2.msra.mxu0 0.0
    %3887 = vmatprep.subr.mxu0 0.0
    %3888 = vmatpush2.msra.mxu0 0.0
    %3889 = vmatprep.subr.mxu0 0.0
    %3890 = vmatpush2.msra.mxu0 0.0
    %3891 = vmatprep.subr.mxu0 0.0
    %3892 = vmatpush2.msra.mxu0 0.0
    %3893 = vmatprep.subr.mxu0 0.0
    %3894 = vmatpush2.msra.mxu0 0.0
    %3895 = vmatprep.subr.mxu0 0.0
    %3896 = vmatpush2.msra.mxu0 0.0
    %3897 = vmatprep.subr.mxu0 0.0
    %3898 = vmatpush2.msra.mxu0 0.0
    %3899 = vmatprep.subr.mxu0 0.0
    %3900 = vmatpush2.msra.mxu0 0.0
    %3901 = vmatprep.subr.mxu0 0.0
    %3902 = vmatpush2.msra.mxu0 0.0
    %3903 = vmatprep.subr.mxu0 0.0
    %3904 = vmatpush2.msra.mxu0 0.0
    %3905 = vmatprep.subr.mxu0 0.0
    %3906 = vmatpush2.msra.mxu0 0.0
    %3907 = vmatprep.subr.mxu0 0.0
    %3908 = vmatpush2.msra.mxu0 0.0
    %3909 = vmatprep.subr.mxu0 0.0
    %3910 = vmatpush2.msra.mxu0 0.0
    %3911 = vmatprep.subr.mxu0 0.0
    %3912 = vmatpush2.msra.mxu0 0.0
    %3913 = vmatprep.subr.mxu0 0.0
    %3914 = vmatpush2.msra.mxu0 0.0
    %3915 = vmatprep.mubr.f32.mxu0 0.0
    %3916 = vmatmul.mubr.f32.gmra.mxu0 %v3769
    %v3917 = vpop.f32.mrf.mxu0
    %v3918 = vadd.f32 %v3764, %v3917
    %v3919 = vpop.f32.mrf.mxu0
    %3920 = vmatprep.mubr.f32.mxu0 0.0
    %3921 = vmatmul.mubr.f32.gmra.mxu0 %v3772
    %v3922 = vpop.f32.mrf.mxu0
    %v3923 = vadd.f32 %v3764, %v3922
    %v3924 = vpop.f32.mrf.mxu0
    %3925 = vdwg.mxu0
    %v3926 = vld [vmem:[%s49] sm:$0xff]
    %v3927 = vld [vmem:[%s49 + $0x8] sm:$0xff]
    %v3928 = vld [vmem:[%s49 + $0x10] sm:$0xff]
    %v3929 = vld [vmem:[%s49 + $0x18] sm:$0xff]
    %v3930 = vld [vmem:[%s49 + $0x20] sm:$0xff]
    %v3931 = vld [vmem:[%s49 + $0x28] sm:$0xff]
    %v3932 = vld [vmem:[%s49 + $0x30] sm:$0xff]
    %v3933 = vld [vmem:[%s49 + $0x38] sm:$0xff]
    %v3934 = vld [vmem:[%s49 + $0x40] sm:$0xff]
    %v3935 = vld [vmem:[%s49 + $0x48] sm:$0xff]
    %v3936 = vld [vmem:[%s49 + $0x50] sm:$0xff]
    %v3937 = vld [vmem:[%s49 + $0x58] sm:$0xff]
    %v3938 = vld [vmem:[%s49 + $0x60] sm:$0xff]
    %v3939 = vld [vmem:[%s49 + $0x68] sm:$0xff]
    %v3940 = vld [vmem:[%s49 + $0x70] sm:$0xff]
    %v3941 = vld [vmem:[%s49 + $0x78] sm:$0xff]
    %v3942 = vld [vmem:[%s49 + $0x80] sm:$0xff]
    %v3943 = vld [vmem:[%s49 + $0x88] sm:$0xff]
    %v3944 = vld [vmem:[%s49 + $0x90] sm:$0xff]
    %v3945 = vld [vmem:[%s49 + $0x98] sm:$0xff]
    %v3946 = vld [vmem:[%s49 + $0xa0] sm:$0xff]
    %v3947 = vld [vmem:[%s49 + $0xa8] sm:$0xff]
    %v3948 = vld [vmem:[%s49 + $0xb0] sm:$0xff]
    %v3949 = vld [vmem:[%s49 + $0xb8] sm:$0xff]
    %v3950 = vld [vmem:[%s49 + $0xc0] sm:$0xff]
    %v3951 = vld [vmem:[%s49 + $0xc8] sm:$0xff]
    %v3952 = vld [vmem:[%s49 + $0xd0] sm:$0xff]
    %v3953 = vld [vmem:[%s49 + $0xd8] sm:$0xff]
    %v3954 = vld [vmem:[%s49 + $0xe0] sm:$0xff]
    %v3955 = vld [vmem:[%s49 + $0xe8] sm:$0xff]
    %v3956 = vld [vmem:[%s49 + $0xf0] sm:$0xff]
    %v3957 = vld [vmem:[%s49 + $0xf8] sm:$0xff]
    %v3958 = vld [vmem:[%s49 + $0x100] sm:$0xff]
    %v3959 = vld [vmem:[%s49 + $0x108] sm:$0xff]
    %v3960 = vld [vmem:[%s49 + $0x110] sm:$0xff]
    %v3961 = vld [vmem:[%s49 + $0x118] sm:$0xff]
    %v3962 = vld [vmem:[%s49 + $0x120] sm:$0xff]
    %v3963 = vld [vmem:[%s49 + $0x128] sm:$0xff]
    %v3964 = vld [vmem:[%s49 + $0x130] sm:$0xff]
    %v3965 = vld [vmem:[%s49 + $0x138] sm:$0xff]
    %v3966 = vld [vmem:[%s49 + $0x140] sm:$0xff]
    %v3967 = vld [vmem:[%s49 + $0x148] sm:$0xff]
    %v3968 = vld [vmem:[%s49 + $0x150] sm:$0xff]
    %v3969 = vld [vmem:[%s49 + $0x158] sm:$0xff]
    %v3970 = vld [vmem:[%s49 + $0x160] sm:$0xff]
    %v3971 = vld [vmem:[%s49 + $0x168] sm:$0xff]
    %v3972 = vld [vmem:[%s49 + $0x170] sm:$0xff]
    %v3973 = vld [vmem:[%s49 + $0x178] sm:$0xff]
    %v3974 = vld [vmem:[#allocation29] sm:$0x1]
    %v3976 = vlaneseq
    %v3977 = vshrl.u32 %v3976, 7
    %v3978 = vsub.s32 0, %v3977
    %v3979 = vrot.slane %v3974, %v3978
    %v3981 = vld [vmem:[#allocation25] sm:$0xff]
    %v3982 = vld [vmem:[#allocation25 + $0x8] sm:$0xff]
    %v3983 = vld [vmem:[#allocation26] sm:$0xff]
    %v3984 = vld [vmem:[#allocation26 + $0x8] sm:$0xff]
    %3985 = vmatprep.subr.mxu0 0.0
    %3986 = vmatpush1.msra.mxu0 0.0
    %3987 = vmatprep.subr.mxu0 0.0
    %3988 = vmatpush1.msra.mxu0 0.0
    %3989 = vmatprep.subr.mxu0 0.0
    %3990 = vmatpush1.msra.mxu0 0.0
    %3991 = vmatprep.subr.mxu0 0.0
    %3992 = vmatpush1.msra.mxu0 0.0
    %3993 = vmatprep.subr.mxu0 0.0
    %3994 = vmatpush1.msra.mxu0 0.0
    %3995 = vmatprep.subr.mxu0 0.0
    %3996 = vmatpush1.msra.mxu0 0.0
    %3997 = vmatprep.subr.mxu0 0.0
    %3998 = vmatpush1.msra.mxu0 0.0
    %3999 = vmatprep.subr.mxu0 0.0
    %4000 = vmatpush1.msra.mxu0 0.0
    %4001 = vmatprep.subr.mxu0 0.0
    %4002 = vmatpush1.msra.mxu0 0.0
    %4003 = vmatprep.subr.mxu0 0.0
    %4004 = vmatpush1.msra.mxu0 0.0
    %4005 = vmatprep.subr.mxu0 0.0
    %4006 = vmatpush1.msra.mxu0 0.0
    %4007 = vmatprep.subr.mxu0 0.0
    %4008 = vmatpush1.msra.mxu0 0.0
    %4009 = vmatprep.subr.mxu0 0.0
    %4010 = vmatpush1.msra.mxu0 0.0
    %4011 = vmatprep.subr.mxu0 0.0
    %4012 = vmatpush1.msra.mxu0 0.0
    %4013 = vmatprep.subr.mxu0 0.0
    %4014 = vmatpush1.msra.mxu0 %v3984
    %4015 = vmatprep.subr.mxu0 0.0
    %4016 = vmatpush1.msra.mxu0 %v3983
    %4017 = vmatprep.subr.mxu0 0.0
    %4018 = vmatpush2.msra.mxu0 0.0
    %4019 = vmatprep.subr.mxu0 0.0
    %4020 = vmatpush2.msra.mxu0 0.0
    %4021 = vmatprep.subr.mxu0 0.0
    %4022 = vmatpush2.msra.mxu0 0.0
    %4023 = vmatprep.subr.mxu0 0.0
    %4024 = vmatpush2.msra.mxu0 0.0
    %4025 = vmatprep.subr.mxu0 0.0
    %4026 = vmatpush2.msra.mxu0 0.0
    %4027 = vmatprep.subr.mxu0 0.0
    %4028 = vmatpush2.msra.mxu0 0.0
    %4029 = vmatprep.subr.mxu0 0.0
    %4030 = vmatpush2.msra.mxu0 0.0
    %4031 = vmatprep.subr.mxu0 0.0
    %4032 = vmatpush2.msra.mxu0 0.0
    %4033 = vmatprep.subr.mxu0 0.0
    %4034 = vmatpush2.msra.mxu0 0.0
    %4035 = vmatprep.subr.mxu0 0.0
    %4036 = vmatpush2.msra.mxu0 0.0
    %4037 = vmatprep.subr.mxu0 0.0
    %4038 = vmatpush2.msra.mxu0 0.0
    %4039 = vmatprep.subr.mxu0 0.0
    %4040 = vmatpush2.msra.mxu0 0.0
    %4041 = vmatprep.subr.mxu0 0.0
    %4042 = vmatpush2.msra.mxu0 0.0
    %4043 = vmatprep.subr.mxu0 0.0
    %4044 = vmatpush2.msra.mxu0 0.0
    %4045 = vmatprep.subr.mxu0 0.0
    %4046 = vmatpush2.msra.mxu0 0.0
    %4047 = vmatprep.subr.mxu0 0.0
    %4048 = vmatpush2.msra.mxu0 0.0
    %4049 = vmatprep.mubr.f32.mxu0 0.0
    %4050 = vmatmul.mubr.f32.gmra.mxu0 %v3291
    %v4051 = vpop.f32.mrf.mxu0
    %v4052 = vadd.f32 0.0, %v4051
    %v4053 = vpop.f32.mrf.mxu0
    %4054 = vdwg.mxu0
    %4055 = vmatprep.subr.mxu0 0.0
    %4056 = vmatpush1.msra.mxu0 0.0
    %4057 = vmatprep.subr.mxu0 0.0
    %4058 = vmatpush1.msra.mxu0 0.0
    %4059 = vmatprep.subr.mxu0 0.0
    %4060 = vmatpush1.msra.mxu0 0.0
    %4061 = vmatprep.subr.mxu0 0.0
    %4062 = vmatpush1.msra.mxu0 0.0
    %4063 = vmatprep.subr.mxu0 0.0
    %4064 = vmatpush1.msra.mxu0 0.0
    %4065 = vmatprep.subr.mxu0 0.0
    %4066 = vmatpush1.msra.mxu0 0.0
    %4067 = vmatprep.subr.mxu0 0.0
    %4068 = vmatpush1.msra.mxu0 0.0
    %4069 = vmatprep.subr.mxu0 0.0
    %4070 = vmatpush1.msra.mxu0 0.0
    %4071 = vmatprep.subr.mxu0 0.0
    %4072 = vmatpush1.msra.mxu0 0.0
    %4073 = vmatprep.subr.mxu0 0.0
    %4074 = vmatpush1.msra.mxu0 0.0
    %4075 = vmatprep.subr.mxu0 0.0
    %4076 = vmatpush1.msra.mxu0 0.0
    %4077 = vmatprep.subr.mxu0 0.0
    %4078 = vmatpush1.msra.mxu0 0.0
    %4079 = vmatprep.subr.mxu0 0.0
    %4080 = vmatpush1.msra.mxu0 0.0
    %4081 = vmatprep.subr.mxu0 0.0
    %4082 = vmatpush1.msra.mxu0 0.0
    %4083 = vmatprep.subr.mxu0 0.0
    %4084 = vmatpush1.msra.mxu0 %v3982
    %4085 = vmatprep.subr.mxu0 0.0
    %4086 = vmatpush1.msra.mxu0 %v3981
    %4087 = vmatprep.subr.mxu0 0.0
    %4088 = vmatpush2.msra.mxu0 0.0
    %4089 = vmatprep.subr.mxu0 0.0
    %4090 = vmatpush2.msra.mxu0 0.0
    %4091 = vmatprep.subr.mxu0 0.0
    %4092 = vmatpush2.msra.mxu0 0.0
    %4093 = vmatprep.subr.mxu0 0.0
    %4094 = vmatpush2.msra.mxu0 0.0
    %4095 = vmatprep.subr.mxu0 0.0
    %4096 = vmatpush2.msra.mxu0 0.0
    %4097 = vmatprep.subr.mxu0 0.0
    %4098 = vmatpush2.msra.mxu0 0.0
    %4099 = vmatprep.subr.mxu0 0.0
    %4100 = vmatpush2.msra.mxu0 0.0
    %4101 = vmatprep.subr.mxu0 0.0
    %4102 = vmatpush2.msra.mxu0 0.0
    %4103 = vmatprep.subr.mxu0 0.0
    %4104 = vmatpush2.msra.mxu0 0.0
    %4105 = vmatprep.subr.mxu0 0.0
    %4106 = vmatpush2.msra.mxu0 0.0
    %4107 = vmatprep.subr.mxu0 0.0
    %4108 = vmatpush2.msra.mxu0 0.0
    %4109 = vmatprep.subr.mxu0 0.0
    %4110 = vmatpush2.msra.mxu0 0.0
    %4111 = vmatprep.subr.mxu0 0.0
    %4112 = vmatpush2.msra.mxu0 0.0
    %4113 = vmatprep.subr.mxu0 0.0
    %4114 = vmatpush2.msra.mxu0 0.0
    %4115 = vmatprep.subr.mxu0 0.0
    %4116 = vmatpush2.msra.mxu0 0.0
    %4117 = vmatprep.subr.mxu0 0.0
    %4118 = vmatpush2.msra.mxu0 0.0
    %4119 = vmatprep.mubr.f32.mxu0 0.0
    %4120 = vmatmul.mubr.f32.gmra.mxu0 %v3634
    %v4121 = vpop.f32.mrf.mxu0
    %v4122 = vadd.f32 %v4052, %v4121
    %v4123 = vpop.f32.mrf.mxu0
    %4124 = vdwg.mxu0
    %v4125 = vld [vmem:[#allocation28] sm:$0x1]
    %v4127 = vlaneseq
    %v4128 = vshrl.u32 %v4127, 7
    %v4129 = vsub.s32 0, %v4128
    %v4130 = vrot.slane %v4125, %v4129
    %v4132 = vadd.f32 %v4122, %v4130
    %v4133 = vtanh.pop %v4132
    %4134 = vmatprep.subr.mxu0 %v3972
    %4135 = vmatpush1.msra.mxu0 %v3971
    %4136 = vmatprep.subr.mxu0 %v3969
    %4137 = vmatpush1.msra.mxu0 %v3968
    %4138 = vmatprep.subr.mxu0 %v3966
    %4139 = vmatpush1.msra.mxu0 %v3965
    %4140 = vmatprep.subr.mxu0 %v3963
    %4141 = vmatpush1.msra.mxu0 %v3962
    %4142 = vmatprep.subr.mxu0 %v3960
    %4143 = vmatpush1.msra.mxu0 %v3959
    %4144 = vmatprep.subr.mxu0 %v3957
    %4145 = vmatpush1.msra.mxu0 %v3956
    %4146 = vmatprep.subr.mxu0 %v3954
    %4147 = vmatpush1.msra.mxu0 %v3953
    %4148 = vmatprep.subr.mxu0 %v3951
    %4149 = vmatpush1.msra.mxu0 %v3950
    %4150 = vmatprep.subr.mxu0 %v3948
    %4151 = vmatpush1.msra.mxu0 %v3947
    %4152 = vmatprep.subr.mxu0 %v3945
    %4153 = vmatpush1.msra.mxu0 %v3944
    %4154 = vmatprep.subr.mxu0 %v3942
    %4155 = vmatpush1.msra.mxu0 %v3941
    %4156 = vmatprep.subr.mxu0 %v3939
    %4157 = vmatpush1.msra.mxu0 %v3938
    %4158 = vmatprep.subr.mxu0 %v3936
    %4159 = vmatpush1.msra.mxu0 %v3935
    %4160 = vmatprep.subr.mxu0 %v3933
    %4161 = vmatpush1.msra.mxu0 %v3932
    %4162 = vmatprep.subr.mxu0 %v3930
    %4163 = vmatpush1.msra.mxu0 %v3929
    %4164 = vmatprep.subr.mxu0 %v3927
    %4165 = vmatpush1.msra.mxu0 %v3926
    %4166 = vmatprep.subr.mxu0 0.0
    %4167 = vmatpush2.msra.mxu0 0.0
    %4168 = vmatprep.subr.mxu0 0.0
    %4169 = vmatpush2.msra.mxu0 0.0
    %4170 = vmatprep.subr.mxu0 0.0
    %4171 = vmatpush2.msra.mxu0 0.0
    %4172 = vmatprep.subr.mxu0 0.0
    %4173 = vmatpush2.msra.mxu0 0.0
    %4174 = vmatprep.subr.mxu0 0.0
    %4175 = vmatpush2.msra.mxu0 0.0
    %4176 = vmatprep.subr.mxu0 0.0
    %4177 = vmatpush2.msra.mxu0 0.0
    %4178 = vmatprep.subr.mxu0 0.0
    %4179 = vmatpush2.msra.mxu0 0.0
    %4180 = vmatprep.subr.mxu0 0.0
    %4181 = vmatpush2.msra.mxu0 0.0
    %4182 = vmatprep.subr.mxu0 0.0
    %4183 = vmatpush2.msra.mxu0 0.0
    %4184 = vmatprep.subr.mxu0 0.0
    %4185 = vmatpush2.msra.mxu0 0.0
    %4186 = vmatprep.subr.mxu0 0.0
    %4187 = vmatpush2.msra.mxu0 0.0
    %4188 = vmatprep.subr.mxu0 0.0
    %4189 = vmatpush2.msra.mxu0 0.0
    %4190 = vmatprep.subr.mxu0 0.0
    %4191 = vmatpush2.msra.mxu0 0.0
    %4192 = vmatprep.subr.mxu0 0.0
    %4193 = vmatpush2.msra.mxu0 0.0
    %4194 = vmatprep.subr.mxu0 0.0
    %4195 = vmatpush2.msra.mxu0 0.0
    %4196 = vmatprep.subr.mxu0 0.0
    %4197 = vmatpush2.msra.mxu0 0.0
    %4198 = vmatprep.mubr.f32.mxu0 0.0
    %4199 = vmatmul.mubr.f32.gmra.mxu0 %v4133
    %v4200 = vpop.f32.mrf.mxu0
    %v4201 = vadd.f32 0.0, %v4200
    %v4202 = vpop.f32.mrf.mxu0
    %v4203 = vadd.f32 0.0, %v4202
    %4204 = vdwg.mxu0
    %4205 = vmatprep.subr.mxu0 0.0
    %4206 = vmatpush1.msra.mxu0 %v3973
    %4207 = vmatprep.subr.mxu0 0.0
    %4208 = vmatpush1.msra.mxu0 %v3970
    %4209 = vmatprep.subr.mxu0 0.0
    %4210 = vmatpush1.msra.mxu0 %v3967
    %4211 = vmatprep.subr.mxu0 0.0
    %4212 = vmatpush1.msra.mxu0 %v3964
    %4213 = vmatprep.subr.mxu0 0.0
    %4214 = vmatpush1.msra.mxu0 %v3961
    %4215 = vmatprep.subr.mxu0 0.0
    %4216 = vmatpush1.msra.mxu0 %v3958
    %4217 = vmatprep.subr.mxu0 0.0
    %4218 = vmatpush1.msra.mxu0 %v3955
    %4219 = vmatprep.subr.mxu0 0.0
    %4220 = vmatpush1.msra.mxu0 %v3952
    %4221 = vmatprep.subr.mxu0 0.0
    %4222 = vmatpush1.msra.mxu0 %v3949
    %4223 = vmatprep.subr.mxu0 0.0
    %4224 = vmatpush1.msra.mxu0 %v3946
    %4225 = vmatprep.subr.mxu0 0.0
    %4226 = vmatpush1.msra.mxu0 %v3943
    %4227 = vmatprep.subr.mxu0 0.0
    %4228 = vmatpush1.msra.mxu0 %v3940
    %4229 = vmatprep.subr.mxu0 0.0
    %4230 = vmatpush1.msra.mxu0 %v3937
    %4231 = vmatprep.subr.mxu0 0.0
    %4232 = vmatpush1.msra.mxu0 %v3934
    %4233 = vmatprep.subr.mxu0 0.0
    %4234 = vmatpush1.msra.mxu0 %v3931
    %4235 = vmatprep.subr.mxu0 0.0
    %4236 = vmatpush1.msra.mxu0 %v3928
    %4237 = vmatprep.subr.mxu0 0.0
    %4238 = vmatpush2.msra.mxu0 0.0
    %4239 = vmatprep.subr.mxu0 0.0
    %4240 = vmatpush2.msra.mxu0 0.0
    %4241 = vmatprep.subr.mxu0 0.0
    %4242 = vmatpush2.msra.mxu0 0.0
    %4243 = vmatprep.subr.mxu0 0.0
    %4244 = vmatpush2.msra.mxu0 0.0
    %4245 = vmatprep.subr.mxu0 0.0
    %4246 = vmatpush2.msra.mxu0 0.0
    %4247 = vmatprep.subr.mxu0 0.0
    %4248 = vmatpush2.msra.mxu0 0.0
    %4249 = vmatprep.subr.mxu0 0.0
    %4250 = vmatpush2.msra.mxu0 0.0
    %4251 = vmatprep.subr.mxu0 0.0
    %4252 = vmatpush2.msra.mxu0 0.0
    %4253 = vmatprep.subr.mxu0 0.0
    %4254 = vmatpush2.msra.mxu0 0.0
    %4255 = vmatprep.subr.mxu0 0.0
    %4256 = vmatpush2.msra.mxu0 0.0
    %4257 = vmatprep.subr.mxu0 0.0
    %4258 = vmatpush2.msra.mxu0 0.0
    %4259 = vmatprep.subr.mxu0 0.0
    %4260 = vmatpush2.msra.mxu0 0.0
    %4261 = vmatprep.subr.mxu0 0.0
    %4262 = vmatpush2.msra.mxu0 0.0
    %4263 = vmatprep.subr.mxu0 0.0
    %4264 = vmatpush2.msra.mxu0 0.0
    %4265 = vmatprep.subr.mxu0 0.0
    %4266 = vmatpush2.msra.mxu0 0.0
    %4267 = vmatprep.subr.mxu0 0.0
    %4268 = vmatpush2.msra.mxu0 0.0
    %4269 = vmatprep.mubr.f32.mxu0 0.0
    %4270 = vmatmul.mubr.f32.gmra.mxu0 %v4133
    %v4271 = vpop.f32.mrf.mxu0
    %v4272 = vadd.f32 0.0, %v4271
    %v4273 = vpop.f32.mrf.mxu0
    %4274 = vdwg.mxu0
    %v4275 = vadd.f32 %v3841, %v4201
    %v4276 = vxor.u32 %v4275, 2147483648
    %v4277 = vmul.f32 %v4276, 1.442695
    %v4278 = vpow.pop %v4277
    %v4279 = vadd.f32 %v4278, 1.0
    %v4280 = vrcp.pop %v4279
    %v4281 = vmul.f32 1.0, %v4280
    %v4282 = vadd.f32 %v3843, %v4203
    %v4283 = vxor.u32 %v4282, 2147483648
    %v4284 = vmul.f32 %v4283, 1.442695
    %v4285 = vpow.pop %v4284
    %v4286 = vadd.f32 %v4285, 1.0
    %v4287 = vrcp.pop %v4286
    %v4288 = vmul.f32 1.0, %v4287
    %v4289 = vadd.f32 %v4272, %v3979
    %v4290 = vmul.f32 %v4281, %v4289
    %v4291 = vadd.f32 %v3918, %v4290
    %v4292 = vtanh.pop %v4291
    %v4293 = vsub.f32 %v4133, %v4292
    %v4294 = vmul.f32 %v4288, %v4293
    %v4295 = vadd.f32 %v4292, %v4294
    %4296 = vst [vmem:[#allocation2] sm:$0x3] %v4295
    %4297 = vmatprep.subr.mxu0 %v3972
    %4298 = vmatpush1.msra.mxu0 %v3971
    %4299 = vmatprep.subr.mxu0 %v3969
    %4300 = vmatpush1.msra.mxu0 %v3968
    %4301 = vmatprep.subr.mxu0 %v3966
    %4302 = vmatpush1.msra.mxu0 %v3965
    %4303 = vmatprep.subr.mxu0 %v3963
    %4304 = vmatpush1.msra.mxu0 %v3962
    %4305 = vmatprep.subr.mxu0 %v3960
    %4306 = vmatpush1.msra.mxu0 %v3959
    %4307 = vmatprep.subr.mxu0 %v3957
    %4308 = vmatpush1.msra.mxu0 %v3956
    %4309 = vmatprep.subr.mxu0 %v3954
    %4310 = vmatpush1.msra.mxu0 %v3953
    %4311 = vmatprep.subr.mxu0 %v3951
    %4312 = vmatpush1.msra.mxu0 %v3950
    %4313 = vmatprep.subr.mxu0 %v3948
    %4314 = vmatpush1.msra.mxu0 %v3947
    %4315 = vmatprep.subr.mxu0 %v3945
    %4316 = vmatpush1.msra.mxu0 %v3944
    %4317 = vmatprep.subr.mxu0 %v3942
    %4318 = vmatpush1.msra.mxu0 %v3941
    %4319 = vmatprep.subr.mxu0 %v3939
    %4320 = vmatpush1.msra.mxu0 %v3938
    %4321 = vmatprep.subr.mxu0 %v3936
    %4322 = vmatpush1.msra.mxu0 %v3935
    %4323 = vmatprep.subr.mxu0 %v3933
    %4324 = vmatpush1.msra.mxu0 %v3932
    %4325 = vmatprep.subr.mxu0 %v3930
    %4326 = vmatpush1.msra.mxu0 %v3929
    %4327 = vmatprep.subr.mxu0 %v3927
    %4328 = vmatpush1.msra.mxu0 %v3926
    %4329 = vmatprep.subr.mxu0 0.0
    %4330 = vmatpush2.msra.mxu0 0.0
    %4331 = vmatprep.subr.mxu0 0.0
    %4332 = vmatpush2.msra.mxu0 0.0
    %4333 = vmatprep.subr.mxu0 0.0
    %4334 = vmatpush2.msra.mxu0 0.0
    %4335 = vmatprep.subr.mxu0 0.0
    %4336 = vmatpush2.msra.mxu0 0.0
    %4337 = vmatprep.subr.mxu0 0.0
    %4338 = vmatpush2.msra.mxu0 0.0
    %4339 = vmatprep.subr.mxu0 0.0
    %4340 = vmatpush2.msra.mxu0 0.0
    %4341 = vmatprep.subr.mxu0 0.0
    %4342 = vmatpush2.msra.mxu0 0.0
    %4343 = vmatprep.subr.mxu0 0.0
    %4344 = vmatpush2.msra.mxu0 0.0
    %4345 = vmatprep.subr.mxu0 0.0
    %4346 = vmatpush2.msra.mxu0 0.0
    %4347 = vmatprep.subr.mxu0 0.0
    %4348 = vmatpush2.msra.mxu0 0.0
    %4349 = vmatprep.subr.mxu0 0.0
    %4350 = vmatpush2.msra.mxu0 0.0
    %4351 = vmatprep.subr.mxu0 0.0
    %4352 = vmatpush2.msra.mxu0 0.0
    %4353 = vmatprep.subr.mxu0 0.0
    %4354 = vmatpush2.msra.mxu0 0.0
    %4355 = vmatprep.subr.mxu0 0.0
    %4356 = vmatpush2.msra.mxu0 0.0
    %4357 = vmatprep.subr.mxu0 0.0
    %4358 = vmatpush2.msra.mxu0 0.0
    %4359 = vmatprep.subr.mxu0 0.0
    %4360 = vmatpush2.msra.mxu0 0.0
    %4361 = vmatprep.mubr.f32.mxu0 0.0
    %4362 = vmatmul.mubr.f32.gmra.mxu0 %v4295
    %v4363 = vpop.f32.mrf.mxu0
    %v4364 = vadd.f32 0.0, %v4363
    %v4365 = vpop.f32.mrf.mxu0
    %v4366 = vadd.f32 0.0, %v4365
    %4367 = vdwg.mxu0
    %4368 = vmatprep.subr.mxu0 0.0
    %4369 = vmatpush1.msra.mxu0 %v3973
    %4370 = vmatprep.subr.mxu0 0.0
    %4371 = vmatpush1.msra.mxu0 %v3970
    %4372 = vmatprep.subr.mxu0 0.0
    %4373 = vmatpush1.msra.mxu0 %v3967
    %4374 = vmatprep.subr.mxu0 0.0
    %4375 = vmatpush1.msra.mxu0 %v3964
    %4376 = vmatprep.subr.mxu0 0.0
    %4377 = vmatpush1.msra.mxu0 %v3961
    %4378 = vmatprep.subr.mxu0 0.0
    %4379 = vmatpush1.msra.mxu0 %v3958
    %4380 = vmatprep.subr.mxu0 0.0
    %4381 = vmatpush1.msra.mxu0 %v3955
    %4382 = vmatprep.subr.mxu0 0.0
    %4383 = vmatpush1.msra.mxu0 %v3952
    %4384 = vmatprep.subr.mxu0 0.0
    %4385 = vmatpush1.msra.mxu0 %v3949
    %4386 = vmatprep.subr.mxu0 0.0
    %4387 = vmatpush1.msra.mxu0 %v3946
    %4388 = vmatprep.subr.mxu0 0.0
    %4389 = vmatpush1.msra.mxu0 %v3943
    %4390 = vmatprep.subr.mxu0 0.0
    %4391 = vmatpush1.msra.mxu0 %v3940
    %4392 = vmatprep.subr.mxu0 0.0
    %4393 = vmatpush1.msra.mxu0 %v3937
    %4394 = vmatprep.subr.mxu0 0.0
    %4395 = vmatpush1.msra.mxu0 %v3934
    %4396 = vmatprep.subr.mxu0 0.0
    %4397 = vmatpush1.msra.mxu0 %v3931
    %4398 = vmatprep.subr.mxu0 0.0
    %4399 = vmatpush1.msra.mxu0 %v3928
    %4400 = vmatprep.subr.mxu0 0.0
    %4401 = vmatpush2.msra.mxu0 0.0
    %4402 = vmatprep.subr.mxu0 0.0
    %4403 = vmatpush2.msra.mxu0 0.0
    %4404 = vmatprep.subr.mxu0 0.0
    %4405 = vmatpush2.msra.mxu0 0.0
    %4406 = vmatprep.subr.mxu0 0.0
    %4407 = vmatpush2.msra.mxu0 0.0
    %4408 = vmatprep.subr.mxu0 0.0
    %4409 = vmatpush2.msra.mxu0 0.0
    %4410 = vmatprep.subr.mxu0 0.0
    %4411 = vmatpush2.msra.mxu0 0.0
    %4412 = vmatprep.subr.mxu0 0.0
    %4413 = vmatpush2.msra.mxu0 0.0
    %4414 = vmatprep.subr.mxu0 0.0
    %4415 = vmatpush2.msra.mxu0 0.0
    %4416 = vmatprep.subr.mxu0 0.0
    %4417 = vmatpush2.msra.mxu0 0.0
    %4418 = vmatprep.subr.mxu0 0.0
    %4419 = vmatpush2.msra.mxu0 0.0
    %4420 = vmatprep.subr.mxu0 0.0
    %4421 = vmatpush2.msra.mxu0 0.0
    %4422 = vmatprep.subr.mxu0 0.0
    %4423 = vmatpush2.msra.mxu0 0.0
    %4424 = vmatprep.subr.mxu0 0.0
    %4425 = vmatpush2.msra.mxu0 0.0
    %4426 = vmatprep.subr.mxu0 0.0
    %4427 = vmatpush2.msra.mxu0 0.0
    %4428 = vmatprep.subr.mxu0 0.0
    %4429 = vmatpush2.msra.mxu0 0.0
    %4430 = vmatprep.subr.mxu0 0.0
    %4431 = vmatpush2.msra.mxu0 0.0
    %4432 = vmatprep.mubr.f32.mxu0 0.0
    %4433 = vmatmul.mubr.f32.gmra.mxu0 %v4295
    %v4434 = vpop.f32.mrf.mxu0
    %v4435 = vadd.f32 0.0, %v4434
    %v4436 = vpop.f32.mrf.mxu0
    %4437 = vdwg.mxu0
    %v4439 = vrot.slane %v4364, 6
    %v4441 = vadd.f32 %v3841, %v4439
    %v4442 = vxor.u32 %v4441, 2147483648
    %v4443 = vmul.f32 %v4442, 1.442695
    %v4444 = vpow.pop %v4443
    %v4445 = vadd.f32 %v4444, 1.0
    %v4446 = vrcp.pop %v4445
    %v4447 = vmul.f32 1.0, %v4446
    %v4449 = vrot.slane %v4366, 6
    %v4451 = vadd.f32 %v3843, %v4449
    %v4452 = vxor.u32 %v4451, 2147483648
    %v4453 = vmul.f32 %v4452, 1.442695
    %v4454 = vpow.pop %v4453
    %v4455 = vadd.f32 %v4454, 1.0
    %v4456 = vrcp.pop %v4455
    %v4457 = vmul.f32 1.0, %v4456
    %v4458 = vadd.f32 %v4435, %v3979
    %v4460 = vrot.slane %v4458, 6
    %v4462 = vmul.f32 %v4447, %v4460
    %v4463 = vadd.f32 %v3918, %v4462
    %v4464 = vtanh.pop %v4463
    %v4466 = vrot.slane %v4464, 2
    %v4468 = vsub.f32 %v4295, %v4466
    %v4470 = vrot.slane %v4468, 6
    %v4472 = vmul.f32 %v4457, %v4470
    %v4473 = vadd.f32 %v4464, %v4472
    %4474 = vst [vmem:[#allocation2] sm:$0xc] %v4473
    %v4476 = vrot.slane %v4473, 2
    %4478 = vmatprep.subr.mxu0 %v3972
    %4479 = vmatpush1.msra.mxu0 %v3971
    %4480 = vmatprep.subr.mxu0 %v3969
    %4481 = vmatpush1.msra.mxu0 %v3968
    %4482 = vmatprep.subr.mxu0 %v3966
    %4483 = vmatpush1.msra.mxu0 %v3965
    %4484 = vmatprep.subr.mxu0 %v3963
    %4485 = vmatpush1.msra.mxu0 %v3962
    %4486 = vmatprep.subr.mxu0 %v3960
    %4487 = vmatpush1.msra.mxu0 %v3959
    %4488 = vmatprep.subr.mxu0 %v3957
    %4489 = vmatpush1.msra.mxu0 %v3956
    %4490 = vmatprep.subr.mxu0 %v3954
    %4491 = vmatpush1.msra.mxu0 %v3953
    %4492 = vmatprep.subr.mxu0 %v3951
    %4493 = vmatpush1.msra.mxu0 %v3950
    %4494 = vmatprep.subr.mxu0 %v3948
    %4495 = vmatpush1.msra.mxu0 %v3947
    %4496 = vmatprep.subr.mxu0 %v3945
    %4497 = vmatpush1.msra.mxu0 %v3944
    %4498 = vmatprep.subr.mxu0 %v3942
    %4499 = vmatpush1.msra.mxu0 %v3941
    %4500 = vmatprep.subr.mxu0 %v3939
    %4501 = vmatpush1.msra.mxu0 %v3938
    %4502 = vmatprep.subr.mxu0 %v3936
    %4503 = vmatpush1.msra.mxu0 %v3935
    %4504 = vmatprep.subr.mxu0 %v3933
    %4505 = vmatpush1.msra.mxu0 %v3932
    %4506 = vmatprep.subr.mxu0 %v3930
    %4507 = vmatpush1.msra.mxu0 %v3929
    %4508 = vmatprep.subr.mxu0 %v3927
    %4509 = vmatpush1.msra.mxu0 %v3926
    %4510 = vmatprep.subr.mxu0 0.0
    %4511 = vmatpush2.msra.mxu0 0.0
    %4512 = vmatprep.subr.mxu0 0.0
    %4513 = vmatpush2.msra.mxu0 0.0
    %4514 = vmatprep.subr.mxu0 0.0
    %4515 = vmatpush2.msra.mxu0 0.0
    %4516 = vmatprep.subr.mxu0 0.0
    %4517 = vmatpush2.msra.mxu0 0.0
    %4518 = vmatprep.subr.mxu0 0.0
    %4519 = vmatpush2.msra.mxu0 0.0
    %4520 = vmatprep.subr.mxu0 0.0
    %4521 = vmatpush2.msra.mxu0 0.0
    %4522 = vmatprep.subr.mxu0 0.0
    %4523 = vmatpush2.msra.mxu0 0.0
    %4524 = vmatprep.subr.mxu0 0.0
    %4525 = vmatpush2.msra.mxu0 0.0
    %4526 = vmatprep.subr.mxu0 0.0
    %4527 = vmatpush2.msra.mxu0 0.0
    %4528 = vmatprep.subr.mxu0 0.0
    %4529 = vmatpush2.msra.mxu0 0.0
    %4530 = vmatprep.subr.mxu0 0.0
    %4531 = vmatpush2.msra.mxu0 0.0
    %4532 = vmatprep.subr.mxu0 0.0
    %4533 = vmatpush2.msra.mxu0 0.0
    %4534 = vmatprep.subr.mxu0 0.0
    %4535 = vmatpush2.msra.mxu0 0.0
    %4536 = vmatprep.subr.mxu0 0.0
    %4537 = vmatpush2.msra.mxu0 0.0
    %4538 = vmatprep.subr.mxu0 0.0
    %4539 = vmatpush2.msra.mxu0 0.0
    %4540 = vmatprep.subr.mxu0 0.0
    %4541 = vmatpush2.msra.mxu0 0.0
    %4542 = vmatprep.mubr.f32.mxu0 0.0
    %4543 = vmatmul.mubr.f32.gmra.mxu0 %v4476
    %v4544 = vpop.f32.mrf.mxu0
    %v4545 = vadd.f32 0.0, %v4544
    %v4546 = vpop.f32.mrf.mxu0
    %v4547 = vadd.f32 0.0, %v4546
    %4548 = vdwg.mxu0
    %4549 = vmatprep.subr.mxu0 0.0
    %4550 = vmatpush1.msra.mxu0 %v3973
    %4551 = vmatprep.subr.mxu0 0.0
    %4552 = vmatpush1.msra.mxu0 %v3970
    %4553 = vmatprep.subr.mxu0 0.0
    %4554 = vmatpush1.msra.mxu0 %v3967
    %4555 = vmatprep.subr.mxu0 0.0
    %4556 = vmatpush1.msra.mxu0 %v3964
    %4557 = vmatprep.subr.mxu0 0.0
    %4558 = vmatpush1.msra.mxu0 %v3961
    %4559 = vmatprep.subr.mxu0 0.0
    %4560 = vmatpush1.msra.mxu0 %v3958
    %4561 = vmatprep.subr.mxu0 0.0
    %4562 = vmatpush1.msra.mxu0 %v3955
    %4563 = vmatprep.subr.mxu0 0.0
    %4564 = vmatpush1.msra.mxu0 %v3952
    %4565 = vmatprep.subr.mxu0 0.0
    %4566 = vmatpush1.msra.mxu0 %v3949
    %4567 = vmatprep.subr.mxu0 0.0
    %4568 = vmatpush1.msra.mxu0 %v3946
    %4569 = vmatprep.subr.mxu0 0.0
    %4570 = vmatpush1.msra.mxu0 %v3943
    %4571 = vmatprep.subr.mxu0 0.0
    %4572 = vmatpush1.msra.mxu0 %v3940
    %4573 = vmatprep.subr.mxu0 0.0
    %4574 = vmatpush1.msra.mxu0 %v3937
    %4575 = vmatprep.subr.mxu0 0.0
    %4576 = vmatpush1.msra.mxu0 %v3934
    %4577 = vmatprep.subr.mxu0 0.0
    %4578 = vmatpush1.msra.mxu0 %v3931
    %4579 = vmatprep.subr.mxu0 0.0
    %4580 = vmatpush1.msra.mxu0 %v3928
    %4581 = vmatprep.subr.mxu0 0.0
    %4582 = vmatpush2.msra.mxu0 0.0
    %4583 = vmatprep.subr.mxu0 0.0
    %4584 = vmatpush2.msra.mxu0 0.0
    %4585 = vmatprep.subr.mxu0 0.0
    %4586 = vmatpush2.msra.mxu0 0.0
    %4587 = vmatprep.subr.mxu0 0.0
    %4588 = vmatpush2.msra.mxu0 0.0
    %4589 = vmatprep.subr.mxu0 0.0
    %4590 = vmatpush2.msra.mxu0 0.0
    %4591 = vmatprep.subr.mxu0 0.0
    %4592 = vmatpush2.msra.mxu0 0.0
    %4593 = vmatprep.subr.mxu0 0.0
    %4594 = vmatpush2.msra.mxu0 0.0
    %4595 = vmatprep.subr.mxu0 0.0
    %4596 = vmatpush2.msra.mxu0 0.0
    %4597 = vmatprep.subr.mxu0 0.0
    %4598 = vmatpush2.msra.mxu0 0.0
    %4599 = vmatprep.subr.mxu0 0.0
    %4600 = vmatpush2.msra.mxu0 0.0
    %4601 = vmatprep.subr.mxu0 0.0
    %4602 = vmatpush2.msra.mxu0 0.0
    %4603 = vmatprep.subr.mxu0 0.0
    %4604 = vmatpush2.msra.mxu0 0.0
    %4605 = vmatprep.subr.mxu0 0.0
    %4606 = vmatpush2.msra.mxu0 0.0
    %4607 = vmatprep.subr.mxu0 0.0
    %4608 = vmatpush2.msra.mxu0 0.0
    %4609 = vmatprep.subr.mxu0 0.0
    %4610 = vmatpush2.msra.mxu0 0.0
    %4611 = vmatprep.subr.mxu0 0.0
    %4612 = vmatpush2.msra.mxu0 0.0
    %4613 = vmatprep.mubr.f32.mxu0 0.0
    %4614 = vmatmul.mubr.f32.gmra.mxu0 %v4476
    %v4615 = vpop.f32.mrf.mxu0
    %v4616 = vadd.f32 0.0, %v4615
    %v4617 = vpop.f32.mrf.mxu0
    %4618 = vdwg.mxu0
    %v4620 = vrot.slane %v4545, 4
    %v4622 = vadd.f32 %v3841, %v4620
    %v4623 = vxor.u32 %v4622, 2147483648
    %v4624 = vmul.f32 %v4623, 1.442695
    %v4625 = vpow.pop %v4624
    %v4626 = vadd.f32 %v4625, 1.0
    %v4627 = vrcp.pop %v4626
    %v4628 = vmul.f32 1.0, %v4627
    %v4630 = vrot.slane %v4547, 4
    %v4632 = vadd.f32 %v3843, %v4630
    %v4633 = vxor.u32 %v4632, 2147483648
    %v4634 = vmul.f32 %v4633, 1.442695
    %v4635 = vpow.pop %v4634
    %v4636 = vadd.f32 %v4635, 1.0
    %v4637 = vrcp.pop %v4636
    %v4638 = vmul.f32 1.0, %v4637
    %v4639 = vadd.f32 %v4616, %v3979
    %v4641 = vrot.slane %v4639, 4
    %v4643 = vmul.f32 %v4628, %v4641
    %v4644 = vadd.f32 %v3918, %v4643
    %v4645 = vtanh.pop %v4644
    %v4647 = vrot.slane %v4645, 2
    %v4649 = vsub.f32 %v4473, %v4647
    %v4651 = vrot.slane %v4649, 6
    %v4653 = vmul.f32 %v4638, %v4651
    %v4654 = vadd.f32 %v4645, %v4653
    %4655 = vst [vmem:[#allocation2] sm:$0x30] %v4654
    %v4657 = vrot.slane %v4654, 4
    %4659 = vmatprep.subr.mxu0 %v3972
    %4660 = vmatpush1.msra.mxu0 %v3971
    %4661 = vmatprep.subr.mxu0 %v3969
    %4662 = vmatpush1.msra.mxu0 %v3968
    %4663 = vmatprep.subr.mxu0 %v3966
    %4664 = vmatpush1.msra.mxu0 %v3965
    %4665 = vmatprep.subr.mxu0 %v3963
    %4666 = vmatpush1.msra.mxu0 %v3962
    %4667 = vmatprep.subr.mxu0 %v3960
    %4668 = vmatpush1.msra.mxu0 %v3959
    %4669 = vmatprep.subr.mxu0 %v3957
    %4670 = vmatpush1.msra.mxu0 %v3956
    %4671 = vmatprep.subr.mxu0 %v3954
    %4672 = vmatpush1.msra.mxu0 %v3953
    %4673 = vmatprep.subr.mxu0 %v3951
    %4674 = vmatpush1.msra.mxu0 %v3950
    %4675 = vmatprep.subr.mxu0 %v3948
    %4676 = vmatpush1.msra.mxu0 %v3947
    %4677 = vmatprep.subr.mxu0 %v3945
    %4678 = vmatpush1.msra.mxu0 %v3944
    %4679 = vmatprep.subr.mxu0 %v3942
    %4680 = vmatpush1.msra.mxu0 %v3941
    %4681 = vmatprep.subr.mxu0 %v3939
    %4682 = vmatpush1.msra.mxu0 %v3938
    %4683 = vmatprep.subr.mxu0 %v3936
    %4684 = vmatpush1.msra.mxu0 %v3935
    %4685 = vmatprep.subr.mxu0 %v3933
    %4686 = vmatpush1.msra.mxu0 %v3932
    %4687 = vmatprep.subr.mxu0 %v3930
    %4688 = vmatpush1.msra.mxu0 %v3929
    %4689 = vmatprep.subr.mxu0 %v3927
    %4690 = vmatpush1.msra.mxu0 %v3926
    %4691 = vmatprep.subr.mxu0 0.0
    %4692 = vmatpush2.msra.mxu0 0.0
    %4693 = vmatprep.subr.mxu0 0.0
    %4694 = vmatpush2.msra.mxu0 0.0
    %4695 = vmatprep.subr.mxu0 0.0
    %4696 = vmatpush2.msra.mxu0 0.0
    %4697 = vmatprep.subr.mxu0 0.0
    %4698 = vmatpush2.msra.mxu0 0.0
    %4699 = vmatprep.subr.mxu0 0.0
    %4700 = vmatpush2.msra.mxu0 0.0
    %4701 = vmatprep.subr.mxu0 0.0
    %4702 = vmatpush2.msra.mxu0 0.0
    %4703 = vmatprep.subr.mxu0 0.0
    %4704 = vmatpush2.msra.mxu0 0.0
    %4705 = vmatprep.subr.mxu0 0.0
    %4706 = vmatpush2.msra.mxu0 0.0
    %4707 = vmatprep.subr.mxu0 0.0
    %4708 = vmatpush2.msra.mxu0 0.0
    %4709 = vmatprep.subr.mxu0 0.0
    %4710 = vmatpush2.msra.mxu0 0.0
    %4711 = vmatprep.subr.mxu0 0.0
    %4712 = vmatpush2.msra.mxu0 0.0
    %4713 = vmatprep.subr.mxu0 0.0
    %4714 = vmatpush2.msra.mxu0 0.0
    %4715 = vmatprep.subr.mxu0 0.0
    %4716 = vmatpush2.msra.mxu0 0.0
    %4717 = vmatprep.subr.mxu0 0.0
    %4718 = vmatpush2.msra.mxu0 0.0
    %4719 = vmatprep.subr.mxu0 0.0
    %4720 = vmatpush2.msra.mxu0 0.0
    %4721 = vmatprep.subr.mxu0 0.0
    %4722 = vmatpush2.msra.mxu0 0.0
    %4723 = vmatprep.mubr.f32.mxu0 0.0
    %4724 = vmatmul.mubr.f32.gmra.mxu0 %v4657
    %v4725 = vpop.f32.mrf.mxu0
    %v4726 = vadd.f32 0.0, %v4725
    %v4727 = vpop.f32.mrf.mxu0
    %v4728 = vadd.f32 0.0, %v4727
    %4729 = vdwg.mxu0
    %4730 = vmatprep.subr.mxu0 0.0
    %4731 = vmatpush1.msra.mxu0 %v3973
    %4732 = vmatprep.subr.mxu0 0.0
    %4733 = vmatpush1.msra.mxu0 %v3970
    %4734 = vmatprep.subr.mxu0 0.0
    %4735 = vmatpush1.msra.mxu0 %v3967
    %4736 = vmatprep.subr.mxu0 0.0
    %4737 = vmatpush1.msra.mxu0 %v3964
    %4738 = vmatprep.subr.mxu0 0.0
    %4739 = vmatpush1.msra.mxu0 %v3961
    %4740 = vmatprep.subr.mxu0 0.0
    %4741 = vmatpush1.msra.mxu0 %v3958
    %4742 = vmatprep.subr.mxu0 0.0
    %4743 = vmatpush1.msra.mxu0 %v3955
    %4744 = vmatprep.subr.mxu0 0.0
    %4745 = vmatpush1.msra.mxu0 %v3952
    %4746 = vmatprep.subr.mxu0 0.0
    %4747 = vmatpush1.msra.mxu0 %v3949
    %4748 = vmatprep.subr.mxu0 0.0
    %4749 = vmatpush1.msra.mxu0 %v3946
    %4750 = vmatprep.subr.mxu0 0.0
    %4751 = vmatpush1.msra.mxu0 %v3943
    %4752 = vmatprep.subr.mxu0 0.0
    %4753 = vmatpush1.msra.mxu0 %v3940
    %4754 = vmatprep.subr.mxu0 0.0
    %4755 = vmatpush1.msra.mxu0 %v3937
    %4756 = vmatprep.subr.mxu0 0.0
    %4757 = vmatpush1.msra.mxu0 %v3934
    %4758 = vmatprep.subr.mxu0 0.0
    %4759 = vmatpush1.msra.mxu0 %v3931
    %4760 = vmatprep.subr.mxu0 0.0
    %4761 = vmatpush1.msra.mxu0 %v3928
    %4762 = vmatprep.subr.mxu0 0.0
    %4763 = vmatpush2.msra.mxu0 0.0
    %4764 = vmatprep.subr.mxu0 0.0
    %4765 = vmatpush2.msra.mxu0 0.0
    %4766 = vmatprep.subr.mxu0 0.0
    %4767 = vmatpush2.msra.mxu0 0.0
    %4768 = vmatprep.subr.mxu0 0.0
    %4769 = vmatpush2.msra.mxu0 0.0
    %4770 = vmatprep.subr.mxu0 0.0
    %4771 = vmatpush2.msra.mxu0 0.0
    %4772 = vmatprep.subr.mxu0 0.0
    %4773 = vmatpush2.msra.mxu0 0.0
    %4774 = vmatprep.subr.mxu0 0.0
    %4775 = vmatpush2.msra.mxu0 0.0
    %4776 = vmatprep.subr.mxu0 0.0
    %4777 = vmatpush2.msra.mxu0 0.0
    %4778 = vmatprep.subr.mxu0 0.0
    %4779 = vmatpush2.msra.mxu0 0.0
    %4780 = vmatprep.subr.mxu0 0.0
    %4781 = vmatpush2.msra.mxu0 0.0
    %4782 = vmatprep.subr.mxu0 0.0
    %4783 = vmatpush2.msra.mxu0 0.0
    %4784 = vmatprep.subr.mxu0 0.0
    %4785 = vmatpush2.msra.mxu0 0.0
    %4786 = vmatprep.subr.mxu0 0.0
    %4787 = vmatpush2.msra.mxu0 0.0
    %4788 = vmatprep.subr.mxu0 0.0
    %4789 = vmatpush2.msra.mxu0 0.0
    %4790 = vmatprep.subr.mxu0 0.0
    %4791 = vmatpush2.msra.mxu0 0.0
    %4792 = vmatprep.subr.mxu0 0.0
    %4793 = vmatpush2.msra.mxu0 0.0
    %4794 = vmatprep.mubr.f32.mxu0 0.0
    %4795 = vmatmul.mubr.f32.gmra.mxu0 %v4657
    %v4796 = vpop.f32.mrf.mxu0
    %v4797 = vadd.f32 0.0, %v4796
    %v4798 = vpop.f32.mrf.mxu0
    %4799 = vdwg.mxu0
    %v4801 = vrot.slane %v4726, 2
    %v4803 = vadd.f32 %v3841, %v4801
    %v4804 = vxor.u32 %v4803, 2147483648
    %v4805 = vmul.f32 %v4804, 1.442695
    %v4806 = vpow.pop %v4805
    %v4807 = vadd.f32 %v4806, 1.0
    %v4808 = vrcp.pop %v4807
    %v4809 = vmul.f32 1.0, %v4808
    %v4811 = vrot.slane %v4728, 2
    %v4813 = vadd.f32 %v3843, %v4811
    %v4814 = vxor.u32 %v4813, 2147483648
    %v4815 = vmul.f32 %v4814, 1.442695
    %v4816 = vpow.pop %v4815
    %v4817 = vadd.f32 %v4816, 1.0
    %v4818 = vrcp.pop %v4817
    %v4819 = vmul.f32 1.0, %v4818
    %v4820 = vadd.f32 %v4797, %v3979
    %v4822 = vrot.slane %v4820, 2
    %v4824 = vmul.f32 %v4809, %v4822
    %v4825 = vadd.f32 %v3918, %v4824
    %v4826 = vtanh.pop %v4825
    %v4828 = vrot.slane %v4826, 2
    %v4830 = vsub.f32 %v4654, %v4828
    %v4832 = vrot.slane %v4830, 6
    %v4834 = vmul.f32 %v4819, %v4832
    %v4835 = vadd.f32 %v4826, %v4834
    %4836 = vst [vmem:[#allocation2] sm:$0xc0] %v4835
    %v4838 = vrot.slane %v4835, 6
    %4840 = vmatprep.subr.mxu0 %v3972
    %4841 = vmatpush1.msra.mxu0 %v3971
    %4842 = vmatprep.subr.mxu0 %v3969
    %4843 = vmatpush1.msra.mxu0 %v3968
    %4844 = vmatprep.subr.mxu0 %v3966
    %4845 = vmatpush1.msra.mxu0 %v3965
    %4846 = vmatprep.subr.mxu0 %v3963
    %4847 = vmatpush1.msra.mxu0 %v3962
    %4848 = vmatprep.subr.mxu0 %v3960
    %4849 = vmatpush1.msra.mxu0 %v3959
    %4850 = vmatprep.subr.mxu0 %v3957
    %4851 = vmatpush1.msra.mxu0 %v3956
    %4852 = vmatprep.subr.mxu0 %v3954
    %4853 = vmatpush1.msra.mxu0 %v3953
    %4854 = vmatprep.subr.mxu0 %v3951
    %4855 = vmatpush1.msra.mxu0 %v3950
    %4856 = vmatprep.subr.mxu0 %v3948
    %4857 = vmatpush1.msra.mxu0 %v3947
    %4858 = vmatprep.subr.mxu0 %v3945
    %4859 = vmatpush1.msra.mxu0 %v3944
    %4860 = vmatprep.subr.mxu0 %v3942
    %4861 = vmatpush1.msra.mxu0 %v3941
    %4862 = vmatprep.subr.mxu0 %v3939
    %4863 = vmatpush1.msra.mxu0 %v3938
    %4864 = vmatprep.subr.mxu0 %v3936
    %4865 = vmatpush1.msra.mxu0 %v3935
    %4866 = vmatprep.subr.mxu0 %v3933
    %4867 = vmatpush1.msra.mxu0 %v3932
    %4868 = vmatprep.subr.mxu0 %v3930
    %4869 = vmatpush1.msra.mxu0 %v3929
    %4870 = vmatprep.subr.mxu0 %v3927
    %4871 = vmatpush1.msra.mxu0 %v3926
    %4872 = vmatprep.subr.mxu0 0.0
    %4873 = vmatpush2.msra.mxu0 0.0
    %4874 = vmatprep.subr.mxu0 0.0
    %4875 = vmatpush2.msra.mxu0 0.0
    %4876 = vmatprep.subr.mxu0 0.0
    %4877 = vmatpush2.msra.mxu0 0.0
    %4878 = vmatprep.subr.mxu0 0.0
    %4879 = vmatpush2.msra.mxu0 0.0
    %4880 = vmatprep.subr.mxu0 0.0
    %4881 = vmatpush2.msra.mxu0 0.0
    %4882 = vmatprep.subr.mxu0 0.0
    %4883 = vmatpush2.msra.mxu0 0.0
    %4884 = vmatprep.subr.mxu0 0.0
    %4885 = vmatpush2.msra.mxu0 0.0
    %4886 = vmatprep.subr.mxu0 0.0
    %4887 = vmatpush2.msra.mxu0 0.0
    %4888 = vmatprep.subr.mxu0 0.0
    %4889 = vmatpush2.msra.mxu0 0.0
    %4890 = vmatprep.subr.mxu0 0.0
    %4891 = vmatpush2.msra.mxu0 0.0
    %4892 = vmatprep.subr.mxu0 0.0
    %4893 = vmatpush2.msra.mxu0 0.0
    %4894 = vmatprep.subr.mxu0 0.0
    %4895 = vmatpush2.msra.mxu0 0.0
    %4896 = vmatprep.subr.mxu0 0.0
    %4897 = vmatpush2.msra.mxu0 0.0
    %4898 = vmatprep.subr.mxu0 0.0
    %4899 = vmatpush2.msra.mxu0 0.0
    %4900 = vmatprep.subr.mxu0 0.0
    %4901 = vmatpush2.msra.mxu0 0.0
    %4902 = vmatprep.subr.mxu0 0.0
    %4903 = vmatpush2.msra.mxu0 0.0
    %4904 = vmatprep.mubr.f32.mxu0 0.0
    %4905 = vmatmul.mubr.f32.gmra.mxu0 %v4838
    %v4906 = vpop.f32.mrf.mxu0
    %v4907 = vadd.f32 0.0, %v4906
    %v4908 = vpop.f32.mrf.mxu0
    %v4909 = vadd.f32 0.0, %v4908
    %4910 = vdwg.mxu0
    %4911 = vmatprep.subr.mxu0 0.0
    %4912 = vmatpush1.msra.mxu0 %v3973
    %4913 = vmatprep.subr.mxu0 0.0
    %4914 = vmatpush1.msra.mxu0 %v3970
    %4915 = vmatprep.subr.mxu0 0.0
    %4916 = vmatpush1.msra.mxu0 %v3967
    %4917 = vmatprep.subr.mxu0 0.0
    %4918 = vmatpush1.msra.mxu0 %v3964
    %4919 = vmatprep.subr.mxu0 0.0
    %4920 = vmatpush1.msra.mxu0 %v3961
    %4921 = vmatprep.subr.mxu0 0.0
    %4922 = vmatpush1.msra.mxu0 %v3958
    %4923 = vmatprep.subr.mxu0 0.0
    %4924 = vmatpush1.msra.mxu0 %v3955
    %4925 = vmatprep.subr.mxu0 0.0
    %4926 = vmatpush1.msra.mxu0 %v3952
    %4927 = vmatprep.subr.mxu0 0.0
    %4928 = vmatpush1.msra.mxu0 %v3949
    %4929 = vmatprep.subr.mxu0 0.0
    %4930 = vmatpush1.msra.mxu0 %v3946
    %4931 = vmatprep.subr.mxu0 0.0
    %4932 = vmatpush1.msra.mxu0 %v3943
    %4933 = vmatprep.subr.mxu0 0.0
    %4934 = vmatpush1.msra.mxu0 %v3940
    %4935 = vmatprep.subr.mxu0 0.0
    %4936 = vmatpush1.msra.mxu0 %v3937
    %4937 = vmatprep.subr.mxu0 0.0
    %4938 = vmatpush1.msra.mxu0 %v3934
    %4939 = vmatprep.subr.mxu0 0.0
    %4940 = vmatpush1.msra.mxu0 %v3931
    %4941 = vmatprep.subr.mxu0 0.0
    %4942 = vmatpush1.msra.mxu0 %v3928
    %4943 = vmatprep.subr.mxu0 0.0
    %4944 = vmatpush2.msra.mxu0 0.0
    %4945 = vmatprep.subr.mxu0 0.0
    %4946 = vmatpush2.msra.mxu0 0.0
    %4947 = vmatprep.subr.mxu0 0.0
    %4948 = vmatpush2.msra.mxu0 0.0
    %4949 = vmatprep.subr.mxu0 0.0
    %4950 = vmatpush2.msra.mxu0 0.0
    %4951 = vmatprep.subr.mxu0 0.0
    %4952 = vmatpush2.msra.mxu0 0.0
    %4953 = vmatprep.subr.mxu0 0.0
    %4954 = vmatpush2.msra.mxu0 0.0
    %4955 = vmatprep.subr.mxu0 0.0
    %4956 = vmatpush2.msra.mxu0 0.0
    %4957 = vmatprep.subr.mxu0 0.0
    %4958 = vmatpush2.msra.mxu0 0.0
    %4959 = vmatprep.subr.mxu0 0.0
    %4960 = vmatpush2.msra.mxu0 0.0
    %4961 = vmatprep.subr.mxu0 0.0
    %4962 = vmatpush2.msra.mxu0 0.0
    %4963 = vmatprep.subr.mxu0 0.0
    %4964 = vmatpush2.msra.mxu0 0.0
    %4965 = vmatprep.subr.mxu0 0.0
    %4966 = vmatpush2.msra.mxu0 0.0
    %4967 = vmatprep.subr.mxu0 0.0
    %4968 = vmatpush2.msra.mxu0 0.0
    %4969 = vmatprep.subr.mxu0 0.0
    %4970 = vmatpush2.msra.mxu0 0.0
    %4971 = vmatprep.subr.mxu0 0.0
    %4972 = vmatpush2.msra.mxu0 0.0
    %4973 = vmatprep.subr.mxu0 0.0
    %4974 = vmatpush2.msra.mxu0 0.0
    %4975 = vmatprep.mubr.f32.mxu0 0.0
    %4976 = vmatmul.mubr.f32.gmra.mxu0 %v4838
    %v4977 = vpop.f32.mrf.mxu0
    %v4978 = vadd.f32 0.0, %v4977
    %v4979 = vpop.f32.mrf.mxu0
    %4980 = vdwg.mxu0
    %v4981 = vadd.f32 %v3847, %v4907
    %v4982 = vxor.u32 %v4981, 2147483648
    %v4983 = vmul.f32 %v4982, 1.442695
    %v4984 = vpow.pop %v4983
    %v4985 = vadd.f32 %v4984, 1.0
    %v4986 = vrcp.pop %v4985
    %v4987 = vmul.f32 1.0, %v4986
    %v4988 = vadd.f32 %v3849, %v4909
    %v4989 = vxor.u32 %v4988, 2147483648
    %v4990 = vmul.f32 %v4989, 1.442695
    %v4991 = vpow.pop %v4990
    %v4992 = vadd.f32 %v4991, 1.0
    %v4993 = vrcp.pop %v4992
    %v4994 = vmul.f32 1.0, %v4993
    %v4995 = vadd.f32 %v4978, %v3979
    %v4996 = vmul.f32 %v4987, %v4995
    %v4997 = vadd.f32 %v3923, %v4996
    %v4998 = vtanh.pop %v4997
    %v5000 = vrot.slane %v4998, 2
    %v5002 = vsub.f32 %v4835, %v5000
    %v5004 = vrot.slane %v5002, 6
    %v5006 = vmul.f32 %v4994, %v5004
    %v5007 = vadd.f32 %v4998, %v5006
    %5008 = vst [vmem:[#allocation2 + $0x8] sm:$0x3] %v5007
    %5009 = vmatprep.subr.mxu0 %v3972
    %5010 = vmatpush1.msra.mxu0 %v3971
    %5011 = vmatprep.subr.mxu0 %v3969
    %5012 = vmatpush1.msra.mxu0 %v3968
    %5013 = vmatprep.subr.mxu0 %v3966
    %5014 = vmatpush1.msra.mxu0 %v3965
    %5015 = vmatprep.subr.mxu0 %v3963
    %5016 = vmatpush1.msra.mxu0 %v3962
    %5017 = vmatprep.subr.mxu0 %v3960
    %5018 = vmatpush1.msra.mxu0 %v3959
    %5019 = vmatprep.subr.mxu0 %v3957
    %5020 = vmatpush1.msra.mxu0 %v3956
    %5021 = vmatprep.subr.mxu0 %v3954
    %5022 = vmatpush1.msra.mxu0 %v3953
    %5023 = vmatprep.subr.mxu0 %v3951
    %5024 = vmatpush1.msra.mxu0 %v3950
    %5025 = vmatprep.subr.mxu0 %v3948
    %5026 = vmatpush1.msra.mxu0 %v3947
    %5027 = vmatprep.subr.mxu0 %v3945
    %5028 = vmatpush1.msra.mxu0 %v3944
    %5029 = vmatprep.subr.mxu0 %v3942
    %5030 = vmatpush1.msra.mxu0 %v3941
    %5031 = vmatprep.subr.mxu0 %v3939
    %5032 = vmatpush1.msra.mxu0 %v3938
    %5033 = vmatprep.subr.mxu0 %v3936
    %5034 = vmatpush1.msra.mxu0 %v3935
    %5035 = vmatprep.subr.mxu0 %v3933
    %5036 = vmatpush1.msra.mxu0 %v3932
    %5037 = vmatprep.subr.mxu0 %v3930
    %5038 = vmatpush1.msra.mxu0 %v3929
    %5039 = vmatprep.subr.mxu0 %v3927
    %5040 = vmatpush1.msra.mxu0 %v3926
    %5041 = vmatprep.subr.mxu0 0.0
    %5042 = vmatpush2.msra.mxu0 0.0
    %5043 = vmatprep.subr.mxu0 0.0
    %5044 = vmatpush2.msra.mxu0 0.0
    %5045 = vmatprep.subr.mxu0 0.0
    %5046 = vmatpush2.msra.mxu0 0.0
    %5047 = vmatprep.subr.mxu0 0.0
    %5048 = vmatpush2.msra.mxu0 0.0
    %5049 = vmatprep.subr.mxu0 0.0
    %5050 = vmatpush2.msra.mxu0 0.0
    %5051 = vmatprep.subr.mxu0 0.0
    %5052 = vmatpush2.msra.mxu0 0.0
    %5053 = vmatprep.subr.mxu0 0.0
    %5054 = vmatpush2.msra.mxu0 0.0
    %5055 = vmatprep.subr.mxu0 0.0
    %5056 = vmatpush2.msra.mxu0 0.0
    %5057 = vmatprep.subr.mxu0 0.0
    %5058 = vmatpush2.msra.mxu0 0.0
    %5059 = vmatprep.subr.mxu0 0.0
    %5060 = vmatpush2.msra.mxu0 0.0
    %5061 = vmatprep.subr.mxu0 0.0
    %5062 = vmatpush2.msra.mxu0 0.0
    %5063 = vmatprep.subr.mxu0 0.0
    %5064 = vmatpush2.msra.mxu0 0.0
    %5065 = vmatprep.subr.mxu0 0.0
    %5066 = vmatpush2.msra.mxu0 0.0
    %5067 = vmatprep.subr.mxu0 0.0
    %5068 = vmatpush2.msra.mxu0 0.0
    %5069 = vmatprep.subr.mxu0 0.0
    %5070 = vmatpush2.msra.mxu0 0.0
    %5071 = vmatprep.subr.mxu0 0.0
    %5072 = vmatpush2.msra.mxu0 0.0
    %5073 = vmatprep.mubr.f32.mxu0 0.0
    %5074 = vmatmul.mubr.f32.gmra.mxu0 %v5007
    %v5075 = vpop.f32.mrf.mxu0
    %v5076 = vadd.f32 0.0, %v5075
    %v5077 = vpop.f32.mrf.mxu0
    %v5078 = vadd.f32 0.0, %v5077
    %5079 = vdwg.mxu0
    %5080 = vmatprep.subr.mxu0 0.0
    %5081 = vmatpush1.msra.mxu0 %v3973
    %5082 = vmatprep.subr.mxu0 0.0
    %5083 = vmatpush1.msra.mxu0 %v3970
    %5084 = vmatprep.subr.mxu0 0.0
    %5085 = vmatpush1.msra.mxu0 %v3967
    %5086 = vmatprep.subr.mxu0 0.0
    %5087 = vmatpush1.msra.mxu0 %v3964
    %5088 = vmatprep.subr.mxu0 0.0
    %5089 = vmatpush1.msra.mxu0 %v3961
    %5090 = vmatprep.subr.mxu0 0.0
    %5091 = vmatpush1.msra.mxu0 %v3958
    %5092 = vmatprep.subr.mxu0 0.0
    %5093 = vmatpush1.msra.mxu0 %v3955
    %5094 = vmatprep.subr.mxu0 0.0
    %5095 = vmatpush1.msra.mxu0 %v3952
    %5096 = vmatprep.subr.mxu0 0.0
    %5097 = vmatpush1.msra.mxu0 %v3949
    %5098 = vmatprep.subr.mxu0 0.0
    %5099 = vmatpush1.msra.mxu0 %v3946
    %5100 = vmatprep.subr.mxu0 0.0
    %5101 = vmatpush1.msra.mxu0 %v3943
    %5102 = vmatprep.subr.mxu0 0.0
    %5103 = vmatpush1.msra.mxu0 %v3940
    %5104 = vmatprep.subr.mxu0 0.0
    %5105 = vmatpush1.msra.mxu0 %v3937
    %5106 = vmatprep.subr.mxu0 0.0
    %5107 = vmatpush1.msra.mxu0 %v3934
    %5108 = vmatprep.subr.mxu0 0.0
    %5109 = vmatpush1.msra.mxu0 %v3931
    %5110 = vmatprep.subr.mxu0 0.0
    %5111 = vmatpush1.msra.mxu0 %v3928
    %5112 = vmatprep.subr.mxu0 0.0
    %5113 = vmatpush2.msra.mxu0 0.0
    %5114 = vmatprep.subr.mxu0 0.0
    %5115 = vmatpush2.msra.mxu0 0.0
    %5116 = vmatprep.subr.mxu0 0.0
    %5117 = vmatpush2.msra.mxu0 0.0
    %5118 = vmatprep.subr.mxu0 0.0
    %5119 = vmatpush2.msra.mxu0 0.0
    %5120 = vmatprep.subr.mxu0 0.0
    %5121 = vmatpush2.msra.mxu0 0.0
    %5122 = vmatprep.subr.mxu0 0.0
    %5123 = vmatpush2.msra.mxu0 0.0
    %5124 = vmatprep.subr.mxu0 0.0
    %5125 = vmatpush2.msra.mxu0 0.0
    %5126 = vmatprep.subr.mxu0 0.0
    %5127 = vmatpush2.msra.mxu0 0.0
    %5128 = vmatprep.subr.mxu0 0.0
    %5129 = vmatpush2.msra.mxu0 0.0
    %5130 = vmatprep.subr.mxu0 0.0
    %5131 = vmatpush2.msra.mxu0 0.0
    %5132 = vmatprep.subr.mxu0 0.0
    %5133 = vmatpush2.msra.mxu0 0.0
    %5134 = vmatprep.subr.mxu0 0.0
    %5135 = vmatpush2.msra.mxu0 0.0
    %5136 = vmatprep.subr.mxu0 0.0
    %5137 = vmatpush2.msra.mxu0 0.0
    %5138 = vmatprep.subr.mxu0 0.0
    %5139 = vmatpush2.msra.mxu0 0.0
    %5140 = vmatprep.subr.mxu0 0.0
    %5141 = vmatpush2.msra.mxu0 0.0
    %5142 = vmatprep.subr.mxu0 0.0
    %5143 = vmatpush2.msra.mxu0 0.0
    %5144 = vmatprep.mubr.f32.mxu0 0.0
    %5145 = vmatmul.mubr.f32.gmra.mxu0 %v5007
    %v5146 = vpop.f32.mrf.mxu0
    %v5147 = vadd.f32 0.0, %v5146
    %v5148 = vpop.f32.mrf.mxu0
    %5149 = vdwg.mxu0
    %v5151 = vrot.slane %v5076, 6
    %v5153 = vadd.f32 %v3847, %v5151
    %v5154 = vxor.u32 %v5153, 2147483648
    %v5155 = vmul.f32 %v5154, 1.442695
    %v5156 = vpow.pop %v5155
    %v5157 = vadd.f32 %v5156, 1.0
    %v5158 = vrcp.pop %v5157
    %v5159 = vmul.f32 1.0, %v5158
    %v5161 = vrot.slane %v5078, 6
    %v5163 = vadd.f32 %v3849, %v5161
    %v5164 = vxor.u32 %v5163, 2147483648
    %v5165 = vmul.f32 %v5164, 1.442695
    %v5166 = vpow.pop %v5165
    %v5167 = vadd.f32 %v5166, 1.0
    %v5168 = vrcp.pop %v5167
    %v5169 = vmul.f32 1.0, %v5168
    %v5170 = vadd.f32 %v5147, %v3979
    %v5172 = vrot.slane %v5170, 6
    %v5174 = vmul.f32 %v5159, %v5172
    %v5175 = vadd.f32 %v3923, %v5174
    %v5176 = vtanh.pop %v5175
    %v5178 = vrot.slane %v5176, 2
    %v5180 = vsub.f32 %v5007, %v5178
    %v5182 = vrot.slane %v5180, 6
    %v5184 = vmul.f32 %v5169, %v5182
    %v5185 = vadd.f32 %v5176, %v5184
    %5186 = vst [vmem:[#allocation2 + $0x8] sm:$0xc] %v5185
    %v5188 = vrot.slane %v5185, 2
    %5190 = vmatprep.subr.mxu0 %v3972
    %5191 = vmatpush1.msra.mxu0 %v3971
    %5192 = vmatprep.subr.mxu0 %v3969
    %5193 = vmatpush1.msra.mxu0 %v3968
    %5194 = vmatprep.subr.mxu0 %v3966
    %5195 = vmatpush1.msra.mxu0 %v3965
    %5196 = vmatprep.subr.mxu0 %v3963
    %5197 = vmatpush1.msra.mxu0 %v3962
    %5198 = vmatprep.subr.mxu0 %v3960
    %5199 = vmatpush1.msra.mxu0 %v3959
    %5200 = vmatprep.subr.mxu0 %v3957
    %5201 = vmatpush1.msra.mxu0 %v3956
    %5202 = vmatprep.subr.mxu0 %v3954
    %5203 = vmatpush1.msra.mxu0 %v3953
    %5204 = vmatprep.subr.mxu0 %v3951
    %5205 = vmatpush1.msra.mxu0 %v3950
    %5206 = vmatprep.subr.mxu0 %v3948
    %5207 = vmatpush1.msra.mxu0 %v3947
    %5208 = vmatprep.subr.mxu0 %v3945
    %5209 = vmatpush1.msra.mxu0 %v3944
    %5210 = vmatprep.subr.mxu0 %v3942
    %5211 = vmatpush1.msra.mxu0 %v3941
    %5212 = vmatprep.subr.mxu0 %v3939
    %5213 = vmatpush1.msra.mxu0 %v3938
    %5214 = vmatprep.subr.mxu0 %v3936
    %5215 = vmatpush1.msra.mxu0 %v3935
    %5216 = vmatprep.subr.mxu0 %v3933
    %5217 = vmatpush1.msra.mxu0 %v3932
    %5218 = vmatprep.subr.mxu0 %v3930
    %5219 = vmatpush1.msra.mxu0 %v3929
    %5220 = vmatprep.subr.mxu0 %v3927
    %5221 = vmatpush1.msra.mxu0 %v3926
    %5222 = vmatprep.subr.mxu0 0.0
    %5223 = vmatpush2.msra.mxu0 0.0
    %5224 = vmatprep.subr.mxu0 0.0
    %5225 = vmatpush2.msra.mxu0 0.0
    %5226 = vmatprep.subr.mxu0 0.0
    %5227 = vmatpush2.msra.mxu0 0.0
    %5228 = vmatprep.subr.mxu0 0.0
    %5229 = vmatpush2.msra.mxu0 0.0
    %5230 = vmatprep.subr.mxu0 0.0
    %5231 = vmatpush2.msra.mxu0 0.0
    %5232 = vmatprep.subr.mxu0 0.0
    %5233 = vmatpush2.msra.mxu0 0.0
    %5234 = vmatprep.subr.mxu0 0.0
    %5235 = vmatpush2.msra.mxu0 0.0
    %5236 = vmatprep.subr.mxu0 0.0
    %5237 = vmatpush2.msra.mxu0 0.0
    %5238 = vmatprep.subr.mxu0 0.0
    %5239 = vmatpush2.msra.mxu0 0.0
    %5240 = vmatprep.subr.mxu0 0.0
    %5241 = vmatpush2.msra.mxu0 0.0
    %5242 = vmatprep.subr.mxu0 0.0
    %5243 = vmatpush2.msra.mxu0 0.0
    %5244 = vmatprep.subr.mxu0 0.0
    %5245 = vmatpush2.msra.mxu0 0.0
    %5246 = vmatprep.subr.mxu0 0.0
    %5247 = vmatpush2.msra.mxu0 0.0
    %5248 = vmatprep.subr.mxu0 0.0
    %5249 = vmatpush2.msra.mxu0 0.0
    %5250 = vmatprep.subr.mxu0 0.0
    %5251 = vmatpush2.msra.mxu0 0.0
    %5252 = vmatprep.subr.mxu0 0.0
    %5253 = vmatpush2.msra.mxu0 0.0
    %5254 = vmatprep.mubr.f32.mxu0 0.0
    %5255 = vmatmul.mubr.f32.gmra.mxu0 %v5188
    %v5256 = vpop.f32.mrf.mxu0
    %v5257 = vadd.f32 0.0, %v5256
    %v5258 = vpop.f32.mrf.mxu0
    %v5259 = vadd.f32 0.0, %v5258
    %5260 = vdwg.mxu0
    %5261 = vmatprep.subr.mxu0 0.0
    %5262 = vmatpush1.msra.mxu0 %v3973
    %5263 = vmatprep.subr.mxu0 0.0
    %5264 = vmatpush1.msra.mxu0 %v3970
    %5265 = vmatprep.subr.mxu0 0.0
    %5266 = vmatpush1.msra.mxu0 %v3967
    %5267 = vmatprep.subr.mxu0 0.0
    %5268 = vmatpush1.msra.mxu0 %v3964
    %5269 = vmatprep.subr.mxu0 0.0
    %5270 = vmatpush1.msra.mxu0 %v3961
    %5271 = vmatprep.subr.mxu0 0.0
    %5272 = vmatpush1.msra.mxu0 %v3958
    %5273 = vmatprep.subr.mxu0 0.0
    %5274 = vmatpush1.msra.mxu0 %v3955
    %5275 = vmatprep.subr.mxu0 0.0
    %5276 = vmatpush1.msra.mxu0 %v3952
    %5277 = vmatprep.subr.mxu0 0.0
    %5278 = vmatpush1.msra.mxu0 %v3949
    %5279 = vmatprep.subr.mxu0 0.0
    %5280 = vmatpush1.msra.mxu0 %v3946
    %5281 = vmatprep.subr.mxu0 0.0
    %5282 = vmatpush1.msra.mxu0 %v3943
    %5283 = vmatprep.subr.mxu0 0.0
    %5284 = vmatpush1.msra.mxu0 %v3940
    %5285 = vmatprep.subr.mxu0 0.0
    %5286 = vmatpush1.msra.mxu0 %v3937
    %5287 = vmatprep.subr.mxu0 0.0
    %5288 = vmatpush1.msra.mxu0 %v3934
    %5289 = vmatprep.subr.mxu0 0.0
    %5290 = vmatpush1.msra.mxu0 %v3931
    %5291 = vmatprep.subr.mxu0 0.0
    %5292 = vmatpush1.msra.mxu0 %v3928
    %5293 = vmatprep.subr.mxu0 0.0
    %5294 = vmatpush2.msra.mxu0 0.0
    %5295 = vmatprep.subr.mxu0 0.0
    %5296 = vmatpush2.msra.mxu0 0.0
    %5297 = vmatprep.subr.mxu0 0.0
    %5298 = vmatpush2.msra.mxu0 0.0
    %5299 = vmatprep.subr.mxu0 0.0
    %5300 = vmatpush2.msra.mxu0 0.0
    %5301 = vmatprep.subr.mxu0 0.0
    %5302 = vmatpush2.msra.mxu0 0.0
    %5303 = vmatprep.subr.mxu0 0.0
    %5304 = vmatpush2.msra.mxu0 0.0
    %5305 = vmatprep.subr.mxu0 0.0
    %5306 = vmatpush2.msra.mxu0 0.0
    %5307 = vmatprep.subr.mxu0 0.0
    %5308 = vmatpush2.msra.mxu0 0.0
    %5309 = vmatprep.subr.mxu0 0.0
    %5310 = vmatpush2.msra.mxu0 0.0
    %5311 = vmatprep.subr.mxu0 0.0
    %5312 = vmatpush2.msra.mxu0 0.0
    %5313 = vmatprep.subr.mxu0 0.0
    %5314 = vmatpush2.msra.mxu0 0.0
    %5315 = vmatprep.subr.mxu0 0.0
    %5316 = vmatpush2.msra.mxu0 0.0
    %5317 = vmatprep.subr.mxu0 0.0
    %5318 = vmatpush2.msra.mxu0 0.0
    %5319 = vmatprep.subr.mxu0 0.0
    %5320 = vmatpush2.msra.mxu0 0.0
    %5321 = vmatprep.subr.mxu0 0.0
    %5322 = vmatpush2.msra.mxu0 0.0
    %5323 = vmatprep.subr.mxu0 0.0
    %5324 = vmatpush2.msra.mxu0 0.0
    %5325 = vmatprep.mubr.f32.mxu0 0.0
    %5326 = vmatmul.mubr.f32.gmra.mxu0 %v5188
    %v5327 = vpop.f32.mrf.mxu0
    %v5328 = vadd.f32 0.0, %v5327
    %v5329 = vpop.f32.mrf.mxu0
    %5330 = vdwg.mxu0
    %v5332 = vrot.slane %v5257, 4
    %v5334 = vadd.f32 %v3847, %v5332
    %v5335 = vxor.u32 %v5334, 2147483648
    %v5336 = vmul.f32 %v5335, 1.442695
    %v5337 = vpow.pop %v5336
    %v5338 = vadd.f32 %v5337, 1.0
    %v5339 = vrcp.pop %v5338
    %v5340 = vmul.f32 1.0, %v5339
    %v5342 = vrot.slane %v5259, 4
    %v5344 = vadd.f32 %v3849, %v5342
    %v5345 = vxor.u32 %v5344, 2147483648
    %v5346 = vmul.f32 %v5345, 1.442695
    %v5347 = vpow.pop %v5346
    %v5348 = vadd.f32 %v5347, 1.0
    %v5349 = vrcp.pop %v5348
    %v5350 = vmul.f32 1.0, %v5349
    %v5351 = vadd.f32 %v5328, %v3979
    %v5353 = vrot.slane %v5351, 4
    %v5355 = vmul.f32 %v5340, %v5353
    %v5356 = vadd.f32 %v3923, %v5355
    %v5357 = vtanh.pop %v5356
    %v5359 = vrot.slane %v5357, 2
    %v5361 = vsub.f32 %v5185, %v5359
    %v5363 = vrot.slane %v5361, 6
    %v5365 = vmul.f32 %v5350, %v5363
    %v5366 = vadd.f32 %v5357, %v5365
    %5367 = vst [vmem:[#allocation2 + $0x8] sm:$0x30] %v5366
    %v5369 = vrot.slane %v5366, 4
    %5371 = vmatprep.subr.mxu0 %v3972
    %5372 = vmatpush1.msra.mxu0 %v3971
    %5373 = vmatprep.subr.mxu0 %v3969
    %5374 = vmatpush1.msra.mxu0 %v3968
    %5375 = vmatprep.subr.mxu0 %v3966
    %5376 = vmatpush1.msra.mxu0 %v3965
    %5377 = vmatprep.subr.mxu0 %v3963
    %5378 = vmatpush1.msra.mxu0 %v3962
    %5379 = vmatprep.subr.mxu0 %v3960
    %5380 = vmatpush1.msra.mxu0 %v3959
    %5381 = vmatprep.subr.mxu0 %v3957
    %5382 = vmatpush1.msra.mxu0 %v3956
    %5383 = vmatprep.subr.mxu0 %v3954
    %5384 = vmatpush1.msra.mxu0 %v3953
    %5385 = vmatprep.subr.mxu0 %v3951
    %5386 = vmatpush1.msra.mxu0 %v3950
    %5387 = vmatprep.subr.mxu0 %v3948
    %5388 = vmatpush1.msra.mxu0 %v3947
    %5389 = vmatprep.subr.mxu0 %v3945
    %5390 = vmatpush1.msra.mxu0 %v3944
    %5391 = vmatprep.subr.mxu0 %v3942
    %5392 = vmatpush1.msra.mxu0 %v3941
    %5393 = vmatprep.subr.mxu0 %v3939
    %5394 = vmatpush1.msra.mxu0 %v3938
    %5395 = vmatprep.subr.mxu0 %v3936
    %5396 = vmatpush1.msra.mxu0 %v3935
    %5397 = vmatprep.subr.mxu0 %v3933
    %5398 = vmatpush1.msra.mxu0 %v3932
    %5399 = vmatprep.subr.mxu0 %v3930
    %5400 = vmatpush1.msra.mxu0 %v3929
    %5401 = vmatprep.subr.mxu0 %v3927
    %5402 = vmatpush1.msra.mxu0 %v3926
    %5403 = vmatprep.subr.mxu0 0.0
    %5404 = vmatpush2.msra.mxu0 0.0
    %5405 = vmatprep.subr.mxu0 0.0
    %5406 = vmatpush2.msra.mxu0 0.0
    %5407 = vmatprep.subr.mxu0 0.0
    %5408 = vmatpush2.msra.mxu0 0.0
    %5409 = vmatprep.subr.mxu0 0.0
    %5410 = vmatpush2.msra.mxu0 0.0
    %5411 = vmatprep.subr.mxu0 0.0
    %5412 = vmatpush2.msra.mxu0 0.0
    %5413 = vmatprep.subr.mxu0 0.0
    %5414 = vmatpush2.msra.mxu0 0.0
    %5415 = vmatprep.subr.mxu0 0.0
    %5416 = vmatpush2.msra.mxu0 0.0
    %5417 = vmatprep.subr.mxu0 0.0
    %5418 = vmatpush2.msra.mxu0 0.0
    %5419 = vmatprep.subr.mxu0 0.0
    %5420 = vmatpush2.msra.mxu0 0.0
    %5421 = vmatprep.subr.mxu0 0.0
    %5422 = vmatpush2.msra.mxu0 0.0
    %5423 = vmatprep.subr.mxu0 0.0
    %5424 = vmatpush2.msra.mxu0 0.0
    %5425 = vmatprep.subr.mxu0 0.0
    %5426 = vmatpush2.msra.mxu0 0.0
    %5427 = vmatprep.subr.mxu0 0.0
    %5428 = vmatpush2.msra.mxu0 0.0
    %5429 = vmatprep.subr.mxu0 0.0
    %5430 = vmatpush2.msra.mxu0 0.0
    %5431 = vmatprep.subr.mxu0 0.0
    %5432 = vmatpush2.msra.mxu0 0.0
    %5433 = vmatprep.subr.mxu0 0.0
    %5434 = vmatpush2.msra.mxu0 0.0
    %5435 = vmatprep.mubr.f32.mxu0 0.0
    %5436 = vmatmul.mubr.f32.gmra.mxu0 %v5369
    %v5437 = vpop.f32.mrf.mxu0
    %v5438 = vadd.f32 0.0, %v5437
    %v5439 = vpop.f32.mrf.mxu0
    %v5440 = vadd.f32 0.0, %v5439
    %5441 = vdwg.mxu0
    %5442 = vmatprep.subr.mxu0 0.0
    %5443 = vmatpush1.msra.mxu0 %v3973
    %5444 = vmatprep.subr.mxu0 0.0
    %5445 = vmatpush1.msra.mxu0 %v3970
    %5446 = vmatprep.subr.mxu0 0.0
    %5447 = vmatpush1.msra.mxu0 %v3967
    %5448 = vmatprep.subr.mxu0 0.0
    %5449 = vmatpush1.msra.mxu0 %v3964
    %5450 = vmatprep.subr.mxu0 0.0
    %5451 = vmatpush1.msra.mxu0 %v3961
    %5452 = vmatprep.subr.mxu0 0.0
    %5453 = vmatpush1.msra.mxu0 %v3958
    %5454 = vmatprep.subr.mxu0 0.0
    %5455 = vmatpush1.msra.mxu0 %v3955
    %5456 = vmatprep.subr.mxu0 0.0
    %5457 = vmatpush1.msra.mxu0 %v3952
    %5458 = vmatprep.subr.mxu0 0.0
    %5459 = vmatpush1.msra.mxu0 %v3949
    %5460 = vmatprep.subr.mxu0 0.0
    %5461 = vmatpush1.msra.mxu0 %v3946
    %5462 = vmatprep.subr.mxu0 0.0
    %5463 = vmatpush1.msra.mxu0 %v3943
    %5464 = vmatprep.subr.mxu0 0.0
    %5465 = vmatpush1.msra.mxu0 %v3940
    %5466 = vmatprep.subr.mxu0 0.0
    %5467 = vmatpush1.msra.mxu0 %v3937
    %5468 = vmatprep.subr.mxu0 0.0
    %5469 = vmatpush1.msra.mxu0 %v3934
    %5470 = vmatprep.subr.mxu0 0.0
    %5471 = vmatpush1.msra.mxu0 %v3931
    %5472 = vmatprep.subr.mxu0 0.0
    %5473 = vmatpush1.msra.mxu0 %v3928
    %5474 = vmatprep.subr.mxu0 0.0
    %5475 = vmatpush2.msra.mxu0 0.0
    %5476 = vmatprep.subr.mxu0 0.0
    %5477 = vmatpush2.msra.mxu0 0.0
    %5478 = vmatprep.subr.mxu0 0.0
    %5479 = vmatpush2.msra.mxu0 0.0
    %5480 = vmatprep.subr.mxu0 0.0
    %5481 = vmatpush2.msra.mxu0 0.0
    %5482 = vmatprep.subr.mxu0 0.0
    %5483 = vmatpush2.msra.mxu0 0.0
    %5484 = vmatprep.subr.mxu0 0.0
    %5485 = vmatpush2.msra.mxu0 0.0
    %5486 = vmatprep.subr.mxu0 0.0
    %5487 = vmatpush2.msra.mxu0 0.0
    %5488 = vmatprep.subr.mxu0 0.0
    %5489 = vmatpush2.msra.mxu0 0.0
    %5490 = vmatprep.subr.mxu0 0.0
    %5491 = vmatpush2.msra.mxu0 0.0
    %5492 = vmatprep.subr.mxu0 0.0
    %5493 = vmatpush2.msra.mxu0 0.0
    %5494 = vmatprep.subr.mxu0 0.0
    %5495 = vmatpush2.msra.mxu0 0.0
    %5496 = vmatprep.subr.mxu0 0.0
    %5497 = vmatpush2.msra.mxu0 0.0
    %5498 = vmatprep.subr.mxu0 0.0
    %5499 = vmatpush2.msra.mxu0 0.0
    %5500 = vmatprep.subr.mxu0 0.0
    %5501 = vmatpush2.msra.mxu0 0.0
    %5502 = vmatprep.subr.mxu0 0.0
    %5503 = vmatpush2.msra.mxu0 0.0
    %5504 = vmatprep.subr.mxu0 0.0
    %5505 = vmatpush2.msra.mxu0 0.0
    %5506 = vmatprep.mubr.f32.mxu0 0.0
    %5507 = vmatmul.mubr.f32.gmra.mxu0 %v5369
    %v5508 = vpop.f32.mrf.mxu0
    %v5509 = vadd.f32 0.0, %v5508
    %v5510 = vpop.f32.mrf.mxu0
    %5511 = vdwg.mxu0
    %v5513 = vrot.slane %v5438, 2
    %v5515 = vadd.f32 %v3847, %v5513
    %v5516 = vxor.u32 %v5515, 2147483648
    %v5517 = vmul.f32 %v5516, 1.442695
    %v5518 = vpow.pop %v5517
    %v5519 = vadd.f32 %v5518, 1.0
    %v5520 = vrcp.pop %v5519
    %v5521 = vmul.f32 1.0, %v5520
    %v5523 = vrot.slane %v5440, 2
    %v5525 = vadd.f32 %v3849, %v5523
    %v5526 = vxor.u32 %v5525, 2147483648
    %v5527 = vmul.f32 %v5526, 1.442695
    %v5528 = vpow.pop %v5527
    %v5529 = vadd.f32 %v5528, 1.0
    %v5530 = vrcp.pop %v5529
    %v5531 = vmul.f32 1.0, %v5530
    %v5532 = vadd.f32 %v5509, %v3979
    %v5534 = vrot.slane %v5532, 2
    %v5536 = vmul.f32 %v5521, %v5534
    %v5537 = vadd.f32 %v3923, %v5536
    %v5538 = vtanh.pop %v5537
    %v5540 = vrot.slane %v5538, 2
    %v5542 = vsub.f32 %v5366, %v5540
    %v5544 = vrot.slane %v5542, 6
    %v5546 = vmul.f32 %v5531, %v5544
    %v5547 = vadd.f32 %v5538, %v5546
    %5548 = vst [vmem:[#allocation2 + $0x8] sm:$0xc0] %v5547
    %v5549 = vld [vmem:[#allocation2] sm:$0xff]
    %v5550 = vld [vmem:[#allocation2 + $0x8] sm:$0xff]
    %v5551 = vld [vmem:[#allocation31] sm:$0xff]
    %v5552 = vld [vmem:[#allocation31 + $0x8] sm:$0xff]
    %v5553 = vld [vmem:[#allocation31 + $0x10] sm:$0xff]
    %v5554 = vld [vmem:[#allocation31 + $0x18] sm:$0xff]
    %v5555 = vld [vmem:[#allocation31 + $0x20] sm:$0xff]
    %v5556 = vld [vmem:[#allocation31 + $0x28] sm:$0xff]
    %v5557 = vld [vmem:[#allocation31 + $0x30] sm:$0xff]
    %v5558 = vld [vmem:[#allocation31 + $0x38] sm:$0xff]
    %v5559 = vld [vmem:[#allocation31 + $0x40] sm:$0xff]
    %v5560 = vld [vmem:[#allocation31 + $0x48] sm:$0xff]
    %v5561 = vld [vmem:[#allocation31 + $0x50] sm:$0xff]
    %v5562 = vld [vmem:[#allocation31 + $0x58] sm:$0xff]
    %v5563 = vld [vmem:[#allocation31 + $0x60] sm:$0xff]
    %v5564 = vld [vmem:[#allocation31 + $0x68] sm:$0xff]
    %v5565 = vld [vmem:[#allocation31 + $0x70] sm:$0xff]
    %v5566 = vld [vmem:[#allocation31 + $0x78] sm:$0xff]
    %v5567 = vld [vmem:[#allocation32] sm:$0x1]
    %v5569 = vlaneseq
    %v5570 = vshrl.u32 %v5569, 7
    %v5571 = vsub.s32 0, %v5570
    %v5572 = vrot.slane %v5567, %v5571
    %5574 = vmatprep.subr.mxu0 0.0
    %5575 = vmatpush1.msra.mxu0 %v5566
    %5576 = vmatprep.subr.mxu0 0.0
    %5577 = vmatpush1.msra.mxu0 %v5565
    %5578 = vmatprep.subr.mxu0 0.0
    %5579 = vmatpush1.msra.mxu0 %v5564
    %5580 = vmatprep.subr.mxu0 0.0
    %5581 = vmatpush1.msra.mxu0 %v5563
    %5582 = vmatprep.subr.mxu0 0.0
    %5583 = vmatpush1.msra.mxu0 %v5562
    %5584 = vmatprep.subr.mxu0 0.0
    %5585 = vmatpush1.msra.mxu0 %v5561
    %5586 = vmatprep.subr.mxu0 0.0
    %5587 = vmatpush1.msra.mxu0 %v5560
    %5588 = vmatprep.subr.mxu0 0.0
    %5589 = vmatpush1.msra.mxu0 %v5559
    %5590 = vmatprep.subr.mxu0 0.0
    %5591 = vmatpush1.msra.mxu0 %v5558
    %5592 = vmatprep.subr.mxu0 0.0
    %5593 = vmatpush1.msra.mxu0 %v5557
    %5594 = vmatprep.subr.mxu0 0.0
    %5595 = vmatpush1.msra.mxu0 %v5556
    %5596 = vmatprep.subr.mxu0 0.0
    %5597 = vmatpush1.msra.mxu0 %v5555
    %5598 = vmatprep.subr.mxu0 0.0
    %5599 = vmatpush1.msra.mxu0 %v5554
    %5600 = vmatprep.subr.mxu0 0.0
    %5601 = vmatpush1.msra.mxu0 %v5553
    %5602 = vmatprep.subr.mxu0 0.0
    %5603 = vmatpush1.msra.mxu0 %v5552
    %5604 = vmatprep.subr.mxu0 0.0
    %5605 = vmatpush1.msra.mxu0 %v5551
    %5606 = vmatprep.subr.mxu0 0.0
    %5607 = vmatpush2.msra.mxu0 0.0
    %5608 = vmatprep.subr.mxu0 0.0
    %5609 = vmatpush2.msra.mxu0 0.0
    %5610 = vmatprep.subr.mxu0 0.0
    %5611 = vmatpush2.msra.mxu0 0.0
    %5612 = vmatprep.subr.mxu0 0.0
    %5613 = vmatpush2.msra.mxu0 0.0
    %5614 = vmatprep.subr.mxu0 0.0
    %5615 = vmatpush2.msra.mxu0 0.0
    %5616 = vmatprep.subr.mxu0 0.0
    %5617 = vmatpush2.msra.mxu0 0.0
    %5618 = vmatprep.subr.mxu0 0.0
    %5619 = vmatpush2.msra.mxu0 0.0
    %5620 = vmatprep.subr.mxu0 0.0
    %5621 = vmatpush2.msra.mxu0 0.0
    %5622 = vmatprep.subr.mxu0 0.0
    %5623 = vmatpush2.msra.mxu0 0.0
    %5624 = vmatprep.subr.mxu0 0.0
    %5625 = vmatpush2.msra.mxu0 0.0
    %5626 = vmatprep.subr.mxu0 0.0
    %5627 = vmatpush2.msra.mxu0 0.0
    %5628 = vmatprep.subr.mxu0 0.0
    %5629 = vmatpush2.msra.mxu0 0.0
    %5630 = vmatprep.subr.mxu0 0.0
    %5631 = vmatpush2.msra.mxu0 0.0
    %5632 = vmatprep.subr.mxu0 0.0
    %5633 = vmatpush2.msra.mxu0 0.0
    %5634 = vmatprep.subr.mxu0 0.0
    %5635 = vmatpush2.msra.mxu0 0.0
    %5636 = vmatprep.subr.mxu0 0.0
    %5637 = vmatpush2.msra.mxu0 0.0
    %5638 = vmatprep.mubr.f32.mxu0 0.0
    %5639 = vmatmul.mubr.f32.gmra.mxu0 %v5549
    %v5640 = vpop.f32.mrf.mxu0
    %v5641 = vadd.f32 %v5572, %v5640
    %v5642 = vpop.f32.mrf.mxu0
    %5643 = vmatprep.mubr.f32.mxu0 0.0
    %5644 = vmatmul.mubr.f32.gmra.mxu0 %v5550
    %v5645 = vpop.f32.mrf.mxu0
    %v5646 = vadd.f32 %v5572, %v5645
    %v5647 = vpop.f32.mrf.mxu0
    %5648 = vdwg.mxu0
    %5649 = vst [vmem:[%s57] sm:$0xff] %v5641
    %5650 = vst [vmem:[%s57 + $0x8] sm:$0xff] %v5646
    // Predicated region
    $region194: #{cvae_forward.1} parent=1 // pred_check
      _
    $region195: #{cvae_forward.1} parent=1 // pred_check_branch
      %5652 = sbr.rel (0) target = $region197
    $region196: #{cvae_forward.1} parent=1 // pred_region
      _
    $region197: #{cvae_forward.1} parent=1 // pred_fallthru
      _
    // Predicated region
    $region198: #{cvae_forward.1} parent=1 // pred_check
      _
    $region199: #{cvae_forward.1} parent=1 // pred_check_branch
      %5654 = sbr.rel (0) target = $region201
    $region200: #{cvae_forward.1} parent=1 // pred_region
      _
    $region201: #{cvae_forward.1} parent=1 // pred_fallthru
      _
    // Predicated region
    $region202: #{cvae_forward.1} parent=1 // pred_check
      _
    $region203: #{cvae_forward.1} parent=1 // pred_check_branch
      %5656 = sbr.rel (0) target = $region205
    $region204: #{cvae_forward.1} parent=1 // pred_region
      _
    $region205: #{cvae_forward.1} parent=1 // pred_fallthru
      _
    // Predicated region
    $region206: #{cvae_forward.1} parent=1 // pred_check
      _
    $region207: #{cvae_forward.1} parent=1 // pred_check_branch
      %5658 = sbr.rel (0) target = $region209
    $region208: #{cvae_forward.1} parent=1 // pred_region
      _
    $region209: #{cvae_forward.1} parent=1 // pred_fallthru
      _
    %5659 = vsyncpa [#allocation4], 1
    %5660 = vsyncpa [#allocation6], 1
    %5661 = vsyncpa [#allocation9], 1
    %5662 = vsyncpa [#allocation12], 1
    %5663 = vsyncpa [#allocation15], 1
    %5664 = vsyncpa [#allocation18], 1
    %5665 = vsyncpa [#allocation21], 1
    %5666 = vsyncpa [#allocation24], 1
    %5667 = vsyncpa [#allocation27], 1
    %5668 = vsyncpa [#allocation30], 1
    %5669 = vsyncpa [#allocation33], 1

</llo_original>
